<compile_context>
chip_gen: v5e
topology: v5e:2x2
jax: 0.10.0
libtpu: 0.0.40
codegen_flags: <defaults>
</compile_context>

<pallas_src>
import math
import functools

import numpy as np
import jax
import jax.numpy as jnp
from jax.experimental import pallas as pl
from jax.experimental.pallas import tpu as pltpu

# hyper-parameters: match the PyTorch module defaults
MAX_ANT = 16
NUM_FREQ = 4
SIG_DIM = 4 * 2
HIDDEN = 64
MLP_DIM = 128
NUM_BLOCKS = 4
NUM_EXPERTS = 3
OUT_DIM = 2
GATE_HIDDEN = 64            # GatingMechanism hidden_dim
BN_EPS = 1e-5
LEAK = 0.3

IN_W = 128                  # packed input slab width: angles(64) | signals(8) | 0-pad
H3 = NUM_EXPERTS * HIDDEN   # 192 : lane-stacked expert activations
M3 = NUM_EXPERTS * MLP_DIM  # 384 : lane-stacked expert MLP width

CHAIN_DOT_DTYPE = jnp.bfloat16   # operand dtype for the block-diag chain matmuls

FREQS_NP = (2.0 ** np.arange(NUM_FREQ, dtype=np.float32)) * np.float32(math.pi)

# 64-lane Fourier row: lanes 0:4 -> sin(f*x), lanes 4:8 -> sin(f*x + pi/2) = cos(f*x)
FREQ64_NP = np.zeros((HIDDEN,), np.float32)
FREQ64_NP[:NUM_FREQ] = FREQS_NP
FREQ64_NP[NUM_FREQ:2 * NUM_FREQ] = FREQS_NP
PHASE64_NP = np.zeros((HIDDEN,), np.float32)
PHASE64_NP[NUM_FREQ:2 * NUM_FREQ] = np.float32(math.pi / 2.0)


# ---- shared math helpers ------------------------------------------------------
def _lrelu(x):
    return jnp.maximum(x, LEAK * x)                     # LeakyReLU(0.3)


def _sigmoid_stable(x):
    # numerically stable sigmoid; tanh lands on the (otherwise idle) EUP slot
    return 0.5 * (jnp.tanh(0.5 * x) + 1.0)


# ------------------------- in-kernel sin() feature probe -----------------------
def _probe_inkernel_sin():
    """Feature-detect the Mosaic lowering of sin() so the Fourier trig can run
    on the in-kernel EUP path (falls back to the XLA wrapper otherwise)."""
    def _k(x_ref, o_ref):
        o_ref[...] = jnp.sin(x_ref[...])
    try:
        out = pl.pallas_call(
            _k,
            out_shape=jax.ShapeDtypeStruct((8, 128), jnp.float32),
            in_specs=[pl.BlockSpec(memory_space=pltpu.MemorySpace.VMEM)],
            out_specs=pl.BlockSpec(memory_space=pltpu.MemorySpace.VMEM),
        )(jnp.zeros((8, 128), jnp.float32))
        jax.block_until_ready(out)
        return True
    except Exception:
        return False


# ------------------------------- Pallas kernel --------------------------------
def _make_kernel(B, A, apply_sin):
    BA = B * A
    H, E = HIDDEN, NUM_EXPERTS
    inv_n = np.float32(1.0 / BA)
    inv_a = np.float32(1.0 / A)

    def _f32dot(a, b):
        return jnp.dot(a, b, preferred_element_type=jnp.float32)

    def kernel(inp_ref, w64_ref, w192_ref, bias_ref,
               w1_ref, b1_ref, w2_ref, b2_ref, out_ref):
        inp = inp_ref[...]                                   # [BA, IN_W]

        # ---- Fourier positional embedding (single sin; cos folded as +pi/2) ----
        ang = inp[:, :H]                                     # angles (or sin(angles))
        embed = jnp.sin(ang) if apply_sin else ang
        pos_feat = _f32dot(embed, w64_ref[0:H, :]) + bias_ref[0:1, 0:H]       # [BA, H]

        # ---- signal encoder + GatingMechanism, pre-tiled x3 along lanes --------
        # (se_w / g2_w were tiled host-side, so `fused3` comes out of the matmuls
        #  already stacked for the 3 experts: no in-kernel tiling / concat)
        sig3 = _f32dot(inp, w192_ref[0:IN_W, :]) + bias_ref[4:5, :]           # [BA, 3H]
        gh = jnp.maximum(_f32dot(pos_feat, w64_ref[H:2 * H, :])
                         + bias_ref[1:2, 0:H], 0.0)                           # [BA, H]
        gate3 = _sigmoid_stable(_f32dot(gh, w192_ref[IN_W:IN_W + H, :])
                                + bias_ref[5:6, :])                           # [BA, 3H]
        fused3 = gate3 * sig3                                                 # [BA, 3H]

        # ---- MoE gate (parallel path, off the expert chain) --------------------
        # S [B, BA]: antenna-mean operator; R [BA, B]: batch one-hot (iota-built)
        tok_r = jax.lax.broadcasted_iota(jnp.int32, (BA, B), 0)
        base_r = jax.lax.broadcasted_iota(jnp.int32, (BA, B), 1) * A
        R = jnp.where(jnp.logical_and(tok_r >= base_r, tok_r < base_r + A),
                      1.0, 0.0).astype(jnp.float32)
        tok_s = jax.lax.broadcasted_iota(jnp.int32, (B, BA), 1)
        base_s = jax.lax.broadcasted_iota(jnp.int32, (B, BA), 0) * A
        S = jnp.where(jnp.logical_and(tok_s >= base_s, tok_s < base_s + A),
                      inv_a, 0.0).astype(jnp.float32)

        gate_in3 = _f32dot(S, fused3)                                         # [B, 3H]
        logits = (_f32dot(gate_in3, w64_ref[3 * H:3 * H + H3, :])
                  + bias_ref[3:4, 0:H])[:, :E]                                # [B, E]
        logits = logits - jnp.max(logits, axis=-1, keepdims=True)
        el = jnp.exp(logits)
        gw = el * pl.reciprocal(jnp.sum(el, axis=-1, keepdims=True), approx=True)
        # per-token, per-lane(3H) gate weights through two tiny matmuls
        lane = jax.lax.broadcasted_iota(jnp.int32, (E, H3), 1)
        base_l = jax.lax.broadcasted_iota(jnp.int32, (E, H3), 0) * H
        blk_ones = jnp.where(jnp.logical_and(lane >= base_l, lane < base_l + H),
                             1.0, 0.0).astype(jnp.float32)                    # [E, 3H]
        gw_rep = _f32dot(_f32dot(R, gw), blk_ones)                            # [BA, 3H]

        # ---- fused block-diagonal 3-expert chain: 4 blocks x 2 halves -----------
        ones_row = jnp.full((1, BA), 1.0, dtype=jnp.float32)

        def bn_norm(v):
            # BatchNorm1d (train mode) biased batch moments on the MXU
            # (affine gamma/beta already folded into fc1 host-side).
            sx = _f32dot(ones_row, v)                        # [1, 3H]
            sx2 = _f32dot(ones_row, v * v)                   # [1, 3H]
            mean = sx * inv_n
            var = sx2 * inv_n - mean * mean
            return (v - mean) * jax.lax.rsqrt(var + BN_EPS)

        x = fused3                                           # [BA, 3H]
        for hh in range(2 * NUM_BLOCKS):                     # fully unrolled, 8 halves
            blk = hh // 2
            xn = bn_norm(x).astype(CHAIN_DOT_DTYPE)
            t = _lrelu(jnp.dot(xn, w1_ref[hh],
                               preferred_element_type=jnp.float32)
                       + b1_ref[hh:hh + 1, :])               # [BA, 3M]
            t = _lrelu(jnp.dot(t.astype(CHAIN_DOT_DTYPE), w2_ref[blk],
                               preferred_element_type=jnp.float32)
                       + b2_ref[blk:blk + 1, :])             # [BA, 3H]
            x = x + t

        # ---- output head: gate-weighted expert sum folded into the matmul ------
        # out64 cols 0:OUT_DIM are real, the rest are exact zeros (zero-padded
        # weights / bias); the wrapper slices them off.
        out_ref[...] = (_f32dot(pos_feat, w64_ref[2 * H:3 * H, :])
                        + _f32dot(x * gw_rep, w64_ref[3 * H + H3:3 * H + 2 * H3, :])
                        + bias_ref[2:3, 0:H])

    return kernel


# ------------------------------- wrapper ---------------------------------------
@functools.partial(jax.jit, static_argnames=("max_antennas", "inkernel_sin"))
def model_forward(positions, signals, kp, max_antennas=MAX_ANT, inkernel_sin=False):
    B, cur, _ = positions.shape
    pad = max_antennas - cur
    if pad > 0:
        # learned padding rows (same semantics as zero-pad + overwrite in PyTorch)
        positions = jnp.concatenate(
            [positions, jnp.broadcast_to(kp["pad1"], (B, pad, 1))], axis=1)
        signals = jnp.concatenate(
            [signals, jnp.broadcast_to(kp["pad2"], (B, pad, SIG_DIM))], axis=1)
    A = max_antennas
    BA = B * A

    # Fourier angles on a single 64-lane row (cos folded in as a +pi/2 phase);
    # sin() itself runs inside the kernel when Mosaic supports it.
    ang = (positions.reshape(BA, 1).astype(jnp.float32) * jnp.asarray(FREQ64_NP)
           + jnp.asarray(PHASE64_NP))                                   # [BA, 64]
    if not inkernel_sin:
        ang = jnp.sin(ang)          # fallback: trig stays in the XLA wrapper
    sig2 = signals.reshape(BA, SIG_DIM).astype(jnp.float32)
    inp = jnp.concatenate(
        [ang, sig2, jnp.zeros((BA, IN_W - HIDDEN - SIG_DIM), jnp.float32)], axis=-1)

    args = [inp, kp["w64"], kp["w192"], kp["bias"],
            kp["w1"], kp["b1"], kp["w2"], kp["b2"]]
    out = pl.pallas_call(
        _make_kernel(B, A, apply_sin=inkernel_sin),
        out_shape=jax.ShapeDtypeStruct((BA, HIDDEN), jnp.float32),
        in_specs=[pl.BlockSpec(memory_space=pltpu.MemorySpace.VMEM)] * len(args),
        out_specs=pl.BlockSpec(memory_space=pltpu.MemorySpace.VMEM),
    )(*args)
    return out[:, :OUT_DIM].reshape(B, A, OUT_DIM)[:, :cur, :]


# --------------------- host-side parameter preparation -------------------------
def prepare_params(p):
    """One-time host-side folding/packing:
       * BatchNorm affine folded into fc1 (one fold per norm, per block)
       * per-(expert,block) fc1/fc2 assembled into block-diagonal [3H,3M]/[3M,3H]
         stacks so the three experts run as one residual chain (shipped bf16)
       * small front-end weights / biases packed into three slabs (fewer entry DMAs)
       * signal-encoder / sigmoid-gate weights pre-tiled x3 -> fused features come
         out of the kernel's matmuls already expert-stacked
       * output head split (no concat) with the expert sum folded into vstack([Wm]*3)
    """
    f32 = jnp.float32
    H, E, NB = HIDDEN, NUM_EXPERTS, NUM_BLOCKS

    # ---------- w64: [576, 64] slab of 64-col weights ----------
    pe_w64 = jnp.zeros((H, H), f32).at[:2 * NUM_FREQ, :].set(p["pe_w"])
    out_wp = jnp.zeros((H, H), f32).at[:, :OUT_DIM].set(p["out_w"][:H])
    gn_w3 = jnp.zeros((H3, H), f32).at[:H, :E].set(p["gn_w"])
    wm3 = jnp.zeros((H3, H), f32).at[:, :OUT_DIM].set(jnp.tile(p["out_w"][H:], (E, 1)))
    w64 = jnp.concatenate([pe_w64, p["g1_w"], out_wp, gn_w3, wm3], axis=0)

    # ---------- w192: [192, 192] slab of 3H-col (pre-tiled) weights ----------
    se_w3 = jnp.zeros((IN_W, H3), f32).at[H:H + SIG_DIM, :].set(
        jnp.tile(p["se_w"], (1, E)))
    g2_w3 = jnp.tile(p["g2_w"], (1, E))
    w192 = jnp.concatenate([se_w3, g2_w3], axis=0)

    # ---------- bias slab [8, 192] ----------
    bias = jnp.zeros((8, H3), f32)
    bias = bias.at[0, :H].set(p["pe_b"])
    bias = bias.at[1, :H].set(p["g1_b"])
    bias = bias.at[2, :OUT_DIM].set(p["out_b"])
    bias = bias.at[3, :E].set(p["gn_b"])
    bias = bias.at[4, :].set(jnp.tile(p["se_b"], (E,)))
    bias = bias.at[5, :].set(jnp.tile(p["g2_b"], (E,)))

    # ---------- block-diagonal expert chain ----------
    w1f, b1f = p["fc1_w"], p["fc1_b"]                       # [E*NB, H, MLP], [E*NB, MLP]

    def fold(gamma, beta):
        return (gamma[:, :, None] * w1f,
                jnp.einsum("kh,khm->km", beta, w1f) + b1f)

    fc1a_w, fc1a_b = fold(p["bn1_w"], p["bn1_b"])           # norm1-folded fc1
    fc1b_w, fc1b_b = fold(p["bn2_w"], p["bn2_b"])           # norm2-folded fc1

    def block_diag(mats):
        a, b = mats[0].shape
        out = jnp.zeros((E * a, E * b), f32)
        for e, m in enumerate(mats):
            out = out.at[e * a:(e + 1) * a, e * b:(e + 1) * b].set(m)
        return out

    w1_l, b1_l, w2_l, b2_l = [], [], [], []
    for blk in range(NB):
        idx = [e * NB + blk for e in range(E)]
        for fw, fb in ((fc1a_w, fc1a_b), (fc1b_w, fc1b_b)):  # half 0 / half 1
            w1_l.append(block_diag([fw[i] for i in idx]))
            b1_l.append(jnp.concatenate([fb[i] for i in idx], axis=0))
        w2_l.append(block_diag([p["fc2_w"][i] for i in idx]))
        b2_l.append(jnp.concatenate([p["fc2_b"][i] for i in idx], axis=0))

    return {
        "w64": w64, "w192": w192, "bias": bias,
        "w1": jnp.stack(w1_l).astype(CHAIN_DOT_DTYPE),       # [8, 3H, 3M]
        "b1": jnp.stack(b1_l).astype(f32),                   # [8, 3M]
        "w2": jnp.stack(w2_l).astype(CHAIN_DOT_DTYPE),       # [4, 3M, 3H]
        "b2": jnp.stack(b2_l).astype(f32),                   # [4, 3H]
        "pad1": p["pad1"], "pad2": p["pad2"],
    }


# ------------------------------- pure-JAX reference ----------------------------
def _batchnorm_ref(x, w, b):
    # nn.BatchNorm1d (train mode): biased batch stats over (batch, patches), two-pass
    m = jnp.mean(x, axis=0, keepdims=True)
    v = jnp.mean(jnp.square(x - m), axis=0, keepdims=True)
    return (x - m) * jax.lax.rsqrt(v + BN_EPS) * w + b


def _linear_ref(x, w, b):
    return jnp.dot(x, w, preferred_element_type=jnp.float32) + b


def _mixer_block_ref(x, w1, b1, w2, b2, bn1w, bn1b, bn2w, bn2b):
    res = x
    h = _batchnorm_ref(x, bn1w, bn1b)
    h = _lrelu(_linear_ref(h, w1, b1))
    h = _lrelu(_linear_ref(h, w2, b2))
    x = h + res
    res = x
    h = _batchnorm_ref(x, bn2w, bn2b)
    h = _lrelu(_linear_ref(h, w1, b1))
    h = _lrelu(_linear_ref(h, w2, b2))
    return h + res


def ref_forward(positions, signals, p, max_antennas=MAX_ANT):
    B, cur, _ = positions.shape
    pad = max_antennas - cur
    if pad > 0:
        positions = jnp.concatenate(
            [positions, jnp.broadcast_to(p["pad1"], (B, pad, 1))], axis=1)
        signals = jnp.concatenate(
            [signals, jnp.broadcast_to(p["pad2"], (B, pad, SIG_DIM))], axis=1)
    A = max_antennas
    freqs = jnp.asarray(FREQS_NP)[None, :]
    angles = positions.reshape(B * A, 1) * freqs
    embed = jnp.concatenate([jnp.sin(angles), jnp.cos(angles)], axis=-1)
    pos_feat = _linear_ref(embed, p["pe_w"], p["pe_b"])
    sig_feat = _linear_ref(signals.reshape(B * A, SIG_DIM), p["se_w"], p["se_b"])
    h = jnp.maximum(_linear_ref(pos_feat, p["g1_w"], p["g1_b"]), 0.0)
    fused = jax.nn.sigmoid(_linear_ref(h, p["g2_w"], p["g2_b"])) * sig_feat
    gate_in = jnp.mean(fused.reshape(B, A, HIDDEN), axis=1)
    gw = jax.nn.softmax(_linear_ref(gate_in, p["gn_w"], p["gn_b"]), axis=-1)
    moe = jnp.zeros((B, A, HIDDEN), jnp.float32)
    for e in range(NUM_EXPERTS):
        x = fused
        for blk in range(NUM_BLOCKS):
            i = e * NUM_BLOCKS + blk
            x = _mixer_block_ref(x, p["fc1_w"][i], p["fc1_b"][i],
                                 p["fc2_w"][i], p["fc2_b"][i],
                                 p["bn1_w"][i], p["bn1_b"][i],
                                 p["bn2_w"][i], p["bn2_b"][i])
        moe = moe + x.reshape(B, A, HIDDEN) * gw[:, e:e + 1][:, None, :]
    combined = jnp.concatenate([pos_feat.reshape(B, A, HIDDEN), moe], axis=-1)
    out = _linear_ref(combined.reshape(B * A, 2 * HIDDEN), p["out_w"], p["out_b"])
    return out.reshape(B, A, OUT_DIM)[:, :cur, :]


# ------------------------------- parameter init --------------------------------
def init_params(key):
    n_wb = NUM_EXPERTS * NUM_BLOCKS
    keys = jax.random.split(key, 18)

    def w(k, shape, scale=0.1):
        return (scale * jax.random.normal(k, shape)).astype(jnp.float32)

    return {
        "pe_w": w(keys[0], (2 * NUM_FREQ, HIDDEN)),
        "pe_b": w(keys[1], (HIDDEN,)),
        "se_w": w(keys[2], (SIG_DIM, HIDDEN)),
        "se_b": w(keys[3], (HIDDEN,)),
        "g1_w": w(keys[4], (HIDDEN, GATE_HIDDEN)),
        "g1_b": w(keys[5], (GATE_HIDDEN,)),
        "g2_w": w(keys[6], (GATE_HIDDEN, HIDDEN)),
        "g2_b": w(keys[7], (HIDDEN,)),
        "fc1_w": w(keys[8], (n_wb, HIDDEN, MLP_DIM)),
        "fc1_b": w(keys[9], (n_wb, MLP_DIM)),
        "fc2_w": w(keys[10], (n_wb, MLP_DIM, HIDDEN)),
        "fc2_b": w(keys[11], (n_wb, HIDDEN)),
        "bn1_w": jnp.ones((n_wb, HIDDEN), jnp.float32),   # BatchNorm affine init (1, 0)
        "bn1_b": jnp.zeros((n_wb, HIDDEN), jnp.float32),
        "bn2_w": jnp.ones((n_wb, HIDDEN), jnp.float32),
        "bn2_b": jnp.zeros((n_wb, HIDDEN), jnp.float32),
        "gn_w": w(keys[12], (HIDDEN, NUM_EXPERTS)),
        "gn_b": w(keys[13], (NUM_EXPERTS,)),
        "out_w": w(keys[14], (2 * HIDDEN, OUT_DIM)),
        "out_b": w(keys[15], (OUT_DIM,)),
        "pad1": w(keys[16], (1, 1, 1), scale=1.0),
        "pad2": w(keys[17], (1, 1, SIG_DIM), scale=1.0),
    }


if __name__ == "__main__":
    root = jax.random.PRNGKey(0)
    kpar, kpos, ksig = jax.random.split(root, 3)
    raw_params = init_params(kpar)
    kparams = prepare_params(raw_params)          # one-time host-side folding/packing

    use_inkernel_sin = _probe_inkernel_sin()      # resolves the sin() TODO safely

    B = 2
    cur_antennas = 12          # < MAX_ANT to exercise the learned-padding path
    positions = jax.random.uniform(kpos, (B, cur_antennas, 1), dtype=jnp.float32)
    signals = jax.random.normal(ksig, (B, cur_antennas, SIG_DIM), dtype=jnp.float32)

    out = model_forward(positions, signals, kparams, inkernel_sin=use_inkernel_sin)
    out = jax.block_until_ready(out)
    assert out.shape == (B, cur_antennas, OUT_DIM)
    assert out.dtype == jnp.float32

    ref = jax.block_until_ready(ref_forward(positions, signals, raw_params))
    # bf16 MXU operands in the fused expert chain (per perf guidance) shift the
    # numerics slightly vs the f32 reference; BN stats / gates / head stay f32.
    np.testing.assert_allclose(np.asarray(out), np.asarray(ref), rtol=3e-2, atol=3e-2)

    print("KERNEL_OK")
</pallas_src>

<mosaic_0001>
module attributes {stable_mosaic.version = 11 : i64} {
  func.func @_k(%arg0: memref<8x128xf32, #tpu.memory_space<vmem>>, %arg1: memref<8x128xf32, #tpu.memory_space<vmem>>) attributes {dimension_semantics = [], scalar_prefetch = 0 : i64, scratch_operands = 0 : i64, tpu.core_type = #tpu.core_type<tc>} {
    %c0 = arith.constant 0 : index
    %c0_0 = arith.constant 0 : index
    %0 = vector.load %arg0[%c0, %c0_0] : memref<8x128xf32, #tpu.memory_space<vmem>>, vector<8x128xf32>
    %1 = math.sin %0 : vector<8x128xf32>
    %c0_1 = arith.constant 0 : index
    %c0_2 = arith.constant 0 : index
    %2 = vector.load %arg1[%c0_1, %c0_2] : memref<8x128xf32, #tpu.memory_space<vmem>>, vector<8x128xf32>
    tpu.vector_store %arg1[%c0_1, %c0_2], %1 {strides = array<i32>} : memref<8x128xf32, #tpu.memory_space<vmem>>, vector<8x128xf32>,
    return
  }
}

module attributes {stable_mosaic.version = 11 : i64} {
  func.func @kernel(%arg0: memref<32x128xf32, #tpu.memory_space<vmem>>, %arg1: memref<576x64xf32, #tpu.memory_space<vmem>>, %arg2: memref<192x192xf32, #tpu.memory_space<vmem>>, %arg3: memref<8x192xf32, #tpu.memory_space<vmem>>, %arg4: memref<8x192x384xbf16, #tpu.memory_space<vmem>>, %arg5: memref<8x384xf32, #tpu.memory_space<vmem>>, %arg6: memref<4x384x192xbf16, #tpu.memory_space<vmem>>, %arg7: memref<4x192xf32, #tpu.memory_space<vmem>>, %arg8: memref<32x64xf32, #tpu.memory_space<vmem>>) attributes {dimension_semantics = [], scalar_prefetch = 0 : i64, scratch_operands = 0 : i64, tpu.core_type = #tpu.core_type<tc>} {
    %c0 = arith.constant 0 : index
    %c0_0 = arith.constant 0 : index
    %0 = vector.load %arg0[%c0, %c0_0] : memref<32x128xf32, #tpu.memory_space<vmem>>, vector<32x128xf32>
    %1 = vector.extract_strided_slice %0 {offsets = [0, 0], sizes = [32, 64], strides = [1, 1]} : vector<32x128xf32> to vector<32x64xf32>
    %c0_1 = arith.constant 0 : index
    %c0_2 = arith.constant 0 : index
    %2 = vector.load %arg1[%c0_1, %c0_2] : memref<576x64xf32, #tpu.memory_space<vmem>>, vector<64x64xf32>
    %cst = arith.constant dense<0.000000e+00> : vector<32x64xf32>
    %3 = tpu.matmul %1, %2, %cst {dimension_numbers = #tpu.dot_dimension_numbers<[1], [0], [0], [1], [0, 0, 1, 1], [], []>} : vector<32x64xf32>, vector<64x64xf32>, vector<32x64xf32> -> vector<32x64xf32>
    %c0_3 = arith.constant 0 : index
    %c0_4 = arith.constant 0 : index
    %4 = vector.load %arg3[%c0_3, %c0_4] : memref<8x192xf32, #tpu.memory_space<vmem>>, vector<1x64xf32>
    %5 = vector.broadcast %4 : vector<1x64xf32> to vector<32x64xf32>
    %6 = arith.addf %3, %5 : vector<32x64xf32>
    %c0_5 = arith.constant 0 : index
    %c0_6 = arith.constant 0 : index
    %7 = vector.load %arg2[%c0_5, %c0_6] : memref<192x192xf32, #tpu.memory_space<vmem>>, vector<128x192xf32>
    %cst_7 = arith.constant dense<0.000000e+00> : vector<32x192xf32>
    %8 = tpu.matmul %0, %7, %cst_7 {dimension_numbers = #tpu.dot_dimension_numbers<[1], [0], [0], [1], [0, 0, 1, 1], [], []>} : vector<32x128xf32>, vector<128x192xf32>, vector<32x192xf32> -> vector<32x192xf32>
    %c4 = arith.constant 4 : index
    %c0_8 = arith.constant 0 : index
    %9 = vector.load %arg3[%c4, %c0_8] : memref<8x192xf32, #tpu.memory_space<vmem>>, vector<1x192xf32>
    %10 = vector.broadcast %9 : vector<1x192xf32> to vector<32x192xf32>
    %11 = arith.addf %8, %10 : vector<32x192xf32>
    %c64 = arith.constant 64 : index
    %c0_9 = arith.constant 0 : index
    %12 = vector.load %arg1[%c64, %c0_9] : memref<576x64xf32, #tpu.memory_space<vmem>>, vector<64x64xf32>
    %cst_10 = arith.constant dense<0.000000e+00> : vector<32x64xf32>
    %13 = tpu.matmul %6, %12, %cst_10 {dimension_numbers = #tpu.dot_dimension_numbers<[1], [0], [0], [1], [0, 0, 1, 1], [], []>} : vector<32x64xf32>, vector<64x64xf32>, vector<32x64xf32> -> vector<32x64xf32>
    %c1 = arith.constant 1 : index
    %c0_11 = arith.constant 0 : index
    %14 = vector.load %arg3[%c1, %c0_11] : memref<8x192xf32, #tpu.memory_space<vmem>>, vector<1x64xf32>
    %15 = vector.broadcast %14 : vector<1x64xf32> to vector<32x64xf32>
    %16 = arith.addf %13, %15 : vector<32x64xf32>
    %cst_12 = arith.constant 0.000000e+00 : f32
    %17 = vector.broadcast %cst_12 : f32 to vector<32x64xf32>
    %18 = arith.maximumf %16, %17 : vector<32x64xf32>
    %c128 = arith.constant 128 : index
    %c0_13 = arith.constant 0 : index
    %19 = vector.load %arg2[%c128, %c0_13] : memref<192x192xf32, #tpu.memory_space<vmem>>, vector<64x192xf32>
    %cst_14 = arith.constant dense<0.000000e+00> : vector<32x192xf32>
    %20 = tpu.matmul %18, %19, %cst_14 {dimension_numbers = #tpu.dot_dimension_numbers<[1], [0], [0], [1], [0, 0, 1, 1], [], []>} : vector<32x64xf32>, vector<64x192xf32>, vector<32x192xf32> -> vector<32x192xf32>
    %c5 = arith.constant 5 : index
    %c0_15 = arith.constant 0 : index
    %21 = vector.load %arg3[%c5, %c0_15] : memref<8x192xf32, #tpu.memory_space<vmem>>, vector<1x192xf32>
    %22 = vector.broadcast %21 : vector<1x192xf32> to vector<32x192xf32>
    %23 = arith.addf %20, %22 : vector<32x192xf32>
    %cst_16 = arith.constant 5.000000e-01 : f32
    %24 = vector.broadcast %cst_16 : f32 to vector<32x192xf32>
    %25 = arith.mulf %24, %23 : vector<32x192xf32>
    %26 = math.tanh %25 : vector<32x192xf32>
    %cst_17 = arith.constant 1.000000e+00 : f32
    %27 = vector.broadcast %cst_17 : f32 to vector<32x192xf32>
    %28 = arith.addf %26, %27 : vector<32x192xf32>
    %cst_18 = arith.constant 5.000000e-01 : f32
    %29 = vector.broadcast %cst_18 : f32 to vector<32x192xf32>
    %30 = arith.mulf %29, %28 : vector<32x192xf32>
    %31 = arith.mulf %30, %11 : vector<32x192xf32>
    %32 = tpu.iota {dimensions = array<i32: 0>} : vector<32x2xi32>
    %33 = tpu.iota {dimensions = array<i32: 1>} : vector<32x2xi32>
    %c16_i32 = arith.constant 16 : i32
    %34 = vector.broadcast %c16_i32 : i32 to vector<32x2xi32>
    %35 = arith.muli %33, %34 : vector<32x2xi32>
    %36 = arith.cmpi sge, %32, %35 : vector<32x2xi32>
    %c16_i32_19 = arith.constant 16 : i32
    %37 = vector.broadcast %c16_i32_19 : i32 to vector<32x2xi32>
    %38 = arith.addi %35, %37 : vector<32x2xi32>
    %39 = arith.cmpi slt, %32, %38 : vector<32x2xi32>
    %40 = arith.andi %36, %39 : vector<32x2xi1>
    %cst_20 = arith.constant 1.000000e+00 : f32
    %cst_21 = arith.constant 0.000000e+00 : f32
    %41 = vector.broadcast %cst_20 : f32 to vector<32x2xf32>
    %42 = vector.broadcast %cst_21 : f32 to vector<32x2xf32>
    %43 = arith.select %40, %41, %42 : vector<32x2xi1>, vector<32x2xf32>
    %44 = tpu.iota {dimensions = array<i32: 1>} : vector<2x32xi32>
    %45 = tpu.iota {dimensions = array<i32: 0>} : vector<2x32xi32>
    %c16_i32_22 = arith.constant 16 : i32
    %46 = vector.broadcast %c16_i32_22 : i32 to vector<2x32xi32>
    %47 = arith.muli %45, %46 : vector<2x32xi32>
    %48 = arith.cmpi sge, %44, %47 : vector<2x32xi32>
    %c16_i32_23 = arith.constant 16 : i32
    %49 = vector.broadcast %c16_i32_23 : i32 to vector<2x32xi32>
    %50 = arith.addi %47, %49 : vector<2x32xi32>
    %51 = arith.cmpi slt, %44, %50 : vector<2x32xi32>
    %52 = arith.andi %48, %51 : vector<2x32xi1>
    %cst_24 = arith.constant 6.250000e-02 : f32
    %cst_25 = arith.constant 0.000000e+00 : f32
    %53 = vector.broadcast %cst_24 : f32 to vector<2x32xf32>
    %54 = vector.broadcast %cst_25 : f32 to vector<2x32xf32>
    %55 = arith.select %52, %53, %54 : vector<2x32xi1>, vector<2x32xf32>
    %cst_26 = arith.constant dense<0.000000e+00> : vector<2x192xf32>
    %56 = tpu.matmul %55, %31, %cst_26 {dimension_numbers = #tpu.dot_dimension_numbers<[1], [0], [0], [1], [0, 0, 1, 1], [], []>} : vector<2x32xf32>, vector<32x192xf32>, vector<2x192xf32> -> vector<2x192xf32>
    %c192 = arith.constant 192 : index
    %c0_27 = arith.constant 0 : index
    %57 = vector.load %arg1[%c192, %c0_27] : memref<576x64xf32, #tpu.memory_space<vmem>>, vector<192x64xf32>
    %cst_28 = arith.constant dense<0.000000e+00> : vector<2x64xf32>
    %58 = tpu.matmul %56, %57, %cst_28 {dimension_numbers = #tpu.dot_dimension_numbers<[1], [0], [0], [1], [0, 0, 1, 1], [], []>} : vector<2x192xf32>, vector<192x64xf32>, vector<2x64xf32> -> vector<2x64xf32>
    %c3 = arith.constant 3 : index
    %c0_29 = arith.constant 0 : index
    %59 = vector.load %arg3[%c3, %c0_29] : memref<8x192xf32, #tpu.memory_space<vmem>>, vector<1x64xf32>
    %60 = vector.broadcast %59 : vector<1x64xf32> to vector<2x64xf32>
    %61 = arith.addf %58, %60 : vector<2x64xf32>
    %62 = vector.extract_strided_slice %61 {offsets = [0, 0], sizes = [2, 3], strides = [1, 1]} : vector<2x64xf32> to vector<2x3xf32>
    %cst_30 = arith.constant dense<0xFF800000> : vector<2xf32>
    %63 = vector.multi_reduction <maximumf>, %62, %cst_30 [1] : vector<2x3xf32> to vector<2xf32>
    %64 = vector.shape_cast %63 : vector<2xf32> to vector<2x1xf32>
    %65 = vector.broadcast %64 : vector<2x1xf32> to vector<2x3xf32>
    %66 = arith.subf %62, %65 : vector<2x3xf32>
    %67 = math.exp %66 : vector<2x3xf32>
    %cst_31 = arith.constant dense<0.000000e+00> : vector<2xf32>
    %68 = vector.multi_reduction <add>, %67, %cst_31 [1] : vector<2x3xf32> to vector<2xf32>
    %69 = vector.shape_cast %68 : vector<2xf32> to vector<2x1xf32>
    %70 = tpu.reciprocal %69 {approx = true} : vector<2x1xf32> -> vector<2x1xf32>
    %71 = vector.broadcast %70 : vector<2x1xf32> to vector<2x3xf32>
    %72 = arith.mulf %67, %71 : vector<2x3xf32>
    %73 = tpu.iota {dimensions = array<i32: 1>} : vector<3x192xi32>
    %74 = tpu.iota {dimensions = array<i32: 0>} : vector<3x192xi32>
    %c64_i32 = arith.constant 64 : i32
    %75 = vector.broadcast %c64_i32 : i32 to vector<3x192xi32>
    %76 = arith.muli %74, %75 : vector<3x192xi32>
    %77 = arith.cmpi sge, %73, %76 : vector<3x192xi32>
    %c64_i32_32 = arith.constant 64 : i32
    %78 = vector.broadcast %c64_i32_32 : i32 to vector<3x192xi32>
    %79 = arith.addi %76, %78 : vector<3x192xi32>
    %80 = arith.cmpi slt, %73, %79 : vector<3x192xi32>
    %81 = arith.andi %77, %80 : vector<3x192xi1>
    %cst_33 = arith.constant 1.000000e+00 : f32
    %cst_34 = arith.constant 0.000000e+00 : f32
    %82 = vector.broadcast %cst_33 : f32 to vector<3x192xf32>
    %83 = vector.broadcast %cst_34 : f32 to vector<3x192xf32>
    %84 = arith.select %81, %82, %83 : vector<3x192xi1>, vector<3x192xf32>
    %cst_35 = arith.constant dense<0.000000e+00> : vector<32x3xf32>
    %85 = tpu.matmul %43, %72, %cst_35 {dimension_numbers = #tpu.dot_dimension_numbers<[1], [0], [0], [1], [0, 0, 1, 1], [], []>} : vector<32x2xf32>, vector<2x3xf32>, vector<32x3xf32> -> vector<32x3xf32>
    %cst_36 = arith.constant dense<0.000000e+00> : vector<32x192xf32>
    %86 = tpu.matmul %85, %84, %cst_36 {dimension_numbers = #tpu.dot_dimension_numbers<[1], [0], [0], [1], [0, 0, 1, 1], [], []>} : vector<32x3xf32>, vector<3x192xf32>, vector<32x192xf32> -> vector<32x192xf32>
    %cst_37 = arith.constant 1.000000e+00 : f32
    %87 = vector.broadcast %cst_37 : f32 to vector<1x32xf32>
    %cst_38 = arith.constant dense<0.000000e+00> : vector<1x192xf32>
    %88 = tpu.matmul %87, %31, %cst_38 {dimension_numbers = #tpu.dot_dimension_numbers<[1], [0], [0], [1], [0, 0, 1, 1], [], []>} : vector<1x32xf32>, vector<32x192xf32>, vector<1x192xf32> -> vector<1x192xf32>
    %89 = arith.mulf %31, %31 : vector<32x192xf32>
    %cst_39 = arith.constant dense<0.000000e+00> : vector<1x192xf32>
    %90 = tpu.matmul %87, %89, %cst_39 {dimension_numbers = #tpu.dot_dimension_numbers<[1], [0], [0], [1], [0, 0, 1, 1], [], []>} : vector<1x32xf32>, vector<32x192xf32>, vector<1x192xf32> -> vector<1x192xf32>
    %cst_40 = arith.constant 3.125000e-02 : f32
    %91 = vector.broadcast %cst_40 : f32 to vector<1x192xf32>
    %92 = arith.mulf %88, %91 : vector<1x192xf32>
    %cst_41 = arith.constant 3.125000e-02 : f32
    %93 = vector.broadcast %cst_41 : f32 to vector<1x192xf32>
    %94 = arith.mulf %90, %93 : vector<1x192xf32>
    %95 = arith.mulf %92, %92 : vector<1x192xf32>
    %96 = arith.subf %94, %95 : vector<1x192xf32>
    %97 = vector.broadcast %92 : vector<1x192xf32> to vector<32x192xf32>
    %98 = arith.subf %31, %97 : vector<32x192xf32>
    %cst_42 = arith.constant 9.99999974E-6 : f32
    %99 = vector.broadcast %cst_42 : f32 to vector<1x192xf32>
    %100 = arith.addf %96, %99 : vector<1x192xf32>
    %101 = math.rsqrt %100 : vector<1x192xf32>
    %102 = vector.broadcast %101 : vector<1x192xf32> to vector<32x192xf32>
    %103 = arith.mulf %98, %102 : vector<32x192xf32>
    %104 = arith.truncf %103 : vector<32x192xf32> to vector<32x192xbf16>
    %c0_43 = arith.constant 0 : index
    %c0_44 = arith.constant 0 : index
    %c0_45 = arith.constant 0 : index
    %105 = vector.load %arg4[%c0_43, %c0_44, %c0_45] : memref<8x192x384xbf16, #tpu.memory_space<vmem>>, vector<1x192x384xbf16>
    %106 = vector.shape_cast %105 : vector<1x192x384xbf16> to vector<192x384xbf16>
    %cst_46 = arith.constant dense<0.000000e+00> : vector<32x384xf32>
    %107 = tpu.matmul %104, %106, %cst_46 {dimension_numbers = #tpu.dot_dimension_numbers<[1], [0], [0], [1], [0, 0, 1, 1], [], []>} : vector<32x192xbf16>, vector<192x384xbf16>, vector<32x384xf32> -> vector<32x384xf32>
    %c0_47 = arith.constant 0 : index
    %c0_48 = arith.constant 0 : index
    %108 = vector.load %arg5[%c0_47, %c0_48] : memref<8x384xf32, #tpu.memory_space<vmem>>, vector<1x384xf32>
    %109 = vector.broadcast %108 : vector<1x384xf32> to vector<32x384xf32>
    %110 = arith.addf %107, %109 : vector<32x384xf32>
    %cst_49 = arith.constant 3.000000e-01 : f32
    %111 = vector.broadcast %cst_49 : f32 to vector<32x384xf32>
    %112 = arith.mulf %111, %110 : vector<32x384xf32>
    %113 = arith.maximumf %110, %112 : vector<32x384xf32>
    %114 = arith.truncf %113 : vector<32x384xf32> to vector<32x384xbf16>
    %c0_50 = arith.constant 0 : index
    %c0_51 = arith.constant 0 : index
    %c0_52 = arith.constant 0 : index
    %115 = vector.load %arg6[%c0_50, %c0_51, %c0_52] : memref<4x384x192xbf16, #tpu.memory_space<vmem>>, vector<1x384x192xbf16>
    %116 = vector.shape_cast %115 : vector<1x384x192xbf16> to vector<384x192xbf16>
    %cst_53 = arith.constant dense<0.000000e+00> : vector<32x192xf32>
    %117 = tpu.matmul %114, %116, %cst_53 {dimension_numbers = #tpu.dot_dimension_numbers<[1], [0], [0], [1], [0, 0, 1, 1], [], []>} : vector<32x384xbf16>, vector<384x192xbf16>, vector<32x192xf32> -> vector<32x192xf32>
    %c0_54 = arith.constant 0 : index
    %c0_55 = arith.constant 0 : index
    %118 = vector.load %arg7[%c0_54, %c0_55] : memref<4x192xf32, #tpu.memory_space<vmem>>, vector<1x192xf32>
    %119 = vector.broadcast %118 : vector<1x192xf32> to vector<32x192xf32>
    %120 = arith.addf %117, %119 : vector<32x192xf32>
    %cst_56 = arith.constant 3.000000e-01 : f32
    %121 = vector.broadcast %cst_56 : f32 to vector<32x192xf32>
    %122 = arith.mulf %121, %120 : vector<32x192xf32>
    %123 = arith.maximumf %120, %122 : vector<32x192xf32>
    %124 = arith.addf %31, %123 : vector<32x192xf32>
    %cst_57 = arith.constant dense<0.000000e+00> : vector<1x192xf32>
    %125 = tpu.matmul %87, %124, %cst_57 {dimension_numbers = #tpu.dot_dimension_numbers<[1], [0], [0], [1], [0, 0, 1, 1], [], []>} : vector<1x32xf32>, vector<32x192xf32>, vector<1x192xf32> -> vector<1x192xf32>
    %126 = arith.mulf %124, %124 : vector<32x192xf32>
    %cst_58 = arith.constant dense<0.000000e+00> : vector<1x192xf32>
    %127 = tpu.matmul %87, %126, %cst_58 {dimension_numbers = #tpu.dot_dimension_numbers<[1], [0], [0], [1], [0, 0, 1, 1], [], []>} : vector<1x32xf32>, vector<32x192xf32>, vector<1x192xf32> -> vector<1x192xf32>
    %cst_59 = arith.constant 3.125000e-02 : f32
    %128 = vector.broadcast %cst_59 : f32 to vector<1x192xf32>
    %129 = arith.mulf %125, %128 : vector<1x192xf32>
    %cst_60 = arith.constant 3.125000e-02 : f32
    %130 = vector.broadcast %cst_60 : f32 to vector<1x192xf32>
    %131 = arith.mulf %127, %130 : vector<1x192xf32>
    %132 = arith.mulf %129, %129 : vector<1x192xf32>
    %133 = arith.subf %131, %132 : vector<1x192xf32>
    %134 = vector.broadcast %129 : vector<1x192xf32> to vector<32x192xf32>
    %135 = arith.subf %124, %134 : vector<32x192xf32>
    %cst_61 = arith.constant 9.99999974E-6 : f32
    %136 = vector.broadcast %cst_61 : f32 to vector<1x192xf32>
    %137 = arith.addf %133, %136 : vector<1x192xf32>
    %138 = math.rsqrt %137 : vector<1x192xf32>
    %139 = vector.broadcast %138 : vector<1x192xf32> to vector<32x192xf32>
    %140 = arith.mulf %135, %139 : vector<32x192xf32>
    %141 = arith.truncf %140 : vector<32x192xf32> to vector<32x192xbf16>
    %c1_62 = arith.constant 1 : index
    %c0_63 = arith.constant 0 : index
    %c0_64 = arith.constant 0 : index
    %142 = vector.load %arg4[%c1_62, %c0_63, %c0_64] : memref<8x192x384xbf16, #tpu.memory_space<vmem>>, vector<1x192x384xbf16>
    %143 = vector.shape_cast %142 : vector<1x192x384xbf16> to vector<192x384xbf16>
    %cst_65 = arith.constant dense<0.000000e+00> : vector<32x384xf32>
    %144 = tpu.matmul %141, %143, %cst_65 {dimension_numbers = #tpu.dot_dimension_numbers<[1], [0], [0], [1], [0, 0, 1, 1], [], []>} : vector<32x192xbf16>, vector<192x384xbf16>, vector<32x384xf32> -> vector<32x384xf32>
    %c1_66 = arith.constant 1 : index
    %c0_67 = arith.constant 0 : index
    %145 = vector.load %arg5[%c1_66, %c0_67] : memref<8x384xf32, #tpu.memory_space<vmem>>, vector<1x384xf32>
    %146 = vector.broadcast %145 : vector<1x384xf32> to vector<32x384xf32>
    %147 = arith.addf %144, %146 : vector<32x384xf32>
    %cst_68 = arith.constant 3.000000e-01 : f32
    %148 = vector.broadcast %cst_68 : f32 to vector<32x384xf32>
    %149 = arith.mulf %148, %147 : vector<32x384xf32>
    %150 = arith.maximumf %147, %149 : vector<32x384xf32>
    %151 = arith.truncf %150 : vector<32x384xf32> to vector<32x384xbf16>
    %c0_69 = arith.constant 0 : index
    %c0_70 = arith.constant 0 : index
    %c0_71 = arith.constant 0 : index
    %152 = vector.load %arg6[%c0_69, %c0_70, %c0_71] : memref<4x384x192xbf16, #tpu.memory_space<vmem>>, vector<1x384x192xbf16>
    %153 = vector.shape_cast %152 : vector<1x384x192xbf16> to vector<384x192xbf16>
    %cst_72 = arith.constant dense<0.000000e+00> : vector<32x192xf32>
    %154 = tpu.matmul %151, %153, %cst_72 {dimension_numbers = #tpu.dot_dimension_numbers<[1], [0], [0], [1], [0, 0, 1, 1], [], []>} : vector<32x384xbf16>, vector<384x192xbf16>, vector<32x192xf32> -> vector<32x192xf32>
    %c0_73 = arith.constant 0 : index
    %c0_74 = arith.constant 0 : index
    %155 = vector.load %arg7[%c0_73, %c0_74] : memref<4x192xf32, #tpu.memory_space<vmem>>, vector<1x192xf32>
    %156 = vector.broadcast %155 : vector<1x192xf32> to vector<32x192xf32>
    %157 = arith.addf %154, %156 : vector<32x192xf32>
    %cst_75 = arith.constant 3.000000e-01 : f32
    %158 = vector.broadcast %cst_75 : f32 to vector<32x192xf32>
    %159 = arith.mulf %158, %157 : vector<32x192xf32>
    %160 = arith.maximumf %157, %159 : vector<32x192xf32>
    %161 = arith.addf %124, %160 : vector<32x192xf32>
    %cst_76 = arith.constant dense<0.000000e+00> : vector<1x192xf32>
    %162 = tpu.matmul %87, %161, %cst_76 {dimension_numbers = #tpu.dot_dimension_numbers<[1], [0], [0], [1], [0, 0, 1, 1], [], []>} : vector<1x32xf32>, vector<32x192xf32>, vector<1x192xf32> -> vector<1x192xf32>
    %163 = arith.mulf %161, %161 : vector<32x192xf32>
    %cst_77 = arith.constant dense<0.000000e+00> : vector<1x192xf32>
    %164 = tpu.matmul %87, %163, %cst_77 {dimension_numbers = #tpu.dot_dimension_numbers<[1], [0], [0], [1], [0, 0, 1, 1], [], []>} : vector<1x32xf32>, vector<32x192xf32>, vector<1x192xf32> -> vector<1x192xf32>
    %cst_78 = arith.constant 3.125000e-02 : f32
    %165 = vector.broadcast %cst_78 : f32 to vector<1x192xf32>
    %166 = arith.mulf %162, %165 : vector<1x192xf32>
    %cst_79 = arith.constant 3.125000e-02 : f32
    %167 = vector.broadcast %cst_79 : f32 to vector<1x192xf32>
    %168 = arith.mulf %164, %167 : vector<1x192xf32>
    %169 = arith.mulf %166, %166 : vector<1x192xf32>
    %170 = arith.subf %168, %169 : vector<1x192xf32>
    %171 = vector.broadcast %166 : vector<1x192xf32> to vector<32x192xf32>
    %172 = arith.subf %161, %171 : vector<32x192xf32>
    %cst_80 = arith.constant 9.99999974E-6 : f32
    %173 = vector.broadcast %cst_80 : f32 to vector<1x192xf32>
    %174 = arith.addf %170, %173 : vector<1x192xf32>
    %175 = math.rsqrt %174 : vector<1x192xf32>
    %176 = vector.broadcast %175 : vector<1x192xf32> to vector<32x192xf32>
    %177 = arith.mulf %172, %176 : vector<32x192xf32>
    %178 = arith.truncf %177 : vector<32x192xf32> to vector<32x192xbf16>
    %c2 = arith.constant 2 : index
    %c0_81 = arith.constant 0 : index
    %c0_82 = arith.constant 0 : index
    %179 = vector.load %arg4[%c2, %c0_81, %c0_82] : memref<8x192x384xbf16, #tpu.memory_space<vmem>>, vector<1x192x384xbf16>
    %180 = vector.shape_cast %179 : vector<1x192x384xbf16> to vector<192x384xbf16>
    %cst_83 = arith.constant dense<0.000000e+00> : vector<32x384xf32>
    %181 = tpu.matmul %178, %180, %cst_83 {dimension_numbers = #tpu.dot_dimension_numbers<[1], [0], [0], [1], [0, 0, 1, 1], [], []>} : vector<32x192xbf16>, vector<192x384xbf16>, vector<32x384xf32> -> vector<32x384xf32>
    %c2_84 = arith.constant 2 : index
    %c0_85 = arith.constant 0 : index
    %182 = vector.load %arg5[%c2_84, %c0_85] : memref<8x384xf32, #tpu.memory_space<vmem>>, vector<1x384xf32>
    %183 = vector.broadcast %182 : vector<1x384xf32> to vector<32x384xf32>
    %184 = arith.addf %181, %183 : vector<32x384xf32>
    %cst_86 = arith.constant 3.000000e-01 : f32
    %185 = vector.broadcast %cst_86 : f32 to vector<32x384xf32>
    %186 = arith.mulf %185, %184 : vector<32x384xf32>
    %187 = arith.maximumf %184, %186 : vector<32x384xf32>
    %188 = arith.truncf %187 : vector<32x384xf32> to vector<32x384xbf16>
    %c1_87 = arith.constant 1 : index
    %c0_88 = arith.constant 0 : index
    %c0_89 = arith.constant 0 : index
    %189 = vector.load %arg6[%c1_87, %c0_88, %c0_89] : memref<4x384x192xbf16, #tpu.memory_space<vmem>>, vector<1x384x192xbf16>
    %190 = vector.shape_cast %189 : vector<1x384x192xbf16> to vector<384x192xbf16>
    %cst_90 = arith.constant dense<0.000000e+00> : vector<32x192xf32>
    %191 = tpu.matmul %188, %190, %cst_90 {dimension_numbers = #tpu.dot_dimension_numbers<[1], [0], [0], [1], [0, 0, 1, 1], [], []>} : vector<32x384xbf16>, vector<384x192xbf16>, vector<32x192xf32> -> vector<32x192xf32>
    %c1_91 = arith.constant 1 : index
    %c0_92 = arith.constant 0 : index
    %192 = vector.load %arg7[%c1_91, %c0_92] : memref<4x192xf32, #tpu.memory_space<vmem>>, vector<1x192xf32>
    %193 = vector.broadcast %192 : vector<1x192xf32> to vector<32x192xf32>
    %194 = arith.addf %191, %193 : vector<32x192xf32>
    %cst_93 = arith.constant 3.000000e-01 : f32
    %195 = vector.broadcast %cst_93 : f32 to vector<32x192xf32>
    %196 = arith.mulf %195, %194 : vector<32x192xf32>
    %197 = arith.maximumf %194, %196 : vector<32x192xf32>
    %198 = arith.addf %161, %197 : vector<32x192xf32>
    %cst_94 = arith.constant dense<0.000000e+00> : vector<1x192xf32>
    %199 = tpu.matmul %87, %198, %cst_94 {dimension_numbers = #tpu.dot_dimension_numbers<[1], [0], [0], [1], [0, 0, 1, 1], [], []>} : vector<1x32xf32>, vector<32x192xf32>, vector<1x192xf32> -> vector<1x192xf32>
    %200 = arith.mulf %198, %198 : vector<32x192xf32>
    %cst_95 = arith.constant dense<0.000000e+00> : vector<1x192xf32>
    %201 = tpu.matmul %87, %200, %cst_95 {dimension_numbers = #tpu.dot_dimension_numbers<[1], [0], [0], [1], [0, 0, 1, 1], [], []>} : vector<1x32xf32>, vector<32x192xf32>, vector<1x192xf32> -> vector<1x192xf32>
    %cst_96 = arith.constant 3.125000e-02 : f32
    %202 = vector.broadcast %cst_96 : f32 to vector<1x192xf32>
    %203 = arith.mulf %199, %202 : vector<1x192xf32>
    %cst_97 = arith.constant 3.125000e-02 : f32
    %204 = vector.broadcast %cst_97 : f32 to vector<1x192xf32>
    %205 = arith.mulf %201, %204 : vector<1x192xf32>
    %206 = arith.mulf %203, %203 : vector<1x192xf32>
    %207 = arith.subf %205, %206 : vector<1x192xf32>
    %208 = vector.broadcast %203 : vector<1x192xf32> to vector<32x192xf32>
    %209 = arith.subf %198, %208 : vector<32x192xf32>
    %cst_98 = arith.constant 9.99999974E-6 : f32
    %210 = vector.broadcast %cst_98 : f32 to vector<1x192xf32>
    %211 = arith.addf %207, %210 : vector<1x192xf32>
    %212 = math.rsqrt %211 : vector<1x192xf32>
    %213 = vector.broadcast %212 : vector<1x192xf32> to vector<32x192xf32>
    %214 = arith.mulf %209, %213 : vector<32x192xf32>
    %215 = arith.truncf %214 : vector<32x192xf32> to vector<32x192xbf16>
    %c3_99 = arith.constant 3 : index
    %c0_100 = arith.constant 0 : index
    %c0_101 = arith.constant 0 : index
    %216 = vector.load %arg4[%c3_99, %c0_100, %c0_101] : memref<8x192x384xbf16, #tpu.memory_space<vmem>>, vector<1x192x384xbf16>
    %217 = vector.shape_cast %216 : vector<1x192x384xbf16> to vector<192x384xbf16>
    %cst_102 = arith.constant dense<0.000000e+00> : vector<32x384xf32>
    %218 = tpu.matmul %215, %217, %cst_102 {dimension_numbers = #tpu.dot_dimension_numbers<[1], [0], [0], [1], [0, 0, 1, 1], [], []>} : vector<32x192xbf16>, vector<192x384xbf16>, vector<32x384xf32> -> vector<32x384xf32>
    %c3_103 = arith.constant 3 : index
    %c0_104 = arith.constant 0 : index
    %219 = vector.load %arg5[%c3_103, %c0_104] : memref<8x384xf32, #tpu.memory_space<vmem>>, vector<1x384xf32>
    %220 = vector.broadcast %219 : vector<1x384xf32> to vector<32x384xf32>
    %221 = arith.addf %218, %220 : vector<32x384xf32>
    %cst_105 = arith.constant 3.000000e-01 : f32
    %222 = vector.broadcast %cst_105 : f32 to vector<32x384xf32>
    %223 = arith.mulf %222, %221 : vector<32x384xf32>
    %224 = arith.maximumf %221, %223 : vector<32x384xf32>
    %225 = arith.truncf %224 : vector<32x384xf32> to vector<32x384xbf16>
    %c1_106 = arith.constant 1 : index
    %c0_107 = arith.constant 0 : index
    %c0_108 = arith.constant 0 : index
    %226 = vector.load %arg6[%c1_106, %c0_107, %c0_108] : memref<4x384x192xbf16, #tpu.memory_space<vmem>>, vector<1x384x192xbf16>
    %227 = vector.shape_cast %226 : vector<1x384x192xbf16> to vector<384x192xbf16>
    %cst_109 = arith.constant dense<0.000000e+00> : vector<32x192xf32>
    %228 = tpu.matmul %225, %227, %cst_109 {dimension_numbers = #tpu.dot_dimension_numbers<[1], [0], [0], [1], [0, 0, 1, 1], [], []>} : vector<32x384xbf16>, vector<384x192xbf16>, vector<32x192xf32> -> vector<32x192xf32>
    %c1_110 = arith.constant 1 : index
    %c0_111 = arith.constant 0 : index
    %229 = vector.load %arg7[%c1_110, %c0_111] : memref<4x192xf32, #tpu.memory_space<vmem>>, vector<1x192xf32>
    %230 = vector.broadcast %229 : vector<1x192xf32> to vector<32x192xf32>
    %231 = arith.addf %228, %230 : vector<32x192xf32>
    %cst_112 = arith.constant 3.000000e-01 : f32
    %232 = vector.broadcast %cst_112 : f32 to vector<32x192xf32>
    %233 = arith.mulf %232, %231 : vector<32x192xf32>
    %234 = arith.maximumf %231, %233 : vector<32x192xf32>
    %235 = arith.addf %198, %234 : vector<32x192xf32>
    %cst_113 = arith.constant dense<0.000000e+00> : vector<1x192xf32>
    %236 = tpu.matmul %87, %235, %cst_113 {dimension_numbers = #tpu.dot_dimension_numbers<[1], [0], [0], [1], [0, 0, 1, 1], [], []>} : vector<1x32xf32>, vector<32x192xf32>, vector<1x192xf32> -> vector<1x192xf32>
    %237 = arith.mulf %235, %235 : vector<32x192xf32>
    %cst_114 = arith.constant dense<0.000000e+00> : vector<1x192xf32>
    %238 = tpu.matmul %87, %237, %cst_114 {dimension_numbers = #tpu.dot_dimension_numbers<[1], [0], [0], [1], [0, 0, 1, 1], [], []>} : vector<1x32xf32>, vector<32x192xf32>, vector<1x192xf32> -> vector<1x192xf32>
    %cst_115 = arith.constant 3.125000e-02 : f32
    %239 = vector.broadcast %cst_115 : f32 to vector<1x192xf32>
    %240 = arith.mulf %236, %239 : vector<1x192xf32>
    %cst_116 = arith.constant 3.125000e-02 : f32
    %241 = vector.broadcast %cst_116 : f32 to vector<1x192xf32>
    %242 = arith.mulf %238, %241 : vector<1x192xf32>
    %243 = arith.mulf %240, %240 : vector<1x192xf32>
    %244 = arith.subf %242, %243 : vector<1x192xf32>
    %245 = vector.broadcast %240 : vector<1x192xf32> to vector<32x192xf32>
    %246 = arith.subf %235, %245 : vector<32x192xf32>
    %cst_117 = arith.constant 9.99999974E-6 : f32
    %247 = vector.broadcast %cst_117 : f32 to vector<1x192xf32>
    %248 = arith.addf %244, %247 : vector<1x192xf32>
    %249 = math.rsqrt %248 : vector<1x192xf32>
    %250 = vector.broadcast %249 : vector<1x192xf32> to vector<32x192xf32>
    %251 = arith.mulf %246, %250 : vector<32x192xf32>
    %252 = arith.truncf %251 : vector<32x192xf32> to vector<32x192xbf16>
    %c4_118 = arith.constant 4 : index
    %c0_119 = arith.constant 0 : index
    %c0_120 = arith.constant 0 : index
    %253 = vector.load %arg4[%c4_118, %c0_119, %c0_120] : memref<8x192x384xbf16, #tpu.memory_space<vmem>>, vector<1x192x384xbf16>
    %254 = vector.shape_cast %253 : vector<1x192x384xbf16> to vector<192x384xbf16>
    %cst_121 = arith.constant dense<0.000000e+00> : vector<32x384xf32>
    %255 = tpu.matmul %252, %254, %cst_121 {dimension_numbers = #tpu.dot_dimension_numbers<[1], [0], [0], [1], [0, 0, 1, 1], [], []>} : vector<32x192xbf16>, vector<192x384xbf16>, vector<32x384xf32> -> vector<32x384xf32>
    %c4_122 = arith.constant 4 : index
    %c0_123 = arith.constant 0 : index
    %256 = vector.load %arg5[%c4_122, %c0_123] : memref<8x384xf32, #tpu.memory_space<vmem>>, vector<1x384xf32>
    %257 = vector.broadcast %256 : vector<1x384xf32> to vector<32x384xf32>
    %258 = arith.addf %255, %257 : vector<32x384xf32>
    %cst_124 = arith.constant 3.000000e-01 : f32
    %259 = vector.broadcast %cst_124 : f32 to vector<32x384xf32>
    %260 = arith.mulf %259, %258 : vector<32x384xf32>
    %261 = arith.maximumf %258, %260 : vector<32x384xf32>
    %262 = arith.truncf %261 : vector<32x384xf32> to vector<32x384xbf16>
    %c2_125 = arith.constant 2 : index
    %c0_126 = arith.constant 0 : index
    %c0_127 = arith.constant 0 : index
    %263 = vector.load %arg6[%c2_125, %c0_126, %c0_127] : memref<4x384x192xbf16, #tpu.memory_space<vmem>>, vector<1x384x192xbf16>
    %264 = vector.shape_cast %263 : vector<1x384x192xbf16> to vector<384x192xbf16>
    %cst_128 = arith.constant dense<0.000000e+00> : vector<32x192xf32>
    %265 = tpu.matmul %262, %264, %cst_128 {dimension_numbers = #tpu.dot_dimension_numbers<[1], [0], [0], [1], [0, 0, 1, 1], [], []>} : vector<32x384xbf16>, vector<384x192xbf16>, vector<32x192xf32> -> vector<32x192xf32>
    %c2_129 = arith.constant 2 : index
    %c0_130 = arith.constant 0 : index
    %266 = vector.load %arg7[%c2_129, %c0_130] : memref<4x192xf32, #tpu.memory_space<vmem>>, vector<1x192xf32>
    %267 = vector.broadcast %266 : vector<1x192xf32> to vector<32x192xf32>
    %268 = arith.addf %265, %267 : vector<32x192xf32>
    %cst_131 = arith.constant 3.000000e-01 : f32
    %269 = vector.broadcast %cst_131 : f32 to vector<32x192xf32>
    %270 = arith.mulf %269, %268 : vector<32x192xf32>
    %271 = arith.maximumf %268, %270 : vector<32x192xf32>
    %272 = arith.addf %235, %271 : vector<32x192xf32>
    %cst_132 = arith.constant dense<0.000000e+00> : vector<1x192xf32>
    %273 = tpu.matmul %87, %272, %cst_132 {dimension_numbers = #tpu.dot_dimension_numbers<[1], [0], [0], [1], [0, 0, 1, 1], [], []>} : vector<1x32xf32>, vector<32x192xf32>, vector<1x192xf32> -> vector<1x192xf32>
    %274 = arith.mulf %272, %272 : vector<32x192xf32>
    %cst_133 = arith.constant dense<0.000000e+00> : vector<1x192xf32>
    %275 = tpu.matmul %87, %274, %cst_133 {dimension_numbers = #tpu.dot_dimension_numbers<[1], [0], [0], [1], [0, 0, 1, 1], [], []>} : vector<1x32xf32>, vector<32x192xf32>, vector<1x192xf32> -> vector<1x192xf32>
    %cst_134 = arith.constant 3.125000e-02 : f32
    %276 = vector.broadcast %cst_134 : f32 to vector<1x192xf32>
    %277 = arith.mulf %273, %276 : vector<1x192xf32>
    %cst_135 = arith.constant 3.125000e-02 : f32
    %278 = vector.broadcast %cst_135 : f32 to vector<1x192xf32>
    %279 = arith.mulf %275, %278 : vector<1x192xf32>
    %280 = arith.mulf %277, %277 : vector<1x192xf32>
    %281 = arith.subf %279, %280 : vector<1x192xf32>
    %282 = vector.broadcast %277 : vector<1x192xf32> to vector<32x192xf32>
    %283 = arith.subf %272, %282 : vector<32x192xf32>
    %cst_136 = arith.constant 9.99999974E-6 : f32
    %284 = vector.broadcast %cst_136 : f32 to vector<1x192xf32>
    %285 = arith.addf %281, %284 : vector<1x192xf32>
    %286 = math.rsqrt %285 : vector<1x192xf32>
    %287 = vector.broadcast %286 : vector<1x192xf32> to vector<32x192xf32>
    %288 = arith.mulf %283, %287 : vector<32x192xf32>
    %289 = arith.truncf %288 : vector<32x192xf32> to vector<32x192xbf16>
    %c5_137 = arith.constant 5 : index
    %c0_138 = arith.constant 0 : index
    %c0_139 = arith.constant 0 : index
    %290 = vector.load %arg4[%c5_137, %c0_138, %c0_139] : memref<8x192x384xbf16, #tpu.memory_space<vmem>>, vector<1x192x384xbf16>
    %291 = vector.shape_cast %290 : vector<1x192x384xbf16> to vector<192x384xbf16>
    %cst_140 = arith.constant dense<0.000000e+00> : vector<32x384xf32>
    %292 = tpu.matmul %289, %291, %cst_140 {dimension_numbers = #tpu.dot_dimension_numbers<[1], [0], [0], [1], [0, 0, 1, 1], [], []>} : vector<32x192xbf16>, vector<192x384xbf16>, vector<32x384xf32> -> vector<32x384xf32>
    %c5_141 = arith.constant 5 : index
    %c0_142 = arith.constant 0 : index
    %293 = vector.load %arg5[%c5_141, %c0_142] : memref<8x384xf32, #tpu.memory_space<vmem>>, vector<1x384xf32>
    %294 = vector.broadcast %293 : vector<1x384xf32> to vector<32x384xf32>
    %295 = arith.addf %292, %294 : vector<32x384xf32>
    %cst_143 = arith.constant 3.000000e-01 : f32
    %296 = vector.broadcast %cst_143 : f32 to vector<32x384xf32>
    %297 = arith.mulf %296, %295 : vector<32x384xf32>
    %298 = arith.maximumf %295, %297 : vector<32x384xf32>
    %299 = arith.truncf %298 : vector<32x384xf32> to vector<32x384xbf16>
    %c2_144 = arith.constant 2 : index
    %c0_145 = arith.constant 0 : index
    %c0_146 = arith.constant 0 : index
    %300 = vector.load %arg6[%c2_144, %c0_145, %c0_146] : memref<4x384x192xbf16, #tpu.memory_space<vmem>>, vector<1x384x192xbf16>
    %301 = vector.shape_cast %300 : vector<1x384x192xbf16> to vector<384x192xbf16>
    %cst_147 = arith.constant dense<0.000000e+00> : vector<32x192xf32>
    %302 = tpu.matmul %299, %301, %cst_147 {dimension_numbers = #tpu.dot_dimension_numbers<[1], [0], [0], [1], [0, 0, 1, 1], [], []>} : vector<32x384xbf16>, vector<384x192xbf16>, vector<32x192xf32> -> vector<32x192xf32>
    %c2_148 = arith.constant 2 : index
    %c0_149 = arith.constant 0 : index
    %303 = vector.load %arg7[%c2_148, %c0_149] : memref<4x192xf32, #tpu.memory_space<vmem>>, vector<1x192xf32>
    %304 = vector.broadcast %303 : vector<1x192xf32> to vector<32x192xf32>
    %305 = arith.addf %302, %304 : vector<32x192xf32>
    %cst_150 = arith.constant 3.000000e-01 : f32
    %306 = vector.broadcast %cst_150 : f32 to vector<32x192xf32>
    %307 = arith.mulf %306, %305 : vector<32x192xf32>
    %308 = arith.maximumf %305, %307 : vector<32x192xf32>
    %309 = arith.addf %272, %308 : vector<32x192xf32>
    %cst_151 = arith.constant dense<0.000000e+00> : vector<1x192xf32>
    %310 = tpu.matmul %87, %309, %cst_151 {dimension_numbers = #tpu.dot_dimension_numbers<[1], [0], [0], [1], [0, 0, 1, 1], [], []>} : vector<1x32xf32>, vector<32x192xf32>, vector<1x192xf32> -> vector<1x192xf32>
    %311 = arith.mulf %309, %309 : vector<32x192xf32>
    %cst_152 = arith.constant dense<0.000000e+00> : vector<1x192xf32>
    %312 = tpu.matmul %87, %311, %cst_152 {dimension_numbers = #tpu.dot_dimension_numbers<[1], [0], [0], [1], [0, 0, 1, 1], [], []>} : vector<1x32xf32>, vector<32x192xf32>, vector<1x192xf32> -> vector<1x192xf32>
    %cst_153 = arith.constant 3.125000e-02 : f32
    %313 = vector.broadcast %cst_153 : f32 to vector<1x192xf32>
    %314 = arith.mulf %310, %313 : vector<1x192xf32>
    %cst_154 = arith.constant 3.125000e-02 : f32
    %315 = vector.broadcast %cst_154 : f32 to vector<1x192xf32>
    %316 = arith.mulf %312, %315 : vector<1x192xf32>
    %317 = arith.mulf %314, %314 : vector<1x192xf32>
    %318 = arith.subf %316, %317 : vector<1x192xf32>
    %319 = vector.broadcast %314 : vector<1x192xf32> to vector<32x192xf32>
    %320 = arith.subf %309, %319 : vector<32x192xf32>
    %cst_155 = arith.constant 9.99999974E-6 : f32
    %321 = vector.broadcast %cst_155 : f32 to vector<1x192xf32>
    %322 = arith.addf %318, %321 : vector<1x192xf32>
    %323 = math.rsqrt %322 : vector<1x192xf32>
    %324 = vector.broadcast %323 : vector<1x192xf32> to vector<32x192xf32>
    %325 = arith.mulf %320, %324 : vector<32x192xf32>
    %326 = arith.truncf %325 : vector<32x192xf32> to vector<32x192xbf16>
    %c6 = arith.constant 6 : index
    %c0_156 = arith.constant 0 : index
    %c0_157 = arith.constant 0 : index
    %327 = vector.load %arg4[%c6, %c0_156, %c0_157] : memref<8x192x384xbf16, #tpu.memory_space<vmem>>, vector<1x192x384xbf16>
    %328 = vector.shape_cast %327 : vector<1x192x384xbf16> to vector<192x384xbf16>
    %cst_158 = arith.constant dense<0.000000e+00> : vector<32x384xf32>
    %329 = tpu.matmul %326, %328, %cst_158 {dimension_numbers = #tpu.dot_dimension_numbers<[1], [0], [0], [1], [0, 0, 1, 1], [], []>} : vector<32x192xbf16>, vector<192x384xbf16>, vector<32x384xf32> -> vector<32x384xf32>
    %c6_159 = arith.constant 6 : index
    %c0_160 = arith.constant 0 : index
    %330 = vector.load %arg5[%c6_159, %c0_160] : memref<8x384xf32, #tpu.memory_space<vmem>>, vector<1x384xf32>
    %331 = vector.broadcast %330 : vector<1x384xf32> to vector<32x384xf32>
    %332 = arith.addf %329, %331 : vector<32x384xf32>
    %cst_161 = arith.constant 3.000000e-01 : f32
    %333 = vector.broadcast %cst_161 : f32 to vector<32x384xf32>
    %334 = arith.mulf %333, %332 : vector<32x384xf32>
    %335 = arith.maximumf %332, %334 : vector<32x384xf32>
    %336 = arith.truncf %335 : vector<32x384xf32> to vector<32x384xbf16>
    %c3_162 = arith.constant 3 : index
    %c0_163 = arith.constant 0 : index
    %c0_164 = arith.constant 0 : index
    %337 = vector.load %arg6[%c3_162, %c0_163, %c0_164] : memref<4x384x192xbf16, #tpu.memory_space<vmem>>, vector<1x384x192xbf16>
    %338 = vector.shape_cast %337 : vector<1x384x192xbf16> to vector<384x192xbf16>
    %cst_165 = arith.constant dense<0.000000e+00> : vector<32x192xf32>
    %339 = tpu.matmul %336, %338, %cst_165 {dimension_numbers = #tpu.dot_dimension_numbers<[1], [0], [0], [1], [0, 0, 1, 1], [], []>} : vector<32x384xbf16>, vector<384x192xbf16>, vector<32x192xf32> -> vector<32x192xf32>
    %c3_166 = arith.constant 3 : index
    %c0_167 = arith.constant 0 : index
    %340 = vector.load %arg7[%c3_166, %c0_167] : memref<4x192xf32, #tpu.memory_space<vmem>>, vector<1x192xf32>
    %341 = vector.broadcast %340 : vector<1x192xf32> to vector<32x192xf32>
    %342 = arith.addf %339, %341 : vector<32x192xf32>
    %cst_168 = arith.constant 3.000000e-01 : f32
    %343 = vector.broadcast %cst_168 : f32 to vector<32x192xf32>
    %344 = arith.mulf %343, %342 : vector<32x192xf32>
    %345 = arith.maximumf %342, %344 : vector<32x192xf32>
    %346 = arith.addf %309, %345 : vector<32x192xf32>
    %cst_169 = arith.constant dense<0.000000e+00> : vector<1x192xf32>
    %347 = tpu.matmul %87, %346, %cst_169 {dimension_numbers = #tpu.dot_dimension_numbers<[1], [0], [0], [1], [0, 0, 1, 1], [], []>} : vector<1x32xf32>, vector<32x192xf32>, vector<1x192xf32> -> vector<1x192xf32>
    %348 = arith.mulf %346, %346 : vector<32x192xf32>
    %cst_170 = arith.constant dense<0.000000e+00> : vector<1x192xf32>
    %349 = tpu.matmul %87, %348, %cst_170 {dimension_numbers = #tpu.dot_dimension_numbers<[1], [0], [0], [1], [0, 0, 1, 1], [], []>} : vector<1x32xf32>, vector<32x192xf32>, vector<1x192xf32> -> vector<1x192xf32>
    %cst_171 = arith.constant 3.125000e-02 : f32
    %350 = vector.broadcast %cst_171 : f32 to vector<1x192xf32>
    %351 = arith.mulf %347, %350 : vector<1x192xf32>
    %cst_172 = arith.constant 3.125000e-02 : f32
    %352 = vector.broadcast %cst_172 : f32 to vector<1x192xf32>
    %353 = arith.mulf %349, %352 : vector<1x192xf32>
    %354 = arith.mulf %351, %351 : vector<1x192xf32>
    %355 = arith.subf %353, %354 : vector<1x192xf32>
    %356 = vector.broadcast %351 : vector<1x192xf32> to vector<32x192xf32>
    %357 = arith.subf %346, %356 : vector<32x192xf32>
    %cst_173 = arith.constant 9.99999974E-6 : f32
    %358 = vector.broadcast %cst_173 : f32 to vector<1x192xf32>
    %359 = arith.addf %355, %358 : vector<1x192xf32>
    %360 = math.rsqrt %359 : vector<1x192xf32>
    %361 = vector.broadcast %360 : vector<1x192xf32> to vector<32x192xf32>
    %362 = arith.mulf %357, %361 : vector<32x192xf32>
    %363 = arith.truncf %362 : vector<32x192xf32> to vector<32x192xbf16>
    %c7 = arith.constant 7 : index
    %c0_174 = arith.constant 0 : index
    %c0_175 = arith.constant 0 : index
    %364 = vector.load %arg4[%c7, %c0_174, %c0_175] : memref<8x192x384xbf16, #tpu.memory_space<vmem>>, vector<1x192x384xbf16>
    %365 = vector.shape_cast %364 : vector<1x192x384xbf16> to vector<192x384xbf16>
    %cst_176 = arith.constant dense<0.000000e+00> : vector<32x384xf32>
    %366 = tpu.matmul %363, %365, %cst_176 {dimension_numbers = #tpu.dot_dimension_numbers<[1], [0], [0], [1], [0, 0, 1, 1], [], []>} : vector<32x192xbf16>, vector<192x384xbf16>, vector<32x384xf32> -> vector<32x384xf32>
    %c7_177 = arith.constant 7 : index
    %c0_178 = arith.constant 0 : index
    %367 = vector.load %arg5[%c7_177, %c0_178] : memref<8x384xf32, #tpu.memory_space<vmem>>, vector<1x384xf32>
    %368 = vector.broadcast %367 : vector<1x384xf32> to vector<32x384xf32>
    %369 = arith.addf %366, %368 : vector<32x384xf32>
    %cst_179 = arith.constant 3.000000e-01 : f32
    %370 = vector.broadcast %cst_179 : f32 to vector<32x384xf32>
    %371 = arith.mulf %370, %369 : vector<32x384xf32>
    %372 = arith.maximumf %369, %371 : vector<32x384xf32>
    %373 = arith.truncf %372 : vector<32x384xf32> to vector<32x384xbf16>
    %c3_180 = arith.constant 3 : index
    %c0_181 = arith.constant 0 : index
    %c0_182 = arith.constant 0 : index
    %374 = vector.load %arg6[%c3_180, %c0_181, %c0_182] : memref<4x384x192xbf16, #tpu.memory_space<vmem>>, vector<1x384x192xbf16>
    %375 = vector.shape_cast %374 : vector<1x384x192xbf16> to vector<384x192xbf16>
    %cst_183 = arith.constant dense<0.000000e+00> : vector<32x192xf32>
    %376 = tpu.matmul %373, %375, %cst_183 {dimension_numbers = #tpu.dot_dimension_numbers<[1], [0], [0], [1], [0, 0, 1, 1], [], []>} : vector<32x384xbf16>, vector<384x192xbf16>, vector<32x192xf32> -> vector<32x192xf32>
    %c3_184 = arith.constant 3 : index
    %c0_185 = arith.constant 0 : index
    %377 = vector.load %arg7[%c3_184, %c0_185] : memref<4x192xf32, #tpu.memory_space<vmem>>, vector<1x192xf32>
    %378 = vector.broadcast %377 : vector<1x192xf32> to vector<32x192xf32>
    %379 = arith.addf %376, %378 : vector<32x192xf32>
    %cst_186 = arith.constant 3.000000e-01 : f32
    %380 = vector.broadcast %cst_186 : f32 to vector<32x192xf32>
    %381 = arith.mulf %380, %379 : vector<32x192xf32>
    %382 = arith.maximumf %379, %381 : vector<32x192xf32>
    %383 = arith.addf %346, %382 : vector<32x192xf32>
    %c128_187 = arith.constant 128 : index
    %c0_188 = arith.constant 0 : index
    %384 = vector.load %arg1[%c128_187, %c0_188] : memref<576x64xf32, #tpu.memory_space<vmem>>, vector<64x64xf32>
    %cst_189 = arith.constant dense<0.000000e+00> : vector<32x64xf32>
    %385 = tpu.matmul %6, %384, %cst_189 {dimension_numbers = #tpu.dot_dimension_numbers<[1], [0], [0], [1], [0, 0, 1, 1], [], []>} : vector<32x64xf32>, vector<64x64xf32>, vector<32x64xf32> -> vector<32x64xf32>
    %386 = arith.mulf %383, %86 : vector<32x192xf32>
    %c384 = arith.constant 384 : index
    %c0_190 = arith.constant 0 : index
    %387 = vector.load %arg1[%c384, %c0_190] : memref<576x64xf32, #tpu.memory_space<vmem>>, vector<192x64xf32>
    %cst_191 = arith.constant dense<0.000000e+00> : vector<32x64xf32>
    %388 = tpu.matmul %386, %387, %cst_191 {dimension_numbers = #tpu.dot_dimension_numbers<[1], [0], [0], [1], [0, 0, 1, 1], [], []>} : vector<32x192xf32>, vector<192x64xf32>, vector<32x64xf32> -> vector<32x64xf32>
    %389 = arith.addf %385, %388 : vector<32x64xf32>
    %c2_192 = arith.constant 2 : index
    %c0_193 = arith.constant 0 : index
    %390 = vector.load %arg3[%c2_192, %c0_193] : memref<8x192xf32, #tpu.memory_space<vmem>>, vector<1x64xf32>
    %391 = vector.broadcast %390 : vector<1x64xf32> to vector<32x64xf32>
    %392 = arith.addf %389, %391 : vector<32x64xf32>
    %c0_194 = arith.constant 0 : index
    %c0_195 = arith.constant 0 : index
    %393 = vector.load %arg8[%c0_194, %c0_195] : memref<32x64xf32, #tpu.memory_space<vmem>>, vector<32x64xf32>
    tpu.vector_store %arg8[%c0_194, %c0_195], %392 {strides = array<i32>} : memref<32x64xf32, #tpu.memory_space<vmem>>, vector<32x64xf32>,
    return
  }
}

</mosaic_0001>

<llo_original>
// kernel: tpu_custom_call.1
$region0: #{tpu_custom_call.1}
  #allocation0 [shape = 'u32[]', space=smem, size = 0x4, offset = 0x4, fixed_abs, tag = 'smem constant byte address 0x4 - core index']
  #allocation1 [shape = 'u32[72,128]{1,0:T(1,128)}', space=vmem, size = 0x9000, scoped, tag = 'internal scratch']
  %s0 = inlined_call_operand.hbm [shape: f32[8,128], index: 0, kind: input, shape index: {}]
  %s1 = inlined_call_operand.hbm [shape: f32[8,128], index: 1, kind: output, shape index: {}]
  %s2 = sld [smem:[#allocation0]]
  $region18: #{tpu_custom_call.1} parent=0
    _
  %s4 = ssub.s32 1, %s2
  %s5 = scalar_select 0, %s4, %s2
  $region1: #{tpu_custom_call.1} parent=0
    #allocation2 [shape = 'u8[4096]{0}', space=vmem, size = 0x1000, scoped, tag = 'input window, operand 0, single buffered']
    #allocation3 [shape = 's32[1]{0}', space=sflag, size = 0x4, scoped, tag = 'scoped memory for tpu_custom_call.1']
    #allocation4 [shape = 's32[1]{0}', space=sflag, size = 0x4, scoped, tag = 'scoped memory for tpu_custom_call.1']
    #allocation5 [shape = 'u8[4096]{0}', space=vmem, size = 0x1000, scoped, tag = 'output window, operand 0, single buffered']
    %6 = vsyncpa [#allocation3], 0
    %7 = vsyncpa [#allocation4], 0
    // Predicated region
    $region2: #{tpu_custom_call.1} parent=1 // pred_check
      _
    $region3: #{tpu_custom_call.1} parent=1 // pred_check_branch
      %9 = sbr.rel (0) target = $region5
    $region4: #{tpu_custom_call.1} parent=1 // pred_region
      %11 = vsyncadd [#allocation3], 0
      %s13 = sshll.u32 %s0, 4
      %s14 = int_to_ptr.hbm [resolvable:$true] %s13
      %s15 = sshll.u32 [#allocation2], 4
      %s16 = int_to_ptr.vmem [resolvable:$true] %s15
      %18 = dma.hbm_to_vmem [thread:$0]  %s14, 128, %s16, [#allocation3]
    $region5: #{tpu_custom_call.1} parent=1 // pred_fallthru
      _
    // Predicated region
    $region6: #{tpu_custom_call.1} parent=1 // pred_check
      _
    $region7: #{tpu_custom_call.1} parent=1 // pred_check_branch
      %20 = sbr.rel (0) target = $region9
    $region8: #{tpu_custom_call.1} parent=1 // pred_region
      %22 = dma.done [#allocation3], 128
    $region9: #{tpu_custom_call.1} parent=1 // pred_fallthru
      _
    %v23 = vld [vmem:[#allocation2] sm:$0xff]
    %v24 = vand.u32 2147483647, %v23
    %vm25 = vcmp.le.f32.partialorder %v24, 0.7853982
    %vm26 = vcmp.lt.s32.totalorder %v23, 0
    %v27 = vand.u32 %v23, 2139095040
    %v28 = vshrl.u32 %v27, 23
    %v29 = vsub.s32 %v28, 127
    %v30 = vand.u32 2147483647, %v23
    %v31 = vand.u32 %v30, 8388607
    %v32 = vor.u32 %v31, 8388608
    %v33 = vsub.s32 0, %v32
    %v34 = vadd.s32 %v29, 1
    %vm35 = vcmp.gt.s32.totalorder %v34, 0
    %v36 = vsel %vm35, %v34, 0
    %v37 = vshrl.u32 %v36, 5
    %v38 = vand.u32 %v36, 31
    %v39 = vsub.s32 32, %v38
    %v40 = vshrl.u32 683565275, %v39
    %v41 = vshll.u32 683565275, %v38
    %v42 = vshrl.u32 2475754826, %v39
    %v43 = vor.u32 %v41, %v42
    %v44 = vshll.u32 2475754826, %v38
    %v45 = vshrl.u32 2131351028, %v39
    %v46 = vor.u32 %v44, %v45
    %v47 = vshll.u32 2131351028, %v38
    %v48 = vshrl.u32 2102212464, %v39
    %v49 = vor.u32 %v47, %v48
    %v50 = vshll.u32 2102212464, %v38
    %v51 = vshrl.u32 920167782, %v39
    %v52 = vor.u32 %v50, %v51
    %v53 = vshll.u32 920167782, %v38
    %v54 = vshrl.u32 1326507024, %v39
    %v55 = vor.u32 %v53, %v54
    %vm56 = vcmp.lt.s32.totalorder %v37, 1
    %vm57 = vcmp.lt.s32.totalorder %v37, 2
    %vm58 = vcmp.lt.s32.totalorder %v37, 3
    %vm59 = vcmp.lt.s32.totalorder %v37, 4
    %v60 = vsel %vm56, %v40, %v43
    %v61 = vsel %vm59, %v49, 2102212464
    %v62 = vsel %vm58, %v46, %v61
    %v63 = vsel %vm57, %v60, %v62
    %v64 = vsel %vm56, %v43, %v46
    %v65 = vsel %vm59, %v52, 920167782
    %v66 = vsel %vm58, %v49, %v65
    %v67 = vsel %vm57, %v64, %v66
    %v68 = vsel %vm56, %v46, %v49
    %v69 = vsel %vm59, %v55, 1326507024
    %v70 = vsel %vm58, %v52, %v69
    %v71 = vsel %vm57, %v68, %v70
    %v72 = vshll.u32 %v32, 8
    %v73 = vand.u32 %v72, 65535
    %v74 = vshrl.u32 %v72, 16
    %v75 = vand.u32 %v71, 65535
    %v76 = vshrl.u32 %v71, 16
    %v77 = vmul.u32 %v73, %v75
    %v78 = vmul.u32 %v73, %v76
    %v79 = vmul.u32 %v74, %v75
    %v80 = vmul.u32 %v74, %v76
    %v81 = vshll.u32 %v78, 16
    %v82 = vshrl.u32 %v78, 16
    %v83 = vshll.u32 %v79, 16
    %v84 = vshrl.u32 %v79, 16
    %vm85 = vc.u32 %v77, %v81
    %v86 = vsel %vm85, 1, 0
    %v87 = vadd.s32 %v77, %v81
    %v88 = vadd.s32 %v80, %v86
    %vm89 = vc.u32 %v87, %v83
    %v90 = vsel %vm89, 1, 0
    %v91 = vadd.s32 %v87, %v83
    %v92 = vadd.s32 %v88, %v90
    %v93 = vadd.s32 %v92, %v82
    %v94 = vadd.s32 %v93, %v84
    %v95 = vand.u32 %v72, 65535
    %v96 = vshrl.u32 %v72, 16
    %v97 = vand.u32 %v67, 65535
    %v98 = vshrl.u32 %v67, 16
    %v99 = vmul.u32 %v95, %v97
    %v100 = vmul.u32 %v95, %v98
    %v101 = vmul.u32 %v96, %v97
    %v102 = vmul.u32 %v96, %v98
    %v103 = vshll.u32 %v100, 16
    %v104 = vshrl.u32 %v100, 16
    %v105 = vshll.u32 %v101, 16
    %v106 = vshrl.u32 %v101, 16
    %vm107 = vc.u32 %v99, %v103
    %v108 = vsel %vm107, 1, 0
    %v109 = vadd.s32 %v99, %v103
    %v110 = vadd.s32 %v102, %v108
    %vm111 = vc.u32 %v109, %v105
    %v112 = vsel %vm111, 1, 0
    %v113 = vadd.s32 %v109, %v105
    %v114 = vadd.s32 %v110, %v112
    %v115 = vadd.s32 %v114, %v104
    %v116 = vadd.s32 %v115, %v106
    %v117 = vmul.u32 %v72, %v63
    %v118 = vadd.s32 %v94, %v113
    %vm119 = vc.u32 %v94, %v113
    %v120 = vadd.s32 %v116, 1
    %v121 = vsel %vm119, %v120, %v116
    %v122 = vadd.s32 %v117, %v121
    %v123 = vadd.s32 %v122, 536870912
    %v124 = vshrl.u32 %v123, 30
    %v125 = vshll.u32 %v124, 30
    %v126 = vsub.s32 %v122, %v125
    %vm127 = vcmp.lt.s32.totalorder %v126, 0
    %v128 = vsub.s32 0, %v126
    %v129 = vsel %vm127, %v128, %v126
    %v130 = vclz %v129
    %v131 = vsub.s32 %v130, 2
    %vm132 = vcmp.gt.s32.totalorder 0, %v131
    %v133 = vsel %vm132, 0, %v131
    %v134 = vsub.s32 32, %v133
    %v135 = vshll.u32 %v126, %v133
    %v136 = vshrl.u32 %v118, %v134
    %v137 = vor.u32 %v135, %v136
    %v138 = vsub.s32 4294967266, %v133
    %v139 = vadd.s32 %v138, 127
    %v140 = vshll.u32 %v139, 23
    %v141 = vor.u32 4788187, %v140
    %v142 = vand.u32 2147483647, %v141
    %v144 = vcvt.s32.f32 %v137
    %v145 = vmul.f32 %v144, %v142
    %v146 = vxor.u32 %v145, 2147483648
    %v147 = vsel %vm26, %v146, %v145
    %v148 = vsub.s32 4, %v124
    %v149 = vsel %vm26, %v148, %v124
    %v150 = vsel %vm25, %v23, %v147
    %v151 = vsel %vm25, 0, %v149
    %v152 = vmul.f32 %v150, %v150
    %v153 = vmul.f32 %v152, -0.001358992
    %v154 = vadd.f32 %v153, 0.041655596
    %v155 = vmul.f32 %v152, %v154
    %v156 = vadd.f32 %v155, -0.4999988
    %v157 = vmul.f32 %v152, %v156
    %v158 = vadd.f32 1.0, %v157
    %v159 = vmul.f32 %v150, %v150
    %v160 = vmul.f32 %v159, -0.00019511016
    %v161 = vadd.f32 %v160, 0.008332121
    %v162 = vmul.f32 %v159, %v161
    %v163 = vadd.f32 %v162, -0.16666654
    %v164 = vmul.f32 %v159, %v163
    %v165 = vadd.f32 %v164, 1.0
    %v166 = vmul.f32 %v165, %v150
    %vm167 = vweird.f32 %v23
    %v168 = vadd.s32 %v151, 3
    %v169 = vand.u32 %v168, 3
    %vm170 = vcmp.lt.s32.totalorder %v169, 2
    %vm171 = vcmp.eq.s32.totalorder %v169, 0
    %v172 = vxor.u32 %v166, 2147483648
    %v173 = vsel %vm171, %v158, %v172
    %vm174 = vcmp.eq.s32.totalorder %v169, 2
    %v175 = vxor.u32 %v158, 2147483648
    %v176 = vsel %vm174, %v175, %v166
    %v177 = vsel %vm170, %v173, %v176
    %v178 = vsel %vm167, nan, %v177
    %179 = vst [vmem:[#allocation5] sm:$0xff] %v178
    // Predicated region
    $region10: #{tpu_custom_call.1} parent=1 // pred_check
      _
    $region11: #{tpu_custom_call.1} parent=1 // pred_check_branch
      %181 = sbr.rel (0) target = $region13
    $region12: #{tpu_custom_call.1} parent=1 // pred_region
      %183 = vsyncadd [#allocation4], 0
      %s185 = sshll.u32 [#allocation5], 4
      %s186 = int_to_ptr.vmem [resolvable:$true] %s185
      %s187 = sshll.u32 %s1, 4
      %s188 = int_to_ptr.hbm [resolvable:$true] %s187
      %190 = dma.vmem_to_hbm [thread:$0]  %s186, 128, %s188, [#allocation4]
    $region13: #{tpu_custom_call.1} parent=1 // pred_fallthru
      _
    // Predicated region
    $region14: #{tpu_custom_call.1} parent=1 // pred_check
      _
    $region15: #{tpu_custom_call.1} parent=1 // pred_check_branch
      %192 = sbr.rel (0) target = $region17
    $region16: #{tpu_custom_call.1} parent=1 // pred_region
      %194 = dma.done [#allocation4], 128
    $region17: #{tpu_custom_call.1} parent=1 // pred_fallthru
      _
    %195 = vsyncpa [#allocation3], 1
    %196 = vsyncpa [#allocation4], 1

// kernel: mul.8
$region0: #{mul.8}
  %s0 = inlined_call_operand.vmem [shape: f32[2,16], index: 0, kind: input, shape index: {}]
  %s1 = inlined_call_operand.vmem [shape: f32[32], index: 1, kind: output, shape index: {}]
  $region1: #{mul.8} parent=0
    #allocation0 [shape = 'u8[4096]{0}', space=vmem, size = 0x1000, scoped, tag = 'scoped mem for output reshape']
    #allocation1 [shape = 'u8[4096]{0}', space=vmem, size = 0x1000, scoped, tag = 'scoped mem for input reshape']
    %s3 = ssub.s32 4, 1
    %v4 = vld [vmem:[%s0] sm:%s3]
    %5 = vst [vmem:[#allocation1] sm:%s3] %v4
    %v6 = vld [vmem:[#allocation1] sm:$0x1]
    %vm7 = vcmask 130048
    %8 = vst.msk [vmem:[#allocation0] sm:$0x1] %vm7, %v6
    %s9 = scalar_lea.vmem [#allocation1], 1
    %v10 = vld [vmem:[%s9] sm:$0x1]
    %11 = vrot.lane.b32.xlu0 %v10, 16
    %v12 = vpop.permute.xlu0 %11
    %vm13 = vcmask 261248
    %14 = vst.msk [vmem:[#allocation0] sm:$0x1] %vm13, %v12
    %s16 = ssub.s32 2, 1
    %v17 = vld [vmem:[#allocation0] sm:%s16]
    %s19 = ssub.s32 2, 1
    %20 = vst [vmem:[%s1] sm:%s19] %v17

// kernel: model_forward.1
$region0: #{model_forward.1}
  #allocation0 [shape = 'u32[]', space=smem, size = 0x4, offset = 0x4, fixed_abs, tag = 'smem constant byte address 0x4 - core index']
  #allocation1 [shape = 'u32[72,128]{1,0:T(1,128)}', space=vmem, size = 0x9000, scoped, tag = 'internal scratch']
  %s0 = inlined_call_operand.vmem [shape: f32[32,128], index: 0, kind: input, shape index: {}]
  %s1 = inlined_call_operand.vmem [shape: f32[576,64], index: 1, kind: input, shape index: {}]
  %s2 = inlined_call_operand.vmem [shape: f32[192,192], index: 2, kind: input, shape index: {}]
  %s3 = inlined_call_operand.vmem [shape: f32[8,192], index: 3, kind: input, shape index: {}]
  %s4 = inlined_call_operand.vmem [shape: bf16[8,192,384], index: 4, kind: input, shape index: {}]
  %s5 = inlined_call_operand.vmem [shape: f32[8,384], index: 5, kind: input, shape index: {}]
  %s6 = inlined_call_operand.vmem [shape: bf16[4,384,192], index: 6, kind: input, shape index: {}]
  %s7 = inlined_call_operand.vmem [shape: f32[4,192], index: 7, kind: input, shape index: {}]
  %s8 = inlined_call_operand.vmem [shape: f32[32,64], index: 8, kind: output, shape index: {}]
  %s9 = sld [smem:[#allocation0]]
  $region42: #{model_forward.1} parent=0
    _
  %s11 = ssub.s32 1, %s9
  %s12 = scalar_select 0, %s11, %s9
  // Predicated region
  $region2: #{model_forward.1} parent=0 // pred_check
    _
  $region3: #{model_forward.1} parent=0 // pred_check_branch
    %14 = sbr.rel (0) target = $region5
  $region4: #{model_forward.1} parent=0 // pred_region
    _
  $region5: #{model_forward.1} parent=0 // pred_fallthru
    _
  // Predicated region
  $region6: #{model_forward.1} parent=0 // pred_check
    _
  $region7: #{model_forward.1} parent=0 // pred_check_branch
    %16 = sbr.rel (0) target = $region9
  $region8: #{model_forward.1} parent=0 // pred_region
    _
  $region9: #{model_forward.1} parent=0 // pred_fallthru
    _
  // Predicated region
  $region10: #{model_forward.1} parent=0 // pred_check
    _
  $region11: #{model_forward.1} parent=0 // pred_check_branch
    %18 = sbr.rel (0) target = $region13
  $region12: #{model_forward.1} parent=0 // pred_region
    _
  $region13: #{model_forward.1} parent=0 // pred_fallthru
    _
  // Predicated region
  $region14: #{model_forward.1} parent=0 // pred_check
    _
  $region15: #{model_forward.1} parent=0 // pred_check_branch
    %20 = sbr.rel (0) target = $region17
  $region16: #{model_forward.1} parent=0 // pred_region
    _
  $region17: #{model_forward.1} parent=0 // pred_fallthru
    _
  // Predicated region
  $region18: #{model_forward.1} parent=0 // pred_check
    _
  $region19: #{model_forward.1} parent=0 // pred_check_branch
    %22 = sbr.rel (0) target = $region21
  $region20: #{model_forward.1} parent=0 // pred_region
    _
  $region21: #{model_forward.1} parent=0 // pred_fallthru
    _
  // Predicated region
  $region22: #{model_forward.1} parent=0 // pred_check
    _
  $region23: #{model_forward.1} parent=0 // pred_check_branch
    %24 = sbr.rel (0) target = $region25
  $region24: #{model_forward.1} parent=0 // pred_region
    _
  $region25: #{model_forward.1} parent=0 // pred_fallthru
    _
  // Predicated region
  $region26: #{model_forward.1} parent=0 // pred_check
    _
  $region27: #{model_forward.1} parent=0 // pred_check_branch
    %26 = sbr.rel (0) target = $region29
  $region28: #{model_forward.1} parent=0 // pred_region
    _
  $region29: #{model_forward.1} parent=0 // pred_fallthru
    _
  // Predicated region
  $region30: #{model_forward.1} parent=0 // pred_check
    _
  $region31: #{model_forward.1} parent=0 // pred_check_branch
    %28 = sbr.rel (0) target = $region33
  $region32: #{model_forward.1} parent=0 // pred_region
    _
  $region33: #{model_forward.1} parent=0 // pred_fallthru
    _
  %v30 = vld [vmem:[%s0] sm:$0xff]
  %v31 = vld [vmem:[%s0 + $0x8] sm:$0xff]
  %v32 = vld [vmem:[%s0 + $0x10] sm:$0xff]
  %v33 = vld [vmem:[%s0 + $0x18] sm:$0xff]
  %v34 = vld [vmem:[%s1] sm:$0xff]
  %v35 = vld [vmem:[%s1 + $0x8] sm:$0xff]
  %v36 = vld [vmem:[%s1 + $0x10] sm:$0xff]
  %v37 = vld [vmem:[%s1 + $0x18] sm:$0xff]
  %v38 = vld [vmem:[%s1 + $0x20] sm:$0xff]
  %v39 = vld [vmem:[%s1 + $0x28] sm:$0xff]
  %v40 = vld [vmem:[%s1 + $0x30] sm:$0xff]
  %v41 = vld [vmem:[%s1 + $0x38] sm:$0xff]
  %v42 = vld [vmem:[%s3] ss:$0 sm:$0xff]
  %vm43 = vcmask 523264
  %v45 = vsel %vm43, %v30, 0
  %v48 = vsel %vm43, %v31, 0
  %v51 = vsel %vm43, %v32, 0
  %v54 = vsel %vm43, %v33, 0
  %56 = vmatpush.msra.mxu0 0.0
  %57 = vmatpush.msra.mxu0 0.0
  %58 = vmatpush.msra.mxu0 0.0
  %59 = vmatpush.msra.mxu0 0.0
  %60 = vmatpush.msra.mxu0 0.0
  %61 = vmatpush.msra.mxu0 0.0
  %62 = vmatpush.msra.mxu0 0.0
  %63 = vmatpush.msra.mxu0 0.0
  %64 = vmatpush.msra.mxu0 %v41
  %65 = vmatpush.msra.mxu0 %v40
  %66 = vmatpush.msra.mxu0 %v39
  %67 = vmatpush.msra.mxu0 %v38
  %68 = vmatpush.msra.mxu0 %v37
  %69 = vmatpush.msra.mxu0 %v36
  %70 = vmatpush.msra.mxu0 %v35
  %71 = vmatpush.msra.mxu0 %v34
  %72 = vmatmul.f32.gmra.mxu0 %v45
  %v73 = vpop.f32.mrf.mxu0
  %v74 = vadd.f32 %v42, %v73
  %75 = vmatmul.f32.gmra.mxu0 %v48
  %v76 = vpop.f32.mrf.mxu0
  %v77 = vadd.f32 %v42, %v76
  %78 = vmatmul.f32.gmra.mxu0 %v51
  %v79 = vpop.f32.mrf.mxu0
  %v80 = vadd.f32 %v42, %v79
  %81 = vmatmul.f32.gmra.mxu0 %v54
  %v82 = vpop.f32.mrf.mxu0
  %v83 = vadd.f32 %v42, %v82
  %84 = vdwg.mxu0
  %v85 = vld [vmem:[%s2] sm:$0xff]
  %v86 = vld [vmem:[%s2 + $0x8] sm:$0xff]
  %v87 = vld [vmem:[%s2 + $0x10] sm:$0xff]
  %v88 = vld [vmem:[%s2 + $0x18] sm:$0xff]
  %v89 = vld [vmem:[%s2 + $0x20] sm:$0xff]
  %v90 = vld [vmem:[%s2 + $0x28] sm:$0xff]
  %v91 = vld [vmem:[%s2 + $0x30] sm:$0xff]
  %v92 = vld [vmem:[%s2 + $0x38] sm:$0xff]
  %v93 = vld [vmem:[%s2 + $0x40] sm:$0xff]
  %v94 = vld [vmem:[%s2 + $0x48] sm:$0xff]
  %v95 = vld [vmem:[%s2 + $0x50] sm:$0xff]
  %v96 = vld [vmem:[%s2 + $0x58] sm:$0xff]
  %v97 = vld [vmem:[%s2 + $0x60] sm:$0xff]
  %v98 = vld [vmem:[%s2 + $0x68] sm:$0xff]
  %v99 = vld [vmem:[%s2 + $0x70] sm:$0xff]
  %v100 = vld [vmem:[%s2 + $0x78] sm:$0xff]
  %v101 = vld [vmem:[%s2 + $0x80] sm:$0xff]
  %v102 = vld [vmem:[%s2 + $0x88] sm:$0xff]
  %v103 = vld [vmem:[%s2 + $0x90] sm:$0xff]
  %v104 = vld [vmem:[%s2 + $0x98] sm:$0xff]
  %v105 = vld [vmem:[%s2 + $0xa0] sm:$0xff]
  %v106 = vld [vmem:[%s2 + $0xa8] sm:$0xff]
  %v107 = vld [vmem:[%s2 + $0xb0] sm:$0xff]
  %v108 = vld [vmem:[%s2 + $0xb8] sm:$0xff]
  %v109 = vld [vmem:[%s2 + $0xc0] sm:$0xff]
  %v110 = vld [vmem:[%s2 + $0xc8] sm:$0xff]
  %v111 = vld [vmem:[%s2 + $0xd0] sm:$0xff]
  %v112 = vld [vmem:[%s2 + $0xd8] sm:$0xff]
  %v113 = vld [vmem:[%s2 + $0xe0] sm:$0xff]
  %v114 = vld [vmem:[%s2 + $0xe8] sm:$0xff]
  %v115 = vld [vmem:[%s2 + $0xf0] sm:$0xff]
  %v116 = vld [vmem:[%s2 + $0xf8] sm:$0xff]
  %s117 = scalar_lea.vmem %s3, 4
  %v118 = vld [vmem:[%s117] ss:$8 sm:$0x3]
  %v120 = vperm.slane %v118, 0
  %v121 = vperm.slane %v118, 1
  %124 = vmatpush.msra.mxu0 %v115
  %125 = vmatpush.msra.mxu0 %v113
  %126 = vmatpush.msra.mxu0 %v111
  %127 = vmatpush.msra.mxu0 %v109
  %128 = vmatpush.msra.mxu0 %v107
  %129 = vmatpush.msra.mxu0 %v105
  %130 = vmatpush.msra.mxu0 %v103
  %131 = vmatpush.msra.mxu0 %v101
  %132 = vmatpush.msra.mxu0 %v99
  %133 = vmatpush.msra.mxu0 %v97
  %134 = vmatpush.msra.mxu0 %v95
  %135 = vmatpush.msra.mxu0 %v93
  %136 = vmatpush.msra.mxu0 %v91
  %137 = vmatpush.msra.mxu0 %v89
  %138 = vmatpush.msra.mxu0 %v87
  %139 = vmatpush.msra.mxu0 %v85
  %140 = vmatmul.f32.gmra.mxu0 %v30
  %v141 = vpop.f32.mrf.mxu0
  %v142 = vadd.f32 %v120, %v141
  %143 = vmatmul.f32.gmra.mxu0 %v31
  %v144 = vpop.f32.mrf.mxu0
  %v145 = vadd.f32 %v120, %v144
  %146 = vmatmul.f32.gmra.mxu0 %v32
  %v147 = vpop.f32.mrf.mxu0
  %v148 = vadd.f32 %v120, %v147
  %149 = vmatmul.f32.gmra.mxu0 %v33
  %v150 = vpop.f32.mrf.mxu0
  %v151 = vadd.f32 %v120, %v150
  %152 = vdwg.mxu0
  %153 = vmatpush.msra.mxu0 %v116
  %154 = vmatpush.msra.mxu0 %v114
  %155 = vmatpush.msra.mxu0 %v112
  %156 = vmatpush.msra.mxu0 %v110
  %157 = vmatpush.msra.mxu0 %v108
  %158 = vmatpush.msra.mxu0 %v106
  %159 = vmatpush.msra.mxu0 %v104
  %160 = vmatpush.msra.mxu0 %v102
  %161 = vmatpush.msra.mxu0 %v100
  %162 = vmatpush.msra.mxu0 %v98
  %163 = vmatpush.msra.mxu0 %v96
  %164 = vmatpush.msra.mxu0 %v94
  %165 = vmatpush.msra.mxu0 %v92
  %166 = vmatpush.msra.mxu0 %v90
  %167 = vmatpush.msra.mxu0 %v88
  %168 = vmatpush.msra.mxu0 %v86
  %169 = vmatmul.f32.gmra.mxu0 %v30
  %v170 = vpop.f32.mrf.mxu0
  %v171 = vadd.f32 %v121, %v170
  %172 = vmatmul.f32.gmra.mxu0 %v31
  %v173 = vpop.f32.mrf.mxu0
  %v174 = vadd.f32 %v121, %v173
  %175 = vmatmul.f32.gmra.mxu0 %v32
  %v176 = vpop.f32.mrf.mxu0
  %v177 = vadd.f32 %v121, %v176
  %178 = vmatmul.f32.gmra.mxu0 %v33
  %v179 = vpop.f32.mrf.mxu0
  %v180 = vadd.f32 %v121, %v179
  %181 = vdwg.mxu0
  %v182 = vld [vmem:[%s1 + $0x40] sm:$0xff]
  %v183 = vld [vmem:[%s1 + $0x48] sm:$0xff]
  %v184 = vld [vmem:[%s1 + $0x50] sm:$0xff]
  %v185 = vld [vmem:[%s1 + $0x58] sm:$0xff]
  %v186 = vld [vmem:[%s1 + $0x60] sm:$0xff]
  %v187 = vld [vmem:[%s1 + $0x68] sm:$0xff]
  %v188 = vld [vmem:[%s1 + $0x70] sm:$0xff]
  %v189 = vld [vmem:[%s1 + $0x78] sm:$0xff]
  %v190 = vld [vmem:[%s3 + $0x1] ss:$0 sm:$0xff]
  %v192 = vsel %vm43, %v74, 0
  %v195 = vsel %vm43, %v77, 0
  %v198 = vsel %vm43, %v80, 0
  %v201 = vsel %vm43, %v83, 0
  %203 = vmatpush.msra.mxu0 0.0
  %204 = vmatpush.msra.mxu0 0.0
  %205 = vmatpush.msra.mxu0 0.0
  %206 = vmatpush.msra.mxu0 0.0
  %207 = vmatpush.msra.mxu0 0.0
  %208 = vmatpush.msra.mxu0 0.0
  %209 = vmatpush.msra.mxu0 0.0
  %210 = vmatpush.msra.mxu0 0.0
  %211 = vmatpush.msra.mxu0 %v189
  %212 = vmatpush.msra.mxu0 %v188
  %213 = vmatpush.msra.mxu0 %v187
  %214 = vmatpush.msra.mxu0 %v186
  %215 = vmatpush.msra.mxu0 %v185
  %216 = vmatpush.msra.mxu0 %v184
  %217 = vmatpush.msra.mxu0 %v183
  %218 = vmatpush.msra.mxu0 %v182
  %219 = vmatmul.f32.gmra.mxu0 %v192
  %v220 = vpop.f32.mrf.mxu0
  %v221 = vadd.f32 %v190, %v220
  %222 = vmatmul.f32.gmra.mxu0 %v195
  %v223 = vpop.f32.mrf.mxu0
  %v224 = vadd.f32 %v190, %v223
  %225 = vmatmul.f32.gmra.mxu0 %v198
  %v226 = vpop.f32.mrf.mxu0
  %v227 = vadd.f32 %v190, %v226
  %228 = vmatmul.f32.gmra.mxu0 %v201
  %v229 = vpop.f32.mrf.mxu0
  %v230 = vadd.f32 %v190, %v229
  %231 = vdwg.mxu0
  %v232 = vmax.f32 %v221, 0.0
  %v233 = vmax.f32 %v224, 0.0
  %v234 = vmax.f32 %v227, 0.0
  %v235 = vmax.f32 %v230, 0.0
  %v236 = vld [vmem:[%s2 + $0x100] sm:$0xff]
  %v237 = vld [vmem:[%s2 + $0x108] sm:$0xff]
  %v238 = vld [vmem:[%s2 + $0x110] sm:$0xff]
  %v239 = vld [vmem:[%s2 + $0x118] sm:$0xff]
  %v240 = vld [vmem:[%s2 + $0x120] sm:$0xff]
  %v241 = vld [vmem:[%s2 + $0x128] sm:$0xff]
  %v242 = vld [vmem:[%s2 + $0x130] sm:$0xff]
  %v243 = vld [vmem:[%s2 + $0x138] sm:$0xff]
  %v244 = vld [vmem:[%s2 + $0x140] sm:$0xff]
  %v245 = vld [vmem:[%s2 + $0x148] sm:$0xff]
  %v246 = vld [vmem:[%s2 + $0x150] sm:$0xff]
  %v247 = vld [vmem:[%s2 + $0x158] sm:$0xff]
  %v248 = vld [vmem:[%s2 + $0x160] sm:$0xff]
  %v249 = vld [vmem:[%s2 + $0x168] sm:$0xff]
  %v250 = vld [vmem:[%s2 + $0x170] sm:$0xff]
  %v251 = vld [vmem:[%s2 + $0x178] sm:$0xff]
  %s252 = scalar_lea.vmem %s3, 5
  %v253 = vld [vmem:[%s252] ss:$8 sm:$0x3]
  %v255 = vperm.slane %v253, 0
  %v256 = vperm.slane %v253, 1
  %v260 = vsel %vm43, %v232, 0
  %v263 = vsel %vm43, %v233, 0
  %v266 = vsel %vm43, %v234, 0
  %v269 = vsel %vm43, %v235, 0
  %271 = vmatpush.msra.mxu0 0.0
  %272 = vmatpush.msra.mxu0 0.0
  %273 = vmatpush.msra.mxu0 0.0
  %274 = vmatpush.msra.mxu0 0.0
  %275 = vmatpush.msra.mxu0 0.0
  %276 = vmatpush.msra.mxu0 0.0
  %277 = vmatpush.msra.mxu0 0.0
  %278 = vmatpush.msra.mxu0 0.0
  %279 = vmatpush.msra.mxu0 %v250
  %280 = vmatpush.msra.mxu0 %v248
  %281 = vmatpush.msra.mxu0 %v246
  %282 = vmatpush.msra.mxu0 %v244
  %283 = vmatpush.msra.mxu0 %v242
  %284 = vmatpush.msra.mxu0 %v240
  %285 = vmatpush.msra.mxu0 %v238
  %286 = vmatpush.msra.mxu0 %v236
  %287 = vmatmul.f32.gmra.mxu0 %v260
  %v288 = vpop.f32.mrf.mxu0
  %v289 = vadd.f32 %v255, %v288
  %290 = vmatmul.f32.gmra.mxu0 %v263
  %v291 = vpop.f32.mrf.mxu0
  %v292 = vadd.f32 %v255, %v291
  %293 = vmatmul.f32.gmra.mxu0 %v266
  %v294 = vpop.f32.mrf.mxu0
  %v295 = vadd.f32 %v255, %v294
  %296 = vmatmul.f32.gmra.mxu0 %v269
  %v297 = vpop.f32.mrf.mxu0
  %v298 = vadd.f32 %v255, %v297
  %299 = vdwg.mxu0
  %300 = vmatpush.msra.mxu0 0.0
  %301 = vmatpush.msra.mxu0 0.0
  %302 = vmatpush.msra.mxu0 0.0
  %303 = vmatpush.msra.mxu0 0.0
  %304 = vmatpush.msra.mxu0 0.0
  %305 = vmatpush.msra.mxu0 0.0
  %306 = vmatpush.msra.mxu0 0.0
  %307 = vmatpush.msra.mxu0 0.0
  %308 = vmatpush.msra.mxu0 %v251
  %309 = vmatpush.msra.mxu0 %v249
  %310 = vmatpush.msra.mxu0 %v247
  %311 = vmatpush.msra.mxu0 %v245
  %312 = vmatpush.msra.mxu0 %v243
  %313 = vmatpush.msra.mxu0 %v241
  %314 = vmatpush.msra.mxu0 %v239
  %315 = vmatpush.msra.mxu0 %v237
  %316 = vmatmul.f32.gmra.mxu0 %v260
  %v317 = vpop.f32.mrf.mxu0
  %v318 = vadd.f32 %v256, %v317
  %319 = vmatmul.f32.gmra.mxu0 %v263
  %v320 = vpop.f32.mrf.mxu0
  %v321 = vadd.f32 %v256, %v320
  %322 = vmatmul.f32.gmra.mxu0 %v266
  %v323 = vpop.f32.mrf.mxu0
  %v324 = vadd.f32 %v256, %v323
  %325 = vmatmul.f32.gmra.mxu0 %v269
  %v326 = vpop.f32.mrf.mxu0
  %v327 = vadd.f32 %v256, %v326
  %328 = vdwg.mxu0
  %v329 = vmul.f32 %v289, 0.5
  %v330 = vmul.f32 %v318, 0.5
  %v331 = vmul.f32 %v292, 0.5
  %v332 = vmul.f32 %v321, 0.5
  %v333 = vmul.f32 %v295, 0.5
  %v334 = vmul.f32 %v324, 0.5
  %v335 = vmul.f32 %v298, 0.5
  %v336 = vmul.f32 %v327, 0.5
  %v337 = vtanh.pop %v329
  %v338 = vtanh.pop %v330
  %v339 = vtanh.pop %v331
  %v340 = vtanh.pop %v332
  %v341 = vtanh.pop %v333
  %v342 = vtanh.pop %v334
  %v343 = vtanh.pop %v335
  %v344 = vtanh.pop %v336
  %v345 = vadd.f32 %v337, 1.0
  %v346 = vadd.f32 %v338, 1.0
  %v347 = vadd.f32 %v339, 1.0
  %v348 = vadd.f32 %v340, 1.0
  %v349 = vadd.f32 %v341, 1.0
  %v350 = vadd.f32 %v342, 1.0
  %v351 = vadd.f32 %v343, 1.0
  %v352 = vadd.f32 %v344, 1.0
  %v353 = vmul.f32 %v345, 0.5
  %v354 = vmul.f32 %v346, 0.5
  %v355 = vmul.f32 %v347, 0.5
  %v356 = vmul.f32 %v348, 0.5
  %v357 = vmul.f32 %v349, 0.5
  %v358 = vmul.f32 %v350, 0.5
  %v359 = vmul.f32 %v351, 0.5
  %v360 = vmul.f32 %v352, 0.5
  %v361 = vmul.f32 %v353, %v142
  %v362 = vmul.f32 %v354, %v171
  %v363 = vmul.f32 %v355, %v145
  %v364 = vmul.f32 %v356, %v174
  %v365 = vmul.f32 %v357, %v148
  %v366 = vmul.f32 %v358, %v177
  %v367 = vmul.f32 %v359, %v151
  %v368 = vmul.f32 %v360, %v180
  %v369 = vlaneseq
  %v370 = vshrl.u32 %v369, 7
  %v371 = vadd.s32 %v370, 8
  %v372 = vadd.s32 %v370, 16
  %v373 = vadd.s32 %v370, 24
  %v374 = vlaneseq
  %v375 = vand.u32 %v374, 127
  %v376 = vmul.u32 %v375, 16
  %vm377 = vcmp.ge.s32.totalorder %v370, %v376
  %vm378 = vcmp.ge.s32.totalorder %v371, %v376
  %vm379 = vcmp.ge.s32.totalorder %v372, %v376
  %vm380 = vcmp.ge.s32.totalorder %v373, %v376
  %v381 = vadd.s32 %v376, 16
  %vm382 = vcmp.lt.s32.totalorder %v370, %v381
  %vm383 = vcmp.lt.s32.totalorder %v371, %v381
  %vm384 = vcmp.lt.s32.totalorder %v372, %v381
  %vm385 = vcmp.lt.s32.totalorder %v373, %v381
  %vm386 = vmand %vm377, %vm382
  %vm387 = vmand %vm378, %vm383
  %vm388 = vmand %vm379, %vm384
  %vm389 = vmand %vm380, %vm385
  %v390 = vsel %vm386, 1.0, 0.0
  %v391 = vsel %vm387, 1.0, 0.0
  %v392 = vsel %vm388, 1.0, 0.0
  %v393 = vsel %vm389, 1.0, 0.0
  %v394 = vmul.u32 %v370, 16
  %vm395 = vcmp.ge.s32.totalorder %v375, %v394
  %v396 = vadd.s32 %v394, 16
  %vm397 = vcmp.lt.s32.totalorder %v375, %v396
  %vm398 = vmand %vm395, %vm397
  %v399 = vsel %vm398, 0.0625, 0.0
  %vm400 = vcmask 261120
  %v402 = vsel %vm400, %v399, 0
  %404 = vmatpush.msra.mxu0 0.0
  %405 = vmatpush.msra.mxu0 0.0
  %406 = vmatpush.msra.mxu0 0.0
  %407 = vmatpush.msra.mxu0 0.0
  %408 = vmatpush.msra.mxu0 0.0
  %409 = vmatpush.msra.mxu0 0.0
  %410 = vmatpush.msra.mxu0 0.0
  %411 = vmatpush.msra.mxu0 0.0
  %412 = vmatpush.msra.mxu0 0.0
  %413 = vmatpush.msra.mxu0 0.0
  %414 = vmatpush.msra.mxu0 0.0
  %415 = vmatpush.msra.mxu0 0.0
  %416 = vmatpush.msra.mxu0 %v367
  %417 = vmatpush.msra.mxu0 %v365
  %418 = vmatpush.msra.mxu0 %v363
  %419 = vmatpush.msra.mxu0 %v361
  %420 = vmatmul.f32.gmra.mxu0 %v402
  %v421 = vpop.f32.mrf.mxu0
  %v422 = vadd.f32 0.0, %v421
  %423 = vdwg.mxu0
  %424 = vmatpush.msra.mxu0 0.0
  %425 = vmatpush.msra.mxu0 0.0
  %426 = vmatpush.msra.mxu0 0.0
  %427 = vmatpush.msra.mxu0 0.0
  %428 = vmatpush.msra.mxu0 0.0
  %429 = vmatpush.msra.mxu0 0.0
  %430 = vmatpush.msra.mxu0 0.0
  %431 = vmatpush.msra.mxu0 0.0
  %432 = vmatpush.msra.mxu0 0.0
  %433 = vmatpush.msra.mxu0 0.0
  %434 = vmatpush.msra.mxu0 0.0
  %435 = vmatpush.msra.mxu0 0.0
  %436 = vmatpush.msra.mxu0 %v368
  %437 = vmatpush.msra.mxu0 %v366
  %438 = vmatpush.msra.mxu0 %v364
  %439 = vmatpush.msra.mxu0 %v362
  %440 = vmatmul.f32.gmra.mxu0 %v402
  %v441 = vpop.f32.mrf.mxu0
  %v442 = vadd.f32 0.0, %v441
  %443 = vdwg.mxu0
  %v444 = vld [vmem:[%s1 + $0xc0] sm:$0xff]
  %v445 = vld [vmem:[%s1 + $0xc8] sm:$0xff]
  %v446 = vld [vmem:[%s1 + $0xd0] sm:$0xff]
  %v447 = vld [vmem:[%s1 + $0xd8] sm:$0xff]
  %v448 = vld [vmem:[%s1 + $0xe0] sm:$0xff]
  %v449 = vld [vmem:[%s1 + $0xe8] sm:$0xff]
  %v450 = vld [vmem:[%s1 + $0xf0] sm:$0xff]
  %v451 = vld [vmem:[%s1 + $0xf8] sm:$0xff]
  %v452 = vld [vmem:[%s1 + $0x100] sm:$0xff]
  %v453 = vld [vmem:[%s1 + $0x108] sm:$0xff]
  %v454 = vld [vmem:[%s1 + $0x110] sm:$0xff]
  %v455 = vld [vmem:[%s1 + $0x118] sm:$0xff]
  %v456 = vld [vmem:[%s1 + $0x120] sm:$0xff]
  %v457 = vld [vmem:[%s1 + $0x128] sm:$0xff]
  %v458 = vld [vmem:[%s1 + $0x130] sm:$0xff]
  %v459 = vld [vmem:[%s1 + $0x138] sm:$0xff]
  %v460 = vld [vmem:[%s1 + $0x140] sm:$0xff]
  %v461 = vld [vmem:[%s1 + $0x148] sm:$0xff]
  %v462 = vld [vmem:[%s1 + $0x150] sm:$0xff]
  %v463 = vld [vmem:[%s1 + $0x158] sm:$0xff]
  %v464 = vld [vmem:[%s1 + $0x160] sm:$0xff]
  %v465 = vld [vmem:[%s1 + $0x168] sm:$0xff]
  %v466 = vld [vmem:[%s1 + $0x170] sm:$0xff]
  %v467 = vld [vmem:[%s1 + $0x178] sm:$0xff]
  %v468 = vld [vmem:[%s3 + $0x3] ss:$0 sm:$0xff]
  %v470 = vsel %vm43, %v442, 0
  %472 = vmatpush.msra.mxu0 %v459
  %473 = vmatpush.msra.mxu0 %v458
  %474 = vmatpush.msra.mxu0 %v457
  %475 = vmatpush.msra.mxu0 %v456
  %476 = vmatpush.msra.mxu0 %v455
  %477 = vmatpush.msra.mxu0 %v454
  %478 = vmatpush.msra.mxu0 %v453
  %479 = vmatpush.msra.mxu0 %v452
  %480 = vmatpush.msra.mxu0 %v451
  %481 = vmatpush.msra.mxu0 %v450
  %482 = vmatpush.msra.mxu0 %v449
  %483 = vmatpush.msra.mxu0 %v448
  %484 = vmatpush.msra.mxu0 %v447
  %485 = vmatpush.msra.mxu0 %v446
  %486 = vmatpush.msra.mxu0 %v445
  %487 = vmatpush.msra.mxu0 %v444
  %488 = vmatmul.f32.gmra.mxu0 %v422
  %v489 = vpop.f32.mrf.mxu0
  %v490 = vadd.f32 %v468, %v489
  %491 = vdwg.mxu0
  %492 = vmatpush.msra.mxu0 0.0
  %493 = vmatpush.msra.mxu0 0.0
  %494 = vmatpush.msra.mxu0 0.0
  %495 = vmatpush.msra.mxu0 0.0
  %496 = vmatpush.msra.mxu0 0.0
  %497 = vmatpush.msra.mxu0 0.0
  %498 = vmatpush.msra.mxu0 0.0
  %499 = vmatpush.msra.mxu0 0.0
  %500 = vmatpush.msra.mxu0 %v467
  %501 = vmatpush.msra.mxu0 %v466
  %502 = vmatpush.msra.mxu0 %v465
  %503 = vmatpush.msra.mxu0 %v464
  %504 = vmatpush.msra.mxu0 %v463
  %505 = vmatpush.msra.mxu0 %v462
  %506 = vmatpush.msra.mxu0 %v461
  %507 = vmatpush.msra.mxu0 %v460
  %508 = vmatmul.f32.gmra.mxu0 %v470
  %v509 = vpop.f32.mrf.mxu0
  %v510 = vadd.f32 %v490, %v509
  %511 = vdwg.mxu0
  %vm512 = vcmask 17408
  %v513 = vsel %vm512, %v510, -inf
  %514 = vmax.xlane.f32.xlu0 %v513
  %v515 = vpop.xlane.xlu0 %514
  %v516 = vsub.f32 %v510, %v515
  %v517 = vmul.f32 %v516, 1.442695
  %v518 = vpow.pop %v517
  %v519 = vsel %vm512, %v518, 0.0
  %520 = vadd.xlane.f32.xlu0 %v519
  %v521 = vpop.xlane.xlu0 %520
  %v522 = vrcp.pop %v521
  %v523 = vmul.f32 %v518, %v522
  %v524 = vadd.s32 %v375, 128
  %v525 = vmul.u32 %v370, 64
  %vm526 = vcmp.ge.s32.totalorder %v375, %v525
  %vm527 = vcmp.ge.s32.totalorder %v524, %v525
  %v528 = vadd.s32 %v525, 64
  %vm529 = vcmp.lt.s32.totalorder %v375, %v528
  %vm530 = vcmp.lt.s32.totalorder %v524, %v528
  %vm531 = vmand %vm526, %vm529
  %vm532 = vmand %vm527, %vm530
  %v533 = vsel %vm531, 1.0, 0.0
  %v534 = vsel %vm532, 1.0, 0.0
  %vm535 = vcmask 15360
  %v537 = vsel %vm535, %v390, 0
  %v540 = vsel %vm535, %v391, 0
  %v543 = vsel %vm535, %v392, 0
  %v546 = vsel %vm535, %v393, 0
  %vm548 = vcmask 1041408
  %v550 = vsel %vm548, %v523, 0
  %552 = vmatpush.msra.mxu0 0.0
  %553 = vmatpush.msra.mxu0 0.0
  %554 = vmatpush.msra.mxu0 0.0
  %555 = vmatpush.msra.mxu0 0.0
  %556 = vmatpush.msra.mxu0 0.0
  %557 = vmatpush.msra.mxu0 0.0
  %558 = vmatpush.msra.mxu0 0.0
  %559 = vmatpush.msra.mxu0 0.0
  %560 = vmatpush.msra.mxu0 0.0
  %561 = vmatpush.msra.mxu0 0.0
  %562 = vmatpush.msra.mxu0 0.0
  %563 = vmatpush.msra.mxu0 0.0
  %564 = vmatpush.msra.mxu0 0.0
  %565 = vmatpush.msra.mxu0 0.0
  %566 = vmatpush.msra.mxu0 0.0
  %567 = vmatpush.msra.mxu0 %v550
  %568 = vmatmul.f32.gmra.mxu0 %v537
  %v569 = vpop.f32.mrf.mxu0
  %v570 = vadd.f32 0.0, %v569
  %571 = vmatmul.f32.gmra.mxu0 %v540
  %v572 = vpop.f32.mrf.mxu0
  %v573 = vadd.f32 0.0, %v572
  %574 = vmatmul.f32.gmra.mxu0 %v543
  %v575 = vpop.f32.mrf.mxu0
  %v576 = vadd.f32 0.0, %v575
  %577 = vmatmul.f32.gmra.mxu0 %v546
  %v578 = vpop.f32.mrf.mxu0
  %v579 = vadd.f32 0.0, %v578
  %580 = vdwg.mxu0
  %vm581 = vcmask 23552
  %v583 = vsel %vm581, %v570, 0
  %v586 = vsel %vm581, %v573, 0
  %v589 = vsel %vm581, %v576, 0
  %v592 = vsel %vm581, %v579, 0
  %vm594 = vcmask 1042432
  %v596 = vsel %vm594, %v533, 0
  %v599 = vsel %vm594, %v534, 0
  %601 = vmatpush.msra.mxu0 0.0
  %602 = vmatpush.msra.mxu0 0.0
  %603 = vmatpush.msra.mxu0 0.0
  %604 = vmatpush.msra.mxu0 0.0
  %605 = vmatpush.msra.mxu0 0.0
  %606 = vmatpush.msra.mxu0 0.0
  %607 = vmatpush.msra.mxu0 0.0
  %608 = vmatpush.msra.mxu0 0.0
  %609 = vmatpush.msra.mxu0 0.0
  %610 = vmatpush.msra.mxu0 0.0
  %611 = vmatpush.msra.mxu0 0.0
  %612 = vmatpush.msra.mxu0 0.0
  %613 = vmatpush.msra.mxu0 0.0
  %614 = vmatpush.msra.mxu0 0.0
  %615 = vmatpush.msra.mxu0 0.0
  %616 = vmatpush.msra.mxu0 %v596
  %617 = vmatmul.f32.gmra.mxu0 %v583
  %v618 = vpop.f32.mrf.mxu0
  %v619 = vadd.f32 0.0, %v618
  %620 = vmatmul.f32.gmra.mxu0 %v586
  %v621 = vpop.f32.mrf.mxu0
  %v622 = vadd.f32 0.0, %v621
  %623 = vmatmul.f32.gmra.mxu0 %v589
  %v624 = vpop.f32.mrf.mxu0
  %v625 = vadd.f32 0.0, %v624
  %626 = vmatmul.f32.gmra.mxu0 %v592
  %v627 = vpop.f32.mrf.mxu0
  %v628 = vadd.f32 0.0, %v627
  %629 = vdwg.mxu0
  %630 = vmatpush.msra.mxu0 0.0
  %631 = vmatpush.msra.mxu0 0.0
  %632 = vmatpush.msra.mxu0 0.0
  %633 = vmatpush.msra.mxu0 0.0
  %634 = vmatpush.msra.mxu0 0.0
  %635 = vmatpush.msra.mxu0 0.0
  %636 = vmatpush.msra.mxu0 0.0
  %637 = vmatpush.msra.mxu0 0.0
  %638 = vmatpush.msra.mxu0 0.0
  %639 = vmatpush.msra.mxu0 0.0
  %640 = vmatpush.msra.mxu0 0.0
  %641 = vmatpush.msra.mxu0 0.0
  %642 = vmatpush.msra.mxu0 0.0
  %643 = vmatpush.msra.mxu0 0.0
  %644 = vmatpush.msra.mxu0 0.0
  %645 = vmatpush.msra.mxu0 %v599
  %646 = vmatmul.f32.gmra.mxu0 %v583
  %v647 = vpop.f32.mrf.mxu0
  %v648 = vadd.f32 0.0, %v647
  %649 = vmatmul.f32.gmra.mxu0 %v586
  %v650 = vpop.f32.mrf.mxu0
  %v651 = vadd.f32 0.0, %v650
  %652 = vmatmul.f32.gmra.mxu0 %v589
  %v653 = vpop.f32.mrf.mxu0
  %v654 = vadd.f32 0.0, %v653
  %655 = vmatmul.f32.gmra.mxu0 %v592
  %v656 = vpop.f32.mrf.mxu0
  %v657 = vadd.f32 0.0, %v656
  %658 = vdwg.mxu0
  %v660 = vsel %vm400, 1.0, 0
  %662 = vmatpush.msra.mxu0 0.0
  %663 = vmatpush.msra.mxu0 0.0
  %664 = vmatpush.msra.mxu0 0.0
  %665 = vmatpush.msra.mxu0 0.0
  %666 = vmatpush.msra.mxu0 0.0
  %667 = vmatpush.msra.mxu0 0.0
  %668 = vmatpush.msra.mxu0 0.0
  %669 = vmatpush.msra.mxu0 0.0
  %670 = vmatpush.msra.mxu0 0.0
  %671 = vmatpush.msra.mxu0 0.0
  %672 = vmatpush.msra.mxu0 0.0
  %673 = vmatpush.msra.mxu0 0.0
  %674 = vmatpush.msra.mxu0 %v367
  %675 = vmatpush.msra.mxu0 %v365
  %676 = vmatpush.msra.mxu0 %v363
  %677 = vmatpush.msra.mxu0 %v361
  %678 = vmatmul.f32.gmra.mxu0 %v660
  %v679 = vpop.f32.mrf.mxu0
  %v680 = vadd.f32 0.0, %v679
  %681 = vdwg.mxu0
  %682 = vmatpush.msra.mxu0 0.0
  %683 = vmatpush.msra.mxu0 0.0
  %684 = vmatpush.msra.mxu0 0.0
  %685 = vmatpush.msra.mxu0 0.0
  %686 = vmatpush.msra.mxu0 0.0
  %687 = vmatpush.msra.mxu0 0.0
  %688 = vmatpush.msra.mxu0 0.0
  %689 = vmatpush.msra.mxu0 0.0
  %690 = vmatpush.msra.mxu0 0.0
  %691 = vmatpush.msra.mxu0 0.0
  %692 = vmatpush.msra.mxu0 0.0
  %693 = vmatpush.msra.mxu0 0.0
  %694 = vmatpush.msra.mxu0 %v368
  %695 = vmatpush.msra.mxu0 %v366
  %696 = vmatpush.msra.mxu0 %v364
  %697 = vmatpush.msra.mxu0 %v362
  %698 = vmatmul.f32.gmra.mxu0 %v660
  %v699 = vpop.f32.mrf.mxu0
  %v700 = vadd.f32 0.0, %v699
  %701 = vdwg.mxu0
  %v702 = vmul.f32 %v361, %v361
  %v703 = vmul.f32 %v362, %v362
  %v704 = vmul.f32 %v363, %v363
  %v705 = vmul.f32 %v364, %v364
  %v706 = vmul.f32 %v365, %v365
  %v707 = vmul.f32 %v366, %v366
  %v708 = vmul.f32 %v367, %v367
  %v709 = vmul.f32 %v368, %v368
  %710 = vmatpush.msra.mxu0 0.0
  %711 = vmatpush.msra.mxu0 0.0
  %712 = vmatpush.msra.mxu0 0.0
  %713 = vmatpush.msra.mxu0 0.0
  %714 = vmatpush.msra.mxu0 0.0
  %715 = vmatpush.msra.mxu0 0.0
  %716 = vmatpush.msra.mxu0 0.0
  %717 = vmatpush.msra.mxu0 0.0
  %718 = vmatpush.msra.mxu0 0.0
  %719 = vmatpush.msra.mxu0 0.0
  %720 = vmatpush.msra.mxu0 0.0
  %721 = vmatpush.msra.mxu0 0.0
  %722 = vmatpush.msra.mxu0 %v708
  %723 = vmatpush.msra.mxu0 %v706
  %724 = vmatpush.msra.mxu0 %v704
  %725 = vmatpush.msra.mxu0 %v702
  %726 = vmatmul.f32.gmra.mxu0 %v660
  %v727 = vpop.f32.mrf.mxu0
  %v728 = vadd.f32 0.0, %v727
  %729 = vdwg.mxu0
  %730 = vmatpush.msra.mxu0 0.0
  %731 = vmatpush.msra.mxu0 0.0
  %732 = vmatpush.msra.mxu0 0.0
  %733 = vmatpush.msra.mxu0 0.0
  %734 = vmatpush.msra.mxu0 0.0
  %735 = vmatpush.msra.mxu0 0.0
  %736 = vmatpush.msra.mxu0 0.0
  %737 = vmatpush.msra.mxu0 0.0
  %738 = vmatpush.msra.mxu0 0.0
  %739 = vmatpush.msra.mxu0 0.0
  %740 = vmatpush.msra.mxu0 0.0
  %741 = vmatpush.msra.mxu0 0.0
  %742 = vmatpush.msra.mxu0 %v709
  %743 = vmatpush.msra.mxu0 %v707
  %744 = vmatpush.msra.mxu0 %v705
  %745 = vmatpush.msra.mxu0 %v703
  %746 = vmatmul.f32.gmra.mxu0 %v660
  %v747 = vpop.f32.mrf.mxu0
  %v748 = vadd.f32 0.0, %v747
  %749 = vdwg.mxu0
  %v750 = vmul.f32 %v680, 0.03125
  %v751 = vmul.f32 %v700, 0.03125
  %v752 = vmul.f32 %v728, 0.03125
  %v753 = vmul.f32 %v748, 0.03125
  %v754 = vmul.f32 %v750, %v750
  %v755 = vmul.f32 %v751, %v751
  %v756 = vsub.f32 %v752, %v754
  %v757 = vsub.f32 %v753, %v755
  %v758 = vperm.slane %v750, 0
  %v759 = vperm.slane %v751, 0
  %v760 = vsub.f32 %v361, %v758
  %v761 = vsub.f32 %v362, %v759
  %v762 = vsub.f32 %v363, %v758
  %v763 = vsub.f32 %v364, %v759
  %v764 = vsub.f32 %v365, %v758
  %v765 = vsub.f32 %v366, %v759
  %v766 = vsub.f32 %v367, %v758
  %v767 = vsub.f32 %v368, %v759
  %v768 = vadd.f32 %v756, 1e-05
  %v769 = vadd.f32 %v757, 1e-05
  %v770 = vrsqrt.pop %v768
  %v771 = vmul.f32 %v770, %v768
  %v772 = vmul.f32 %v771, %v770
  %v773 = vmul.f32 0.5, %v772
  %v774 = vsub.f32 1.5, %v773
  %v775 = vmul.f32 %v770, %v774
  %vm776 = vweird.f32 %v768
  %vm777 = vweird.f32 %v770
  %vm778 = vmor %vm776, %vm777
  %v779 = vsel %vm778, %v770, %v775
  %v780 = vrsqrt.pop %v769
  %v781 = vmul.f32 %v780, %v769
  %v782 = vmul.f32 %v781, %v780
  %v783 = vmul.f32 0.5, %v782
  %v784 = vsub.f32 1.5, %v783
  %v785 = vmul.f32 %v780, %v784
  %vm786 = vweird.f32 %v769
  %vm787 = vweird.f32 %v780
  %vm788 = vmor %vm786, %vm787
  %v789 = vsel %vm788, %v780, %v785
  %v790 = vperm.slane %v779, 0
  %v791 = vperm.slane %v789, 0
  %v792 = vmul.f32 %v760, %v790
  %v793 = vmul.f32 %v761, %v791
  %v794 = vmul.f32 %v762, %v790
  %v795 = vmul.f32 %v763, %v791
  %v796 = vmul.f32 %v764, %v790
  %v797 = vmul.f32 %v765, %v791
  %v798 = vmul.f32 %v766, %v790
  %v799 = vmul.f32 %v767, %v791
  %v800 = vpack.c.bf16 %v794, %v792
  %v801 = vpack.c.bf16 %v795, %v793
  %v802 = vpack.c.bf16 %v798, %v796
  %v803 = vpack.c.bf16 %v799, %v797
  %v804 = vld [vmem:[%s4] sm:$0xff]
  %v805 = vld [vmem:[%s4 + $0x8] sm:$0xf]
  %v806 = vld [vmem:[%s4 + $0xc] sm:$0xff]
  %v807 = vld [vmem:[%s4 + $0x14] sm:$0xf]
  %v808 = vld [vmem:[%s4 + $0x18] sm:$0xff]
  %v809 = vld [vmem:[%s4 + $0x20] sm:$0xf]
  %v810 = vld [vmem:[%s4 + $0x24] sm:$0xff]
  %v811 = vld [vmem:[%s4 + $0x2c] sm:$0xf]
  %v812 = vld [vmem:[%s4 + $0x30] sm:$0xff]
  %v813 = vld [vmem:[%s4 + $0x38] sm:$0xf]
  %v814 = vld [vmem:[%s4 + $0x3c] sm:$0xff]
  %v815 = vld [vmem:[%s4 + $0x44] sm:$0xf]
  %v816 = vld [vmem:[%s4 + $0x48] sm:$0xff]
  %v817 = vld [vmem:[%s4 + $0x50] sm:$0xf]
  %v818 = vld [vmem:[%s4 + $0x54] sm:$0xff]
  %v819 = vld [vmem:[%s4 + $0x5c] sm:$0xf]
  %v820 = vld [vmem:[%s4 + $0x60] sm:$0xff]
  %v821 = vld [vmem:[%s4 + $0x68] sm:$0xf]
  %v822 = vld [vmem:[%s4 + $0x6c] sm:$0xff]
  %v823 = vld [vmem:[%s4 + $0x74] sm:$0xf]
  %v824 = vld [vmem:[%s4 + $0x78] sm:$0xff]
  %v825 = vld [vmem:[%s4 + $0x80] sm:$0xf]
  %v826 = vld [vmem:[%s4 + $0x84] sm:$0xff]
  %v827 = vld [vmem:[%s4 + $0x8c] sm:$0xf]
  %v828 = vld [vmem:[%s4 + $0x90] sm:$0xff]
  %v829 = vld [vmem:[%s4 + $0x98] sm:$0xf]
  %v830 = vld [vmem:[%s4 + $0x9c] sm:$0xff]
  %v831 = vld [vmem:[%s4 + $0xa4] sm:$0xf]
  %v832 = vld [vmem:[%s4 + $0xa8] sm:$0xff]
  %v833 = vld [vmem:[%s4 + $0xb0] sm:$0xf]
  %v834 = vld [vmem:[%s4 + $0xb4] sm:$0xff]
  %v835 = vld [vmem:[%s4 + $0xbc] sm:$0xf]
  %v836 = vld [vmem:[%s4 + $0xc0] sm:$0xff]
  %v837 = vld [vmem:[%s4 + $0xc8] sm:$0xf]
  %v838 = vld [vmem:[%s4 + $0xcc] sm:$0xff]
  %v839 = vld [vmem:[%s4 + $0xd4] sm:$0xf]
  %v840 = vld [vmem:[%s4 + $0xd8] sm:$0xff]
  %v841 = vld [vmem:[%s4 + $0xe0] sm:$0xf]
  %v842 = vld [vmem:[%s4 + $0xe4] sm:$0xff]
  %v843 = vld [vmem:[%s4 + $0xec] sm:$0xf]
  %v844 = vld [vmem:[%s4 + $0xf0] sm:$0xff]
  %v845 = vld [vmem:[%s4 + $0xf8] sm:$0xf]
  %v846 = vld [vmem:[%s4 + $0xfc] sm:$0xff]
  %v847 = vld [vmem:[%s4 + $0x104] sm:$0xf]
  %v848 = vld [vmem:[%s4 + $0x108] sm:$0xff]
  %v849 = vld [vmem:[%s4 + $0x110] sm:$0xf]
  %v850 = vld [vmem:[%s4 + $0x114] sm:$0xff]
  %v851 = vld [vmem:[%s4 + $0x11c] sm:$0xf]
  %v852 = vld [vmem:[%s5] ss:$8 sm:$0x7]
  %v854 = vperm.slane %v852, 0
  %v855 = vperm.slane %v852, 1
  %v856 = vperm.slane %v852, 2
  %v908 = vunpack.c.l.b16 %v804
  %v909 = vunpack.c.h.b16 %v804
  %v910 = vunpack.c.l.b16 %v805
  %v911 = vunpack.c.l.b16 %v806
  %v912 = vunpack.c.h.b16 %v806
  %v913 = vunpack.c.l.b16 %v807
  %v914 = vunpack.c.l.b16 %v808
  %v915 = vunpack.c.h.b16 %v808
  %v916 = vunpack.c.l.b16 %v809
  %v917 = vunpack.c.l.b16 %v810
  %v918 = vunpack.c.h.b16 %v810
  %v919 = vunpack.c.l.b16 %v811
  %v920 = vunpack.c.l.b16 %v812
  %v921 = vunpack.c.h.b16 %v812
  %v922 = vunpack.c.l.b16 %v813
  %v923 = vunpack.c.l.b16 %v814
  %v924 = vunpack.c.h.b16 %v814
  %v925 = vunpack.c.l.b16 %v815
  %v926 = vunpack.c.l.b16 %v816
  %v927 = vunpack.c.h.b16 %v816
  %v928 = vunpack.c.l.b16 %v817
  %v929 = vunpack.c.l.b16 %v818
  %v930 = vunpack.c.h.b16 %v818
  %v931 = vunpack.c.l.b16 %v819
  %v932 = vunpack.c.l.b16 %v820
  %v933 = vunpack.c.h.b16 %v820
  %v934 = vunpack.c.l.b16 %v821
  %v935 = vunpack.c.l.b16 %v822
  %v936 = vunpack.c.h.b16 %v822
  %v937 = vunpack.c.l.b16 %v823
  %v938 = vunpack.c.l.b16 %v824
  %v939 = vunpack.c.h.b16 %v824
  %v940 = vunpack.c.l.b16 %v825
  %v941 = vunpack.c.l.b16 %v826
  %v942 = vunpack.c.h.b16 %v826
  %v943 = vunpack.c.l.b16 %v827
  %v944 = vunpack.c.l.b16 %v828
  %v945 = vunpack.c.h.b16 %v828
  %v946 = vunpack.c.l.b16 %v829
  %v947 = vunpack.c.l.b16 %v830
  %v948 = vunpack.c.h.b16 %v830
  %v949 = vunpack.c.l.b16 %v831
  %v950 = vunpack.c.l.b16 %v832
  %v951 = vunpack.c.h.b16 %v832
  %v952 = vunpack.c.l.b16 %v833
  %v953 = vunpack.c.l.b16 %v834
  %v954 = vunpack.c.h.b16 %v834
  %v955 = vunpack.c.l.b16 %v835
  %v956 = vunpack.c.l.b16 %v836
  %v957 = vunpack.c.h.b16 %v836
  %v958 = vunpack.c.l.b16 %v837
  %v959 = vunpack.c.l.b16 %v838
  %v960 = vunpack.c.h.b16 %v838
  %v961 = vunpack.c.l.b16 %v839
  %v962 = vunpack.c.l.b16 %v840
  %v963 = vunpack.c.h.b16 %v840
  %v964 = vunpack.c.l.b16 %v841
  %v965 = vunpack.c.l.b16 %v842
  %v966 = vunpack.c.h.b16 %v842
  %v967 = vunpack.c.l.b16 %v843
  %v968 = vunpack.c.l.b16 %v844
  %v969 = vunpack.c.h.b16 %v844
  %v970 = vunpack.c.l.b16 %v845
  %v971 = vunpack.c.l.b16 %v846
  %v972 = vunpack.c.h.b16 %v846
  %v973 = vunpack.c.l.b16 %v847
  %v974 = vunpack.c.l.b16 %v848
  %v975 = vunpack.c.h.b16 %v848
  %v976 = vunpack.c.l.b16 %v849
  %v977 = vunpack.c.l.b16 %v850
  %v978 = vunpack.c.h.b16 %v850
  %v979 = vunpack.c.l.b16 %v851
  %v980 = vpack.c.b16 %v911, %v908
  %v981 = vpack.c.b16 %v912, %v909
  %v982 = vpack.c.b16 %v913, %v910
  %v983 = vpack.c.b16 %v917, %v914
  %v984 = vpack.c.b16 %v918, %v915
  %v985 = vpack.c.b16 %v919, %v916
  %v986 = vpack.c.b16 %v923, %v920
  %v987 = vpack.c.b16 %v924, %v921
  %v988 = vpack.c.b16 %v925, %v922
  %v989 = vpack.c.b16 %v929, %v926
  %v990 = vpack.c.b16 %v930, %v927
  %v991 = vpack.c.b16 %v931, %v928
  %v992 = vpack.c.b16 %v935, %v932
  %v993 = vpack.c.b16 %v936, %v933
  %v994 = vpack.c.b16 %v937, %v934
  %v995 = vpack.c.b16 %v941, %v938
  %v996 = vpack.c.b16 %v942, %v939
  %v997 = vpack.c.b16 %v943, %v940
  %v998 = vpack.c.b16 %v947, %v944
  %v999 = vpack.c.b16 %v948, %v945
  %v1000 = vpack.c.b16 %v949, %v946
  %v1001 = vpack.c.b16 %v953, %v950
  %v1002 = vpack.c.b16 %v954, %v951
  %v1003 = vpack.c.b16 %v955, %v952
  %v1004 = vpack.c.b16 %v959, %v956
  %v1005 = vpack.c.b16 %v960, %v957
  %v1006 = vpack.c.b16 %v961, %v958
  %v1007 = vpack.c.b16 %v965, %v962
  %v1008 = vpack.c.b16 %v966, %v963
  %v1009 = vpack.c.b16 %v967, %v964
  %v1010 = vpack.c.b16 %v971, %v968
  %v1011 = vpack.c.b16 %v972, %v969
  %v1012 = vpack.c.b16 %v973, %v970
  %v1013 = vpack.c.b16 %v977, %v974
  %v1014 = vpack.c.b16 %v978, %v975
  %v1015 = vpack.c.b16 %v979, %v976
  %v1053 = vsel %vm43, %v801, 0
  %v1056 = vsel %vm43, %v803, 0
  %1058 = vmatpush.bf16.msra.mxu0 %v1001
  %1059 = vmatpush.bf16.msra.mxu0 %v998
  %1060 = vmatpush.bf16.msra.mxu0 %v995
  %1061 = vmatpush.bf16.msra.mxu0 %v992
  %1062 = vmatpush.bf16.msra.mxu0 %v989
  %1063 = vmatpush.bf16.msra.mxu0 %v986
  %1064 = vmatpush.bf16.msra.mxu0 %v983
  %1065 = vmatpush.bf16.msra.mxu0 %v980
  %1066 = vmatmul.bf16.gmra.mxu0 %v800
  %v1067 = vpop.f32.mrf.mxu0
  %v1068 = vadd.f32 %v854, %v1067
  %v1069 = vpop.f32.mrf.mxu0
  %v1070 = vadd.f32 %v854, %v1069
  %1071 = vmatmul.bf16.gmra.mxu0 %v802
  %v1072 = vpop.f32.mrf.mxu0
  %v1073 = vadd.f32 %v854, %v1072
  %v1074 = vpop.f32.mrf.mxu0
  %v1075 = vadd.f32 %v854, %v1074
  %1076 = vdwg.mxu0
  %1077 = vmatpush.bf16.msra.mxu0 0
  %1078 = vmatpush.bf16.msra.mxu0 0
  %1079 = vmatpush.bf16.msra.mxu0 0
  %1080 = vmatpush.bf16.msra.mxu0 0
  %1081 = vmatpush.bf16.msra.mxu0 %v1013
  %1082 = vmatpush.bf16.msra.mxu0 %v1010
  %1083 = vmatpush.bf16.msra.mxu0 %v1007
  %1084 = vmatpush.bf16.msra.mxu0 %v1004
  %1085 = vmatmul.bf16.gmra.mxu0 %v1053
  %v1086 = vpop.f32.mrf.mxu0
  %v1087 = vadd.f32 %v1068, %v1086
  %v1088 = vpop.f32.mrf.mxu0
  %v1089 = vadd.f32 %v1070, %v1088
  %1090 = vmatmul.bf16.gmra.mxu0 %v1056
  %v1091 = vpop.f32.mrf.mxu0
  %v1092 = vadd.f32 %v1073, %v1091
  %v1093 = vpop.f32.mrf.mxu0
  %v1094 = vadd.f32 %v1075, %v1093
  %1095 = vdwg.mxu0
  %1096 = vmatpush.bf16.msra.mxu0 %v1002
  %1097 = vmatpush.bf16.msra.mxu0 %v999
  %1098 = vmatpush.bf16.msra.mxu0 %v996
  %1099 = vmatpush.bf16.msra.mxu0 %v993
  %1100 = vmatpush.bf16.msra.mxu0 %v990
  %1101 = vmatpush.bf16.msra.mxu0 %v987
  %1102 = vmatpush.bf16.msra.mxu0 %v984
  %1103 = vmatpush.bf16.msra.mxu0 %v981
  %1104 = vmatmul.bf16.gmra.mxu0 %v800
  %v1105 = vpop.f32.mrf.mxu0
  %v1106 = vadd.f32 %v855, %v1105
  %v1107 = vpop.f32.mrf.mxu0
  %v1108 = vadd.f32 %v855, %v1107
  %1109 = vmatmul.bf16.gmra.mxu0 %v802
  %v1110 = vpop.f32.mrf.mxu0
  %v1111 = vadd.f32 %v855, %v1110
  %v1112 = vpop.f32.mrf.mxu0
  %v1113 = vadd.f32 %v855, %v1112
  %1114 = vdwg.mxu0
  %1115 = vmatpush.bf16.msra.mxu0 0
  %1116 = vmatpush.bf16.msra.mxu0 0
  %1117 = vmatpush.bf16.msra.mxu0 0
  %1118 = vmatpush.bf16.msra.mxu0 0
  %1119 = vmatpush.bf16.msra.mxu0 %v1014
  %1120 = vmatpush.bf16.msra.mxu0 %v1011
  %1121 = vmatpush.bf16.msra.mxu0 %v1008
  %1122 = vmatpush.bf16.msra.mxu0 %v1005
  %1123 = vmatmul.bf16.gmra.mxu0 %v1053
  %v1124 = vpop.f32.mrf.mxu0
  %v1125 = vadd.f32 %v1106, %v1124
  %v1126 = vpop.f32.mrf.mxu0
  %v1127 = vadd.f32 %v1108, %v1126
  %1128 = vmatmul.bf16.gmra.mxu0 %v1056
  %v1129 = vpop.f32.mrf.mxu0
  %v1130 = vadd.f32 %v1111, %v1129
  %v1131 = vpop.f32.mrf.mxu0
  %v1132 = vadd.f32 %v1113, %v1131
  %1133 = vdwg.mxu0
  %1134 = vmatpush.bf16.msra.mxu0 %v1003
  %1135 = vmatpush.bf16.msra.mxu0 %v1000
  %1136 = vmatpush.bf16.msra.mxu0 %v997
  %1137 = vmatpush.bf16.msra.mxu0 %v994
  %1138 = vmatpush.bf16.msra.mxu0 %v991
  %1139 = vmatpush.bf16.msra.mxu0 %v988
  %1140 = vmatpush.bf16.msra.mxu0 %v985
  %1141 = vmatpush.bf16.msra.mxu0 %v982
  %1142 = vmatmul.bf16.gmra.mxu0 %v800
  %v1143 = vpop.f32.mrf.mxu0
  %v1144 = vadd.f32 %v856, %v1143
  %v1145 = vpop.f32.mrf.mxu0
  %v1146 = vadd.f32 %v856, %v1145
  %1147 = vmatmul.bf16.gmra.mxu0 %v802
  %v1148 = vpop.f32.mrf.mxu0
  %v1149 = vadd.f32 %v856, %v1148
  %v1150 = vpop.f32.mrf.mxu0
  %v1151 = vadd.f32 %v856, %v1150
  %1152 = vdwg.mxu0
  %1153 = vmatpush.bf16.msra.mxu0 0
  %1154 = vmatpush.bf16.msra.mxu0 0
  %1155 = vmatpush.bf16.msra.mxu0 0
  %1156 = vmatpush.bf16.msra.mxu0 0
  %1157 = vmatpush.bf16.msra.mxu0 %v1015
  %1158 = vmatpush.bf16.msra.mxu0 %v1012
  %1159 = vmatpush.bf16.msra.mxu0 %v1009
  %1160 = vmatpush.bf16.msra.mxu0 %v1006
  %1161 = vmatmul.bf16.gmra.mxu0 %v1053
  %v1162 = vpop.f32.mrf.mxu0
  %v1163 = vadd.f32 %v1144, %v1162
  %v1164 = vpop.f32.mrf.mxu0
  %v1165 = vadd.f32 %v1146, %v1164
  %1166 = vmatmul.bf16.gmra.mxu0 %v1056
  %v1167 = vpop.f32.mrf.mxu0
  %v1168 = vadd.f32 %v1149, %v1167
  %v1169 = vpop.f32.mrf.mxu0
  %v1170 = vadd.f32 %v1151, %v1169
  %1171 = vdwg.mxu0
  %v1172 = vmul.f32 %v1087, 0.3
  %v1173 = vmul.f32 %v1125, 0.3
  %v1174 = vmul.f32 %v1163, 0.3
  %v1175 = vmul.f32 %v1089, 0.3
  %v1176 = vmul.f32 %v1127, 0.3
  %v1177 = vmul.f32 %v1165, 0.3
  %v1178 = vmul.f32 %v1092, 0.3
  %v1179 = vmul.f32 %v1130, 0.3
  %v1180 = vmul.f32 %v1168, 0.3
  %v1181 = vmul.f32 %v1094, 0.3
  %v1182 = vmul.f32 %v1132, 0.3
  %v1183 = vmul.f32 %v1170, 0.3
  %v1184 = vmax.f32 %v1087, %v1172
  %v1185 = vmax.f32 %v1125, %v1173
  %v1186 = vmax.f32 %v1163, %v1174
  %v1187 = vmax.f32 %v1089, %v1175
  %v1188 = vmax.f32 %v1127, %v1176
  %v1189 = vmax.f32 %v1165, %v1177
  %v1190 = vmax.f32 %v1092, %v1178
  %v1191 = vmax.f32 %v1130, %v1179
  %v1192 = vmax.f32 %v1168, %v1180
  %v1193 = vmax.f32 %v1094, %v1181
  %v1194 = vmax.f32 %v1132, %v1182
  %v1195 = vmax.f32 %v1170, %v1183
  %v1196 = vpack.c.bf16 %v1187, %v1184
  %v1197 = vpack.c.bf16 %v1188, %v1185
  %v1198 = vpack.c.bf16 %v1189, %v1186
  %v1199 = vpack.c.bf16 %v1193, %v1190
  %v1200 = vpack.c.bf16 %v1194, %v1191
  %v1201 = vpack.c.bf16 %v1195, %v1192
  %v1202 = vld [vmem:[%s6] sm:$0xff]
  %v1203 = vld [vmem:[%s6 + $0x8] sm:$0xff]
  %v1204 = vld [vmem:[%s6 + $0x10] sm:$0xff]
  %v1205 = vld [vmem:[%s6 + $0x18] sm:$0xff]
  %v1206 = vld [vmem:[%s6 + $0x20] sm:$0xff]
  %v1207 = vld [vmem:[%s6 + $0x28] sm:$0xff]
  %v1208 = vld [vmem:[%s6 + $0x30] sm:$0xff]
  %v1209 = vld [vmem:[%s6 + $0x38] sm:$0xff]
  %v1210 = vld [vmem:[%s6 + $0x40] sm:$0xff]
  %v1211 = vld [vmem:[%s6 + $0x48] sm:$0xff]
  %v1212 = vld [vmem:[%s6 + $0x50] sm:$0xff]
  %v1213 = vld [vmem:[%s6 + $0x58] sm:$0xff]
  %v1214 = vld [vmem:[%s6 + $0x60] sm:$0xff]
  %v1215 = vld [vmem:[%s6 + $0x68] sm:$0xff]
  %v1216 = vld [vmem:[%s6 + $0x70] sm:$0xff]
  %v1217 = vld [vmem:[%s6 + $0x78] sm:$0xff]
  %v1218 = vld [vmem:[%s6 + $0x80] sm:$0xff]
  %v1219 = vld [vmem:[%s6 + $0x88] sm:$0xff]
  %v1220 = vld [vmem:[%s6 + $0x90] sm:$0xff]
  %v1221 = vld [vmem:[%s6 + $0x98] sm:$0xff]
  %v1222 = vld [vmem:[%s6 + $0xa0] sm:$0xff]
  %v1223 = vld [vmem:[%s6 + $0xa8] sm:$0xff]
  %v1224 = vld [vmem:[%s6 + $0xb0] sm:$0xff]
  %v1225 = vld [vmem:[%s6 + $0xb8] sm:$0xff]
  %v1226 = vld [vmem:[%s6 + $0xc0] sm:$0xff]
  %v1227 = vld [vmem:[%s6 + $0xc8] sm:$0xff]
  %v1228 = vld [vmem:[%s6 + $0xd0] sm:$0xff]
  %v1229 = vld [vmem:[%s6 + $0xd8] sm:$0xff]
  %v1230 = vld [vmem:[%s6 + $0xe0] sm:$0xff]
  %v1231 = vld [vmem:[%s6 + $0xe8] sm:$0xff]
  %v1232 = vld [vmem:[%s6 + $0xf0] sm:$0xff]
  %v1233 = vld [vmem:[%s6 + $0xf8] sm:$0xff]
  %v1234 = vld [vmem:[%s6 + $0x100] sm:$0xff]
  %v1235 = vld [vmem:[%s6 + $0x108] sm:$0xff]
  %v1236 = vld [vmem:[%s6 + $0x110] sm:$0xff]
  %v1237 = vld [vmem:[%s6 + $0x118] sm:$0xff]
  %v1238 = vld [vmem:[%s6 + $0x120] sm:$0xff]
  %v1239 = vld [vmem:[%s6 + $0x128] sm:$0xff]
  %v1240 = vld [vmem:[%s6 + $0x130] sm:$0xff]
  %v1241 = vld [vmem:[%s6 + $0x138] sm:$0xff]
  %v1242 = vld [vmem:[%s6 + $0x140] sm:$0xff]
  %v1243 = vld [vmem:[%s6 + $0x148] sm:$0xff]
  %v1244 = vld [vmem:[%s6 + $0x150] sm:$0xff]
  %v1245 = vld [vmem:[%s6 + $0x158] sm:$0xff]
  %v1246 = vld [vmem:[%s6 + $0x160] sm:$0xff]
  %v1247 = vld [vmem:[%s6 + $0x168] sm:$0xff]
  %v1248 = vld [vmem:[%s6 + $0x170] sm:$0xff]
  %v1249 = vld [vmem:[%s6 + $0x178] sm:$0xff]
  %v1250 = vld [vmem:[%s7] ss:$4 sm:$0x3]
  %v1252 = vperm.slane %v1250, 0
  %v1253 = vperm.slane %v1250, 1
  %v1304 = vunpack.c.l.b16 %v1202
  %v1305 = vunpack.c.h.b16 %v1202
  %v1306 = vunpack.c.l.b16 %v1203
  %v1307 = vunpack.c.h.b16 %v1203
  %v1308 = vunpack.c.l.b16 %v1204
  %v1309 = vunpack.c.h.b16 %v1204
  %v1310 = vunpack.c.l.b16 %v1205
  %v1311 = vunpack.c.h.b16 %v1205
  %v1312 = vunpack.c.l.b16 %v1206
  %v1313 = vunpack.c.h.b16 %v1206
  %v1314 = vunpack.c.l.b16 %v1207
  %v1315 = vunpack.c.h.b16 %v1207
  %v1316 = vunpack.c.l.b16 %v1208
  %v1317 = vunpack.c.h.b16 %v1208
  %v1318 = vunpack.c.l.b16 %v1209
  %v1319 = vunpack.c.h.b16 %v1209
  %v1320 = vunpack.c.l.b16 %v1210
  %v1321 = vunpack.c.h.b16 %v1210
  %v1322 = vunpack.c.l.b16 %v1211
  %v1323 = vunpack.c.h.b16 %v1211
  %v1324 = vunpack.c.l.b16 %v1212
  %v1325 = vunpack.c.h.b16 %v1212
  %v1326 = vunpack.c.l.b16 %v1213
  %v1327 = vunpack.c.h.b16 %v1213
  %v1328 = vunpack.c.l.b16 %v1214
  %v1329 = vunpack.c.h.b16 %v1214
  %v1330 = vunpack.c.l.b16 %v1215
  %v1331 = vunpack.c.h.b16 %v1215
  %v1332 = vunpack.c.l.b16 %v1216
  %v1333 = vunpack.c.h.b16 %v1216
  %v1334 = vunpack.c.l.b16 %v1217
  %v1335 = vunpack.c.h.b16 %v1217
  %v1336 = vunpack.c.l.b16 %v1218
  %v1337 = vunpack.c.h.b16 %v1218
  %v1338 = vunpack.c.l.b16 %v1219
  %v1339 = vunpack.c.h.b16 %v1219
  %v1340 = vunpack.c.l.b16 %v1220
  %v1341 = vunpack.c.h.b16 %v1220
  %v1342 = vunpack.c.l.b16 %v1221
  %v1343 = vunpack.c.h.b16 %v1221
  %v1344 = vunpack.c.l.b16 %v1222
  %v1345 = vunpack.c.h.b16 %v1222
  %v1346 = vunpack.c.l.b16 %v1223
  %v1347 = vunpack.c.h.b16 %v1223
  %v1348 = vunpack.c.l.b16 %v1224
  %v1349 = vunpack.c.h.b16 %v1224
  %v1350 = vunpack.c.l.b16 %v1225
  %v1351 = vunpack.c.h.b16 %v1225
  %v1352 = vunpack.c.l.b16 %v1226
  %v1353 = vunpack.c.h.b16 %v1226
  %v1354 = vunpack.c.l.b16 %v1227
  %v1355 = vunpack.c.h.b16 %v1227
  %v1356 = vunpack.c.l.b16 %v1228
  %v1357 = vunpack.c.h.b16 %v1228
  %v1358 = vunpack.c.l.b16 %v1229
  %v1359 = vunpack.c.h.b16 %v1229
  %v1360 = vunpack.c.l.b16 %v1230
  %v1361 = vunpack.c.h.b16 %v1230
  %v1362 = vunpack.c.l.b16 %v1231
  %v1363 = vunpack.c.h.b16 %v1231
  %v1364 = vunpack.c.l.b16 %v1232
  %v1365 = vunpack.c.h.b16 %v1232
  %v1366 = vunpack.c.l.b16 %v1233
  %v1367 = vunpack.c.h.b16 %v1233
  %v1368 = vunpack.c.l.b16 %v1234
  %v1369 = vunpack.c.h.b16 %v1234
  %v1370 = vunpack.c.l.b16 %v1235
  %v1371 = vunpack.c.h.b16 %v1235
  %v1372 = vunpack.c.l.b16 %v1236
  %v1373 = vunpack.c.h.b16 %v1236
  %v1374 = vunpack.c.l.b16 %v1237
  %v1375 = vunpack.c.h.b16 %v1237
  %v1376 = vunpack.c.l.b16 %v1238
  %v1377 = vunpack.c.h.b16 %v1238
  %v1378 = vunpack.c.l.b16 %v1239
  %v1379 = vunpack.c.h.b16 %v1239
  %v1380 = vunpack.c.l.b16 %v1240
  %v1381 = vunpack.c.h.b16 %v1240
  %v1382 = vunpack.c.l.b16 %v1241
  %v1383 = vunpack.c.h.b16 %v1241
  %v1384 = vunpack.c.l.b16 %v1242
  %v1385 = vunpack.c.h.b16 %v1242
  %v1386 = vunpack.c.l.b16 %v1243
  %v1387 = vunpack.c.h.b16 %v1243
  %v1388 = vunpack.c.l.b16 %v1244
  %v1389 = vunpack.c.h.b16 %v1244
  %v1390 = vunpack.c.l.b16 %v1245
  %v1391 = vunpack.c.h.b16 %v1245
  %v1392 = vunpack.c.l.b16 %v1246
  %v1393 = vunpack.c.h.b16 %v1246
  %v1394 = vunpack.c.l.b16 %v1247
  %v1395 = vunpack.c.h.b16 %v1247
  %v1396 = vunpack.c.l.b16 %v1248
  %v1397 = vunpack.c.h.b16 %v1248
  %v1398 = vunpack.c.l.b16 %v1249
  %v1399 = vunpack.c.h.b16 %v1249
  %v1400 = vpack.c.b16 %v1306, %v1304
  %v1401 = vpack.c.b16 %v1307, %v1305
  %v1402 = vpack.c.b16 %v1310, %v1308
  %v1403 = vpack.c.b16 %v1311, %v1309
  %v1404 = vpack.c.b16 %v1314, %v1312
  %v1405 = vpack.c.b16 %v1315, %v1313
  %v1406 = vpack.c.b16 %v1318, %v1316
  %v1407 = vpack.c.b16 %v1319, %v1317
  %v1408 = vpack.c.b16 %v1322, %v1320
  %v1409 = vpack.c.b16 %v1323, %v1321
  %v1410 = vpack.c.b16 %v1326, %v1324
  %v1411 = vpack.c.b16 %v1327, %v1325
  %v1412 = vpack.c.b16 %v1330, %v1328
  %v1413 = vpack.c.b16 %v1331, %v1329
  %v1414 = vpack.c.b16 %v1334, %v1332
  %v1415 = vpack.c.b16 %v1335, %v1333
  %v1416 = vpack.c.b16 %v1338, %v1336
  %v1417 = vpack.c.b16 %v1339, %v1337
  %v1418 = vpack.c.b16 %v1342, %v1340
  %v1419 = vpack.c.b16 %v1343, %v1341
  %v1420 = vpack.c.b16 %v1346, %v1344
  %v1421 = vpack.c.b16 %v1347, %v1345
  %v1422 = vpack.c.b16 %v1350, %v1348
  %v1423 = vpack.c.b16 %v1351, %v1349
  %v1424 = vpack.c.b16 %v1354, %v1352
  %v1425 = vpack.c.b16 %v1355, %v1353
  %v1426 = vpack.c.b16 %v1358, %v1356
  %v1427 = vpack.c.b16 %v1359, %v1357
  %v1428 = vpack.c.b16 %v1362, %v1360
  %v1429 = vpack.c.b16 %v1363, %v1361
  %v1430 = vpack.c.b16 %v1366, %v1364
  %v1431 = vpack.c.b16 %v1367, %v1365
  %v1432 = vpack.c.b16 %v1370, %v1368
  %v1433 = vpack.c.b16 %v1371, %v1369
  %v1434 = vpack.c.b16 %v1374, %v1372
  %v1435 = vpack.c.b16 %v1375, %v1373
  %v1436 = vpack.c.b16 %v1378, %v1376
  %v1437 = vpack.c.b16 %v1379, %v1377
  %v1438 = vpack.c.b16 %v1382, %v1380
  %v1439 = vpack.c.b16 %v1383, %v1381
  %v1440 = vpack.c.b16 %v1386, %v1384
  %v1441 = vpack.c.b16 %v1387, %v1385
  %v1442 = vpack.c.b16 %v1390, %v1388
  %v1443 = vpack.c.b16 %v1391, %v1389
  %v1444 = vpack.c.b16 %v1394, %v1392
  %v1445 = vpack.c.b16 %v1395, %v1393
  %v1446 = vpack.c.b16 %v1398, %v1396
  %v1447 = vpack.c.b16 %v1399, %v1397
  %1496 = vmatpush.bf16.msra.mxu0 %v1414
  %1497 = vmatpush.bf16.msra.mxu0 %v1412
  %1498 = vmatpush.bf16.msra.mxu0 %v1410
  %1499 = vmatpush.bf16.msra.mxu0 %v1408
  %1500 = vmatpush.bf16.msra.mxu0 %v1406
  %1501 = vmatpush.bf16.msra.mxu0 %v1404
  %1502 = vmatpush.bf16.msra.mxu0 %v1402
  %1503 = vmatpush.bf16.msra.mxu0 %v1400
  %1504 = vmatmul.bf16.gmra.mxu0 %v1196
  %v1505 = vpop.f32.mrf.mxu0
  %v1506 = vadd.f32 %v1252, %v1505
  %v1507 = vpop.f32.mrf.mxu0
  %v1508 = vadd.f32 %v1252, %v1507
  %1509 = vmatmul.bf16.gmra.mxu0 %v1199
  %v1510 = vpop.f32.mrf.mxu0
  %v1511 = vadd.f32 %v1252, %v1510
  %v1512 = vpop.f32.mrf.mxu0
  %v1513 = vadd.f32 %v1252, %v1512
  %1514 = vdwg.mxu0
  %1515 = vmatpush.bf16.msra.mxu0 %v1430
  %1516 = vmatpush.bf16.msra.mxu0 %v1428
  %1517 = vmatpush.bf16.msra.mxu0 %v1426
  %1518 = vmatpush.bf16.msra.mxu0 %v1424
  %1519 = vmatpush.bf16.msra.mxu0 %v1422
  %1520 = vmatpush.bf16.msra.mxu0 %v1420
  %1521 = vmatpush.bf16.msra.mxu0 %v1418
  %1522 = vmatpush.bf16.msra.mxu0 %v1416
  %1523 = vmatmul.bf16.gmra.mxu0 %v1197
  %v1524 = vpop.f32.mrf.mxu0
  %v1525 = vadd.f32 %v1506, %v1524
  %v1526 = vpop.f32.mrf.mxu0
  %v1527 = vadd.f32 %v1508, %v1526
  %1528 = vmatmul.bf16.gmra.mxu0 %v1200
  %v1529 = vpop.f32.mrf.mxu0
  %v1530 = vadd.f32 %v1511, %v1529
  %v1531 = vpop.f32.mrf.mxu0
  %v1532 = vadd.f32 %v1513, %v1531
  %1533 = vdwg.mxu0
  %1534 = vmatpush.bf16.msra.mxu0 %v1446
  %1535 = vmatpush.bf16.msra.mxu0 %v1444
  %1536 = vmatpush.bf16.msra.mxu0 %v1442
  %1537 = vmatpush.bf16.msra.mxu0 %v1440
  %1538 = vmatpush.bf16.msra.mxu0 %v1438
  %1539 = vmatpush.bf16.msra.mxu0 %v1436
  %1540 = vmatpush.bf16.msra.mxu0 %v1434
  %1541 = vmatpush.bf16.msra.mxu0 %v1432
  %1542 = vmatmul.bf16.gmra.mxu0 %v1198
  %v1543 = vpop.f32.mrf.mxu0
  %v1544 = vadd.f32 %v1525, %v1543
  %v1545 = vpop.f32.mrf.mxu0
  %v1546 = vadd.f32 %v1527, %v1545
  %1547 = vmatmul.bf16.gmra.mxu0 %v1201
  %v1548 = vpop.f32.mrf.mxu0
  %v1549 = vadd.f32 %v1530, %v1548
  %v1550 = vpop.f32.mrf.mxu0
  %v1551 = vadd.f32 %v1532, %v1550
  %1552 = vdwg.mxu0
  %1553 = vmatpush.bf16.msra.mxu0 %v1415
  %1554 = vmatpush.bf16.msra.mxu0 %v1413
  %1555 = vmatpush.bf16.msra.mxu0 %v1411
  %1556 = vmatpush.bf16.msra.mxu0 %v1409
  %1557 = vmatpush.bf16.msra.mxu0 %v1407
  %1558 = vmatpush.bf16.msra.mxu0 %v1405
  %1559 = vmatpush.bf16.msra.mxu0 %v1403
  %1560 = vmatpush.bf16.msra.mxu0 %v1401
  %1561 = vmatmul.bf16.gmra.mxu0 %v1196
  %v1562 = vpop.f32.mrf.mxu0
  %v1563 = vadd.f32 %v1253, %v1562
  %v1564 = vpop.f32.mrf.mxu0
  %v1565 = vadd.f32 %v1253, %v1564
  %1566 = vmatmul.bf16.gmra.mxu0 %v1199
  %v1567 = vpop.f32.mrf.mxu0
  %v1568 = vadd.f32 %v1253, %v1567
  %v1569 = vpop.f32.mrf.mxu0
  %v1570 = vadd.f32 %v1253, %v1569
  %1571 = vdwg.mxu0
  %1572 = vmatpush.bf16.msra.mxu0 %v1431
  %1573 = vmatpush.bf16.msra.mxu0 %v1429
  %1574 = vmatpush.bf16.msra.mxu0 %v1427
  %1575 = vmatpush.bf16.msra.mxu0 %v1425
  %1576 = vmatpush.bf16.msra.mxu0 %v1423
  %1577 = vmatpush.bf16.msra.mxu0 %v1421
  %1578 = vmatpush.bf16.msra.mxu0 %v1419
  %1579 = vmatpush.bf16.msra.mxu0 %v1417
  %1580 = vmatmul.bf16.gmra.mxu0 %v1197
  %v1581 = vpop.f32.mrf.mxu0
  %v1582 = vadd.f32 %v1563, %v1581
  %v1583 = vpop.f32.mrf.mxu0
  %v1584 = vadd.f32 %v1565, %v1583
  %1585 = vmatmul.bf16.gmra.mxu0 %v1200
  %v1586 = vpop.f32.mrf.mxu0
  %v1587 = vadd.f32 %v1568, %v1586
  %v1588 = vpop.f32.mrf.mxu0
  %v1589 = vadd.f32 %v1570, %v1588
  %1590 = vdwg.mxu0
  %1591 = vmatpush.bf16.msra.mxu0 %v1447
  %1592 = vmatpush.bf16.msra.mxu0 %v1445
  %1593 = vmatpush.bf16.msra.mxu0 %v1443
  %1594 = vmatpush.bf16.msra.mxu0 %v1441
  %1595 = vmatpush.bf16.msra.mxu0 %v1439
  %1596 = vmatpush.bf16.msra.mxu0 %v1437
  %1597 = vmatpush.bf16.msra.mxu0 %v1435
  %1598 = vmatpush.bf16.msra.mxu0 %v1433
  %1599 = vmatmul.bf16.gmra.mxu0 %v1198
  %v1600 = vpop.f32.mrf.mxu0
  %v1601 = vadd.f32 %v1582, %v1600
  %v1602 = vpop.f32.mrf.mxu0
  %v1603 = vadd.f32 %v1584, %v1602
  %1604 = vmatmul.bf16.gmra.mxu0 %v1201
  %v1605 = vpop.f32.mrf.mxu0
  %v1606 = vadd.f32 %v1587, %v1605
  %v1607 = vpop.f32.mrf.mxu0
  %v1608 = vadd.f32 %v1589, %v1607
  %1609 = vdwg.mxu0
  %v1610 = vmul.f32 %v1544, 0.3
  %v1611 = vmul.f32 %v1601, 0.3
  %v1612 = vmul.f32 %v1546, 0.3
  %v1613 = vmul.f32 %v1603, 0.3
  %v1614 = vmul.f32 %v1549, 0.3
  %v1615 = vmul.f32 %v1606, 0.3
  %v1616 = vmul.f32 %v1551, 0.3
  %v1617 = vmul.f32 %v1608, 0.3
  %v1618 = vmax.f32 %v1544, %v1610
  %v1619 = vmax.f32 %v1601, %v1611
  %v1620 = vmax.f32 %v1546, %v1612
  %v1621 = vmax.f32 %v1603, %v1613
  %v1622 = vmax.f32 %v1549, %v1614
  %v1623 = vmax.f32 %v1606, %v1615
  %v1624 = vmax.f32 %v1551, %v1616
  %v1625 = vmax.f32 %v1608, %v1617
  %v1626 = vadd.f32 %v361, %v1618
  %v1627 = vadd.f32 %v362, %v1619
  %v1628 = vadd.f32 %v363, %v1620
  %v1629 = vadd.f32 %v364, %v1621
  %v1630 = vadd.f32 %v365, %v1622
  %v1631 = vadd.f32 %v366, %v1623
  %v1632 = vadd.f32 %v367, %v1624
  %v1633 = vadd.f32 %v368, %v1625
  %1634 = vmatpush.msra.mxu0 0.0
  %1635 = vmatpush.msra.mxu0 0.0
  %1636 = vmatpush.msra.mxu0 0.0
  %1637 = vmatpush.msra.mxu0 0.0
  %1638 = vmatpush.msra.mxu0 0.0
  %1639 = vmatpush.msra.mxu0 0.0
  %1640 = vmatpush.msra.mxu0 0.0
  %1641 = vmatpush.msra.mxu0 0.0
  %1642 = vmatpush.msra.mxu0 0.0
  %1643 = vmatpush.msra.mxu0 0.0
  %1644 = vmatpush.msra.mxu0 0.0
  %1645 = vmatpush.msra.mxu0 0.0
  %1646 = vmatpush.msra.mxu0 %v1632
  %1647 = vmatpush.msra.mxu0 %v1630
  %1648 = vmatpush.msra.mxu0 %v1628
  %1649 = vmatpush.msra.mxu0 %v1626
  %1650 = vmatmul.f32.gmra.mxu0 %v660
  %v1651 = vpop.f32.mrf.mxu0
  %v1652 = vadd.f32 0.0, %v1651
  %1653 = vdwg.mxu0
  %1654 = vmatpush.msra.mxu0 0.0
  %1655 = vmatpush.msra.mxu0 0.0
  %1656 = vmatpush.msra.mxu0 0.0
  %1657 = vmatpush.msra.mxu0 0.0
  %1658 = vmatpush.msra.mxu0 0.0
  %1659 = vmatpush.msra.mxu0 0.0
  %1660 = vmatpush.msra.mxu0 0.0
  %1661 = vmatpush.msra.mxu0 0.0
  %1662 = vmatpush.msra.mxu0 0.0
  %1663 = vmatpush.msra.mxu0 0.0
  %1664 = vmatpush.msra.mxu0 0.0
  %1665 = vmatpush.msra.mxu0 0.0
  %1666 = vmatpush.msra.mxu0 %v1633
  %1667 = vmatpush.msra.mxu0 %v1631
  %1668 = vmatpush.msra.mxu0 %v1629
  %1669 = vmatpush.msra.mxu0 %v1627
  %1670 = vmatmul.f32.gmra.mxu0 %v660
  %v1671 = vpop.f32.mrf.mxu0
  %v1672 = vadd.f32 0.0, %v1671
  %1673 = vdwg.mxu0
  %v1674 = vmul.f32 %v1626, %v1626
  %v1675 = vmul.f32 %v1627, %v1627
  %v1676 = vmul.f32 %v1628, %v1628
  %v1677 = vmul.f32 %v1629, %v1629
  %v1678 = vmul.f32 %v1630, %v1630
  %v1679 = vmul.f32 %v1631, %v1631
  %v1680 = vmul.f32 %v1632, %v1632
  %v1681 = vmul.f32 %v1633, %v1633
  %1682 = vmatpush.msra.mxu0 0.0
  %1683 = vmatpush.msra.mxu0 0.0
  %1684 = vmatpush.msra.mxu0 0.0
  %1685 = vmatpush.msra.mxu0 0.0
  %1686 = vmatpush.msra.mxu0 0.0
  %1687 = vmatpush.msra.mxu0 0.0
  %1688 = vmatpush.msra.mxu0 0.0
  %1689 = vmatpush.msra.mxu0 0.0
  %1690 = vmatpush.msra.mxu0 0.0
  %1691 = vmatpush.msra.mxu0 0.0
  %1692 = vmatpush.msra.mxu0 0.0
  %1693 = vmatpush.msra.mxu0 0.0
  %1694 = vmatpush.msra.mxu0 %v1680
  %1695 = vmatpush.msra.mxu0 %v1678
  %1696 = vmatpush.msra.mxu0 %v1676
  %1697 = vmatpush.msra.mxu0 %v1674
  %1698 = vmatmul.f32.gmra.mxu0 %v660
  %v1699 = vpop.f32.mrf.mxu0
  %v1700 = vadd.f32 0.0, %v1699
  %1701 = vdwg.mxu0
  %1702 = vmatpush.msra.mxu0 0.0
  %1703 = vmatpush.msra.mxu0 0.0
  %1704 = vmatpush.msra.mxu0 0.0
  %1705 = vmatpush.msra.mxu0 0.0
  %1706 = vmatpush.msra.mxu0 0.0
  %1707 = vmatpush.msra.mxu0 0.0
  %1708 = vmatpush.msra.mxu0 0.0
  %1709 = vmatpush.msra.mxu0 0.0
  %1710 = vmatpush.msra.mxu0 0.0
  %1711 = vmatpush.msra.mxu0 0.0
  %1712 = vmatpush.msra.mxu0 0.0
  %1713 = vmatpush.msra.mxu0 0.0
  %1714 = vmatpush.msra.mxu0 %v1681
  %1715 = vmatpush.msra.mxu0 %v1679
  %1716 = vmatpush.msra.mxu0 %v1677
  %1717 = vmatpush.msra.mxu0 %v1675
  %1718 = vmatmul.f32.gmra.mxu0 %v660
  %v1719 = vpop.f32.mrf.mxu0
  %v1720 = vadd.f32 0.0, %v1719
  %1721 = vdwg.mxu0
  %v1722 = vmul.f32 %v1652, 0.03125
  %v1723 = vmul.f32 %v1672, 0.03125
  %v1724 = vmul.f32 %v1700, 0.03125
  %v1725 = vmul.f32 %v1720, 0.03125
  %v1726 = vmul.f32 %v1722, %v1722
  %v1727 = vmul.f32 %v1723, %v1723
  %v1728 = vsub.f32 %v1724, %v1726
  %v1729 = vsub.f32 %v1725, %v1727
  %v1730 = vperm.slane %v1722, 0
  %v1731 = vperm.slane %v1723, 0
  %v1732 = vsub.f32 %v1626, %v1730
  %v1733 = vsub.f32 %v1627, %v1731
  %v1734 = vsub.f32 %v1628, %v1730
  %v1735 = vsub.f32 %v1629, %v1731
  %v1736 = vsub.f32 %v1630, %v1730
  %v1737 = vsub.f32 %v1631, %v1731
  %v1738 = vsub.f32 %v1632, %v1730
  %v1739 = vsub.f32 %v1633, %v1731
  %v1740 = vadd.f32 %v1728, 1e-05
  %v1741 = vadd.f32 %v1729, 1e-05
  %v1742 = vrsqrt.pop %v1740
  %v1743 = vmul.f32 %v1742, %v1740
  %v1744 = vmul.f32 %v1743, %v1742
  %v1745 = vmul.f32 0.5, %v1744
  %v1746 = vsub.f32 1.5, %v1745
  %v1747 = vmul.f32 %v1742, %v1746
  %vm1748 = vweird.f32 %v1740
  %vm1749 = vweird.f32 %v1742
  %vm1750 = vmor %vm1748, %vm1749
  %v1751 = vsel %vm1750, %v1742, %v1747
  %v1752 = vrsqrt.pop %v1741
  %v1753 = vmul.f32 %v1752, %v1741
  %v1754 = vmul.f32 %v1753, %v1752
  %v1755 = vmul.f32 0.5, %v1754
  %v1756 = vsub.f32 1.5, %v1755
  %v1757 = vmul.f32 %v1752, %v1756
  %vm1758 = vweird.f32 %v1741
  %vm1759 = vweird.f32 %v1752
  %vm1760 = vmor %vm1758, %vm1759
  %v1761 = vsel %vm1760, %v1752, %v1757
  %v1762 = vperm.slane %v1751, 0
  %v1763 = vperm.slane %v1761, 0
  %v1764 = vmul.f32 %v1732, %v1762
  %v1765 = vmul.f32 %v1733, %v1763
  %v1766 = vmul.f32 %v1734, %v1762
  %v1767 = vmul.f32 %v1735, %v1763
  %v1768 = vmul.f32 %v1736, %v1762
  %v1769 = vmul.f32 %v1737, %v1763
  %v1770 = vmul.f32 %v1738, %v1762
  %v1771 = vmul.f32 %v1739, %v1763
  %v1772 = vpack.c.bf16 %v1766, %v1764
  %v1773 = vpack.c.bf16 %v1767, %v1765
  %v1774 = vpack.c.bf16 %v1770, %v1768
  %v1775 = vpack.c.bf16 %v1771, %v1769
  %s1776 = scalar_lea.vmem %s4, 288
  %v1777 = vld [vmem:[%s1776] sm:$0xff]
  %v1778 = vld [vmem:[%s1776 + $0x8] sm:$0xf]
  %v1779 = vld [vmem:[%s1776 + $0xc] sm:$0xff]
  %v1780 = vld [vmem:[%s1776 + $0x14] sm:$0xf]
  %v1781 = vld [vmem:[%s1776 + $0x18] sm:$0xff]
  %v1782 = vld [vmem:[%s1776 + $0x20] sm:$0xf]
  %v1783 = vld [vmem:[%s1776 + $0x24] sm:$0xff]
  %v1784 = vld [vmem:[%s1776 + $0x2c] sm:$0xf]
  %v1785 = vld [vmem:[%s1776 + $0x30] sm:$0xff]
  %v1786 = vld [vmem:[%s1776 + $0x38] sm:$0xf]
  %v1787 = vld [vmem:[%s1776 + $0x3c] sm:$0xff]
  %v1788 = vld [vmem:[%s1776 + $0x44] sm:$0xf]
  %v1789 = vld [vmem:[%s1776 + $0x48] sm:$0xff]
  %v1790 = vld [vmem:[%s1776 + $0x50] sm:$0xf]
  %v1791 = vld [vmem:[%s1776 + $0x54] sm:$0xff]
  %v1792 = vld [vmem:[%s1776 + $0x5c] sm:$0xf]
  %v1793 = vld [vmem:[%s1776 + $0x60] sm:$0xff]
  %v1794 = vld [vmem:[%s1776 + $0x68] sm:$0xf]
  %v1795 = vld [vmem:[%s1776 + $0x6c] sm:$0xff]
  %v1796 = vld [vmem:[%s1776 + $0x74] sm:$0xf]
  %v1797 = vld [vmem:[%s1776 + $0x78] sm:$0xff]
  %v1798 = vld [vmem:[%s1776 + $0x80] sm:$0xf]
  %v1799 = vld [vmem:[%s1776 + $0x84] sm:$0xff]
  %v1800 = vld [vmem:[%s1776 + $0x8c] sm:$0xf]
  %v1801 = vld [vmem:[%s1776 + $0x90] sm:$0xff]
  %v1802 = vld [vmem:[%s1776 + $0x98] sm:$0xf]
  %v1803 = vld [vmem:[%s1776 + $0x9c] sm:$0xff]
  %v1804 = vld [vmem:[%s1776 + $0xa4] sm:$0xf]
  %v1805 = vld [vmem:[%s1776 + $0xa8] sm:$0xff]
  %v1806 = vld [vmem:[%s1776 + $0xb0] sm:$0xf]
  %v1807 = vld [vmem:[%s1776 + $0xb4] sm:$0xff]
  %v1808 = vld [vmem:[%s1776 + $0xbc] sm:$0xf]
  %v1809 = vld [vmem:[%s1776 + $0xc0] sm:$0xff]
  %v1810 = vld [vmem:[%s1776 + $0xc8] sm:$0xf]
  %v1811 = vld [vmem:[%s1776 + $0xcc] sm:$0xff]
  %v1812 = vld [vmem:[%s1776 + $0xd4] sm:$0xf]
  %v1813 = vld [vmem:[%s1776 + $0xd8] sm:$0xff]
  %v1814 = vld [vmem:[%s1776 + $0xe0] sm:$0xf]
  %v1815 = vld [vmem:[%s1776 + $0xe4] sm:$0xff]
  %v1816 = vld [vmem:[%s1776 + $0xec] sm:$0xf]
  %v1817 = vld [vmem:[%s1776 + $0xf0] sm:$0xff]
  %v1818 = vld [vmem:[%s1776 + $0xf8] sm:$0xf]
  %v1819 = vld [vmem:[%s1776 + $0xfc] sm:$0xff]
  %v1820 = vld [vmem:[%s1776 + $0x104] sm:$0xf]
  %v1821 = vld [vmem:[%s1776 + $0x108] sm:$0xff]
  %v1822 = vld [vmem:[%s1776 + $0x110] sm:$0xf]
  %v1823 = vld [vmem:[%s1776 + $0x114] sm:$0xff]
  %v1824 = vld [vmem:[%s1776 + $0x11c] sm:$0xf]
  %s1825 = scalar_lea.vmem %s5, 1
  %v1826 = vld [vmem:[%s1825] ss:$8 sm:$0x7]
  %v1828 = vperm.slane %v1826, 0
  %v1829 = vperm.slane %v1826, 1
  %v1830 = vperm.slane %v1826, 2
  %v1882 = vunpack.c.l.b16 %v1777
  %v1883 = vunpack.c.h.b16 %v1777
  %v1884 = vunpack.c.l.b16 %v1778
  %v1885 = vunpack.c.l.b16 %v1779
  %v1886 = vunpack.c.h.b16 %v1779
  %v1887 = vunpack.c.l.b16 %v1780
  %v1888 = vunpack.c.l.b16 %v1781
  %v1889 = vunpack.c.h.b16 %v1781
  %v1890 = vunpack.c.l.b16 %v1782
  %v1891 = vunpack.c.l.b16 %v1783
  %v1892 = vunpack.c.h.b16 %v1783
  %v1893 = vunpack.c.l.b16 %v1784
  %v1894 = vunpack.c.l.b16 %v1785
  %v1895 = vunpack.c.h.b16 %v1785
  %v1896 = vunpack.c.l.b16 %v1786
  %v1897 = vunpack.c.l.b16 %v1787
  %v1898 = vunpack.c.h.b16 %v1787
  %v1899 = vunpack.c.l.b16 %v1788
  %v1900 = vunpack.c.l.b16 %v1789
  %v1901 = vunpack.c.h.b16 %v1789
  %v1902 = vunpack.c.l.b16 %v1790
  %v1903 = vunpack.c.l.b16 %v1791
  %v1904 = vunpack.c.h.b16 %v1791
  %v1905 = vunpack.c.l.b16 %v1792
  %v1906 = vunpack.c.l.b16 %v1793
  %v1907 = vunpack.c.h.b16 %v1793
  %v1908 = vunpack.c.l.b16 %v1794
  %v1909 = vunpack.c.l.b16 %v1795
  %v1910 = vunpack.c.h.b16 %v1795
  %v1911 = vunpack.c.l.b16 %v1796
  %v1912 = vunpack.c.l.b16 %v1797
  %v1913 = vunpack.c.h.b16 %v1797
  %v1914 = vunpack.c.l.b16 %v1798
  %v1915 = vunpack.c.l.b16 %v1799
  %v1916 = vunpack.c.h.b16 %v1799
  %v1917 = vunpack.c.l.b16 %v1800
  %v1918 = vunpack.c.l.b16 %v1801
  %v1919 = vunpack.c.h.b16 %v1801
  %v1920 = vunpack.c.l.b16 %v1802
  %v1921 = vunpack.c.l.b16 %v1803
  %v1922 = vunpack.c.h.b16 %v1803
  %v1923 = vunpack.c.l.b16 %v1804
  %v1924 = vunpack.c.l.b16 %v1805
  %v1925 = vunpack.c.h.b16 %v1805
  %v1926 = vunpack.c.l.b16 %v1806
  %v1927 = vunpack.c.l.b16 %v1807
  %v1928 = vunpack.c.h.b16 %v1807
  %v1929 = vunpack.c.l.b16 %v1808
  %v1930 = vunpack.c.l.b16 %v1809
  %v1931 = vunpack.c.h.b16 %v1809
  %v1932 = vunpack.c.l.b16 %v1810
  %v1933 = vunpack.c.l.b16 %v1811
  %v1934 = vunpack.c.h.b16 %v1811
  %v1935 = vunpack.c.l.b16 %v1812
  %v1936 = vunpack.c.l.b16 %v1813
  %v1937 = vunpack.c.h.b16 %v1813
  %v1938 = vunpack.c.l.b16 %v1814
  %v1939 = vunpack.c.l.b16 %v1815
  %v1940 = vunpack.c.h.b16 %v1815
  %v1941 = vunpack.c.l.b16 %v1816
  %v1942 = vunpack.c.l.b16 %v1817
  %v1943 = vunpack.c.h.b16 %v1817
  %v1944 = vunpack.c.l.b16 %v1818
  %v1945 = vunpack.c.l.b16 %v1819
  %v1946 = vunpack.c.h.b16 %v1819
  %v1947 = vunpack.c.l.b16 %v1820
  %v1948 = vunpack.c.l.b16 %v1821
  %v1949 = vunpack.c.h.b16 %v1821
  %v1950 = vunpack.c.l.b16 %v1822
  %v1951 = vunpack.c.l.b16 %v1823
  %v1952 = vunpack.c.h.b16 %v1823
  %v1953 = vunpack.c.l.b16 %v1824
  %v1954 = vpack.c.b16 %v1885, %v1882
  %v1955 = vpack.c.b16 %v1886, %v1883
  %v1956 = vpack.c.b16 %v1887, %v1884
  %v1957 = vpack.c.b16 %v1891, %v1888
  %v1958 = vpack.c.b16 %v1892, %v1889
  %v1959 = vpack.c.b16 %v1893, %v1890
  %v1960 = vpack.c.b16 %v1897, %v1894
  %v1961 = vpack.c.b16 %v1898, %v1895
  %v1962 = vpack.c.b16 %v1899, %v1896
  %v1963 = vpack.c.b16 %v1903, %v1900
  %v1964 = vpack.c.b16 %v1904, %v1901
  %v1965 = vpack.c.b16 %v1905, %v1902
  %v1966 = vpack.c.b16 %v1909, %v1906
  %v1967 = vpack.c.b16 %v1910, %v1907
  %v1968 = vpack.c.b16 %v1911, %v1908
  %v1969 = vpack.c.b16 %v1915, %v1912
  %v1970 = vpack.c.b16 %v1916, %v1913
  %v1971 = vpack.c.b16 %v1917, %v1914
  %v1972 = vpack.c.b16 %v1921, %v1918
  %v1973 = vpack.c.b16 %v1922, %v1919
  %v1974 = vpack.c.b16 %v1923, %v1920
  %v1975 = vpack.c.b16 %v1927, %v1924
  %v1976 = vpack.c.b16 %v1928, %v1925
  %v1977 = vpack.c.b16 %v1929, %v1926
  %v1978 = vpack.c.b16 %v1933, %v1930
  %v1979 = vpack.c.b16 %v1934, %v1931
  %v1980 = vpack.c.b16 %v1935, %v1932
  %v1981 = vpack.c.b16 %v1939, %v1936
  %v1982 = vpack.c.b16 %v1940, %v1937
  %v1983 = vpack.c.b16 %v1941, %v1938
  %v1984 = vpack.c.b16 %v1945, %v1942
  %v1985 = vpack.c.b16 %v1946, %v1943
  %v1986 = vpack.c.b16 %v1947, %v1944
  %v1987 = vpack.c.b16 %v1951, %v1948
  %v1988 = vpack.c.b16 %v1952, %v1949
  %v1989 = vpack.c.b16 %v1953, %v1950
  %v2027 = vsel %vm43, %v1773, 0
  %v2030 = vsel %vm43, %v1775, 0
  %2032 = vmatpush.bf16.msra.mxu0 %v1975
  %2033 = vmatpush.bf16.msra.mxu0 %v1972
  %2034 = vmatpush.bf16.msra.mxu0 %v1969
  %2035 = vmatpush.bf16.msra.mxu0 %v1966
  %2036 = vmatpush.bf16.msra.mxu0 %v1963
  %2037 = vmatpush.bf16.msra.mxu0 %v1960
  %2038 = vmatpush.bf16.msra.mxu0 %v1957
  %2039 = vmatpush.bf16.msra.mxu0 %v1954
  %2040 = vmatmul.bf16.gmra.mxu0 %v1772
  %v2041 = vpop.f32.mrf.mxu0
  %v2042 = vadd.f32 %v1828, %v2041
  %v2043 = vpop.f32.mrf.mxu0
  %v2044 = vadd.f32 %v1828, %v2043
  %2045 = vmatmul.bf16.gmra.mxu0 %v1774
  %v2046 = vpop.f32.mrf.mxu0
  %v2047 = vadd.f32 %v1828, %v2046
  %v2048 = vpop.f32.mrf.mxu0
  %v2049 = vadd.f32 %v1828, %v2048
  %2050 = vdwg.mxu0
  %2051 = vmatpush.bf16.msra.mxu0 0
  %2052 = vmatpush.bf16.msra.mxu0 0
  %2053 = vmatpush.bf16.msra.mxu0 0
  %2054 = vmatpush.bf16.msra.mxu0 0
  %2055 = vmatpush.bf16.msra.mxu0 %v1987
  %2056 = vmatpush.bf16.msra.mxu0 %v1984
  %2057 = vmatpush.bf16.msra.mxu0 %v1981
  %2058 = vmatpush.bf16.msra.mxu0 %v1978
  %2059 = vmatmul.bf16.gmra.mxu0 %v2027
  %v2060 = vpop.f32.mrf.mxu0
  %v2061 = vadd.f32 %v2042, %v2060
  %v2062 = vpop.f32.mrf.mxu0
  %v2063 = vadd.f32 %v2044, %v2062
  %2064 = vmatmul.bf16.gmra.mxu0 %v2030
  %v2065 = vpop.f32.mrf.mxu0
  %v2066 = vadd.f32 %v2047, %v2065
  %v2067 = vpop.f32.mrf.mxu0
  %v2068 = vadd.f32 %v2049, %v2067
  %2069 = vdwg.mxu0
  %2070 = vmatpush.bf16.msra.mxu0 %v1976
  %2071 = vmatpush.bf16.msra.mxu0 %v1973
  %2072 = vmatpush.bf16.msra.mxu0 %v1970
  %2073 = vmatpush.bf16.msra.mxu0 %v1967
  %2074 = vmatpush.bf16.msra.mxu0 %v1964
  %2075 = vmatpush.bf16.msra.mxu0 %v1961
  %2076 = vmatpush.bf16.msra.mxu0 %v1958
  %2077 = vmatpush.bf16.msra.mxu0 %v1955
  %2078 = vmatmul.bf16.gmra.mxu0 %v1772
  %v2079 = vpop.f32.mrf.mxu0
  %v2080 = vadd.f32 %v1829, %v2079
  %v2081 = vpop.f32.mrf.mxu0
  %v2082 = vadd.f32 %v1829, %v2081
  %2083 = vmatmul.bf16.gmra.mxu0 %v1774
  %v2084 = vpop.f32.mrf.mxu0
  %v2085 = vadd.f32 %v1829, %v2084
  %v2086 = vpop.f32.mrf.mxu0
  %v2087 = vadd.f32 %v1829, %v2086
  %2088 = vdwg.mxu0
  %2089 = vmatpush.bf16.msra.mxu0 0
  %2090 = vmatpush.bf16.msra.mxu0 0
  %2091 = vmatpush.bf16.msra.mxu0 0
  %2092 = vmatpush.bf16.msra.mxu0 0
  %2093 = vmatpush.bf16.msra.mxu0 %v1988
  %2094 = vmatpush.bf16.msra.mxu0 %v1985
  %2095 = vmatpush.bf16.msra.mxu0 %v1982
  %2096 = vmatpush.bf16.msra.mxu0 %v1979
  %2097 = vmatmul.bf16.gmra.mxu0 %v2027
  %v2098 = vpop.f32.mrf.mxu0
  %v2099 = vadd.f32 %v2080, %v2098
  %v2100 = vpop.f32.mrf.mxu0
  %v2101 = vadd.f32 %v2082, %v2100
  %2102 = vmatmul.bf16.gmra.mxu0 %v2030
  %v2103 = vpop.f32.mrf.mxu0
  %v2104 = vadd.f32 %v2085, %v2103
  %v2105 = vpop.f32.mrf.mxu0
  %v2106 = vadd.f32 %v2087, %v2105
  %2107 = vdwg.mxu0
  %2108 = vmatpush.bf16.msra.mxu0 %v1977
  %2109 = vmatpush.bf16.msra.mxu0 %v1974
  %2110 = vmatpush.bf16.msra.mxu0 %v1971
  %2111 = vmatpush.bf16.msra.mxu0 %v1968
  %2112 = vmatpush.bf16.msra.mxu0 %v1965
  %2113 = vmatpush.bf16.msra.mxu0 %v1962
  %2114 = vmatpush.bf16.msra.mxu0 %v1959
  %2115 = vmatpush.bf16.msra.mxu0 %v1956
  %2116 = vmatmul.bf16.gmra.mxu0 %v1772
  %v2117 = vpop.f32.mrf.mxu0
  %v2118 = vadd.f32 %v1830, %v2117
  %v2119 = vpop.f32.mrf.mxu0
  %v2120 = vadd.f32 %v1830, %v2119
  %2121 = vmatmul.bf16.gmra.mxu0 %v1774
  %v2122 = vpop.f32.mrf.mxu0
  %v2123 = vadd.f32 %v1830, %v2122
  %v2124 = vpop.f32.mrf.mxu0
  %v2125 = vadd.f32 %v1830, %v2124
  %2126 = vdwg.mxu0
  %2127 = vmatpush.bf16.msra.mxu0 0
  %2128 = vmatpush.bf16.msra.mxu0 0
  %2129 = vmatpush.bf16.msra.mxu0 0
  %2130 = vmatpush.bf16.msra.mxu0 0
  %2131 = vmatpush.bf16.msra.mxu0 %v1989
  %2132 = vmatpush.bf16.msra.mxu0 %v1986
  %2133 = vmatpush.bf16.msra.mxu0 %v1983
  %2134 = vmatpush.bf16.msra.mxu0 %v1980
  %2135 = vmatmul.bf16.gmra.mxu0 %v2027
  %v2136 = vpop.f32.mrf.mxu0
  %v2137 = vadd.f32 %v2118, %v2136
  %v2138 = vpop.f32.mrf.mxu0
  %v2139 = vadd.f32 %v2120, %v2138
  %2140 = vmatmul.bf16.gmra.mxu0 %v2030
  %v2141 = vpop.f32.mrf.mxu0
  %v2142 = vadd.f32 %v2123, %v2141
  %v2143 = vpop.f32.mrf.mxu0
  %v2144 = vadd.f32 %v2125, %v2143
  %2145 = vdwg.mxu0
  %v2146 = vmul.f32 %v2061, 0.3
  %v2147 = vmul.f32 %v2099, 0.3
  %v2148 = vmul.f32 %v2137, 0.3
  %v2149 = vmul.f32 %v2063, 0.3
  %v2150 = vmul.f32 %v2101, 0.3
  %v2151 = vmul.f32 %v2139, 0.3
  %v2152 = vmul.f32 %v2066, 0.3
  %v2153 = vmul.f32 %v2104, 0.3
  %v2154 = vmul.f32 %v2142, 0.3
  %v2155 = vmul.f32 %v2068, 0.3
  %v2156 = vmul.f32 %v2106, 0.3
  %v2157 = vmul.f32 %v2144, 0.3
  %v2158 = vmax.f32 %v2061, %v2146
  %v2159 = vmax.f32 %v2099, %v2147
  %v2160 = vmax.f32 %v2137, %v2148
  %v2161 = vmax.f32 %v2063, %v2149
  %v2162 = vmax.f32 %v2101, %v2150
  %v2163 = vmax.f32 %v2139, %v2151
  %v2164 = vmax.f32 %v2066, %v2152
  %v2165 = vmax.f32 %v2104, %v2153
  %v2166 = vmax.f32 %v2142, %v2154
  %v2167 = vmax.f32 %v2068, %v2155
  %v2168 = vmax.f32 %v2106, %v2156
  %v2169 = vmax.f32 %v2144, %v2157
  %v2170 = vpack.c.bf16 %v2161, %v2158
  %v2171 = vpack.c.bf16 %v2162, %v2159
  %v2172 = vpack.c.bf16 %v2163, %v2160
  %v2173 = vpack.c.bf16 %v2167, %v2164
  %v2174 = vpack.c.bf16 %v2168, %v2165
  %v2175 = vpack.c.bf16 %v2169, %v2166
  %2176 = vmatpush.bf16.msra.mxu0 %v1414
  %2177 = vmatpush.bf16.msra.mxu0 %v1412
  %2178 = vmatpush.bf16.msra.mxu0 %v1410
  %2179 = vmatpush.bf16.msra.mxu0 %v1408
  %2180 = vmatpush.bf16.msra.mxu0 %v1406
  %2181 = vmatpush.bf16.msra.mxu0 %v1404
  %2182 = vmatpush.bf16.msra.mxu0 %v1402
  %2183 = vmatpush.bf16.msra.mxu0 %v1400
  %2184 = vmatmul.bf16.gmra.mxu0 %v2170
  %v2185 = vpop.f32.mrf.mxu0
  %v2186 = vadd.f32 %v1252, %v2185
  %v2187 = vpop.f32.mrf.mxu0
  %v2188 = vadd.f32 %v1252, %v2187
  %2189 = vmatmul.bf16.gmra.mxu0 %v2173
  %v2190 = vpop.f32.mrf.mxu0
  %v2191 = vadd.f32 %v1252, %v2190
  %v2192 = vpop.f32.mrf.mxu0
  %v2193 = vadd.f32 %v1252, %v2192
  %2194 = vdwg.mxu0
  %2195 = vmatpush.bf16.msra.mxu0 %v1430
  %2196 = vmatpush.bf16.msra.mxu0 %v1428
  %2197 = vmatpush.bf16.msra.mxu0 %v1426
  %2198 = vmatpush.bf16.msra.mxu0 %v1424
  %2199 = vmatpush.bf16.msra.mxu0 %v1422
  %2200 = vmatpush.bf16.msra.mxu0 %v1420
  %2201 = vmatpush.bf16.msra.mxu0 %v1418
  %2202 = vmatpush.bf16.msra.mxu0 %v1416
  %2203 = vmatmul.bf16.gmra.mxu0 %v2171
  %v2204 = vpop.f32.mrf.mxu0
  %v2205 = vadd.f32 %v2186, %v2204
  %v2206 = vpop.f32.mrf.mxu0
  %v2207 = vadd.f32 %v2188, %v2206
  %2208 = vmatmul.bf16.gmra.mxu0 %v2174
  %v2209 = vpop.f32.mrf.mxu0
  %v2210 = vadd.f32 %v2191, %v2209
  %v2211 = vpop.f32.mrf.mxu0
  %v2212 = vadd.f32 %v2193, %v2211
  %2213 = vdwg.mxu0
  %2214 = vmatpush.bf16.msra.mxu0 %v1446
  %2215 = vmatpush.bf16.msra.mxu0 %v1444
  %2216 = vmatpush.bf16.msra.mxu0 %v1442
  %2217 = vmatpush.bf16.msra.mxu0 %v1440
  %2218 = vmatpush.bf16.msra.mxu0 %v1438
  %2219 = vmatpush.bf16.msra.mxu0 %v1436
  %2220 = vmatpush.bf16.msra.mxu0 %v1434
  %2221 = vmatpush.bf16.msra.mxu0 %v1432
  %2222 = vmatmul.bf16.gmra.mxu0 %v2172
  %v2223 = vpop.f32.mrf.mxu0
  %v2224 = vadd.f32 %v2205, %v2223
  %v2225 = vpop.f32.mrf.mxu0
  %v2226 = vadd.f32 %v2207, %v2225
  %2227 = vmatmul.bf16.gmra.mxu0 %v2175
  %v2228 = vpop.f32.mrf.mxu0
  %v2229 = vadd.f32 %v2210, %v2228
  %v2230 = vpop.f32.mrf.mxu0
  %v2231 = vadd.f32 %v2212, %v2230
  %2232 = vdwg.mxu0
  %2233 = vmatpush.bf16.msra.mxu0 %v1415
  %2234 = vmatpush.bf16.msra.mxu0 %v1413
  %2235 = vmatpush.bf16.msra.mxu0 %v1411
  %2236 = vmatpush.bf16.msra.mxu0 %v1409
  %2237 = vmatpush.bf16.msra.mxu0 %v1407
  %2238 = vmatpush.bf16.msra.mxu0 %v1405
  %2239 = vmatpush.bf16.msra.mxu0 %v1403
  %2240 = vmatpush.bf16.msra.mxu0 %v1401
  %2241 = vmatmul.bf16.gmra.mxu0 %v2170
  %v2242 = vpop.f32.mrf.mxu0
  %v2243 = vadd.f32 %v1253, %v2242
  %v2244 = vpop.f32.mrf.mxu0
  %v2245 = vadd.f32 %v1253, %v2244
  %2246 = vmatmul.bf16.gmra.mxu0 %v2173
  %v2247 = vpop.f32.mrf.mxu0
  %v2248 = vadd.f32 %v1253, %v2247
  %v2249 = vpop.f32.mrf.mxu0
  %v2250 = vadd.f32 %v1253, %v2249
  %2251 = vdwg.mxu0
  %2252 = vmatpush.bf16.msra.mxu0 %v1431
  %2253 = vmatpush.bf16.msra.mxu0 %v1429
  %2254 = vmatpush.bf16.msra.mxu0 %v1427
  %2255 = vmatpush.bf16.msra.mxu0 %v1425
  %2256 = vmatpush.bf16.msra.mxu0 %v1423
  %2257 = vmatpush.bf16.msra.mxu0 %v1421
  %2258 = vmatpush.bf16.msra.mxu0 %v1419
  %2259 = vmatpush.bf16.msra.mxu0 %v1417
  %2260 = vmatmul.bf16.gmra.mxu0 %v2171
  %v2261 = vpop.f32.mrf.mxu0
  %v2262 = vadd.f32 %v2243, %v2261
  %v2263 = vpop.f32.mrf.mxu0
  %v2264 = vadd.f32 %v2245, %v2263
  %2265 = vmatmul.bf16.gmra.mxu0 %v2174
  %v2266 = vpop.f32.mrf.mxu0
  %v2267 = vadd.f32 %v2248, %v2266
  %v2268 = vpop.f32.mrf.mxu0
  %v2269 = vadd.f32 %v2250, %v2268
  %2270 = vdwg.mxu0
  %2271 = vmatpush.bf16.msra.mxu0 %v1447
  %2272 = vmatpush.bf16.msra.mxu0 %v1445
  %2273 = vmatpush.bf16.msra.mxu0 %v1443
  %2274 = vmatpush.bf16.msra.mxu0 %v1441
  %2275 = vmatpush.bf16.msra.mxu0 %v1439
  %2276 = vmatpush.bf16.msra.mxu0 %v1437
  %2277 = vmatpush.bf16.msra.mxu0 %v1435
  %2278 = vmatpush.bf16.msra.mxu0 %v1433
  %2279 = vmatmul.bf16.gmra.mxu0 %v2172
  %v2280 = vpop.f32.mrf.mxu0
  %v2281 = vadd.f32 %v2262, %v2280
  %v2282 = vpop.f32.mrf.mxu0
  %v2283 = vadd.f32 %v2264, %v2282
  %2284 = vmatmul.bf16.gmra.mxu0 %v2175
  %v2285 = vpop.f32.mrf.mxu0
  %v2286 = vadd.f32 %v2267, %v2285
  %v2287 = vpop.f32.mrf.mxu0
  %v2288 = vadd.f32 %v2269, %v2287
  %2289 = vdwg.mxu0
  %v2290 = vmul.f32 %v2224, 0.3
  %v2291 = vmul.f32 %v2281, 0.3
  %v2292 = vmul.f32 %v2226, 0.3
  %v2293 = vmul.f32 %v2283, 0.3
  %v2294 = vmul.f32 %v2229, 0.3
  %v2295 = vmul.f32 %v2286, 0.3
  %v2296 = vmul.f32 %v2231, 0.3
  %v2297 = vmul.f32 %v2288, 0.3
  %v2298 = vmax.f32 %v2224, %v2290
  %v2299 = vmax.f32 %v2281, %v2291
  %v2300 = vmax.f32 %v2226, %v2292
  %v2301 = vmax.f32 %v2283, %v2293
  %v2302 = vmax.f32 %v2229, %v2294
  %v2303 = vmax.f32 %v2286, %v2295
  %v2304 = vmax.f32 %v2231, %v2296
  %v2305 = vmax.f32 %v2288, %v2297
  %v2306 = vadd.f32 %v1626, %v2298
  %v2307 = vadd.f32 %v1627, %v2299
  %v2308 = vadd.f32 %v1628, %v2300
  %v2309 = vadd.f32 %v1629, %v2301
  %v2310 = vadd.f32 %v1630, %v2302
  %v2311 = vadd.f32 %v1631, %v2303
  %v2312 = vadd.f32 %v1632, %v2304
  %v2313 = vadd.f32 %v1633, %v2305
  %2314 = vmatpush.msra.mxu0 0.0
  %2315 = vmatpush.msra.mxu0 0.0
  %2316 = vmatpush.msra.mxu0 0.0
  %2317 = vmatpush.msra.mxu0 0.0
  %2318 = vmatpush.msra.mxu0 0.0
  %2319 = vmatpush.msra.mxu0 0.0
  %2320 = vmatpush.msra.mxu0 0.0
  %2321 = vmatpush.msra.mxu0 0.0
  %2322 = vmatpush.msra.mxu0 0.0
  %2323 = vmatpush.msra.mxu0 0.0
  %2324 = vmatpush.msra.mxu0 0.0
  %2325 = vmatpush.msra.mxu0 0.0
  %2326 = vmatpush.msra.mxu0 %v2312
  %2327 = vmatpush.msra.mxu0 %v2310
  %2328 = vmatpush.msra.mxu0 %v2308
  %2329 = vmatpush.msra.mxu0 %v2306
  %2330 = vmatmul.f32.gmra.mxu0 %v660
  %v2331 = vpop.f32.mrf.mxu0
  %v2332 = vadd.f32 0.0, %v2331
  %2333 = vdwg.mxu0
  %2334 = vmatpush.msra.mxu0 0.0
  %2335 = vmatpush.msra.mxu0 0.0
  %2336 = vmatpush.msra.mxu0 0.0
  %2337 = vmatpush.msra.mxu0 0.0
  %2338 = vmatpush.msra.mxu0 0.0
  %2339 = vmatpush.msra.mxu0 0.0
  %2340 = vmatpush.msra.mxu0 0.0
  %2341 = vmatpush.msra.mxu0 0.0
  %2342 = vmatpush.msra.mxu0 0.0
  %2343 = vmatpush.msra.mxu0 0.0
  %2344 = vmatpush.msra.mxu0 0.0
  %2345 = vmatpush.msra.mxu0 0.0
  %2346 = vmatpush.msra.mxu0 %v2313
  %2347 = vmatpush.msra.mxu0 %v2311
  %2348 = vmatpush.msra.mxu0 %v2309
  %2349 = vmatpush.msra.mxu0 %v2307
  %2350 = vmatmul.f32.gmra.mxu0 %v660
  %v2351 = vpop.f32.mrf.mxu0
  %v2352 = vadd.f32 0.0, %v2351
  %2353 = vdwg.mxu0
  %v2354 = vmul.f32 %v2306, %v2306
  %v2355 = vmul.f32 %v2307, %v2307
  %v2356 = vmul.f32 %v2308, %v2308
  %v2357 = vmul.f32 %v2309, %v2309
  %v2358 = vmul.f32 %v2310, %v2310
  %v2359 = vmul.f32 %v2311, %v2311
  %v2360 = vmul.f32 %v2312, %v2312
  %v2361 = vmul.f32 %v2313, %v2313
  %2362 = vmatpush.msra.mxu0 0.0
  %2363 = vmatpush.msra.mxu0 0.0
  %2364 = vmatpush.msra.mxu0 0.0
  %2365 = vmatpush.msra.mxu0 0.0
  %2366 = vmatpush.msra.mxu0 0.0
  %2367 = vmatpush.msra.mxu0 0.0
  %2368 = vmatpush.msra.mxu0 0.0
  %2369 = vmatpush.msra.mxu0 0.0
  %2370 = vmatpush.msra.mxu0 0.0
  %2371 = vmatpush.msra.mxu0 0.0
  %2372 = vmatpush.msra.mxu0 0.0
  %2373 = vmatpush.msra.mxu0 0.0
  %2374 = vmatpush.msra.mxu0 %v2360
  %2375 = vmatpush.msra.mxu0 %v2358
  %2376 = vmatpush.msra.mxu0 %v2356
  %2377 = vmatpush.msra.mxu0 %v2354
  %2378 = vmatmul.f32.gmra.mxu0 %v660
  %v2379 = vpop.f32.mrf.mxu0
  %v2380 = vadd.f32 0.0, %v2379
  %2381 = vdwg.mxu0
  %2382 = vmatpush.msra.mxu0 0.0
  %2383 = vmatpush.msra.mxu0 0.0
  %2384 = vmatpush.msra.mxu0 0.0
  %2385 = vmatpush.msra.mxu0 0.0
  %2386 = vmatpush.msra.mxu0 0.0
  %2387 = vmatpush.msra.mxu0 0.0
  %2388 = vmatpush.msra.mxu0 0.0
  %2389 = vmatpush.msra.mxu0 0.0
  %2390 = vmatpush.msra.mxu0 0.0
  %2391 = vmatpush.msra.mxu0 0.0
  %2392 = vmatpush.msra.mxu0 0.0
  %2393 = vmatpush.msra.mxu0 0.0
  %2394 = vmatpush.msra.mxu0 %v2361
  %2395 = vmatpush.msra.mxu0 %v2359
  %2396 = vmatpush.msra.mxu0 %v2357
  %2397 = vmatpush.msra.mxu0 %v2355
  %2398 = vmatmul.f32.gmra.mxu0 %v660
  %v2399 = vpop.f32.mrf.mxu0
  %v2400 = vadd.f32 0.0, %v2399
  %2401 = vdwg.mxu0
  %v2402 = vmul.f32 %v2332, 0.03125
  %v2403 = vmul.f32 %v2352, 0.03125
  %v2404 = vmul.f32 %v2380, 0.03125
  %v2405 = vmul.f32 %v2400, 0.03125
  %v2406 = vmul.f32 %v2402, %v2402
  %v2407 = vmul.f32 %v2403, %v2403
  %v2408 = vsub.f32 %v2404, %v2406
  %v2409 = vsub.f32 %v2405, %v2407
  %v2410 = vperm.slane %v2402, 0
  %v2411 = vperm.slane %v2403, 0
  %v2412 = vsub.f32 %v2306, %v2410
  %v2413 = vsub.f32 %v2307, %v2411
  %v2414 = vsub.f32 %v2308, %v2410
  %v2415 = vsub.f32 %v2309, %v2411
  %v2416 = vsub.f32 %v2310, %v2410
  %v2417 = vsub.f32 %v2311, %v2411
  %v2418 = vsub.f32 %v2312, %v2410
  %v2419 = vsub.f32 %v2313, %v2411
  %v2420 = vadd.f32 %v2408, 1e-05
  %v2421 = vadd.f32 %v2409, 1e-05
  %v2422 = vrsqrt.pop %v2420
  %v2423 = vmul.f32 %v2422, %v2420
  %v2424 = vmul.f32 %v2423, %v2422
  %v2425 = vmul.f32 0.5, %v2424
  %v2426 = vsub.f32 1.5, %v2425
  %v2427 = vmul.f32 %v2422, %v2426
  %vm2428 = vweird.f32 %v2420
  %vm2429 = vweird.f32 %v2422
  %vm2430 = vmor %vm2428, %vm2429
  %v2431 = vsel %vm2430, %v2422, %v2427
  %v2432 = vrsqrt.pop %v2421
  %v2433 = vmul.f32 %v2432, %v2421
  %v2434 = vmul.f32 %v2433, %v2432
  %v2435 = vmul.f32 0.5, %v2434
  %v2436 = vsub.f32 1.5, %v2435
  %v2437 = vmul.f32 %v2432, %v2436
  %vm2438 = vweird.f32 %v2421
  %vm2439 = vweird.f32 %v2432
  %vm2440 = vmor %vm2438, %vm2439
  %v2441 = vsel %vm2440, %v2432, %v2437
  %v2442 = vperm.slane %v2431, 0
  %v2443 = vperm.slane %v2441, 0
  %v2444 = vmul.f32 %v2412, %v2442
  %v2445 = vmul.f32 %v2413, %v2443
  %v2446 = vmul.f32 %v2414, %v2442
  %v2447 = vmul.f32 %v2415, %v2443
  %v2448 = vmul.f32 %v2416, %v2442
  %v2449 = vmul.f32 %v2417, %v2443
  %v2450 = vmul.f32 %v2418, %v2442
  %v2451 = vmul.f32 %v2419, %v2443
  %v2452 = vpack.c.bf16 %v2446, %v2444
  %v2453 = vpack.c.bf16 %v2447, %v2445
  %v2454 = vpack.c.bf16 %v2450, %v2448
  %v2455 = vpack.c.bf16 %v2451, %v2449
  %s2456 = scalar_lea.vmem %s4, 576
  %v2457 = vld [vmem:[%s2456] sm:$0xff]
  %v2458 = vld [vmem:[%s2456 + $0x8] sm:$0xf]
  %v2459 = vld [vmem:[%s2456 + $0xc] sm:$0xff]
  %v2460 = vld [vmem:[%s2456 + $0x14] sm:$0xf]
  %v2461 = vld [vmem:[%s2456 + $0x18] sm:$0xff]
  %v2462 = vld [vmem:[%s2456 + $0x20] sm:$0xf]
  %v2463 = vld [vmem:[%s2456 + $0x24] sm:$0xff]
  %v2464 = vld [vmem:[%s2456 + $0x2c] sm:$0xf]
  %v2465 = vld [vmem:[%s2456 + $0x30] sm:$0xff]
  %v2466 = vld [vmem:[%s2456 + $0x38] sm:$0xf]
  %v2467 = vld [vmem:[%s2456 + $0x3c] sm:$0xff]
  %v2468 = vld [vmem:[%s2456 + $0x44] sm:$0xf]
  %v2469 = vld [vmem:[%s2456 + $0x48] sm:$0xff]
  %v2470 = vld [vmem:[%s2456 + $0x50] sm:$0xf]
  %v2471 = vld [vmem:[%s2456 + $0x54] sm:$0xff]
  %v2472 = vld [vmem:[%s2456 + $0x5c] sm:$0xf]
  %v2473 = vld [vmem:[%s2456 + $0x60] sm:$0xff]
  %v2474 = vld [vmem:[%s2456 + $0x68] sm:$0xf]
  %v2475 = vld [vmem:[%s2456 + $0x6c] sm:$0xff]
  %v2476 = vld [vmem:[%s2456 + $0x74] sm:$0xf]
  %v2477 = vld [vmem:[%s2456 + $0x78] sm:$0xff]
  %v2478 = vld [vmem:[%s2456 + $0x80] sm:$0xf]
  %v2479 = vld [vmem:[%s2456 + $0x84] sm:$0xff]
  %v2480 = vld [vmem:[%s2456 + $0x8c] sm:$0xf]
  %v2481 = vld [vmem:[%s2456 + $0x90] sm:$0xff]
  %v2482 = vld [vmem:[%s2456 + $0x98] sm:$0xf]
  %v2483 = vld [vmem:[%s2456 + $0x9c] sm:$0xff]
  %v2484 = vld [vmem:[%s2456 + $0xa4] sm:$0xf]
  %v2485 = vld [vmem:[%s2456 + $0xa8] sm:$0xff]
  %v2486 = vld [vmem:[%s2456 + $0xb0] sm:$0xf]
  %v2487 = vld [vmem:[%s2456 + $0xb4] sm:$0xff]
  %v2488 = vld [vmem:[%s2456 + $0xbc] sm:$0xf]
  %v2489 = vld [vmem:[%s2456 + $0xc0] sm:$0xff]
  %v2490 = vld [vmem:[%s2456 + $0xc8] sm:$0xf]
  %v2491 = vld [vmem:[%s2456 + $0xcc] sm:$0xff]
  %v2492 = vld [vmem:[%s2456 + $0xd4] sm:$0xf]
  %v2493 = vld [vmem:[%s2456 + $0xd8] sm:$0xff]
  %v2494 = vld [vmem:[%s2456 + $0xe0] sm:$0xf]
  %v2495 = vld [vmem:[%s2456 + $0xe4] sm:$0xff]
  %v2496 = vld [vmem:[%s2456 + $0xec] sm:$0xf]
  %v2497 = vld [vmem:[%s2456 + $0xf0] sm:$0xff]
  %v2498 = vld [vmem:[%s2456 + $0xf8] sm:$0xf]
  %v2499 = vld [vmem:[%s2456 + $0xfc] sm:$0xff]
  %v2500 = vld [vmem:[%s2456 + $0x104] sm:$0xf]
  %v2501 = vld [vmem:[%s2456 + $0x108] sm:$0xff]
  %v2502 = vld [vmem:[%s2456 + $0x110] sm:$0xf]
  %v2503 = vld [vmem:[%s2456 + $0x114] sm:$0xff]
  %v2504 = vld [vmem:[%s2456 + $0x11c] sm:$0xf]
  %s2505 = scalar_lea.vmem %s5, 2
  %v2506 = vld [vmem:[%s2505] ss:$8 sm:$0x7]
  %v2508 = vperm.slane %v2506, 0
  %v2509 = vperm.slane %v2506, 1
  %v2510 = vperm.slane %v2506, 2
  %v2562 = vunpack.c.l.b16 %v2457
  %v2563 = vunpack.c.h.b16 %v2457
  %v2564 = vunpack.c.l.b16 %v2458
  %v2565 = vunpack.c.l.b16 %v2459
  %v2566 = vunpack.c.h.b16 %v2459
  %v2567 = vunpack.c.l.b16 %v2460
  %v2568 = vunpack.c.l.b16 %v2461
  %v2569 = vunpack.c.h.b16 %v2461
  %v2570 = vunpack.c.l.b16 %v2462
  %v2571 = vunpack.c.l.b16 %v2463
  %v2572 = vunpack.c.h.b16 %v2463
  %v2573 = vunpack.c.l.b16 %v2464
  %v2574 = vunpack.c.l.b16 %v2465
  %v2575 = vunpack.c.h.b16 %v2465
  %v2576 = vunpack.c.l.b16 %v2466
  %v2577 = vunpack.c.l.b16 %v2467
  %v2578 = vunpack.c.h.b16 %v2467
  %v2579 = vunpack.c.l.b16 %v2468
  %v2580 = vunpack.c.l.b16 %v2469
  %v2581 = vunpack.c.h.b16 %v2469
  %v2582 = vunpack.c.l.b16 %v2470
  %v2583 = vunpack.c.l.b16 %v2471
  %v2584 = vunpack.c.h.b16 %v2471
  %v2585 = vunpack.c.l.b16 %v2472
  %v2586 = vunpack.c.l.b16 %v2473
  %v2587 = vunpack.c.h.b16 %v2473
  %v2588 = vunpack.c.l.b16 %v2474
  %v2589 = vunpack.c.l.b16 %v2475
  %v2590 = vunpack.c.h.b16 %v2475
  %v2591 = vunpack.c.l.b16 %v2476
  %v2592 = vunpack.c.l.b16 %v2477
  %v2593 = vunpack.c.h.b16 %v2477
  %v2594 = vunpack.c.l.b16 %v2478
  %v2595 = vunpack.c.l.b16 %v2479
  %v2596 = vunpack.c.h.b16 %v2479
  %v2597 = vunpack.c.l.b16 %v2480
  %v2598 = vunpack.c.l.b16 %v2481
  %v2599 = vunpack.c.h.b16 %v2481
  %v2600 = vunpack.c.l.b16 %v2482
  %v2601 = vunpack.c.l.b16 %v2483
  %v2602 = vunpack.c.h.b16 %v2483
  %v2603 = vunpack.c.l.b16 %v2484
  %v2604 = vunpack.c.l.b16 %v2485
  %v2605 = vunpack.c.h.b16 %v2485
  %v2606 = vunpack.c.l.b16 %v2486
  %v2607 = vunpack.c.l.b16 %v2487
  %v2608 = vunpack.c.h.b16 %v2487
  %v2609 = vunpack.c.l.b16 %v2488
  %v2610 = vunpack.c.l.b16 %v2489
  %v2611 = vunpack.c.h.b16 %v2489
  %v2612 = vunpack.c.l.b16 %v2490
  %v2613 = vunpack.c.l.b16 %v2491
  %v2614 = vunpack.c.h.b16 %v2491
  %v2615 = vunpack.c.l.b16 %v2492
  %v2616 = vunpack.c.l.b16 %v2493
  %v2617 = vunpack.c.h.b16 %v2493
  %v2618 = vunpack.c.l.b16 %v2494
  %v2619 = vunpack.c.l.b16 %v2495
  %v2620 = vunpack.c.h.b16 %v2495
  %v2621 = vunpack.c.l.b16 %v2496
  %v2622 = vunpack.c.l.b16 %v2497
  %v2623 = vunpack.c.h.b16 %v2497
  %v2624 = vunpack.c.l.b16 %v2498
  %v2625 = vunpack.c.l.b16 %v2499
  %v2626 = vunpack.c.h.b16 %v2499
  %v2627 = vunpack.c.l.b16 %v2500
  %v2628 = vunpack.c.l.b16 %v2501
  %v2629 = vunpack.c.h.b16 %v2501
  %v2630 = vunpack.c.l.b16 %v2502
  %v2631 = vunpack.c.l.b16 %v2503
  %v2632 = vunpack.c.h.b16 %v2503
  %v2633 = vunpack.c.l.b16 %v2504
  %v2634 = vpack.c.b16 %v2565, %v2562
  %v2635 = vpack.c.b16 %v2566, %v2563
  %v2636 = vpack.c.b16 %v2567, %v2564
  %v2637 = vpack.c.b16 %v2571, %v2568
  %v2638 = vpack.c.b16 %v2572, %v2569
  %v2639 = vpack.c.b16 %v2573, %v2570
  %v2640 = vpack.c.b16 %v2577, %v2574
  %v2641 = vpack.c.b16 %v2578, %v2575
  %v2642 = vpack.c.b16 %v2579, %v2576
  %v2643 = vpack.c.b16 %v2583, %v2580
  %v2644 = vpack.c.b16 %v2584, %v2581
  %v2645 = vpack.c.b16 %v2585, %v2582
  %v2646 = vpack.c.b16 %v2589, %v2586
  %v2647 = vpack.c.b16 %v2590, %v2587
  %v2648 = vpack.c.b16 %v2591, %v2588
  %v2649 = vpack.c.b16 %v2595, %v2592
  %v2650 = vpack.c.b16 %v2596, %v2593
  %v2651 = vpack.c.b16 %v2597, %v2594
  %v2652 = vpack.c.b16 %v2601, %v2598
  %v2653 = vpack.c.b16 %v2602, %v2599
  %v2654 = vpack.c.b16 %v2603, %v2600
  %v2655 = vpack.c.b16 %v2607, %v2604
  %v2656 = vpack.c.b16 %v2608, %v2605
  %v2657 = vpack.c.b16 %v2609, %v2606
  %v2658 = vpack.c.b16 %v2613, %v2610
  %v2659 = vpack.c.b16 %v2614, %v2611
  %v2660 = vpack.c.b16 %v2615, %v2612
  %v2661 = vpack.c.b16 %v2619, %v2616
  %v2662 = vpack.c.b16 %v2620, %v2617
  %v2663 = vpack.c.b16 %v2621, %v2618
  %v2664 = vpack.c.b16 %v2625, %v2622
  %v2665 = vpack.c.b16 %v2626, %v2623
  %v2666 = vpack.c.b16 %v2627, %v2624
  %v2667 = vpack.c.b16 %v2631, %v2628
  %v2668 = vpack.c.b16 %v2632, %v2629
  %v2669 = vpack.c.b16 %v2633, %v2630
  %v2707 = vsel %vm43, %v2453, 0
  %v2710 = vsel %vm43, %v2455, 0
  %2712 = vmatpush.bf16.msra.mxu0 %v2655
  %2713 = vmatpush.bf16.msra.mxu0 %v2652
  %2714 = vmatpush.bf16.msra.mxu0 %v2649
  %2715 = vmatpush.bf16.msra.mxu0 %v2646
  %2716 = vmatpush.bf16.msra.mxu0 %v2643
  %2717 = vmatpush.bf16.msra.mxu0 %v2640
  %2718 = vmatpush.bf16.msra.mxu0 %v2637
  %2719 = vmatpush.bf16.msra.mxu0 %v2634
  %2720 = vmatmul.bf16.gmra.mxu0 %v2452
  %v2721 = vpop.f32.mrf.mxu0
  %v2722 = vadd.f32 %v2508, %v2721
  %v2723 = vpop.f32.mrf.mxu0
  %v2724 = vadd.f32 %v2508, %v2723
  %2725 = vmatmul.bf16.gmra.mxu0 %v2454
  %v2726 = vpop.f32.mrf.mxu0
  %v2727 = vadd.f32 %v2508, %v2726
  %v2728 = vpop.f32.mrf.mxu0
  %v2729 = vadd.f32 %v2508, %v2728
  %2730 = vdwg.mxu0
  %2731 = vmatpush.bf16.msra.mxu0 0
  %2732 = vmatpush.bf16.msra.mxu0 0
  %2733 = vmatpush.bf16.msra.mxu0 0
  %2734 = vmatpush.bf16.msra.mxu0 0
  %2735 = vmatpush.bf16.msra.mxu0 %v2667
  %2736 = vmatpush.bf16.msra.mxu0 %v2664
  %2737 = vmatpush.bf16.msra.mxu0 %v2661
  %2738 = vmatpush.bf16.msra.mxu0 %v2658
  %2739 = vmatmul.bf16.gmra.mxu0 %v2707
  %v2740 = vpop.f32.mrf.mxu0
  %v2741 = vadd.f32 %v2722, %v2740
  %v2742 = vpop.f32.mrf.mxu0
  %v2743 = vadd.f32 %v2724, %v2742
  %2744 = vmatmul.bf16.gmra.mxu0 %v2710
  %v2745 = vpop.f32.mrf.mxu0
  %v2746 = vadd.f32 %v2727, %v2745
  %v2747 = vpop.f32.mrf.mxu0
  %v2748 = vadd.f32 %v2729, %v2747
  %2749 = vdwg.mxu0
  %2750 = vmatpush.bf16.msra.mxu0 %v2656
  %2751 = vmatpush.bf16.msra.mxu0 %v2653
  %2752 = vmatpush.bf16.msra.mxu0 %v2650
  %2753 = vmatpush.bf16.msra.mxu0 %v2647
  %2754 = vmatpush.bf16.msra.mxu0 %v2644
  %2755 = vmatpush.bf16.msra.mxu0 %v2641
  %2756 = vmatpush.bf16.msra.mxu0 %v2638
  %2757 = vmatpush.bf16.msra.mxu0 %v2635
  %2758 = vmatmul.bf16.gmra.mxu0 %v2452
  %v2759 = vpop.f32.mrf.mxu0
  %v2760 = vadd.f32 %v2509, %v2759
  %v2761 = vpop.f32.mrf.mxu0
  %v2762 = vadd.f32 %v2509, %v2761
  %2763 = vmatmul.bf16.gmra.mxu0 %v2454
  %v2764 = vpop.f32.mrf.mxu0
  %v2765 = vadd.f32 %v2509, %v2764
  %v2766 = vpop.f32.mrf.mxu0
  %v2767 = vadd.f32 %v2509, %v2766
  %2768 = vdwg.mxu0
  %2769 = vmatpush.bf16.msra.mxu0 0
  %2770 = vmatpush.bf16.msra.mxu0 0
  %2771 = vmatpush.bf16.msra.mxu0 0
  %2772 = vmatpush.bf16.msra.mxu0 0
  %2773 = vmatpush.bf16.msra.mxu0 %v2668
  %2774 = vmatpush.bf16.msra.mxu0 %v2665
  %2775 = vmatpush.bf16.msra.mxu0 %v2662
  %2776 = vmatpush.bf16.msra.mxu0 %v2659
  %2777 = vmatmul.bf16.gmra.mxu0 %v2707
  %v2778 = vpop.f32.mrf.mxu0
  %v2779 = vadd.f32 %v2760, %v2778
  %v2780 = vpop.f32.mrf.mxu0
  %v2781 = vadd.f32 %v2762, %v2780
  %2782 = vmatmul.bf16.gmra.mxu0 %v2710
  %v2783 = vpop.f32.mrf.mxu0
  %v2784 = vadd.f32 %v2765, %v2783
  %v2785 = vpop.f32.mrf.mxu0
  %v2786 = vadd.f32 %v2767, %v2785
  %2787 = vdwg.mxu0
  %2788 = vmatpush.bf16.msra.mxu0 %v2657
  %2789 = vmatpush.bf16.msra.mxu0 %v2654
  %2790 = vmatpush.bf16.msra.mxu0 %v2651
  %2791 = vmatpush.bf16.msra.mxu0 %v2648
  %2792 = vmatpush.bf16.msra.mxu0 %v2645
  %2793 = vmatpush.bf16.msra.mxu0 %v2642
  %2794 = vmatpush.bf16.msra.mxu0 %v2639
  %2795 = vmatpush.bf16.msra.mxu0 %v2636
  %2796 = vmatmul.bf16.gmra.mxu0 %v2452
  %v2797 = vpop.f32.mrf.mxu0
  %v2798 = vadd.f32 %v2510, %v2797
  %v2799 = vpop.f32.mrf.mxu0
  %v2800 = vadd.f32 %v2510, %v2799
  %2801 = vmatmul.bf16.gmra.mxu0 %v2454
  %v2802 = vpop.f32.mrf.mxu0
  %v2803 = vadd.f32 %v2510, %v2802
  %v2804 = vpop.f32.mrf.mxu0
  %v2805 = vadd.f32 %v2510, %v2804
  %2806 = vdwg.mxu0
  %2807 = vmatpush.bf16.msra.mxu0 0
  %2808 = vmatpush.bf16.msra.mxu0 0
  %2809 = vmatpush.bf16.msra.mxu0 0
  %2810 = vmatpush.bf16.msra.mxu0 0
  %2811 = vmatpush.bf16.msra.mxu0 %v2669
  %2812 = vmatpush.bf16.msra.mxu0 %v2666
  %2813 = vmatpush.bf16.msra.mxu0 %v2663
  %2814 = vmatpush.bf16.msra.mxu0 %v2660
  %2815 = vmatmul.bf16.gmra.mxu0 %v2707
  %v2816 = vpop.f32.mrf.mxu0
  %v2817 = vadd.f32 %v2798, %v2816
  %v2818 = vpop.f32.mrf.mxu0
  %v2819 = vadd.f32 %v2800, %v2818
  %2820 = vmatmul.bf16.gmra.mxu0 %v2710
  %v2821 = vpop.f32.mrf.mxu0
  %v2822 = vadd.f32 %v2803, %v2821
  %v2823 = vpop.f32.mrf.mxu0
  %v2824 = vadd.f32 %v2805, %v2823
  %2825 = vdwg.mxu0
  %v2826 = vmul.f32 %v2741, 0.3
  %v2827 = vmul.f32 %v2779, 0.3
  %v2828 = vmul.f32 %v2817, 0.3
  %v2829 = vmul.f32 %v2743, 0.3
  %v2830 = vmul.f32 %v2781, 0.3
  %v2831 = vmul.f32 %v2819, 0.3
  %v2832 = vmul.f32 %v2746, 0.3
  %v2833 = vmul.f32 %v2784, 0.3
  %v2834 = vmul.f32 %v2822, 0.3
  %v2835 = vmul.f32 %v2748, 0.3
  %v2836 = vmul.f32 %v2786, 0.3
  %v2837 = vmul.f32 %v2824, 0.3
  %v2838 = vmax.f32 %v2741, %v2826
  %v2839 = vmax.f32 %v2779, %v2827
  %v2840 = vmax.f32 %v2817, %v2828
  %v2841 = vmax.f32 %v2743, %v2829
  %v2842 = vmax.f32 %v2781, %v2830
  %v2843 = vmax.f32 %v2819, %v2831
  %v2844 = vmax.f32 %v2746, %v2832
  %v2845 = vmax.f32 %v2784, %v2833
  %v2846 = vmax.f32 %v2822, %v2834
  %v2847 = vmax.f32 %v2748, %v2835
  %v2848 = vmax.f32 %v2786, %v2836
  %v2849 = vmax.f32 %v2824, %v2837
  %v2850 = vpack.c.bf16 %v2841, %v2838
  %v2851 = vpack.c.bf16 %v2842, %v2839
  %v2852 = vpack.c.bf16 %v2843, %v2840
  %v2853 = vpack.c.bf16 %v2847, %v2844
  %v2854 = vpack.c.bf16 %v2848, %v2845
  %v2855 = vpack.c.bf16 %v2849, %v2846
  %s2856 = scalar_lea.vmem %s6, 384
  %v2857 = vld [vmem:[%s2856] sm:$0xff]
  %v2858 = vld [vmem:[%s2856 + $0x8] sm:$0xff]
  %v2859 = vld [vmem:[%s2856 + $0x10] sm:$0xff]
  %v2860 = vld [vmem:[%s2856 + $0x18] sm:$0xff]
  %v2861 = vld [vmem:[%s2856 + $0x20] sm:$0xff]
  %v2862 = vld [vmem:[%s2856 + $0x28] sm:$0xff]
  %v2863 = vld [vmem:[%s2856 + $0x30] sm:$0xff]
  %v2864 = vld [vmem:[%s2856 + $0x38] sm:$0xff]
  %v2865 = vld [vmem:[%s2856 + $0x40] sm:$0xff]
  %v2866 = vld [vmem:[%s2856 + $0x48] sm:$0xff]
  %v2867 = vld [vmem:[%s2856 + $0x50] sm:$0xff]
  %v2868 = vld [vmem:[%s2856 + $0x58] sm:$0xff]
  %v2869 = vld [vmem:[%s2856 + $0x60] sm:$0xff]
  %v2870 = vld [vmem:[%s2856 + $0x68] sm:$0xff]
  %v2871 = vld [vmem:[%s2856 + $0x70] sm:$0xff]
  %v2872 = vld [vmem:[%s2856 + $0x78] sm:$0xff]
  %v2873 = vld [vmem:[%s2856 + $0x80] sm:$0xff]
  %v2874 = vld [vmem:[%s2856 + $0x88] sm:$0xff]
  %v2875 = vld [vmem:[%s2856 + $0x90] sm:$0xff]
  %v2876 = vld [vmem:[%s2856 + $0x98] sm:$0xff]
  %v2877 = vld [vmem:[%s2856 + $0xa0] sm:$0xff]
  %v2878 = vld [vmem:[%s2856 + $0xa8] sm:$0xff]
  %v2879 = vld [vmem:[%s2856 + $0xb0] sm:$0xff]
  %v2880 = vld [vmem:[%s2856 + $0xb8] sm:$0xff]
  %v2881 = vld [vmem:[%s2856 + $0xc0] sm:$0xff]
  %v2882 = vld [vmem:[%s2856 + $0xc8] sm:$0xff]
  %v2883 = vld [vmem:[%s2856 + $0xd0] sm:$0xff]
  %v2884 = vld [vmem:[%s2856 + $0xd8] sm:$0xff]
  %v2885 = vld [vmem:[%s2856 + $0xe0] sm:$0xff]
  %v2886 = vld [vmem:[%s2856 + $0xe8] sm:$0xff]
  %v2887 = vld [vmem:[%s2856 + $0xf0] sm:$0xff]
  %v2888 = vld [vmem:[%s2856 + $0xf8] sm:$0xff]
  %v2889 = vld [vmem:[%s2856 + $0x100] sm:$0xff]
  %v2890 = vld [vmem:[%s2856 + $0x108] sm:$0xff]
  %v2891 = vld [vmem:[%s2856 + $0x110] sm:$0xff]
  %v2892 = vld [vmem:[%s2856 + $0x118] sm:$0xff]
  %v2893 = vld [vmem:[%s2856 + $0x120] sm:$0xff]
  %v2894 = vld [vmem:[%s2856 + $0x128] sm:$0xff]
  %v2895 = vld [vmem:[%s2856 + $0x130] sm:$0xff]
  %v2896 = vld [vmem:[%s2856 + $0x138] sm:$0xff]
  %v2897 = vld [vmem:[%s2856 + $0x140] sm:$0xff]
  %v2898 = vld [vmem:[%s2856 + $0x148] sm:$0xff]
  %v2899 = vld [vmem:[%s2856 + $0x150] sm:$0xff]
  %v2900 = vld [vmem:[%s2856 + $0x158] sm:$0xff]
  %v2901 = vld [vmem:[%s2856 + $0x160] sm:$0xff]
  %v2902 = vld [vmem:[%s2856 + $0x168] sm:$0xff]
  %v2903 = vld [vmem:[%s2856 + $0x170] sm:$0xff]
  %v2904 = vld [vmem:[%s2856 + $0x178] sm:$0xff]
  %s2905 = scalar_lea.vmem %s7, 1
  %v2906 = vld [vmem:[%s2905] ss:$4 sm:$0x3]
  %v2908 = vperm.slane %v2906, 0
  %v2909 = vperm.slane %v2906, 1
  %v2960 = vunpack.c.l.b16 %v2857
  %v2961 = vunpack.c.h.b16 %v2857
  %v2962 = vunpack.c.l.b16 %v2858
  %v2963 = vunpack.c.h.b16 %v2858
  %v2964 = vunpack.c.l.b16 %v2859
  %v2965 = vunpack.c.h.b16 %v2859
  %v2966 = vunpack.c.l.b16 %v2860
  %v2967 = vunpack.c.h.b16 %v2860
  %v2968 = vunpack.c.l.b16 %v2861
  %v2969 = vunpack.c.h.b16 %v2861
  %v2970 = vunpack.c.l.b16 %v2862
  %v2971 = vunpack.c.h.b16 %v2862
  %v2972 = vunpack.c.l.b16 %v2863
  %v2973 = vunpack.c.h.b16 %v2863
  %v2974 = vunpack.c.l.b16 %v2864
  %v2975 = vunpack.c.h.b16 %v2864
  %v2976 = vunpack.c.l.b16 %v2865
  %v2977 = vunpack.c.h.b16 %v2865
  %v2978 = vunpack.c.l.b16 %v2866
  %v2979 = vunpack.c.h.b16 %v2866
  %v2980 = vunpack.c.l.b16 %v2867
  %v2981 = vunpack.c.h.b16 %v2867
  %v2982 = vunpack.c.l.b16 %v2868
  %v2983 = vunpack.c.h.b16 %v2868
  %v2984 = vunpack.c.l.b16 %v2869
  %v2985 = vunpack.c.h.b16 %v2869
  %v2986 = vunpack.c.l.b16 %v2870
  %v2987 = vunpack.c.h.b16 %v2870
  %v2988 = vunpack.c.l.b16 %v2871
  %v2989 = vunpack.c.h.b16 %v2871
  %v2990 = vunpack.c.l.b16 %v2872
  %v2991 = vunpack.c.h.b16 %v2872
  %v2992 = vunpack.c.l.b16 %v2873
  %v2993 = vunpack.c.h.b16 %v2873
  %v2994 = vunpack.c.l.b16 %v2874
  %v2995 = vunpack.c.h.b16 %v2874
  %v2996 = vunpack.c.l.b16 %v2875
  %v2997 = vunpack.c.h.b16 %v2875
  %v2998 = vunpack.c.l.b16 %v2876
  %v2999 = vunpack.c.h.b16 %v2876
  %v3000 = vunpack.c.l.b16 %v2877
  %v3001 = vunpack.c.h.b16 %v2877
  %v3002 = vunpack.c.l.b16 %v2878
  %v3003 = vunpack.c.h.b16 %v2878
  %v3004 = vunpack.c.l.b16 %v2879
  %v3005 = vunpack.c.h.b16 %v2879
  %v3006 = vunpack.c.l.b16 %v2880
  %v3007 = vunpack.c.h.b16 %v2880
  %v3008 = vunpack.c.l.b16 %v2881
  %v3009 = vunpack.c.h.b16 %v2881
  %v3010 = vunpack.c.l.b16 %v2882
  %v3011 = vunpack.c.h.b16 %v2882
  %v3012 = vunpack.c.l.b16 %v2883
  %v3013 = vunpack.c.h.b16 %v2883
  %v3014 = vunpack.c.l.b16 %v2884
  %v3015 = vunpack.c.h.b16 %v2884
  %v3016 = vunpack.c.l.b16 %v2885
  %v3017 = vunpack.c.h.b16 %v2885
  %v3018 = vunpack.c.l.b16 %v2886
  %v3019 = vunpack.c.h.b16 %v2886
  %v3020 = vunpack.c.l.b16 %v2887
  %v3021 = vunpack.c.h.b16 %v2887
  %v3022 = vunpack.c.l.b16 %v2888
  %v3023 = vunpack.c.h.b16 %v2888
  %v3024 = vunpack.c.l.b16 %v2889
  %v3025 = vunpack.c.h.b16 %v2889
  %v3026 = vunpack.c.l.b16 %v2890
  %v3027 = vunpack.c.h.b16 %v2890
  %v3028 = vunpack.c.l.b16 %v2891
  %v3029 = vunpack.c.h.b16 %v2891
  %v3030 = vunpack.c.l.b16 %v2892
  %v3031 = vunpack.c.h.b16 %v2892
  %v3032 = vunpack.c.l.b16 %v2893
  %v3033 = vunpack.c.h.b16 %v2893
  %v3034 = vunpack.c.l.b16 %v2894
  %v3035 = vunpack.c.h.b16 %v2894
  %v3036 = vunpack.c.l.b16 %v2895
  %v3037 = vunpack.c.h.b16 %v2895
  %v3038 = vunpack.c.l.b16 %v2896
  %v3039 = vunpack.c.h.b16 %v2896
  %v3040 = vunpack.c.l.b16 %v2897
  %v3041 = vunpack.c.h.b16 %v2897
  %v3042 = vunpack.c.l.b16 %v2898
  %v3043 = vunpack.c.h.b16 %v2898
  %v3044 = vunpack.c.l.b16 %v2899
  %v3045 = vunpack.c.h.b16 %v2899
  %v3046 = vunpack.c.l.b16 %v2900
  %v3047 = vunpack.c.h.b16 %v2900
  %v3048 = vunpack.c.l.b16 %v2901
  %v3049 = vunpack.c.h.b16 %v2901
  %v3050 = vunpack.c.l.b16 %v2902
  %v3051 = vunpack.c.h.b16 %v2902
  %v3052 = vunpack.c.l.b16 %v2903
  %v3053 = vunpack.c.h.b16 %v2903
  %v3054 = vunpack.c.l.b16 %v2904
  %v3055 = vunpack.c.h.b16 %v2904
  %v3056 = vpack.c.b16 %v2962, %v2960
  %v3057 = vpack.c.b16 %v2963, %v2961
  %v3058 = vpack.c.b16 %v2966, %v2964
  %v3059 = vpack.c.b16 %v2967, %v2965
  %v3060 = vpack.c.b16 %v2970, %v2968
  %v3061 = vpack.c.b16 %v2971, %v2969
  %v3062 = vpack.c.b16 %v2974, %v2972
  %v3063 = vpack.c.b16 %v2975, %v2973
  %v3064 = vpack.c.b16 %v2978, %v2976
  %v3065 = vpack.c.b16 %v2979, %v2977
  %v3066 = vpack.c.b16 %v2982, %v2980
  %v3067 = vpack.c.b16 %v2983, %v2981
  %v3068 = vpack.c.b16 %v2986, %v2984
  %v3069 = vpack.c.b16 %v2987, %v2985
  %v3070 = vpack.c.b16 %v2990, %v2988
  %v3071 = vpack.c.b16 %v2991, %v2989
  %v3072 = vpack.c.b16 %v2994, %v2992
  %v3073 = vpack.c.b16 %v2995, %v2993
  %v3074 = vpack.c.b16 %v2998, %v2996
  %v3075 = vpack.c.b16 %v2999, %v2997
  %v3076 = vpack.c.b16 %v3002, %v3000
  %v3077 = vpack.c.b16 %v3003, %v3001
  %v3078 = vpack.c.b16 %v3006, %v3004
  %v3079 = vpack.c.b16 %v3007, %v3005
  %v3080 = vpack.c.b16 %v3010, %v3008
  %v3081 = vpack.c.b16 %v3011, %v3009
  %v3082 = vpack.c.b16 %v3014, %v3012
  %v3083 = vpack.c.b16 %v3015, %v3013
  %v3084 = vpack.c.b16 %v3018, %v3016
  %v3085 = vpack.c.b16 %v3019, %v3017
  %v3086 = vpack.c.b16 %v3022, %v3020
  %v3087 = vpack.c.b16 %v3023, %v3021
  %v3088 = vpack.c.b16 %v3026, %v3024
  %v3089 = vpack.c.b16 %v3027, %v3025
  %v3090 = vpack.c.b16 %v3030, %v3028
  %v3091 = vpack.c.b16 %v3031, %v3029
  %v3092 = vpack.c.b16 %v3034, %v3032
  %v3093 = vpack.c.b16 %v3035, %v3033
  %v3094 = vpack.c.b16 %v3038, %v3036
  %v3095 = vpack.c.b16 %v3039, %v3037
  %v3096 = vpack.c.b16 %v3042, %v3040
  %v3097 = vpack.c.b16 %v3043, %v3041
  %v3098 = vpack.c.b16 %v3046, %v3044
  %v3099 = vpack.c.b16 %v3047, %v3045
  %v3100 = vpack.c.b16 %v3050, %v3048
  %v3101 = vpack.c.b16 %v3051, %v3049
  %v3102 = vpack.c.b16 %v3054, %v3052
  %v3103 = vpack.c.b16 %v3055, %v3053
  %3152 = vmatpush.bf16.msra.mxu0 %v3070
  %3153 = vmatpush.bf16.msra.mxu0 %v3068
  %3154 = vmatpush.bf16.msra.mxu0 %v3066
  %3155 = vmatpush.bf16.msra.mxu0 %v3064
  %3156 = vmatpush.bf16.msra.mxu0 %v3062
  %3157 = vmatpush.bf16.msra.mxu0 %v3060
  %3158 = vmatpush.bf16.msra.mxu0 %v3058
  %3159 = vmatpush.bf16.msra.mxu0 %v3056
  %3160 = vmatmul.bf16.gmra.mxu0 %v2850
  %v3161 = vpop.f32.mrf.mxu0
  %v3162 = vadd.f32 %v2908, %v3161
  %v3163 = vpop.f32.mrf.mxu0
  %v3164 = vadd.f32 %v2908, %v3163
  %3165 = vmatmul.bf16.gmra.mxu0 %v2853
  %v3166 = vpop.f32.mrf.mxu0
  %v3167 = vadd.f32 %v2908, %v3166
  %v3168 = vpop.f32.mrf.mxu0
  %v3169 = vadd.f32 %v2908, %v3168
  %3170 = vdwg.mxu0
  %3171 = vmatpush.bf16.msra.mxu0 %v3086
  %3172 = vmatpush.bf16.msra.mxu0 %v3084
  %3173 = vmatpush.bf16.msra.mxu0 %v3082
  %3174 = vmatpush.bf16.msra.mxu0 %v3080
  %3175 = vmatpush.bf16.msra.mxu0 %v3078
  %3176 = vmatpush.bf16.msra.mxu0 %v3076
  %3177 = vmatpush.bf16.msra.mxu0 %v3074
  %3178 = vmatpush.bf16.msra.mxu0 %v3072
  %3179 = vmatmul.bf16.gmra.mxu0 %v2851
  %v3180 = vpop.f32.mrf.mxu0
  %v3181 = vadd.f32 %v3162, %v3180
  %v3182 = vpop.f32.mrf.mxu0
  %v3183 = vadd.f32 %v3164, %v3182
  %3184 = vmatmul.bf16.gmra.mxu0 %v2854
  %v3185 = vpop.f32.mrf.mxu0
  %v3186 = vadd.f32 %v3167, %v3185
  %v3187 = vpop.f32.mrf.mxu0
  %v3188 = vadd.f32 %v3169, %v3187
  %3189 = vdwg.mxu0
  %3190 = vmatpush.bf16.msra.mxu0 %v3102
  %3191 = vmatpush.bf16.msra.mxu0 %v3100
  %3192 = vmatpush.bf16.msra.mxu0 %v3098
  %3193 = vmatpush.bf16.msra.mxu0 %v3096
  %3194 = vmatpush.bf16.msra.mxu0 %v3094
  %3195 = vmatpush.bf16.msra.mxu0 %v3092
  %3196 = vmatpush.bf16.msra.mxu0 %v3090
  %3197 = vmatpush.bf16.msra.mxu0 %v3088
  %3198 = vmatmul.bf16.gmra.mxu0 %v2852
  %v3199 = vpop.f32.mrf.mxu0
  %v3200 = vadd.f32 %v3181, %v3199
  %v3201 = vpop.f32.mrf.mxu0
  %v3202 = vadd.f32 %v3183, %v3201
  %3203 = vmatmul.bf16.gmra.mxu0 %v2855
  %v3204 = vpop.f32.mrf.mxu0
  %v3205 = vadd.f32 %v3186, %v3204
  %v3206 = vpop.f32.mrf.mxu0
  %v3207 = vadd.f32 %v3188, %v3206
  %3208 = vdwg.mxu0
  %3209 = vmatpush.bf16.msra.mxu0 %v3071
  %3210 = vmatpush.bf16.msra.mxu0 %v3069
  %3211 = vmatpush.bf16.msra.mxu0 %v3067
  %3212 = vmatpush.bf16.msra.mxu0 %v3065
  %3213 = vmatpush.bf16.msra.mxu0 %v3063
  %3214 = vmatpush.bf16.msra.mxu0 %v3061
  %3215 = vmatpush.bf16.msra.mxu0 %v3059
  %3216 = vmatpush.bf16.msra.mxu0 %v3057
  %3217 = vmatmul.bf16.gmra.mxu0 %v2850
  %v3218 = vpop.f32.mrf.mxu0
  %v3219 = vadd.f32 %v2909, %v3218
  %v3220 = vpop.f32.mrf.mxu0
  %v3221 = vadd.f32 %v2909, %v3220
  %3222 = vmatmul.bf16.gmra.mxu0 %v2853
  %v3223 = vpop.f32.mrf.mxu0
  %v3224 = vadd.f32 %v2909, %v3223
  %v3225 = vpop.f32.mrf.mxu0
  %v3226 = vadd.f32 %v2909, %v3225
  %3227 = vdwg.mxu0
  %3228 = vmatpush.bf16.msra.mxu0 %v3087
  %3229 = vmatpush.bf16.msra.mxu0 %v3085
  %3230 = vmatpush.bf16.msra.mxu0 %v3083
  %3231 = vmatpush.bf16.msra.mxu0 %v3081
  %3232 = vmatpush.bf16.msra.mxu0 %v3079
  %3233 = vmatpush.bf16.msra.mxu0 %v3077
  %3234 = vmatpush.bf16.msra.mxu0 %v3075
  %3235 = vmatpush.bf16.msra.mxu0 %v3073
  %3236 = vmatmul.bf16.gmra.mxu0 %v2851
  %v3237 = vpop.f32.mrf.mxu0
  %v3238 = vadd.f32 %v3219, %v3237
  %v3239 = vpop.f32.mrf.mxu0
  %v3240 = vadd.f32 %v3221, %v3239
  %3241 = vmatmul.bf16.gmra.mxu0 %v2854
  %v3242 = vpop.f32.mrf.mxu0
  %v3243 = vadd.f32 %v3224, %v3242
  %v3244 = vpop.f32.mrf.mxu0
  %v3245 = vadd.f32 %v3226, %v3244
  %3246 = vdwg.mxu0
  %3247 = vmatpush.bf16.msra.mxu0 %v3103
  %3248 = vmatpush.bf16.msra.mxu0 %v3101
  %3249 = vmatpush.bf16.msra.mxu0 %v3099
  %3250 = vmatpush.bf16.msra.mxu0 %v3097
  %3251 = vmatpush.bf16.msra.mxu0 %v3095
  %3252 = vmatpush.bf16.msra.mxu0 %v3093
  %3253 = vmatpush.bf16.msra.mxu0 %v3091
  %3254 = vmatpush.bf16.msra.mxu0 %v3089
  %3255 = vmatmul.bf16.gmra.mxu0 %v2852
  %v3256 = vpop.f32.mrf.mxu0
  %v3257 = vadd.f32 %v3238, %v3256
  %v3258 = vpop.f32.mrf.mxu0
  %v3259 = vadd.f32 %v3240, %v3258
  %3260 = vmatmul.bf16.gmra.mxu0 %v2855
  %v3261 = vpop.f32.mrf.mxu0
  %v3262 = vadd.f32 %v3243, %v3261
  %v3263 = vpop.f32.mrf.mxu0
  %v3264 = vadd.f32 %v3245, %v3263
  %3265 = vdwg.mxu0
  %v3266 = vmul.f32 %v3200, 0.3
  %v3267 = vmul.f32 %v3257, 0.3
  %v3268 = vmul.f32 %v3202, 0.3
  %v3269 = vmul.f32 %v3259, 0.3
  %v3270 = vmul.f32 %v3205, 0.3
  %v3271 = vmul.f32 %v3262, 0.3
  %v3272 = vmul.f32 %v3207, 0.3
  %v3273 = vmul.f32 %v3264, 0.3
  %v3274 = vmax.f32 %v3200, %v3266
  %v3275 = vmax.f32 %v3257, %v3267
  %v3276 = vmax.f32 %v3202, %v3268
  %v3277 = vmax.f32 %v3259, %v3269
  %v3278 = vmax.f32 %v3205, %v3270
  %v3279 = vmax.f32 %v3262, %v3271
  %v3280 = vmax.f32 %v3207, %v3272
  %v3281 = vmax.f32 %v3264, %v3273
  %v3282 = vadd.f32 %v2306, %v3274
  %v3283 = vadd.f32 %v2307, %v3275
  %v3284 = vadd.f32 %v2308, %v3276
  %v3285 = vadd.f32 %v2309, %v3277
  %v3286 = vadd.f32 %v2310, %v3278
  %v3287 = vadd.f32 %v2311, %v3279
  %v3288 = vadd.f32 %v2312, %v3280
  %v3289 = vadd.f32 %v2313, %v3281
  %3290 = vmatpush.msra.mxu0 0.0
  %3291 = vmatpush.msra.mxu0 0.0
  %3292 = vmatpush.msra.mxu0 0.0
  %3293 = vmatpush.msra.mxu0 0.0
  %3294 = vmatpush.msra.mxu0 0.0
  %3295 = vmatpush.msra.mxu0 0.0
  %3296 = vmatpush.msra.mxu0 0.0
  %3297 = vmatpush.msra.mxu0 0.0
  %3298 = vmatpush.msra.mxu0 0.0
  %3299 = vmatpush.msra.mxu0 0.0
  %3300 = vmatpush.msra.mxu0 0.0
  %3301 = vmatpush.msra.mxu0 0.0
  %3302 = vmatpush.msra.mxu0 %v3288
  %3303 = vmatpush.msra.mxu0 %v3286
  %3304 = vmatpush.msra.mxu0 %v3284
  %3305 = vmatpush.msra.mxu0 %v3282
  %3306 = vmatmul.f32.gmra.mxu0 %v660
  %v3307 = vpop.f32.mrf.mxu0
  %v3308 = vadd.f32 0.0, %v3307
  %3309 = vdwg.mxu0
  %3310 = vmatpush.msra.mxu0 0.0
  %3311 = vmatpush.msra.mxu0 0.0
  %3312 = vmatpush.msra.mxu0 0.0
  %3313 = vmatpush.msra.mxu0 0.0
  %3314 = vmatpush.msra.mxu0 0.0
  %3315 = vmatpush.msra.mxu0 0.0
  %3316 = vmatpush.msra.mxu0 0.0
  %3317 = vmatpush.msra.mxu0 0.0
  %3318 = vmatpush.msra.mxu0 0.0
  %3319 = vmatpush.msra.mxu0 0.0
  %3320 = vmatpush.msra.mxu0 0.0
  %3321 = vmatpush.msra.mxu0 0.0
  %3322 = vmatpush.msra.mxu0 %v3289
  %3323 = vmatpush.msra.mxu0 %v3287
  %3324 = vmatpush.msra.mxu0 %v3285
  %3325 = vmatpush.msra.mxu0 %v3283
  %3326 = vmatmul.f32.gmra.mxu0 %v660
  %v3327 = vpop.f32.mrf.mxu0
  %v3328 = vadd.f32 0.0, %v3327
  %3329 = vdwg.mxu0
  %v3330 = vmul.f32 %v3282, %v3282
  %v3331 = vmul.f32 %v3283, %v3283
  %v3332 = vmul.f32 %v3284, %v3284
  %v3333 = vmul.f32 %v3285, %v3285
  %v3334 = vmul.f32 %v3286, %v3286
  %v3335 = vmul.f32 %v3287, %v3287
  %v3336 = vmul.f32 %v3288, %v3288
  %v3337 = vmul.f32 %v3289, %v3289
  %3338 = vmatpush.msra.mxu0 0.0
  %3339 = vmatpush.msra.mxu0 0.0
  %3340 = vmatpush.msra.mxu0 0.0
  %3341 = vmatpush.msra.mxu0 0.0
  %3342 = vmatpush.msra.mxu0 0.0
  %3343 = vmatpush.msra.mxu0 0.0
  %3344 = vmatpush.msra.mxu0 0.0
  %3345 = vmatpush.msra.mxu0 0.0
  %3346 = vmatpush.msra.mxu0 0.0
  %3347 = vmatpush.msra.mxu0 0.0
  %3348 = vmatpush.msra.mxu0 0.0
  %3349 = vmatpush.msra.mxu0 0.0
  %3350 = vmatpush.msra.mxu0 %v3336
  %3351 = vmatpush.msra.mxu0 %v3334
  %3352 = vmatpush.msra.mxu0 %v3332
  %3353 = vmatpush.msra.mxu0 %v3330
  %3354 = vmatmul.f32.gmra.mxu0 %v660
  %v3355 = vpop.f32.mrf.mxu0
  %v3356 = vadd.f32 0.0, %v3355
  %3357 = vdwg.mxu0
  %3358 = vmatpush.msra.mxu0 0.0
  %3359 = vmatpush.msra.mxu0 0.0
  %3360 = vmatpush.msra.mxu0 0.0
  %3361 = vmatpush.msra.mxu0 0.0
  %3362 = vmatpush.msra.mxu0 0.0
  %3363 = vmatpush.msra.mxu0 0.0
  %3364 = vmatpush.msra.mxu0 0.0
  %3365 = vmatpush.msra.mxu0 0.0
  %3366 = vmatpush.msra.mxu0 0.0
  %3367 = vmatpush.msra.mxu0 0.0
  %3368 = vmatpush.msra.mxu0 0.0
  %3369 = vmatpush.msra.mxu0 0.0
  %3370 = vmatpush.msra.mxu0 %v3337
  %3371 = vmatpush.msra.mxu0 %v3335
  %3372 = vmatpush.msra.mxu0 %v3333
  %3373 = vmatpush.msra.mxu0 %v3331
  %3374 = vmatmul.f32.gmra.mxu0 %v660
  %v3375 = vpop.f32.mrf.mxu0
  %v3376 = vadd.f32 0.0, %v3375
  %3377 = vdwg.mxu0
  %v3378 = vmul.f32 %v3308, 0.03125
  %v3379 = vmul.f32 %v3328, 0.03125
  %v3380 = vmul.f32 %v3356, 0.03125
  %v3381 = vmul.f32 %v3376, 0.03125
  %v3382 = vmul.f32 %v3378, %v3378
  %v3383 = vmul.f32 %v3379, %v3379
  %v3384 = vsub.f32 %v3380, %v3382
  %v3385 = vsub.f32 %v3381, %v3383
  %v3386 = vperm.slane %v3378, 0
  %v3387 = vperm.slane %v3379, 0
  %v3388 = vsub.f32 %v3282, %v3386
  %v3389 = vsub.f32 %v3283, %v3387
  %v3390 = vsub.f32 %v3284, %v3386
  %v3391 = vsub.f32 %v3285, %v3387
  %v3392 = vsub.f32 %v3286, %v3386
  %v3393 = vsub.f32 %v3287, %v3387
  %v3394 = vsub.f32 %v3288, %v3386
  %v3395 = vsub.f32 %v3289, %v3387
  %v3396 = vadd.f32 %v3384, 1e-05
  %v3397 = vadd.f32 %v3385, 1e-05
  %v3398 = vrsqrt.pop %v3396
  %v3399 = vmul.f32 %v3398, %v3396
  %v3400 = vmul.f32 %v3399, %v3398
  %v3401 = vmul.f32 0.5, %v3400
  %v3402 = vsub.f32 1.5, %v3401
  %v3403 = vmul.f32 %v3398, %v3402
  %vm3404 = vweird.f32 %v3396
  %vm3405 = vweird.f32 %v3398
  %vm3406 = vmor %vm3404, %vm3405
  %v3407 = vsel %vm3406, %v3398, %v3403
  %v3408 = vrsqrt.pop %v3397
  %v3409 = vmul.f32 %v3408, %v3397
  %v3410 = vmul.f32 %v3409, %v3408
  %v3411 = vmul.f32 0.5, %v3410
  %v3412 = vsub.f32 1.5, %v3411
  %v3413 = vmul.f32 %v3408, %v3412
  %vm3414 = vweird.f32 %v3397
  %vm3415 = vweird.f32 %v3408
  %vm3416 = vmor %vm3414, %vm3415
  %v3417 = vsel %vm3416, %v3408, %v3413
  %v3418 = vperm.slane %v3407, 0
  %v3419 = vperm.slane %v3417, 0
  %v3420 = vmul.f32 %v3388, %v3418
  %v3421 = vmul.f32 %v3389, %v3419
  %v3422 = vmul.f32 %v3390, %v3418
  %v3423 = vmul.f32 %v3391, %v3419
  %v3424 = vmul.f32 %v3392, %v3418
  %v3425 = vmul.f32 %v3393, %v3419
  %v3426 = vmul.f32 %v3394, %v3418
  %v3427 = vmul.f32 %v3395, %v3419
  %v3428 = vpack.c.bf16 %v3422, %v3420
  %v3429 = vpack.c.bf16 %v3423, %v3421
  %v3430 = vpack.c.bf16 %v3426, %v3424
  %v3431 = vpack.c.bf16 %v3427, %v3425
  %s3432 = scalar_lea.vmem %s4, 864
  %v3433 = vld [vmem:[%s3432] sm:$0xff]
  %v3434 = vld [vmem:[%s3432 + $0x8] sm:$0xf]
  %v3435 = vld [vmem:[%s3432 + $0xc] sm:$0xff]
  %v3436 = vld [vmem:[%s3432 + $0x14] sm:$0xf]
  %v3437 = vld [vmem:[%s3432 + $0x18] sm:$0xff]
  %v3438 = vld [vmem:[%s3432 + $0x20] sm:$0xf]
  %v3439 = vld [vmem:[%s3432 + $0x24] sm:$0xff]
  %v3440 = vld [vmem:[%s3432 + $0x2c] sm:$0xf]
  %v3441 = vld [vmem:[%s3432 + $0x30] sm:$0xff]
  %v3442 = vld [vmem:[%s3432 + $0x38] sm:$0xf]
  %v3443 = vld [vmem:[%s3432 + $0x3c] sm:$0xff]
  %v3444 = vld [vmem:[%s3432 + $0x44] sm:$0xf]
  %v3445 = vld [vmem:[%s3432 + $0x48] sm:$0xff]
  %v3446 = vld [vmem:[%s3432 + $0x50] sm:$0xf]
  %v3447 = vld [vmem:[%s3432 + $0x54] sm:$0xff]
  %v3448 = vld [vmem:[%s3432 + $0x5c] sm:$0xf]
  %v3449 = vld [vmem:[%s3432 + $0x60] sm:$0xff]
  %v3450 = vld [vmem:[%s3432 + $0x68] sm:$0xf]
  %v3451 = vld [vmem:[%s3432 + $0x6c] sm:$0xff]
  %v3452 = vld [vmem:[%s3432 + $0x74] sm:$0xf]
  %v3453 = vld [vmem:[%s3432 + $0x78] sm:$0xff]
  %v3454 = vld [vmem:[%s3432 + $0x80] sm:$0xf]
  %v3455 = vld [vmem:[%s3432 + $0x84] sm:$0xff]
  %v3456 = vld [vmem:[%s3432 + $0x8c] sm:$0xf]
  %v3457 = vld [vmem:[%s3432 + $0x90] sm:$0xff]
  %v3458 = vld [vmem:[%s3432 + $0x98] sm:$0xf]
  %v3459 = vld [vmem:[%s3432 + $0x9c] sm:$0xff]
  %v3460 = vld [vmem:[%s3432 + $0xa4] sm:$0xf]
  %v3461 = vld [vmem:[%s3432 + $0xa8] sm:$0xff]
  %v3462 = vld [vmem:[%s3432 + $0xb0] sm:$0xf]
  %v3463 = vld [vmem:[%s3432 + $0xb4] sm:$0xff]
  %v3464 = vld [vmem:[%s3432 + $0xbc] sm:$0xf]
  %v3465 = vld [vmem:[%s3432 + $0xc0] sm:$0xff]
  %v3466 = vld [vmem:[%s3432 + $0xc8] sm:$0xf]
  %v3467 = vld [vmem:[%s3432 + $0xcc] sm:$0xff]
  %v3468 = vld [vmem:[%s3432 + $0xd4] sm:$0xf]
  %v3469 = vld [vmem:[%s3432 + $0xd8] sm:$0xff]
  %v3470 = vld [vmem:[%s3432 + $0xe0] sm:$0xf]
  %v3471 = vld [vmem:[%s3432 + $0xe4] sm:$0xff]
  %v3472 = vld [vmem:[%s3432 + $0xec] sm:$0xf]
  %v3473 = vld [vmem:[%s3432 + $0xf0] sm:$0xff]
  %v3474 = vld [vmem:[%s3432 + $0xf8] sm:$0xf]
  %v3475 = vld [vmem:[%s3432 + $0xfc] sm:$0xff]
  %v3476 = vld [vmem:[%s3432 + $0x104] sm:$0xf]
  %v3477 = vld [vmem:[%s3432 + $0x108] sm:$0xff]
  %v3478 = vld [vmem:[%s3432 + $0x110] sm:$0xf]
  %v3479 = vld [vmem:[%s3432 + $0x114] sm:$0xff]
  %v3480 = vld [vmem:[%s3432 + $0x11c] sm:$0xf]
  %s3481 = scalar_lea.vmem %s5, 3
  %v3482 = vld [vmem:[%s3481] ss:$8 sm:$0x7]
  %v3484 = vperm.slane %v3482, 0
  %v3485 = vperm.slane %v3482, 1
  %v3486 = vperm.slane %v3482, 2
  %v3538 = vunpack.c.l.b16 %v3433
  %v3539 = vunpack.c.h.b16 %v3433
  %v3540 = vunpack.c.l.b16 %v3434
  %v3541 = vunpack.c.l.b16 %v3435
  %v3542 = vunpack.c.h.b16 %v3435
  %v3543 = vunpack.c.l.b16 %v3436
  %v3544 = vunpack.c.l.b16 %v3437
  %v3545 = vunpack.c.h.b16 %v3437
  %v3546 = vunpack.c.l.b16 %v3438
  %v3547 = vunpack.c.l.b16 %v3439
  %v3548 = vunpack.c.h.b16 %v3439
  %v3549 = vunpack.c.l.b16 %v3440
  %v3550 = vunpack.c.l.b16 %v3441
  %v3551 = vunpack.c.h.b16 %v3441
  %v3552 = vunpack.c.l.b16 %v3442
  %v3553 = vunpack.c.l.b16 %v3443
  %v3554 = vunpack.c.h.b16 %v3443
  %v3555 = vunpack.c.l.b16 %v3444
  %v3556 = vunpack.c.l.b16 %v3445
  %v3557 = vunpack.c.h.b16 %v3445
  %v3558 = vunpack.c.l.b16 %v3446
  %v3559 = vunpack.c.l.b16 %v3447
  %v3560 = vunpack.c.h.b16 %v3447
  %v3561 = vunpack.c.l.b16 %v3448
  %v3562 = vunpack.c.l.b16 %v3449
  %v3563 = vunpack.c.h.b16 %v3449
  %v3564 = vunpack.c.l.b16 %v3450
  %v3565 = vunpack.c.l.b16 %v3451
  %v3566 = vunpack.c.h.b16 %v3451
  %v3567 = vunpack.c.l.b16 %v3452
  %v3568 = vunpack.c.l.b16 %v3453
  %v3569 = vunpack.c.h.b16 %v3453
  %v3570 = vunpack.c.l.b16 %v3454
  %v3571 = vunpack.c.l.b16 %v3455
  %v3572 = vunpack.c.h.b16 %v3455
  %v3573 = vunpack.c.l.b16 %v3456
  %v3574 = vunpack.c.l.b16 %v3457
  %v3575 = vunpack.c.h.b16 %v3457
  %v3576 = vunpack.c.l.b16 %v3458
  %v3577 = vunpack.c.l.b16 %v3459
  %v3578 = vunpack.c.h.b16 %v3459
  %v3579 = vunpack.c.l.b16 %v3460
  %v3580 = vunpack.c.l.b16 %v3461
  %v3581 = vunpack.c.h.b16 %v3461
  %v3582 = vunpack.c.l.b16 %v3462
  %v3583 = vunpack.c.l.b16 %v3463
  %v3584 = vunpack.c.h.b16 %v3463
  %v3585 = vunpack.c.l.b16 %v3464
  %v3586 = vunpack.c.l.b16 %v3465
  %v3587 = vunpack.c.h.b16 %v3465
  %v3588 = vunpack.c.l.b16 %v3466
  %v3589 = vunpack.c.l.b16 %v3467
  %v3590 = vunpack.c.h.b16 %v3467
  %v3591 = vunpack.c.l.b16 %v3468
  %v3592 = vunpack.c.l.b16 %v3469
  %v3593 = vunpack.c.h.b16 %v3469
  %v3594 = vunpack.c.l.b16 %v3470
  %v3595 = vunpack.c.l.b16 %v3471
  %v3596 = vunpack.c.h.b16 %v3471
  %v3597 = vunpack.c.l.b16 %v3472
  %v3598 = vunpack.c.l.b16 %v3473
  %v3599 = vunpack.c.h.b16 %v3473
  %v3600 = vunpack.c.l.b16 %v3474
  %v3601 = vunpack.c.l.b16 %v3475
  %v3602 = vunpack.c.h.b16 %v3475
  %v3603 = vunpack.c.l.b16 %v3476
  %v3604 = vunpack.c.l.b16 %v3477
  %v3605 = vunpack.c.h.b16 %v3477
  %v3606 = vunpack.c.l.b16 %v3478
  %v3607 = vunpack.c.l.b16 %v3479
  %v3608 = vunpack.c.h.b16 %v3479
  %v3609 = vunpack.c.l.b16 %v3480
  %v3610 = vpack.c.b16 %v3541, %v3538
  %v3611 = vpack.c.b16 %v3542, %v3539
  %v3612 = vpack.c.b16 %v3543, %v3540
  %v3613 = vpack.c.b16 %v3547, %v3544
  %v3614 = vpack.c.b16 %v3548, %v3545
  %v3615 = vpack.c.b16 %v3549, %v3546
  %v3616 = vpack.c.b16 %v3553, %v3550
  %v3617 = vpack.c.b16 %v3554, %v3551
  %v3618 = vpack.c.b16 %v3555, %v3552
  %v3619 = vpack.c.b16 %v3559, %v3556
  %v3620 = vpack.c.b16 %v3560, %v3557
  %v3621 = vpack.c.b16 %v3561, %v3558
  %v3622 = vpack.c.b16 %v3565, %v3562
  %v3623 = vpack.c.b16 %v3566, %v3563
  %v3624 = vpack.c.b16 %v3567, %v3564
  %v3625 = vpack.c.b16 %v3571, %v3568
  %v3626 = vpack.c.b16 %v3572, %v3569
  %v3627 = vpack.c.b16 %v3573, %v3570
  %v3628 = vpack.c.b16 %v3577, %v3574
  %v3629 = vpack.c.b16 %v3578, %v3575
  %v3630 = vpack.c.b16 %v3579, %v3576
  %v3631 = vpack.c.b16 %v3583, %v3580
  %v3632 = vpack.c.b16 %v3584, %v3581
  %v3633 = vpack.c.b16 %v3585, %v3582
  %v3634 = vpack.c.b16 %v3589, %v3586
  %v3635 = vpack.c.b16 %v3590, %v3587
  %v3636 = vpack.c.b16 %v3591, %v3588
  %v3637 = vpack.c.b16 %v3595, %v3592
  %v3638 = vpack.c.b16 %v3596, %v3593
  %v3639 = vpack.c.b16 %v3597, %v3594
  %v3640 = vpack.c.b16 %v3601, %v3598
  %v3641 = vpack.c.b16 %v3602, %v3599
  %v3642 = vpack.c.b16 %v3603, %v3600
  %v3643 = vpack.c.b16 %v3607, %v3604
  %v3644 = vpack.c.b16 %v3608, %v3605
  %v3645 = vpack.c.b16 %v3609, %v3606
  %v3683 = vsel %vm43, %v3429, 0
  %v3686 = vsel %vm43, %v3431, 0
  %3688 = vmatpush.bf16.msra.mxu0 %v3631
  %3689 = vmatpush.bf16.msra.mxu0 %v3628
  %3690 = vmatpush.bf16.msra.mxu0 %v3625
  %3691 = vmatpush.bf16.msra.mxu0 %v3622
  %3692 = vmatpush.bf16.msra.mxu0 %v3619
  %3693 = vmatpush.bf16.msra.mxu0 %v3616
  %3694 = vmatpush.bf16.msra.mxu0 %v3613
  %3695 = vmatpush.bf16.msra.mxu0 %v3610
  %3696 = vmatmul.bf16.gmra.mxu0 %v3428
  %v3697 = vpop.f32.mrf.mxu0
  %v3698 = vadd.f32 %v3484, %v3697
  %v3699 = vpop.f32.mrf.mxu0
  %v3700 = vadd.f32 %v3484, %v3699
  %3701 = vmatmul.bf16.gmra.mxu0 %v3430
  %v3702 = vpop.f32.mrf.mxu0
  %v3703 = vadd.f32 %v3484, %v3702
  %v3704 = vpop.f32.mrf.mxu0
  %v3705 = vadd.f32 %v3484, %v3704
  %3706 = vdwg.mxu0
  %3707 = vmatpush.bf16.msra.mxu0 0
  %3708 = vmatpush.bf16.msra.mxu0 0
  %3709 = vmatpush.bf16.msra.mxu0 0
  %3710 = vmatpush.bf16.msra.mxu0 0
  %3711 = vmatpush.bf16.msra.mxu0 %v3643
  %3712 = vmatpush.bf16.msra.mxu0 %v3640
  %3713 = vmatpush.bf16.msra.mxu0 %v3637
  %3714 = vmatpush.bf16.msra.mxu0 %v3634
  %3715 = vmatmul.bf16.gmra.mxu0 %v3683
  %v3716 = vpop.f32.mrf.mxu0
  %v3717 = vadd.f32 %v3698, %v3716
  %v3718 = vpop.f32.mrf.mxu0
  %v3719 = vadd.f32 %v3700, %v3718
  %3720 = vmatmul.bf16.gmra.mxu0 %v3686
  %v3721 = vpop.f32.mrf.mxu0
  %v3722 = vadd.f32 %v3703, %v3721
  %v3723 = vpop.f32.mrf.mxu0
  %v3724 = vadd.f32 %v3705, %v3723
  %3725 = vdwg.mxu0
  %3726 = vmatpush.bf16.msra.mxu0 %v3632
  %3727 = vmatpush.bf16.msra.mxu0 %v3629
  %3728 = vmatpush.bf16.msra.mxu0 %v3626
  %3729 = vmatpush.bf16.msra.mxu0 %v3623
  %3730 = vmatpush.bf16.msra.mxu0 %v3620
  %3731 = vmatpush.bf16.msra.mxu0 %v3617
  %3732 = vmatpush.bf16.msra.mxu0 %v3614
  %3733 = vmatpush.bf16.msra.mxu0 %v3611
  %3734 = vmatmul.bf16.gmra.mxu0 %v3428
  %v3735 = vpop.f32.mrf.mxu0
  %v3736 = vadd.f32 %v3485, %v3735
  %v3737 = vpop.f32.mrf.mxu0
  %v3738 = vadd.f32 %v3485, %v3737
  %3739 = vmatmul.bf16.gmra.mxu0 %v3430
  %v3740 = vpop.f32.mrf.mxu0
  %v3741 = vadd.f32 %v3485, %v3740
  %v3742 = vpop.f32.mrf.mxu0
  %v3743 = vadd.f32 %v3485, %v3742
  %3744 = vdwg.mxu0
  %3745 = vmatpush.bf16.msra.mxu0 0
  %3746 = vmatpush.bf16.msra.mxu0 0
  %3747 = vmatpush.bf16.msra.mxu0 0
  %3748 = vmatpush.bf16.msra.mxu0 0
  %3749 = vmatpush.bf16.msra.mxu0 %v3644
  %3750 = vmatpush.bf16.msra.mxu0 %v3641
  %3751 = vmatpush.bf16.msra.mxu0 %v3638
  %3752 = vmatpush.bf16.msra.mxu0 %v3635
  %3753 = vmatmul.bf16.gmra.mxu0 %v3683
  %v3754 = vpop.f32.mrf.mxu0
  %v3755 = vadd.f32 %v3736, %v3754
  %v3756 = vpop.f32.mrf.mxu0
  %v3757 = vadd.f32 %v3738, %v3756
  %3758 = vmatmul.bf16.gmra.mxu0 %v3686
  %v3759 = vpop.f32.mrf.mxu0
  %v3760 = vadd.f32 %v3741, %v3759
  %v3761 = vpop.f32.mrf.mxu0
  %v3762 = vadd.f32 %v3743, %v3761
  %3763 = vdwg.mxu0
  %3764 = vmatpush.bf16.msra.mxu0 %v3633
  %3765 = vmatpush.bf16.msra.mxu0 %v3630
  %3766 = vmatpush.bf16.msra.mxu0 %v3627
  %3767 = vmatpush.bf16.msra.mxu0 %v3624
  %3768 = vmatpush.bf16.msra.mxu0 %v3621
  %3769 = vmatpush.bf16.msra.mxu0 %v3618
  %3770 = vmatpush.bf16.msra.mxu0 %v3615
  %3771 = vmatpush.bf16.msra.mxu0 %v3612
  %3772 = vmatmul.bf16.gmra.mxu0 %v3428
  %v3773 = vpop.f32.mrf.mxu0
  %v3774 = vadd.f32 %v3486, %v3773
  %v3775 = vpop.f32.mrf.mxu0
  %v3776 = vadd.f32 %v3486, %v3775
  %3777 = vmatmul.bf16.gmra.mxu0 %v3430
  %v3778 = vpop.f32.mrf.mxu0
  %v3779 = vadd.f32 %v3486, %v3778
  %v3780 = vpop.f32.mrf.mxu0
  %v3781 = vadd.f32 %v3486, %v3780
  %3782 = vdwg.mxu0
  %3783 = vmatpush.bf16.msra.mxu0 0
  %3784 = vmatpush.bf16.msra.mxu0 0
  %3785 = vmatpush.bf16.msra.mxu0 0
  %3786 = vmatpush.bf16.msra.mxu0 0
  %3787 = vmatpush.bf16.msra.mxu0 %v3645
  %3788 = vmatpush.bf16.msra.mxu0 %v3642
  %3789 = vmatpush.bf16.msra.mxu0 %v3639
  %3790 = vmatpush.bf16.msra.mxu0 %v3636
  %3791 = vmatmul.bf16.gmra.mxu0 %v3683
  %v3792 = vpop.f32.mrf.mxu0
  %v3793 = vadd.f32 %v3774, %v3792
  %v3794 = vpop.f32.mrf.mxu0
  %v3795 = vadd.f32 %v3776, %v3794
  %3796 = vmatmul.bf16.gmra.mxu0 %v3686
  %v3797 = vpop.f32.mrf.mxu0
  %v3798 = vadd.f32 %v3779, %v3797
  %v3799 = vpop.f32.mrf.mxu0
  %v3800 = vadd.f32 %v3781, %v3799
  %3801 = vdwg.mxu0
  %v3802 = vmul.f32 %v3717, 0.3
  %v3803 = vmul.f32 %v3755, 0.3
  %v3804 = vmul.f32 %v3793, 0.3
  %v3805 = vmul.f32 %v3719, 0.3
  %v3806 = vmul.f32 %v3757, 0.3
  %v3807 = vmul.f32 %v3795, 0.3
  %v3808 = vmul.f32 %v3722, 0.3
  %v3809 = vmul.f32 %v3760, 0.3
  %v3810 = vmul.f32 %v3798, 0.3
  %v3811 = vmul.f32 %v3724, 0.3
  %v3812 = vmul.f32 %v3762, 0.3
  %v3813 = vmul.f32 %v3800, 0.3
  %v3814 = vmax.f32 %v3717, %v3802
  %v3815 = vmax.f32 %v3755, %v3803
  %v3816 = vmax.f32 %v3793, %v3804
  %v3817 = vmax.f32 %v3719, %v3805
  %v3818 = vmax.f32 %v3757, %v3806
  %v3819 = vmax.f32 %v3795, %v3807
  %v3820 = vmax.f32 %v3722, %v3808
  %v3821 = vmax.f32 %v3760, %v3809
  %v3822 = vmax.f32 %v3798, %v3810
  %v3823 = vmax.f32 %v3724, %v3811
  %v3824 = vmax.f32 %v3762, %v3812
  %v3825 = vmax.f32 %v3800, %v3813
  %v3826 = vpack.c.bf16 %v3817, %v3814
  %v3827 = vpack.c.bf16 %v3818, %v3815
  %v3828 = vpack.c.bf16 %v3819, %v3816
  %v3829 = vpack.c.bf16 %v3823, %v3820
  %v3830 = vpack.c.bf16 %v3824, %v3821
  %v3831 = vpack.c.bf16 %v3825, %v3822
  %3832 = vmatpush.bf16.msra.mxu0 %v3070
  %3833 = vmatpush.bf16.msra.mxu0 %v3068
  %3834 = vmatpush.bf16.msra.mxu0 %v3066
  %3835 = vmatpush.bf16.msra.mxu0 %v3064
  %3836 = vmatpush.bf16.msra.mxu0 %v3062
  %3837 = vmatpush.bf16.msra.mxu0 %v3060
  %3838 = vmatpush.bf16.msra.mxu0 %v3058
  %3839 = vmatpush.bf16.msra.mxu0 %v3056
  %3840 = vmatmul.bf16.gmra.mxu0 %v3826
  %v3841 = vpop.f32.mrf.mxu0
  %v3842 = vadd.f32 %v2908, %v3841
  %v3843 = vpop.f32.mrf.mxu0
  %v3844 = vadd.f32 %v2908, %v3843
  %3845 = vmatmul.bf16.gmra.mxu0 %v3829
  %v3846 = vpop.f32.mrf.mxu0
  %v3847 = vadd.f32 %v2908, %v3846
  %v3848 = vpop.f32.mrf.mxu0
  %v3849 = vadd.f32 %v2908, %v3848
  %3850 = vdwg.mxu0
  %3851 = vmatpush.bf16.msra.mxu0 %v3086
  %3852 = vmatpush.bf16.msra.mxu0 %v3084
  %3853 = vmatpush.bf16.msra.mxu0 %v3082
  %3854 = vmatpush.bf16.msra.mxu0 %v3080
  %3855 = vmatpush.bf16.msra.mxu0 %v3078
  %3856 = vmatpush.bf16.msra.mxu0 %v3076
  %3857 = vmatpush.bf16.msra.mxu0 %v3074
  %3858 = vmatpush.bf16.msra.mxu0 %v3072
  %3859 = vmatmul.bf16.gmra.mxu0 %v3827
  %v3860 = vpop.f32.mrf.mxu0
  %v3861 = vadd.f32 %v3842, %v3860
  %v3862 = vpop.f32.mrf.mxu0
  %v3863 = vadd.f32 %v3844, %v3862
  %3864 = vmatmul.bf16.gmra.mxu0 %v3830
  %v3865 = vpop.f32.mrf.mxu0
  %v3866 = vadd.f32 %v3847, %v3865
  %v3867 = vpop.f32.mrf.mxu0
  %v3868 = vadd.f32 %v3849, %v3867
  %3869 = vdwg.mxu0
  %3870 = vmatpush.bf16.msra.mxu0 %v3102
  %3871 = vmatpush.bf16.msra.mxu0 %v3100
  %3872 = vmatpush.bf16.msra.mxu0 %v3098
  %3873 = vmatpush.bf16.msra.mxu0 %v3096
  %3874 = vmatpush.bf16.msra.mxu0 %v3094
  %3875 = vmatpush.bf16.msra.mxu0 %v3092
  %3876 = vmatpush.bf16.msra.mxu0 %v3090
  %3877 = vmatpush.bf16.msra.mxu0 %v3088
  %3878 = vmatmul.bf16.gmra.mxu0 %v3828
  %v3879 = vpop.f32.mrf.mxu0
  %v3880 = vadd.f32 %v3861, %v3879
  %v3881 = vpop.f32.mrf.mxu0
  %v3882 = vadd.f32 %v3863, %v3881
  %3883 = vmatmul.bf16.gmra.mxu0 %v3831
  %v3884 = vpop.f32.mrf.mxu0
  %v3885 = vadd.f32 %v3866, %v3884
  %v3886 = vpop.f32.mrf.mxu0
  %v3887 = vadd.f32 %v3868, %v3886
  %3888 = vdwg.mxu0
  %3889 = vmatpush.bf16.msra.mxu0 %v3071
  %3890 = vmatpush.bf16.msra.mxu0 %v3069
  %3891 = vmatpush.bf16.msra.mxu0 %v3067
  %3892 = vmatpush.bf16.msra.mxu0 %v3065
  %3893 = vmatpush.bf16.msra.mxu0 %v3063
  %3894 = vmatpush.bf16.msra.mxu0 %v3061
  %3895 = vmatpush.bf16.msra.mxu0 %v3059
  %3896 = vmatpush.bf16.msra.mxu0 %v3057
  %3897 = vmatmul.bf16.gmra.mxu0 %v3826
  %v3898 = vpop.f32.mrf.mxu0
  %v3899 = vadd.f32 %v2909, %v3898
  %v3900 = vpop.f32.mrf.mxu0
  %v3901 = vadd.f32 %v2909, %v3900
  %3902 = vmatmul.bf16.gmra.mxu0 %v3829
  %v3903 = vpop.f32.mrf.mxu0
  %v3904 = vadd.f32 %v2909, %v3903
  %v3905 = vpop.f32.mrf.mxu0
  %v3906 = vadd.f32 %v2909, %v3905
  %3907 = vdwg.mxu0
  %3908 = vmatpush.bf16.msra.mxu0 %v3087
  %3909 = vmatpush.bf16.msra.mxu0 %v3085
  %3910 = vmatpush.bf16.msra.mxu0 %v3083
  %3911 = vmatpush.bf16.msra.mxu0 %v3081
  %3912 = vmatpush.bf16.msra.mxu0 %v3079
  %3913 = vmatpush.bf16.msra.mxu0 %v3077
  %3914 = vmatpush.bf16.msra.mxu0 %v3075
  %3915 = vmatpush.bf16.msra.mxu0 %v3073
  %3916 = vmatmul.bf16.gmra.mxu0 %v3827
  %v3917 = vpop.f32.mrf.mxu0
  %v3918 = vadd.f32 %v3899, %v3917
  %v3919 = vpop.f32.mrf.mxu0
  %v3920 = vadd.f32 %v3901, %v3919
  %3921 = vmatmul.bf16.gmra.mxu0 %v3830
  %v3922 = vpop.f32.mrf.mxu0
  %v3923 = vadd.f32 %v3904, %v3922
  %v3924 = vpop.f32.mrf.mxu0
  %v3925 = vadd.f32 %v3906, %v3924
  %3926 = vdwg.mxu0
  %3927 = vmatpush.bf16.msra.mxu0 %v3103
  %3928 = vmatpush.bf16.msra.mxu0 %v3101
  %3929 = vmatpush.bf16.msra.mxu0 %v3099
  %3930 = vmatpush.bf16.msra.mxu0 %v3097
  %3931 = vmatpush.bf16.msra.mxu0 %v3095
  %3932 = vmatpush.bf16.msra.mxu0 %v3093
  %3933 = vmatpush.bf16.msra.mxu0 %v3091
  %3934 = vmatpush.bf16.msra.mxu0 %v3089
  %3935 = vmatmul.bf16.gmra.mxu0 %v3828
  %v3936 = vpop.f32.mrf.mxu0
  %v3937 = vadd.f32 %v3918, %v3936
  %v3938 = vpop.f32.mrf.mxu0
  %v3939 = vadd.f32 %v3920, %v3938
  %3940 = vmatmul.bf16.gmra.mxu0 %v3831
  %v3941 = vpop.f32.mrf.mxu0
  %v3942 = vadd.f32 %v3923, %v3941
  %v3943 = vpop.f32.mrf.mxu0
  %v3944 = vadd.f32 %v3925, %v3943
  %3945 = vdwg.mxu0
  %v3946 = vmul.f32 %v3880, 0.3
  %v3947 = vmul.f32 %v3937, 0.3
  %v3948 = vmul.f32 %v3882, 0.3
  %v3949 = vmul.f32 %v3939, 0.3
  %v3950 = vmul.f32 %v3885, 0.3
  %v3951 = vmul.f32 %v3942, 0.3
  %v3952 = vmul.f32 %v3887, 0.3
  %v3953 = vmul.f32 %v3944, 0.3
  %v3954 = vmax.f32 %v3880, %v3946
  %v3955 = vmax.f32 %v3937, %v3947
  %v3956 = vmax.f32 %v3882, %v3948
  %v3957 = vmax.f32 %v3939, %v3949
  %v3958 = vmax.f32 %v3885, %v3950
  %v3959 = vmax.f32 %v3942, %v3951
  %v3960 = vmax.f32 %v3887, %v3952
  %v3961 = vmax.f32 %v3944, %v3953
  %v3962 = vadd.f32 %v3282, %v3954
  %v3963 = vadd.f32 %v3283, %v3955
  %v3964 = vadd.f32 %v3284, %v3956
  %v3965 = vadd.f32 %v3285, %v3957
  %v3966 = vadd.f32 %v3286, %v3958
  %v3967 = vadd.f32 %v3287, %v3959
  %v3968 = vadd.f32 %v3288, %v3960
  %v3969 = vadd.f32 %v3289, %v3961
  %3970 = vmatpush.msra.mxu0 0.0
  %3971 = vmatpush.msra.mxu0 0.0
  %3972 = vmatpush.msra.mxu0 0.0
  %3973 = vmatpush.msra.mxu0 0.0
  %3974 = vmatpush.msra.mxu0 0.0
  %3975 = vmatpush.msra.mxu0 0.0
  %3976 = vmatpush.msra.mxu0 0.0
  %3977 = vmatpush.msra.mxu0 0.0
  %3978 = vmatpush.msra.mxu0 0.0
  %3979 = vmatpush.msra.mxu0 0.0
  %3980 = vmatpush.msra.mxu0 0.0
  %3981 = vmatpush.msra.mxu0 0.0
  %3982 = vmatpush.msra.mxu0 %v3968
  %3983 = vmatpush.msra.mxu0 %v3966
  %3984 = vmatpush.msra.mxu0 %v3964
  %3985 = vmatpush.msra.mxu0 %v3962
  %3986 = vmatmul.f32.gmra.mxu0 %v660
  %v3987 = vpop.f32.mrf.mxu0
  %v3988 = vadd.f32 0.0, %v3987
  %3989 = vdwg.mxu0
  %3990 = vmatpush.msra.mxu0 0.0
  %3991 = vmatpush.msra.mxu0 0.0
  %3992 = vmatpush.msra.mxu0 0.0
  %3993 = vmatpush.msra.mxu0 0.0
  %3994 = vmatpush.msra.mxu0 0.0
  %3995 = vmatpush.msra.mxu0 0.0
  %3996 = vmatpush.msra.mxu0 0.0
  %3997 = vmatpush.msra.mxu0 0.0
  %3998 = vmatpush.msra.mxu0 0.0
  %3999 = vmatpush.msra.mxu0 0.0
  %4000 = vmatpush.msra.mxu0 0.0
  %4001 = vmatpush.msra.mxu0 0.0
  %4002 = vmatpush.msra.mxu0 %v3969
  %4003 = vmatpush.msra.mxu0 %v3967
  %4004 = vmatpush.msra.mxu0 %v3965
  %4005 = vmatpush.msra.mxu0 %v3963
  %4006 = vmatmul.f32.gmra.mxu0 %v660
  %v4007 = vpop.f32.mrf.mxu0
  %v4008 = vadd.f32 0.0, %v4007
  %4009 = vdwg.mxu0
  %v4010 = vmul.f32 %v3962, %v3962
  %v4011 = vmul.f32 %v3963, %v3963
  %v4012 = vmul.f32 %v3964, %v3964
  %v4013 = vmul.f32 %v3965, %v3965
  %v4014 = vmul.f32 %v3966, %v3966
  %v4015 = vmul.f32 %v3967, %v3967
  %v4016 = vmul.f32 %v3968, %v3968
  %v4017 = vmul.f32 %v3969, %v3969
  %4018 = vmatpush.msra.mxu0 0.0
  %4019 = vmatpush.msra.mxu0 0.0
  %4020 = vmatpush.msra.mxu0 0.0
  %4021 = vmatpush.msra.mxu0 0.0
  %4022 = vmatpush.msra.mxu0 0.0
  %4023 = vmatpush.msra.mxu0 0.0
  %4024 = vmatpush.msra.mxu0 0.0
  %4025 = vmatpush.msra.mxu0 0.0
  %4026 = vmatpush.msra.mxu0 0.0
  %4027 = vmatpush.msra.mxu0 0.0
  %4028 = vmatpush.msra.mxu0 0.0
  %4029 = vmatpush.msra.mxu0 0.0
  %4030 = vmatpush.msra.mxu0 %v4016
  %4031 = vmatpush.msra.mxu0 %v4014
  %4032 = vmatpush.msra.mxu0 %v4012
  %4033 = vmatpush.msra.mxu0 %v4010
  %4034 = vmatmul.f32.gmra.mxu0 %v660
  %v4035 = vpop.f32.mrf.mxu0
  %v4036 = vadd.f32 0.0, %v4035
  %4037 = vdwg.mxu0
  %4038 = vmatpush.msra.mxu0 0.0
  %4039 = vmatpush.msra.mxu0 0.0
  %4040 = vmatpush.msra.mxu0 0.0
  %4041 = vmatpush.msra.mxu0 0.0
  %4042 = vmatpush.msra.mxu0 0.0
  %4043 = vmatpush.msra.mxu0 0.0
  %4044 = vmatpush.msra.mxu0 0.0
  %4045 = vmatpush.msra.mxu0 0.0
  %4046 = vmatpush.msra.mxu0 0.0
  %4047 = vmatpush.msra.mxu0 0.0
  %4048 = vmatpush.msra.mxu0 0.0
  %4049 = vmatpush.msra.mxu0 0.0
  %4050 = vmatpush.msra.mxu0 %v4017
  %4051 = vmatpush.msra.mxu0 %v4015
  %4052 = vmatpush.msra.mxu0 %v4013
  %4053 = vmatpush.msra.mxu0 %v4011
  %4054 = vmatmul.f32.gmra.mxu0 %v660
  %v4055 = vpop.f32.mrf.mxu0
  %v4056 = vadd.f32 0.0, %v4055
  %4057 = vdwg.mxu0
  %v4058 = vmul.f32 %v3988, 0.03125
  %v4059 = vmul.f32 %v4008, 0.03125
  %v4060 = vmul.f32 %v4036, 0.03125
  %v4061 = vmul.f32 %v4056, 0.03125
  %v4062 = vmul.f32 %v4058, %v4058
  %v4063 = vmul.f32 %v4059, %v4059
  %v4064 = vsub.f32 %v4060, %v4062
  %v4065 = vsub.f32 %v4061, %v4063
  %v4066 = vperm.slane %v4058, 0
  %v4067 = vperm.slane %v4059, 0
  %v4068 = vsub.f32 %v3962, %v4066
  %v4069 = vsub.f32 %v3963, %v4067
  %v4070 = vsub.f32 %v3964, %v4066
  %v4071 = vsub.f32 %v3965, %v4067
  %v4072 = vsub.f32 %v3966, %v4066
  %v4073 = vsub.f32 %v3967, %v4067
  %v4074 = vsub.f32 %v3968, %v4066
  %v4075 = vsub.f32 %v3969, %v4067
  %v4076 = vadd.f32 %v4064, 1e-05
  %v4077 = vadd.f32 %v4065, 1e-05
  %v4078 = vrsqrt.pop %v4076
  %v4079 = vmul.f32 %v4078, %v4076
  %v4080 = vmul.f32 %v4079, %v4078
  %v4081 = vmul.f32 0.5, %v4080
  %v4082 = vsub.f32 1.5, %v4081
  %v4083 = vmul.f32 %v4078, %v4082
  %vm4084 = vweird.f32 %v4076
  %vm4085 = vweird.f32 %v4078
  %vm4086 = vmor %vm4084, %vm4085
  %v4087 = vsel %vm4086, %v4078, %v4083
  %v4088 = vrsqrt.pop %v4077
  %v4089 = vmul.f32 %v4088, %v4077
  %v4090 = vmul.f32 %v4089, %v4088
  %v4091 = vmul.f32 0.5, %v4090
  %v4092 = vsub.f32 1.5, %v4091
  %v4093 = vmul.f32 %v4088, %v4092
  %vm4094 = vweird.f32 %v4077
  %vm4095 = vweird.f32 %v4088
  %vm4096 = vmor %vm4094, %vm4095
  %v4097 = vsel %vm4096, %v4088, %v4093
  %v4098 = vperm.slane %v4087, 0
  %v4099 = vperm.slane %v4097, 0
  %v4100 = vmul.f32 %v4068, %v4098
  %v4101 = vmul.f32 %v4069, %v4099
  %v4102 = vmul.f32 %v4070, %v4098
  %v4103 = vmul.f32 %v4071, %v4099
  %v4104 = vmul.f32 %v4072, %v4098
  %v4105 = vmul.f32 %v4073, %v4099
  %v4106 = vmul.f32 %v4074, %v4098
  %v4107 = vmul.f32 %v4075, %v4099
  %v4108 = vpack.c.bf16 %v4102, %v4100
  %v4109 = vpack.c.bf16 %v4103, %v4101
  %v4110 = vpack.c.bf16 %v4106, %v4104
  %v4111 = vpack.c.bf16 %v4107, %v4105
  %s4112 = scalar_lea.vmem %s4, 1152
  %v4113 = vld [vmem:[%s4112] sm:$0xff]
  %v4114 = vld [vmem:[%s4112 + $0x8] sm:$0xf]
  %v4115 = vld [vmem:[%s4112 + $0xc] sm:$0xff]
  %v4116 = vld [vmem:[%s4112 + $0x14] sm:$0xf]
  %v4117 = vld [vmem:[%s4112 + $0x18] sm:$0xff]
  %v4118 = vld [vmem:[%s4112 + $0x20] sm:$0xf]
  %v4119 = vld [vmem:[%s4112 + $0x24] sm:$0xff]
  %v4120 = vld [vmem:[%s4112 + $0x2c] sm:$0xf]
  %v4121 = vld [vmem:[%s4112 + $0x30] sm:$0xff]
  %v4122 = vld [vmem:[%s4112 + $0x38] sm:$0xf]
  %v4123 = vld [vmem:[%s4112 + $0x3c] sm:$0xff]
  %v4124 = vld [vmem:[%s4112 + $0x44] sm:$0xf]
  %v4125 = vld [vmem:[%s4112 + $0x48] sm:$0xff]
  %v4126 = vld [vmem:[%s4112 + $0x50] sm:$0xf]
  %v4127 = vld [vmem:[%s4112 + $0x54] sm:$0xff]
  %v4128 = vld [vmem:[%s4112 + $0x5c] sm:$0xf]
  %v4129 = vld [vmem:[%s4112 + $0x60] sm:$0xff]
  %v4130 = vld [vmem:[%s4112 + $0x68] sm:$0xf]
  %v4131 = vld [vmem:[%s4112 + $0x6c] sm:$0xff]
  %v4132 = vld [vmem:[%s4112 + $0x74] sm:$0xf]
  %v4133 = vld [vmem:[%s4112 + $0x78] sm:$0xff]
  %v4134 = vld [vmem:[%s4112 + $0x80] sm:$0xf]
  %v4135 = vld [vmem:[%s4112 + $0x84] sm:$0xff]
  %v4136 = vld [vmem:[%s4112 + $0x8c] sm:$0xf]
  %v4137 = vld [vmem:[%s4112 + $0x90] sm:$0xff]
  %v4138 = vld [vmem:[%s4112 + $0x98] sm:$0xf]
  %v4139 = vld [vmem:[%s4112 + $0x9c] sm:$0xff]
  %v4140 = vld [vmem:[%s4112 + $0xa4] sm:$0xf]
  %v4141 = vld [vmem:[%s4112 + $0xa8] sm:$0xff]
  %v4142 = vld [vmem:[%s4112 + $0xb0] sm:$0xf]
  %v4143 = vld [vmem:[%s4112 + $0xb4] sm:$0xff]
  %v4144 = vld [vmem:[%s4112 + $0xbc] sm:$0xf]
  %v4145 = vld [vmem:[%s4112 + $0xc0] sm:$0xff]
  %v4146 = vld [vmem:[%s4112 + $0xc8] sm:$0xf]
  %v4147 = vld [vmem:[%s4112 + $0xcc] sm:$0xff]
  %v4148 = vld [vmem:[%s4112 + $0xd4] sm:$0xf]
  %v4149 = vld [vmem:[%s4112 + $0xd8] sm:$0xff]
  %v4150 = vld [vmem:[%s4112 + $0xe0] sm:$0xf]
  %v4151 = vld [vmem:[%s4112 + $0xe4] sm:$0xff]
  %v4152 = vld [vmem:[%s4112 + $0xec] sm:$0xf]
  %v4153 = vld [vmem:[%s4112 + $0xf0] sm:$0xff]
  %v4154 = vld [vmem:[%s4112 + $0xf8] sm:$0xf]
  %v4155 = vld [vmem:[%s4112 + $0xfc] sm:$0xff]
  %v4156 = vld [vmem:[%s4112 + $0x104] sm:$0xf]
  %v4157 = vld [vmem:[%s4112 + $0x108] sm:$0xff]
  %v4158 = vld [vmem:[%s4112 + $0x110] sm:$0xf]
  %v4159 = vld [vmem:[%s4112 + $0x114] sm:$0xff]
  %v4160 = vld [vmem:[%s4112 + $0x11c] sm:$0xf]
  %s4161 = scalar_lea.vmem %s5, 4
  %v4162 = vld [vmem:[%s4161] ss:$8 sm:$0x7]
  %v4164 = vperm.slane %v4162, 0
  %v4165 = vperm.slane %v4162, 1
  %v4166 = vperm.slane %v4162, 2
  %v4218 = vunpack.c.l.b16 %v4113
  %v4219 = vunpack.c.h.b16 %v4113
  %v4220 = vunpack.c.l.b16 %v4114
  %v4221 = vunpack.c.l.b16 %v4115
  %v4222 = vunpack.c.h.b16 %v4115
  %v4223 = vunpack.c.l.b16 %v4116
  %v4224 = vunpack.c.l.b16 %v4117
  %v4225 = vunpack.c.h.b16 %v4117
  %v4226 = vunpack.c.l.b16 %v4118
  %v4227 = vunpack.c.l.b16 %v4119
  %v4228 = vunpack.c.h.b16 %v4119
  %v4229 = vunpack.c.l.b16 %v4120
  %v4230 = vunpack.c.l.b16 %v4121
  %v4231 = vunpack.c.h.b16 %v4121
  %v4232 = vunpack.c.l.b16 %v4122
  %v4233 = vunpack.c.l.b16 %v4123
  %v4234 = vunpack.c.h.b16 %v4123
  %v4235 = vunpack.c.l.b16 %v4124
  %v4236 = vunpack.c.l.b16 %v4125
  %v4237 = vunpack.c.h.b16 %v4125
  %v4238 = vunpack.c.l.b16 %v4126
  %v4239 = vunpack.c.l.b16 %v4127
  %v4240 = vunpack.c.h.b16 %v4127
  %v4241 = vunpack.c.l.b16 %v4128
  %v4242 = vunpack.c.l.b16 %v4129
  %v4243 = vunpack.c.h.b16 %v4129
  %v4244 = vunpack.c.l.b16 %v4130
  %v4245 = vunpack.c.l.b16 %v4131
  %v4246 = vunpack.c.h.b16 %v4131
  %v4247 = vunpack.c.l.b16 %v4132
  %v4248 = vunpack.c.l.b16 %v4133
  %v4249 = vunpack.c.h.b16 %v4133
  %v4250 = vunpack.c.l.b16 %v4134
  %v4251 = vunpack.c.l.b16 %v4135
  %v4252 = vunpack.c.h.b16 %v4135
  %v4253 = vunpack.c.l.b16 %v4136
  %v4254 = vunpack.c.l.b16 %v4137
  %v4255 = vunpack.c.h.b16 %v4137
  %v4256 = vunpack.c.l.b16 %v4138
  %v4257 = vunpack.c.l.b16 %v4139
  %v4258 = vunpack.c.h.b16 %v4139
  %v4259 = vunpack.c.l.b16 %v4140
  %v4260 = vunpack.c.l.b16 %v4141
  %v4261 = vunpack.c.h.b16 %v4141
  %v4262 = vunpack.c.l.b16 %v4142
  %v4263 = vunpack.c.l.b16 %v4143
  %v4264 = vunpack.c.h.b16 %v4143
  %v4265 = vunpack.c.l.b16 %v4144
  %v4266 = vunpack.c.l.b16 %v4145
  %v4267 = vunpack.c.h.b16 %v4145
  %v4268 = vunpack.c.l.b16 %v4146
  %v4269 = vunpack.c.l.b16 %v4147
  %v4270 = vunpack.c.h.b16 %v4147
  %v4271 = vunpack.c.l.b16 %v4148
  %v4272 = vunpack.c.l.b16 %v4149
  %v4273 = vunpack.c.h.b16 %v4149
  %v4274 = vunpack.c.l.b16 %v4150
  %v4275 = vunpack.c.l.b16 %v4151
  %v4276 = vunpack.c.h.b16 %v4151
  %v4277 = vunpack.c.l.b16 %v4152
  %v4278 = vunpack.c.l.b16 %v4153
  %v4279 = vunpack.c.h.b16 %v4153
  %v4280 = vunpack.c.l.b16 %v4154
  %v4281 = vunpack.c.l.b16 %v4155
  %v4282 = vunpack.c.h.b16 %v4155
  %v4283 = vunpack.c.l.b16 %v4156
  %v4284 = vunpack.c.l.b16 %v4157
  %v4285 = vunpack.c.h.b16 %v4157
  %v4286 = vunpack.c.l.b16 %v4158
  %v4287 = vunpack.c.l.b16 %v4159
  %v4288 = vunpack.c.h.b16 %v4159
  %v4289 = vunpack.c.l.b16 %v4160
  %v4290 = vpack.c.b16 %v4221, %v4218
  %v4291 = vpack.c.b16 %v4222, %v4219
  %v4292 = vpack.c.b16 %v4223, %v4220
  %v4293 = vpack.c.b16 %v4227, %v4224
  %v4294 = vpack.c.b16 %v4228, %v4225
  %v4295 = vpack.c.b16 %v4229, %v4226
  %v4296 = vpack.c.b16 %v4233, %v4230
  %v4297 = vpack.c.b16 %v4234, %v4231
  %v4298 = vpack.c.b16 %v4235, %v4232
  %v4299 = vpack.c.b16 %v4239, %v4236
  %v4300 = vpack.c.b16 %v4240, %v4237
  %v4301 = vpack.c.b16 %v4241, %v4238
  %v4302 = vpack.c.b16 %v4245, %v4242
  %v4303 = vpack.c.b16 %v4246, %v4243
  %v4304 = vpack.c.b16 %v4247, %v4244
  %v4305 = vpack.c.b16 %v4251, %v4248
  %v4306 = vpack.c.b16 %v4252, %v4249
  %v4307 = vpack.c.b16 %v4253, %v4250
  %v4308 = vpack.c.b16 %v4257, %v4254
  %v4309 = vpack.c.b16 %v4258, %v4255
  %v4310 = vpack.c.b16 %v4259, %v4256
  %v4311 = vpack.c.b16 %v4263, %v4260
  %v4312 = vpack.c.b16 %v4264, %v4261
  %v4313 = vpack.c.b16 %v4265, %v4262
  %v4314 = vpack.c.b16 %v4269, %v4266
  %v4315 = vpack.c.b16 %v4270, %v4267
  %v4316 = vpack.c.b16 %v4271, %v4268
  %v4317 = vpack.c.b16 %v4275, %v4272
  %v4318 = vpack.c.b16 %v4276, %v4273
  %v4319 = vpack.c.b16 %v4277, %v4274
  %v4320 = vpack.c.b16 %v4281, %v4278
  %v4321 = vpack.c.b16 %v4282, %v4279
  %v4322 = vpack.c.b16 %v4283, %v4280
  %v4323 = vpack.c.b16 %v4287, %v4284
  %v4324 = vpack.c.b16 %v4288, %v4285
  %v4325 = vpack.c.b16 %v4289, %v4286
  %v4363 = vsel %vm43, %v4109, 0
  %v4366 = vsel %vm43, %v4111, 0
  %4368 = vmatpush.bf16.msra.mxu0 %v4311
  %4369 = vmatpush.bf16.msra.mxu0 %v4308
  %4370 = vmatpush.bf16.msra.mxu0 %v4305
  %4371 = vmatpush.bf16.msra.mxu0 %v4302
  %4372 = vmatpush.bf16.msra.mxu0 %v4299
  %4373 = vmatpush.bf16.msra.mxu0 %v4296
  %4374 = vmatpush.bf16.msra.mxu0 %v4293
  %4375 = vmatpush.bf16.msra.mxu0 %v4290
  %4376 = vmatmul.bf16.gmra.mxu0 %v4108
  %v4377 = vpop.f32.mrf.mxu0
  %v4378 = vadd.f32 %v4164, %v4377
  %v4379 = vpop.f32.mrf.mxu0
  %v4380 = vadd.f32 %v4164, %v4379
  %4381 = vmatmul.bf16.gmra.mxu0 %v4110
  %v4382 = vpop.f32.mrf.mxu0
  %v4383 = vadd.f32 %v4164, %v4382
  %v4384 = vpop.f32.mrf.mxu0
  %v4385 = vadd.f32 %v4164, %v4384
  %4386 = vdwg.mxu0
  %4387 = vmatpush.bf16.msra.mxu0 0
  %4388 = vmatpush.bf16.msra.mxu0 0
  %4389 = vmatpush.bf16.msra.mxu0 0
  %4390 = vmatpush.bf16.msra.mxu0 0
  %4391 = vmatpush.bf16.msra.mxu0 %v4323
  %4392 = vmatpush.bf16.msra.mxu0 %v4320
  %4393 = vmatpush.bf16.msra.mxu0 %v4317
  %4394 = vmatpush.bf16.msra.mxu0 %v4314
  %4395 = vmatmul.bf16.gmra.mxu0 %v4363
  %v4396 = vpop.f32.mrf.mxu0
  %v4397 = vadd.f32 %v4378, %v4396
  %v4398 = vpop.f32.mrf.mxu0
  %v4399 = vadd.f32 %v4380, %v4398
  %4400 = vmatmul.bf16.gmra.mxu0 %v4366
  %v4401 = vpop.f32.mrf.mxu0
  %v4402 = vadd.f32 %v4383, %v4401
  %v4403 = vpop.f32.mrf.mxu0
  %v4404 = vadd.f32 %v4385, %v4403
  %4405 = vdwg.mxu0
  %4406 = vmatpush.bf16.msra.mxu0 %v4312
  %4407 = vmatpush.bf16.msra.mxu0 %v4309
  %4408 = vmatpush.bf16.msra.mxu0 %v4306
  %4409 = vmatpush.bf16.msra.mxu0 %v4303
  %4410 = vmatpush.bf16.msra.mxu0 %v4300
  %4411 = vmatpush.bf16.msra.mxu0 %v4297
  %4412 = vmatpush.bf16.msra.mxu0 %v4294
  %4413 = vmatpush.bf16.msra.mxu0 %v4291
  %4414 = vmatmul.bf16.gmra.mxu0 %v4108
  %v4415 = vpop.f32.mrf.mxu0
  %v4416 = vadd.f32 %v4165, %v4415
  %v4417 = vpop.f32.mrf.mxu0
  %v4418 = vadd.f32 %v4165, %v4417
  %4419 = vmatmul.bf16.gmra.mxu0 %v4110
  %v4420 = vpop.f32.mrf.mxu0
  %v4421 = vadd.f32 %v4165, %v4420
  %v4422 = vpop.f32.mrf.mxu0
  %v4423 = vadd.f32 %v4165, %v4422
  %4424 = vdwg.mxu0
  %4425 = vmatpush.bf16.msra.mxu0 0
  %4426 = vmatpush.bf16.msra.mxu0 0
  %4427 = vmatpush.bf16.msra.mxu0 0
  %4428 = vmatpush.bf16.msra.mxu0 0
  %4429 = vmatpush.bf16.msra.mxu0 %v4324
  %4430 = vmatpush.bf16.msra.mxu0 %v4321
  %4431 = vmatpush.bf16.msra.mxu0 %v4318
  %4432 = vmatpush.bf16.msra.mxu0 %v4315
  %4433 = vmatmul.bf16.gmra.mxu0 %v4363
  %v4434 = vpop.f32.mrf.mxu0
  %v4435 = vadd.f32 %v4416, %v4434
  %v4436 = vpop.f32.mrf.mxu0
  %v4437 = vadd.f32 %v4418, %v4436
  %4438 = vmatmul.bf16.gmra.mxu0 %v4366
  %v4439 = vpop.f32.mrf.mxu0
  %v4440 = vadd.f32 %v4421, %v4439
  %v4441 = vpop.f32.mrf.mxu0
  %v4442 = vadd.f32 %v4423, %v4441
  %4443 = vdwg.mxu0
  %4444 = vmatpush.bf16.msra.mxu0 %v4313
  %4445 = vmatpush.bf16.msra.mxu0 %v4310
  %4446 = vmatpush.bf16.msra.mxu0 %v4307
  %4447 = vmatpush.bf16.msra.mxu0 %v4304
  %4448 = vmatpush.bf16.msra.mxu0 %v4301
  %4449 = vmatpush.bf16.msra.mxu0 %v4298
  %4450 = vmatpush.bf16.msra.mxu0 %v4295
  %4451 = vmatpush.bf16.msra.mxu0 %v4292
  %4452 = vmatmul.bf16.gmra.mxu0 %v4108
  %v4453 = vpop.f32.mrf.mxu0
  %v4454 = vadd.f32 %v4166, %v4453
  %v4455 = vpop.f32.mrf.mxu0
  %v4456 = vadd.f32 %v4166, %v4455
  %4457 = vmatmul.bf16.gmra.mxu0 %v4110
  %v4458 = vpop.f32.mrf.mxu0
  %v4459 = vadd.f32 %v4166, %v4458
  %v4460 = vpop.f32.mrf.mxu0
  %v4461 = vadd.f32 %v4166, %v4460
  %4462 = vdwg.mxu0
  %4463 = vmatpush.bf16.msra.mxu0 0
  %4464 = vmatpush.bf16.msra.mxu0 0
  %4465 = vmatpush.bf16.msra.mxu0 0
  %4466 = vmatpush.bf16.msra.mxu0 0
  %4467 = vmatpush.bf16.msra.mxu0 %v4325
  %4468 = vmatpush.bf16.msra.mxu0 %v4322
  %4469 = vmatpush.bf16.msra.mxu0 %v4319
  %4470 = vmatpush.bf16.msra.mxu0 %v4316
  %4471 = vmatmul.bf16.gmra.mxu0 %v4363
  %v4472 = vpop.f32.mrf.mxu0
  %v4473 = vadd.f32 %v4454, %v4472
  %v4474 = vpop.f32.mrf.mxu0
  %v4475 = vadd.f32 %v4456, %v4474
  %4476 = vmatmul.bf16.gmra.mxu0 %v4366
  %v4477 = vpop.f32.mrf.mxu0
  %v4478 = vadd.f32 %v4459, %v4477
  %v4479 = vpop.f32.mrf.mxu0
  %v4480 = vadd.f32 %v4461, %v4479
  %4481 = vdwg.mxu0
  %v4482 = vmul.f32 %v4397, 0.3
  %v4483 = vmul.f32 %v4435, 0.3
  %v4484 = vmul.f32 %v4473, 0.3
  %v4485 = vmul.f32 %v4399, 0.3
  %v4486 = vmul.f32 %v4437, 0.3
  %v4487 = vmul.f32 %v4475, 0.3
  %v4488 = vmul.f32 %v4402, 0.3
  %v4489 = vmul.f32 %v4440, 0.3
  %v4490 = vmul.f32 %v4478, 0.3
  %v4491 = vmul.f32 %v4404, 0.3
  %v4492 = vmul.f32 %v4442, 0.3
  %v4493 = vmul.f32 %v4480, 0.3
  %v4494 = vmax.f32 %v4397, %v4482
  %v4495 = vmax.f32 %v4435, %v4483
  %v4496 = vmax.f32 %v4473, %v4484
  %v4497 = vmax.f32 %v4399, %v4485
  %v4498 = vmax.f32 %v4437, %v4486
  %v4499 = vmax.f32 %v4475, %v4487
  %v4500 = vmax.f32 %v4402, %v4488
  %v4501 = vmax.f32 %v4440, %v4489
  %v4502 = vmax.f32 %v4478, %v4490
  %v4503 = vmax.f32 %v4404, %v4491
  %v4504 = vmax.f32 %v4442, %v4492
  %v4505 = vmax.f32 %v4480, %v4493
  %v4506 = vpack.c.bf16 %v4497, %v4494
  %v4507 = vpack.c.bf16 %v4498, %v4495
  %v4508 = vpack.c.bf16 %v4499, %v4496
  %v4509 = vpack.c.bf16 %v4503, %v4500
  %v4510 = vpack.c.bf16 %v4504, %v4501
  %v4511 = vpack.c.bf16 %v4505, %v4502
  %s4512 = scalar_lea.vmem %s6, 768
  %v4513 = vld [vmem:[%s4512] sm:$0xff]
  %v4514 = vld [vmem:[%s4512 + $0x8] sm:$0xff]
  %v4515 = vld [vmem:[%s4512 + $0x10] sm:$0xff]
  %v4516 = vld [vmem:[%s4512 + $0x18] sm:$0xff]
  %v4517 = vld [vmem:[%s4512 + $0x20] sm:$0xff]
  %v4518 = vld [vmem:[%s4512 + $0x28] sm:$0xff]
  %v4519 = vld [vmem:[%s4512 + $0x30] sm:$0xff]
  %v4520 = vld [vmem:[%s4512 + $0x38] sm:$0xff]
  %v4521 = vld [vmem:[%s4512 + $0x40] sm:$0xff]
  %v4522 = vld [vmem:[%s4512 + $0x48] sm:$0xff]
  %v4523 = vld [vmem:[%s4512 + $0x50] sm:$0xff]
  %v4524 = vld [vmem:[%s4512 + $0x58] sm:$0xff]
  %v4525 = vld [vmem:[%s4512 + $0x60] sm:$0xff]
  %v4526 = vld [vmem:[%s4512 + $0x68] sm:$0xff]
  %v4527 = vld [vmem:[%s4512 + $0x70] sm:$0xff]
  %v4528 = vld [vmem:[%s4512 + $0x78] sm:$0xff]
  %v4529 = vld [vmem:[%s4512 + $0x80] sm:$0xff]
  %v4530 = vld [vmem:[%s4512 + $0x88] sm:$0xff]
  %v4531 = vld [vmem:[%s4512 + $0x90] sm:$0xff]
  %v4532 = vld [vmem:[%s4512 + $0x98] sm:$0xff]
  %v4533 = vld [vmem:[%s4512 + $0xa0] sm:$0xff]
  %v4534 = vld [vmem:[%s4512 + $0xa8] sm:$0xff]
  %v4535 = vld [vmem:[%s4512 + $0xb0] sm:$0xff]
  %v4536 = vld [vmem:[%s4512 + $0xb8] sm:$0xff]
  %v4537 = vld [vmem:[%s4512 + $0xc0] sm:$0xff]
  %v4538 = vld [vmem:[%s4512 + $0xc8] sm:$0xff]
  %v4539 = vld [vmem:[%s4512 + $0xd0] sm:$0xff]
  %v4540 = vld [vmem:[%s4512 + $0xd8] sm:$0xff]
  %v4541 = vld [vmem:[%s4512 + $0xe0] sm:$0xff]
  %v4542 = vld [vmem:[%s4512 + $0xe8] sm:$0xff]
  %v4543 = vld [vmem:[%s4512 + $0xf0] sm:$0xff]
  %v4544 = vld [vmem:[%s4512 + $0xf8] sm:$0xff]
  %v4545 = vld [vmem:[%s4512 + $0x100] sm:$0xff]
  %v4546 = vld [vmem:[%s4512 + $0x108] sm:$0xff]
  %v4547 = vld [vmem:[%s4512 + $0x110] sm:$0xff]
  %v4548 = vld [vmem:[%s4512 + $0x118] sm:$0xff]
  %v4549 = vld [vmem:[%s4512 + $0x120] sm:$0xff]
  %v4550 = vld [vmem:[%s4512 + $0x128] sm:$0xff]
  %v4551 = vld [vmem:[%s4512 + $0x130] sm:$0xff]
  %v4552 = vld [vmem:[%s4512 + $0x138] sm:$0xff]
  %v4553 = vld [vmem:[%s4512 + $0x140] sm:$0xff]
  %v4554 = vld [vmem:[%s4512 + $0x148] sm:$0xff]
  %v4555 = vld [vmem:[%s4512 + $0x150] sm:$0xff]
  %v4556 = vld [vmem:[%s4512 + $0x158] sm:$0xff]
  %v4557 = vld [vmem:[%s4512 + $0x160] sm:$0xff]
  %v4558 = vld [vmem:[%s4512 + $0x168] sm:$0xff]
  %v4559 = vld [vmem:[%s4512 + $0x170] sm:$0xff]
  %v4560 = vld [vmem:[%s4512 + $0x178] sm:$0xff]
  %s4561 = scalar_lea.vmem %s7, 2
  %v4562 = vld [vmem:[%s4561] ss:$4 sm:$0x3]
  %v4564 = vperm.slane %v4562, 0
  %v4565 = vperm.slane %v4562, 1
  %v4616 = vunpack.c.l.b16 %v4513
  %v4617 = vunpack.c.h.b16 %v4513
  %v4618 = vunpack.c.l.b16 %v4514
  %v4619 = vunpack.c.h.b16 %v4514
  %v4620 = vunpack.c.l.b16 %v4515
  %v4621 = vunpack.c.h.b16 %v4515
  %v4622 = vunpack.c.l.b16 %v4516
  %v4623 = vunpack.c.h.b16 %v4516
  %v4624 = vunpack.c.l.b16 %v4517
  %v4625 = vunpack.c.h.b16 %v4517
  %v4626 = vunpack.c.l.b16 %v4518
  %v4627 = vunpack.c.h.b16 %v4518
  %v4628 = vunpack.c.l.b16 %v4519
  %v4629 = vunpack.c.h.b16 %v4519
  %v4630 = vunpack.c.l.b16 %v4520
  %v4631 = vunpack.c.h.b16 %v4520
  %v4632 = vunpack.c.l.b16 %v4521
  %v4633 = vunpack.c.h.b16 %v4521
  %v4634 = vunpack.c.l.b16 %v4522
  %v4635 = vunpack.c.h.b16 %v4522
  %v4636 = vunpack.c.l.b16 %v4523
  %v4637 = vunpack.c.h.b16 %v4523
  %v4638 = vunpack.c.l.b16 %v4524
  %v4639 = vunpack.c.h.b16 %v4524
  %v4640 = vunpack.c.l.b16 %v4525
  %v4641 = vunpack.c.h.b16 %v4525
  %v4642 = vunpack.c.l.b16 %v4526
  %v4643 = vunpack.c.h.b16 %v4526
  %v4644 = vunpack.c.l.b16 %v4527
  %v4645 = vunpack.c.h.b16 %v4527
  %v4646 = vunpack.c.l.b16 %v4528
  %v4647 = vunpack.c.h.b16 %v4528
  %v4648 = vunpack.c.l.b16 %v4529
  %v4649 = vunpack.c.h.b16 %v4529
  %v4650 = vunpack.c.l.b16 %v4530
  %v4651 = vunpack.c.h.b16 %v4530
  %v4652 = vunpack.c.l.b16 %v4531
  %v4653 = vunpack.c.h.b16 %v4531
  %v4654 = vunpack.c.l.b16 %v4532
  %v4655 = vunpack.c.h.b16 %v4532
  %v4656 = vunpack.c.l.b16 %v4533
  %v4657 = vunpack.c.h.b16 %v4533
  %v4658 = vunpack.c.l.b16 %v4534
  %v4659 = vunpack.c.h.b16 %v4534
  %v4660 = vunpack.c.l.b16 %v4535
  %v4661 = vunpack.c.h.b16 %v4535
  %v4662 = vunpack.c.l.b16 %v4536
  %v4663 = vunpack.c.h.b16 %v4536
  %v4664 = vunpack.c.l.b16 %v4537
  %v4665 = vunpack.c.h.b16 %v4537
  %v4666 = vunpack.c.l.b16 %v4538
  %v4667 = vunpack.c.h.b16 %v4538
  %v4668 = vunpack.c.l.b16 %v4539
  %v4669 = vunpack.c.h.b16 %v4539
  %v4670 = vunpack.c.l.b16 %v4540
  %v4671 = vunpack.c.h.b16 %v4540
  %v4672 = vunpack.c.l.b16 %v4541
  %v4673 = vunpack.c.h.b16 %v4541
  %v4674 = vunpack.c.l.b16 %v4542
  %v4675 = vunpack.c.h.b16 %v4542
  %v4676 = vunpack.c.l.b16 %v4543
  %v4677 = vunpack.c.h.b16 %v4543
  %v4678 = vunpack.c.l.b16 %v4544
  %v4679 = vunpack.c.h.b16 %v4544
  %v4680 = vunpack.c.l.b16 %v4545
  %v4681 = vunpack.c.h.b16 %v4545
  %v4682 = vunpack.c.l.b16 %v4546
  %v4683 = vunpack.c.h.b16 %v4546
  %v4684 = vunpack.c.l.b16 %v4547
  %v4685 = vunpack.c.h.b16 %v4547
  %v4686 = vunpack.c.l.b16 %v4548
  %v4687 = vunpack.c.h.b16 %v4548
  %v4688 = vunpack.c.l.b16 %v4549
  %v4689 = vunpack.c.h.b16 %v4549
  %v4690 = vunpack.c.l.b16 %v4550
  %v4691 = vunpack.c.h.b16 %v4550
  %v4692 = vunpack.c.l.b16 %v4551
  %v4693 = vunpack.c.h.b16 %v4551
  %v4694 = vunpack.c.l.b16 %v4552
  %v4695 = vunpack.c.h.b16 %v4552
  %v4696 = vunpack.c.l.b16 %v4553
  %v4697 = vunpack.c.h.b16 %v4553
  %v4698 = vunpack.c.l.b16 %v4554
  %v4699 = vunpack.c.h.b16 %v4554
  %v4700 = vunpack.c.l.b16 %v4555
  %v4701 = vunpack.c.h.b16 %v4555
  %v4702 = vunpack.c.l.b16 %v4556
  %v4703 = vunpack.c.h.b16 %v4556
  %v4704 = vunpack.c.l.b16 %v4557
  %v4705 = vunpack.c.h.b16 %v4557
  %v4706 = vunpack.c.l.b16 %v4558
  %v4707 = vunpack.c.h.b16 %v4558
  %v4708 = vunpack.c.l.b16 %v4559
  %v4709 = vunpack.c.h.b16 %v4559
  %v4710 = vunpack.c.l.b16 %v4560
  %v4711 = vunpack.c.h.b16 %v4560
  %v4712 = vpack.c.b16 %v4618, %v4616
  %v4713 = vpack.c.b16 %v4619, %v4617
  %v4714 = vpack.c.b16 %v4622, %v4620
  %v4715 = vpack.c.b16 %v4623, %v4621
  %v4716 = vpack.c.b16 %v4626, %v4624
  %v4717 = vpack.c.b16 %v4627, %v4625
  %v4718 = vpack.c.b16 %v4630, %v4628
  %v4719 = vpack.c.b16 %v4631, %v4629
  %v4720 = vpack.c.b16 %v4634, %v4632
  %v4721 = vpack.c.b16 %v4635, %v4633
  %v4722 = vpack.c.b16 %v4638, %v4636
  %v4723 = vpack.c.b16 %v4639, %v4637
  %v4724 = vpack.c.b16 %v4642, %v4640
  %v4725 = vpack.c.b16 %v4643, %v4641
  %v4726 = vpack.c.b16 %v4646, %v4644
  %v4727 = vpack.c.b16 %v4647, %v4645
  %v4728 = vpack.c.b16 %v4650, %v4648
  %v4729 = vpack.c.b16 %v4651, %v4649
  %v4730 = vpack.c.b16 %v4654, %v4652
  %v4731 = vpack.c.b16 %v4655, %v4653
  %v4732 = vpack.c.b16 %v4658, %v4656
  %v4733 = vpack.c.b16 %v4659, %v4657
  %v4734 = vpack.c.b16 %v4662, %v4660
  %v4735 = vpack.c.b16 %v4663, %v4661
  %v4736 = vpack.c.b16 %v4666, %v4664
  %v4737 = vpack.c.b16 %v4667, %v4665
  %v4738 = vpack.c.b16 %v4670, %v4668
  %v4739 = vpack.c.b16 %v4671, %v4669
  %v4740 = vpack.c.b16 %v4674, %v4672
  %v4741 = vpack.c.b16 %v4675, %v4673
  %v4742 = vpack.c.b16 %v4678, %v4676
  %v4743 = vpack.c.b16 %v4679, %v4677
  %v4744 = vpack.c.b16 %v4682, %v4680
  %v4745 = vpack.c.b16 %v4683, %v4681
  %v4746 = vpack.c.b16 %v4686, %v4684
  %v4747 = vpack.c.b16 %v4687, %v4685
  %v4748 = vpack.c.b16 %v4690, %v4688
  %v4749 = vpack.c.b16 %v4691, %v4689
  %v4750 = vpack.c.b16 %v4694, %v4692
  %v4751 = vpack.c.b16 %v4695, %v4693
  %v4752 = vpack.c.b16 %v4698, %v4696
  %v4753 = vpack.c.b16 %v4699, %v4697
  %v4754 = vpack.c.b16 %v4702, %v4700
  %v4755 = vpack.c.b16 %v4703, %v4701
  %v4756 = vpack.c.b16 %v4706, %v4704
  %v4757 = vpack.c.b16 %v4707, %v4705
  %v4758 = vpack.c.b16 %v4710, %v4708
  %v4759 = vpack.c.b16 %v4711, %v4709
  %4808 = vmatpush.bf16.msra.mxu0 %v4726
  %4809 = vmatpush.bf16.msra.mxu0 %v4724
  %4810 = vmatpush.bf16.msra.mxu0 %v4722
  %4811 = vmatpush.bf16.msra.mxu0 %v4720
  %4812 = vmatpush.bf16.msra.mxu0 %v4718
  %4813 = vmatpush.bf16.msra.mxu0 %v4716
  %4814 = vmatpush.bf16.msra.mxu0 %v4714
  %4815 = vmatpush.bf16.msra.mxu0 %v4712
  %4816 = vmatmul.bf16.gmra.mxu0 %v4506
  %v4817 = vpop.f32.mrf.mxu0
  %v4818 = vadd.f32 %v4564, %v4817
  %v4819 = vpop.f32.mrf.mxu0
  %v4820 = vadd.f32 %v4564, %v4819
  %4821 = vmatmul.bf16.gmra.mxu0 %v4509
  %v4822 = vpop.f32.mrf.mxu0
  %v4823 = vadd.f32 %v4564, %v4822
  %v4824 = vpop.f32.mrf.mxu0
  %v4825 = vadd.f32 %v4564, %v4824
  %4826 = vdwg.mxu0
  %4827 = vmatpush.bf16.msra.mxu0 %v4742
  %4828 = vmatpush.bf16.msra.mxu0 %v4740
  %4829 = vmatpush.bf16.msra.mxu0 %v4738
  %4830 = vmatpush.bf16.msra.mxu0 %v4736
  %4831 = vmatpush.bf16.msra.mxu0 %v4734
  %4832 = vmatpush.bf16.msra.mxu0 %v4732
  %4833 = vmatpush.bf16.msra.mxu0 %v4730
  %4834 = vmatpush.bf16.msra.mxu0 %v4728
  %4835 = vmatmul.bf16.gmra.mxu0 %v4507
  %v4836 = vpop.f32.mrf.mxu0
  %v4837 = vadd.f32 %v4818, %v4836
  %v4838 = vpop.f32.mrf.mxu0
  %v4839 = vadd.f32 %v4820, %v4838
  %4840 = vmatmul.bf16.gmra.mxu0 %v4510
  %v4841 = vpop.f32.mrf.mxu0
  %v4842 = vadd.f32 %v4823, %v4841
  %v4843 = vpop.f32.mrf.mxu0
  %v4844 = vadd.f32 %v4825, %v4843
  %4845 = vdwg.mxu0
  %4846 = vmatpush.bf16.msra.mxu0 %v4758
  %4847 = vmatpush.bf16.msra.mxu0 %v4756
  %4848 = vmatpush.bf16.msra.mxu0 %v4754
  %4849 = vmatpush.bf16.msra.mxu0 %v4752
  %4850 = vmatpush.bf16.msra.mxu0 %v4750
  %4851 = vmatpush.bf16.msra.mxu0 %v4748
  %4852 = vmatpush.bf16.msra.mxu0 %v4746
  %4853 = vmatpush.bf16.msra.mxu0 %v4744
  %4854 = vmatmul.bf16.gmra.mxu0 %v4508
  %v4855 = vpop.f32.mrf.mxu0
  %v4856 = vadd.f32 %v4837, %v4855
  %v4857 = vpop.f32.mrf.mxu0
  %v4858 = vadd.f32 %v4839, %v4857
  %4859 = vmatmul.bf16.gmra.mxu0 %v4511
  %v4860 = vpop.f32.mrf.mxu0
  %v4861 = vadd.f32 %v4842, %v4860
  %v4862 = vpop.f32.mrf.mxu0
  %v4863 = vadd.f32 %v4844, %v4862
  %4864 = vdwg.mxu0
  %4865 = vmatpush.bf16.msra.mxu0 %v4727
  %4866 = vmatpush.bf16.msra.mxu0 %v4725
  %4867 = vmatpush.bf16.msra.mxu0 %v4723
  %4868 = vmatpush.bf16.msra.mxu0 %v4721
  %4869 = vmatpush.bf16.msra.mxu0 %v4719
  %4870 = vmatpush.bf16.msra.mxu0 %v4717
  %4871 = vmatpush.bf16.msra.mxu0 %v4715
  %4872 = vmatpush.bf16.msra.mxu0 %v4713
  %4873 = vmatmul.bf16.gmra.mxu0 %v4506
  %v4874 = vpop.f32.mrf.mxu0
  %v4875 = vadd.f32 %v4565, %v4874
  %v4876 = vpop.f32.mrf.mxu0
  %v4877 = vadd.f32 %v4565, %v4876
  %4878 = vmatmul.bf16.gmra.mxu0 %v4509
  %v4879 = vpop.f32.mrf.mxu0
  %v4880 = vadd.f32 %v4565, %v4879
  %v4881 = vpop.f32.mrf.mxu0
  %v4882 = vadd.f32 %v4565, %v4881
  %4883 = vdwg.mxu0
  %4884 = vmatpush.bf16.msra.mxu0 %v4743
  %4885 = vmatpush.bf16.msra.mxu0 %v4741
  %4886 = vmatpush.bf16.msra.mxu0 %v4739
  %4887 = vmatpush.bf16.msra.mxu0 %v4737
  %4888 = vmatpush.bf16.msra.mxu0 %v4735
  %4889 = vmatpush.bf16.msra.mxu0 %v4733
  %4890 = vmatpush.bf16.msra.mxu0 %v4731
  %4891 = vmatpush.bf16.msra.mxu0 %v4729
  %4892 = vmatmul.bf16.gmra.mxu0 %v4507
  %v4893 = vpop.f32.mrf.mxu0
  %v4894 = vadd.f32 %v4875, %v4893
  %v4895 = vpop.f32.mrf.mxu0
  %v4896 = vadd.f32 %v4877, %v4895
  %4897 = vmatmul.bf16.gmra.mxu0 %v4510
  %v4898 = vpop.f32.mrf.mxu0
  %v4899 = vadd.f32 %v4880, %v4898
  %v4900 = vpop.f32.mrf.mxu0
  %v4901 = vadd.f32 %v4882, %v4900
  %4902 = vdwg.mxu0
  %4903 = vmatpush.bf16.msra.mxu0 %v4759
  %4904 = vmatpush.bf16.msra.mxu0 %v4757
  %4905 = vmatpush.bf16.msra.mxu0 %v4755
  %4906 = vmatpush.bf16.msra.mxu0 %v4753
  %4907 = vmatpush.bf16.msra.mxu0 %v4751
  %4908 = vmatpush.bf16.msra.mxu0 %v4749
  %4909 = vmatpush.bf16.msra.mxu0 %v4747
  %4910 = vmatpush.bf16.msra.mxu0 %v4745
  %4911 = vmatmul.bf16.gmra.mxu0 %v4508
  %v4912 = vpop.f32.mrf.mxu0
  %v4913 = vadd.f32 %v4894, %v4912
  %v4914 = vpop.f32.mrf.mxu0
  %v4915 = vadd.f32 %v4896, %v4914
  %4916 = vmatmul.bf16.gmra.mxu0 %v4511
  %v4917 = vpop.f32.mrf.mxu0
  %v4918 = vadd.f32 %v4899, %v4917
  %v4919 = vpop.f32.mrf.mxu0
  %v4920 = vadd.f32 %v4901, %v4919
  %4921 = vdwg.mxu0
  %v4922 = vmul.f32 %v4856, 0.3
  %v4923 = vmul.f32 %v4913, 0.3
  %v4924 = vmul.f32 %v4858, 0.3
  %v4925 = vmul.f32 %v4915, 0.3
  %v4926 = vmul.f32 %v4861, 0.3
  %v4927 = vmul.f32 %v4918, 0.3
  %v4928 = vmul.f32 %v4863, 0.3
  %v4929 = vmul.f32 %v4920, 0.3
  %v4930 = vmax.f32 %v4856, %v4922
  %v4931 = vmax.f32 %v4913, %v4923
  %v4932 = vmax.f32 %v4858, %v4924
  %v4933 = vmax.f32 %v4915, %v4925
  %v4934 = vmax.f32 %v4861, %v4926
  %v4935 = vmax.f32 %v4918, %v4927
  %v4936 = vmax.f32 %v4863, %v4928
  %v4937 = vmax.f32 %v4920, %v4929
  %v4938 = vadd.f32 %v3962, %v4930
  %v4939 = vadd.f32 %v3963, %v4931
  %v4940 = vadd.f32 %v3964, %v4932
  %v4941 = vadd.f32 %v3965, %v4933
  %v4942 = vadd.f32 %v3966, %v4934
  %v4943 = vadd.f32 %v3967, %v4935
  %v4944 = vadd.f32 %v3968, %v4936
  %v4945 = vadd.f32 %v3969, %v4937
  %4946 = vmatpush.msra.mxu0 0.0
  %4947 = vmatpush.msra.mxu0 0.0
  %4948 = vmatpush.msra.mxu0 0.0
  %4949 = vmatpush.msra.mxu0 0.0
  %4950 = vmatpush.msra.mxu0 0.0
  %4951 = vmatpush.msra.mxu0 0.0
  %4952 = vmatpush.msra.mxu0 0.0
  %4953 = vmatpush.msra.mxu0 0.0
  %4954 = vmatpush.msra.mxu0 0.0
  %4955 = vmatpush.msra.mxu0 0.0
  %4956 = vmatpush.msra.mxu0 0.0
  %4957 = vmatpush.msra.mxu0 0.0
  %4958 = vmatpush.msra.mxu0 %v4944
  %4959 = vmatpush.msra.mxu0 %v4942
  %4960 = vmatpush.msra.mxu0 %v4940
  %4961 = vmatpush.msra.mxu0 %v4938
  %4962 = vmatmul.f32.gmra.mxu0 %v660
  %v4963 = vpop.f32.mrf.mxu0
  %v4964 = vadd.f32 0.0, %v4963
  %4965 = vdwg.mxu0
  %4966 = vmatpush.msra.mxu0 0.0
  %4967 = vmatpush.msra.mxu0 0.0
  %4968 = vmatpush.msra.mxu0 0.0
  %4969 = vmatpush.msra.mxu0 0.0
  %4970 = vmatpush.msra.mxu0 0.0
  %4971 = vmatpush.msra.mxu0 0.0
  %4972 = vmatpush.msra.mxu0 0.0
  %4973 = vmatpush.msra.mxu0 0.0
  %4974 = vmatpush.msra.mxu0 0.0
  %4975 = vmatpush.msra.mxu0 0.0
  %4976 = vmatpush.msra.mxu0 0.0
  %4977 = vmatpush.msra.mxu0 0.0
  %4978 = vmatpush.msra.mxu0 %v4945
  %4979 = vmatpush.msra.mxu0 %v4943
  %4980 = vmatpush.msra.mxu0 %v4941
  %4981 = vmatpush.msra.mxu0 %v4939
  %4982 = vmatmul.f32.gmra.mxu0 %v660
  %v4983 = vpop.f32.mrf.mxu0
  %v4984 = vadd.f32 0.0, %v4983
  %4985 = vdwg.mxu0
  %v4986 = vmul.f32 %v4938, %v4938
  %v4987 = vmul.f32 %v4939, %v4939
  %v4988 = vmul.f32 %v4940, %v4940
  %v4989 = vmul.f32 %v4941, %v4941
  %v4990 = vmul.f32 %v4942, %v4942
  %v4991 = vmul.f32 %v4943, %v4943
  %v4992 = vmul.f32 %v4944, %v4944
  %v4993 = vmul.f32 %v4945, %v4945
  %4994 = vmatpush.msra.mxu0 0.0
  %4995 = vmatpush.msra.mxu0 0.0
  %4996 = vmatpush.msra.mxu0 0.0
  %4997 = vmatpush.msra.mxu0 0.0
  %4998 = vmatpush.msra.mxu0 0.0
  %4999 = vmatpush.msra.mxu0 0.0
  %5000 = vmatpush.msra.mxu0 0.0
  %5001 = vmatpush.msra.mxu0 0.0
  %5002 = vmatpush.msra.mxu0 0.0
  %5003 = vmatpush.msra.mxu0 0.0
  %5004 = vmatpush.msra.mxu0 0.0
  %5005 = vmatpush.msra.mxu0 0.0
  %5006 = vmatpush.msra.mxu0 %v4992
  %5007 = vmatpush.msra.mxu0 %v4990
  %5008 = vmatpush.msra.mxu0 %v4988
  %5009 = vmatpush.msra.mxu0 %v4986
  %5010 = vmatmul.f32.gmra.mxu0 %v660
  %v5011 = vpop.f32.mrf.mxu0
  %v5012 = vadd.f32 0.0, %v5011
  %5013 = vdwg.mxu0
  %5014 = vmatpush.msra.mxu0 0.0
  %5015 = vmatpush.msra.mxu0 0.0
  %5016 = vmatpush.msra.mxu0 0.0
  %5017 = vmatpush.msra.mxu0 0.0
  %5018 = vmatpush.msra.mxu0 0.0
  %5019 = vmatpush.msra.mxu0 0.0
  %5020 = vmatpush.msra.mxu0 0.0
  %5021 = vmatpush.msra.mxu0 0.0
  %5022 = vmatpush.msra.mxu0 0.0
  %5023 = vmatpush.msra.mxu0 0.0
  %5024 = vmatpush.msra.mxu0 0.0
  %5025 = vmatpush.msra.mxu0 0.0
  %5026 = vmatpush.msra.mxu0 %v4993
  %5027 = vmatpush.msra.mxu0 %v4991
  %5028 = vmatpush.msra.mxu0 %v4989
  %5029 = vmatpush.msra.mxu0 %v4987
  %5030 = vmatmul.f32.gmra.mxu0 %v660
  %v5031 = vpop.f32.mrf.mxu0
  %v5032 = vadd.f32 0.0, %v5031
  %5033 = vdwg.mxu0
  %v5034 = vmul.f32 %v4964, 0.03125
  %v5035 = vmul.f32 %v4984, 0.03125
  %v5036 = vmul.f32 %v5012, 0.03125
  %v5037 = vmul.f32 %v5032, 0.03125
  %v5038 = vmul.f32 %v5034, %v5034
  %v5039 = vmul.f32 %v5035, %v5035
  %v5040 = vsub.f32 %v5036, %v5038
  %v5041 = vsub.f32 %v5037, %v5039
  %v5042 = vperm.slane %v5034, 0
  %v5043 = vperm.slane %v5035, 0
  %v5044 = vsub.f32 %v4938, %v5042
  %v5045 = vsub.f32 %v4939, %v5043
  %v5046 = vsub.f32 %v4940, %v5042
  %v5047 = vsub.f32 %v4941, %v5043
  %v5048 = vsub.f32 %v4942, %v5042
  %v5049 = vsub.f32 %v4943, %v5043
  %v5050 = vsub.f32 %v4944, %v5042
  %v5051 = vsub.f32 %v4945, %v5043
  %v5052 = vadd.f32 %v5040, 1e-05
  %v5053 = vadd.f32 %v5041, 1e-05
  %v5054 = vrsqrt.pop %v5052
  %v5055 = vmul.f32 %v5054, %v5052
  %v5056 = vmul.f32 %v5055, %v5054
  %v5057 = vmul.f32 0.5, %v5056
  %v5058 = vsub.f32 1.5, %v5057
  %v5059 = vmul.f32 %v5054, %v5058
  %vm5060 = vweird.f32 %v5052
  %vm5061 = vweird.f32 %v5054
  %vm5062 = vmor %vm5060, %vm5061
  %v5063 = vsel %vm5062, %v5054, %v5059
  %v5064 = vrsqrt.pop %v5053
  %v5065 = vmul.f32 %v5064, %v5053
  %v5066 = vmul.f32 %v5065, %v5064
  %v5067 = vmul.f32 0.5, %v5066
  %v5068 = vsub.f32 1.5, %v5067
  %v5069 = vmul.f32 %v5064, %v5068
  %vm5070 = vweird.f32 %v5053
  %vm5071 = vweird.f32 %v5064
  %vm5072 = vmor %vm5070, %vm5071
  %v5073 = vsel %vm5072, %v5064, %v5069
  %v5074 = vperm.slane %v5063, 0
  %v5075 = vperm.slane %v5073, 0
  %v5076 = vmul.f32 %v5044, %v5074
  %v5077 = vmul.f32 %v5045, %v5075
  %v5078 = vmul.f32 %v5046, %v5074
  %v5079 = vmul.f32 %v5047, %v5075
  %v5080 = vmul.f32 %v5048, %v5074
  %v5081 = vmul.f32 %v5049, %v5075
  %v5082 = vmul.f32 %v5050, %v5074
  %v5083 = vmul.f32 %v5051, %v5075
  %v5084 = vpack.c.bf16 %v5078, %v5076
  %v5085 = vpack.c.bf16 %v5079, %v5077
  %v5086 = vpack.c.bf16 %v5082, %v5080
  %v5087 = vpack.c.bf16 %v5083, %v5081
  %s5088 = scalar_lea.vmem %s4, 1440
  %v5089 = vld [vmem:[%s5088] sm:$0xff]
  %v5090 = vld [vmem:[%s5088 + $0x8] sm:$0xf]
  %v5091 = vld [vmem:[%s5088 + $0xc] sm:$0xff]
  %v5092 = vld [vmem:[%s5088 + $0x14] sm:$0xf]
  %v5093 = vld [vmem:[%s5088 + $0x18] sm:$0xff]
  %v5094 = vld [vmem:[%s5088 + $0x20] sm:$0xf]
  %v5095 = vld [vmem:[%s5088 + $0x24] sm:$0xff]
  %v5096 = vld [vmem:[%s5088 + $0x2c] sm:$0xf]
  %v5097 = vld [vmem:[%s5088 + $0x30] sm:$0xff]
  %v5098 = vld [vmem:[%s5088 + $0x38] sm:$0xf]
  %v5099 = vld [vmem:[%s5088 + $0x3c] sm:$0xff]
  %v5100 = vld [vmem:[%s5088 + $0x44] sm:$0xf]
  %v5101 = vld [vmem:[%s5088 + $0x48] sm:$0xff]
  %v5102 = vld [vmem:[%s5088 + $0x50] sm:$0xf]
  %v5103 = vld [vmem:[%s5088 + $0x54] sm:$0xff]
  %v5104 = vld [vmem:[%s5088 + $0x5c] sm:$0xf]
  %v5105 = vld [vmem:[%s5088 + $0x60] sm:$0xff]
  %v5106 = vld [vmem:[%s5088 + $0x68] sm:$0xf]
  %v5107 = vld [vmem:[%s5088 + $0x6c] sm:$0xff]
  %v5108 = vld [vmem:[%s5088 + $0x74] sm:$0xf]
  %v5109 = vld [vmem:[%s5088 + $0x78] sm:$0xff]
  %v5110 = vld [vmem:[%s5088 + $0x80] sm:$0xf]
  %v5111 = vld [vmem:[%s5088 + $0x84] sm:$0xff]
  %v5112 = vld [vmem:[%s5088 + $0x8c] sm:$0xf]
  %v5113 = vld [vmem:[%s5088 + $0x90] sm:$0xff]
  %v5114 = vld [vmem:[%s5088 + $0x98] sm:$0xf]
  %v5115 = vld [vmem:[%s5088 + $0x9c] sm:$0xff]
  %v5116 = vld [vmem:[%s5088 + $0xa4] sm:$0xf]
  %v5117 = vld [vmem:[%s5088 + $0xa8] sm:$0xff]
  %v5118 = vld [vmem:[%s5088 + $0xb0] sm:$0xf]
  %v5119 = vld [vmem:[%s5088 + $0xb4] sm:$0xff]
  %v5120 = vld [vmem:[%s5088 + $0xbc] sm:$0xf]
  %v5121 = vld [vmem:[%s5088 + $0xc0] sm:$0xff]
  %v5122 = vld [vmem:[%s5088 + $0xc8] sm:$0xf]
  %v5123 = vld [vmem:[%s5088 + $0xcc] sm:$0xff]
  %v5124 = vld [vmem:[%s5088 + $0xd4] sm:$0xf]
  %v5125 = vld [vmem:[%s5088 + $0xd8] sm:$0xff]
  %v5126 = vld [vmem:[%s5088 + $0xe0] sm:$0xf]
  %v5127 = vld [vmem:[%s5088 + $0xe4] sm:$0xff]
  %v5128 = vld [vmem:[%s5088 + $0xec] sm:$0xf]
  %v5129 = vld [vmem:[%s5088 + $0xf0] sm:$0xff]
  %v5130 = vld [vmem:[%s5088 + $0xf8] sm:$0xf]
  %v5131 = vld [vmem:[%s5088 + $0xfc] sm:$0xff]
  %v5132 = vld [vmem:[%s5088 + $0x104] sm:$0xf]
  %v5133 = vld [vmem:[%s5088 + $0x108] sm:$0xff]
  %v5134 = vld [vmem:[%s5088 + $0x110] sm:$0xf]
  %v5135 = vld [vmem:[%s5088 + $0x114] sm:$0xff]
  %v5136 = vld [vmem:[%s5088 + $0x11c] sm:$0xf]
  %s5137 = scalar_lea.vmem %s5, 5
  %v5138 = vld [vmem:[%s5137] ss:$8 sm:$0x7]
  %v5140 = vperm.slane %v5138, 0
  %v5141 = vperm.slane %v5138, 1
  %v5142 = vperm.slane %v5138, 2
  %v5194 = vunpack.c.l.b16 %v5089
  %v5195 = vunpack.c.h.b16 %v5089
  %v5196 = vunpack.c.l.b16 %v5090
  %v5197 = vunpack.c.l.b16 %v5091
  %v5198 = vunpack.c.h.b16 %v5091
  %v5199 = vunpack.c.l.b16 %v5092
  %v5200 = vunpack.c.l.b16 %v5093
  %v5201 = vunpack.c.h.b16 %v5093
  %v5202 = vunpack.c.l.b16 %v5094
  %v5203 = vunpack.c.l.b16 %v5095
  %v5204 = vunpack.c.h.b16 %v5095
  %v5205 = vunpack.c.l.b16 %v5096
  %v5206 = vunpack.c.l.b16 %v5097
  %v5207 = vunpack.c.h.b16 %v5097
  %v5208 = vunpack.c.l.b16 %v5098
  %v5209 = vunpack.c.l.b16 %v5099
  %v5210 = vunpack.c.h.b16 %v5099
  %v5211 = vunpack.c.l.b16 %v5100
  %v5212 = vunpack.c.l.b16 %v5101
  %v5213 = vunpack.c.h.b16 %v5101
  %v5214 = vunpack.c.l.b16 %v5102
  %v5215 = vunpack.c.l.b16 %v5103
  %v5216 = vunpack.c.h.b16 %v5103
  %v5217 = vunpack.c.l.b16 %v5104
  %v5218 = vunpack.c.l.b16 %v5105
  %v5219 = vunpack.c.h.b16 %v5105
  %v5220 = vunpack.c.l.b16 %v5106
  %v5221 = vunpack.c.l.b16 %v5107
  %v5222 = vunpack.c.h.b16 %v5107
  %v5223 = vunpack.c.l.b16 %v5108
  %v5224 = vunpack.c.l.b16 %v5109
  %v5225 = vunpack.c.h.b16 %v5109
  %v5226 = vunpack.c.l.b16 %v5110
  %v5227 = vunpack.c.l.b16 %v5111
  %v5228 = vunpack.c.h.b16 %v5111
  %v5229 = vunpack.c.l.b16 %v5112
  %v5230 = vunpack.c.l.b16 %v5113
  %v5231 = vunpack.c.h.b16 %v5113
  %v5232 = vunpack.c.l.b16 %v5114
  %v5233 = vunpack.c.l.b16 %v5115
  %v5234 = vunpack.c.h.b16 %v5115
  %v5235 = vunpack.c.l.b16 %v5116
  %v5236 = vunpack.c.l.b16 %v5117
  %v5237 = vunpack.c.h.b16 %v5117
  %v5238 = vunpack.c.l.b16 %v5118
  %v5239 = vunpack.c.l.b16 %v5119
  %v5240 = vunpack.c.h.b16 %v5119
  %v5241 = vunpack.c.l.b16 %v5120
  %v5242 = vunpack.c.l.b16 %v5121
  %v5243 = vunpack.c.h.b16 %v5121
  %v5244 = vunpack.c.l.b16 %v5122
  %v5245 = vunpack.c.l.b16 %v5123
  %v5246 = vunpack.c.h.b16 %v5123
  %v5247 = vunpack.c.l.b16 %v5124
  %v5248 = vunpack.c.l.b16 %v5125
  %v5249 = vunpack.c.h.b16 %v5125
  %v5250 = vunpack.c.l.b16 %v5126
  %v5251 = vunpack.c.l.b16 %v5127
  %v5252 = vunpack.c.h.b16 %v5127
  %v5253 = vunpack.c.l.b16 %v5128
  %v5254 = vunpack.c.l.b16 %v5129
  %v5255 = vunpack.c.h.b16 %v5129
  %v5256 = vunpack.c.l.b16 %v5130
  %v5257 = vunpack.c.l.b16 %v5131
  %v5258 = vunpack.c.h.b16 %v5131
  %v5259 = vunpack.c.l.b16 %v5132
  %v5260 = vunpack.c.l.b16 %v5133
  %v5261 = vunpack.c.h.b16 %v5133
  %v5262 = vunpack.c.l.b16 %v5134
  %v5263 = vunpack.c.l.b16 %v5135
  %v5264 = vunpack.c.h.b16 %v5135
  %v5265 = vunpack.c.l.b16 %v5136
  %v5266 = vpack.c.b16 %v5197, %v5194
  %v5267 = vpack.c.b16 %v5198, %v5195
  %v5268 = vpack.c.b16 %v5199, %v5196
  %v5269 = vpack.c.b16 %v5203, %v5200
  %v5270 = vpack.c.b16 %v5204, %v5201
  %v5271 = vpack.c.b16 %v5205, %v5202
  %v5272 = vpack.c.b16 %v5209, %v5206
  %v5273 = vpack.c.b16 %v5210, %v5207
  %v5274 = vpack.c.b16 %v5211, %v5208
  %v5275 = vpack.c.b16 %v5215, %v5212
  %v5276 = vpack.c.b16 %v5216, %v5213
  %v5277 = vpack.c.b16 %v5217, %v5214
  %v5278 = vpack.c.b16 %v5221, %v5218
  %v5279 = vpack.c.b16 %v5222, %v5219
  %v5280 = vpack.c.b16 %v5223, %v5220
  %v5281 = vpack.c.b16 %v5227, %v5224
  %v5282 = vpack.c.b16 %v5228, %v5225
  %v5283 = vpack.c.b16 %v5229, %v5226
  %v5284 = vpack.c.b16 %v5233, %v5230
  %v5285 = vpack.c.b16 %v5234, %v5231
  %v5286 = vpack.c.b16 %v5235, %v5232
  %v5287 = vpack.c.b16 %v5239, %v5236
  %v5288 = vpack.c.b16 %v5240, %v5237
  %v5289 = vpack.c.b16 %v5241, %v5238
  %v5290 = vpack.c.b16 %v5245, %v5242
  %v5291 = vpack.c.b16 %v5246, %v5243
  %v5292 = vpack.c.b16 %v5247, %v5244
  %v5293 = vpack.c.b16 %v5251, %v5248
  %v5294 = vpack.c.b16 %v5252, %v5249
  %v5295 = vpack.c.b16 %v5253, %v5250
  %v5296 = vpack.c.b16 %v5257, %v5254
  %v5297 = vpack.c.b16 %v5258, %v5255
  %v5298 = vpack.c.b16 %v5259, %v5256
  %v5299 = vpack.c.b16 %v5263, %v5260
  %v5300 = vpack.c.b16 %v5264, %v5261
  %v5301 = vpack.c.b16 %v5265, %v5262
  %v5339 = vsel %vm43, %v5085, 0
  %v5342 = vsel %vm43, %v5087, 0
  %5344 = vmatpush.bf16.msra.mxu0 %v5287
  %5345 = vmatpush.bf16.msra.mxu0 %v5284
  %5346 = vmatpush.bf16.msra.mxu0 %v5281
  %5347 = vmatpush.bf16.msra.mxu0 %v5278
  %5348 = vmatpush.bf16.msra.mxu0 %v5275
  %5349 = vmatpush.bf16.msra.mxu0 %v5272
  %5350 = vmatpush.bf16.msra.mxu0 %v5269
  %5351 = vmatpush.bf16.msra.mxu0 %v5266
  %5352 = vmatmul.bf16.gmra.mxu0 %v5084
  %v5353 = vpop.f32.mrf.mxu0
  %v5354 = vadd.f32 %v5140, %v5353
  %v5355 = vpop.f32.mrf.mxu0
  %v5356 = vadd.f32 %v5140, %v5355
  %5357 = vmatmul.bf16.gmra.mxu0 %v5086
  %v5358 = vpop.f32.mrf.mxu0
  %v5359 = vadd.f32 %v5140, %v5358
  %v5360 = vpop.f32.mrf.mxu0
  %v5361 = vadd.f32 %v5140, %v5360
  %5362 = vdwg.mxu0
  %5363 = vmatpush.bf16.msra.mxu0 0
  %5364 = vmatpush.bf16.msra.mxu0 0
  %5365 = vmatpush.bf16.msra.mxu0 0
  %5366 = vmatpush.bf16.msra.mxu0 0
  %5367 = vmatpush.bf16.msra.mxu0 %v5299
  %5368 = vmatpush.bf16.msra.mxu0 %v5296
  %5369 = vmatpush.bf16.msra.mxu0 %v5293
  %5370 = vmatpush.bf16.msra.mxu0 %v5290
  %5371 = vmatmul.bf16.gmra.mxu0 %v5339
  %v5372 = vpop.f32.mrf.mxu0
  %v5373 = vadd.f32 %v5354, %v5372
  %v5374 = vpop.f32.mrf.mxu0
  %v5375 = vadd.f32 %v5356, %v5374
  %5376 = vmatmul.bf16.gmra.mxu0 %v5342
  %v5377 = vpop.f32.mrf.mxu0
  %v5378 = vadd.f32 %v5359, %v5377
  %v5379 = vpop.f32.mrf.mxu0
  %v5380 = vadd.f32 %v5361, %v5379
  %5381 = vdwg.mxu0
  %5382 = vmatpush.bf16.msra.mxu0 %v5288
  %5383 = vmatpush.bf16.msra.mxu0 %v5285
  %5384 = vmatpush.bf16.msra.mxu0 %v5282
  %5385 = vmatpush.bf16.msra.mxu0 %v5279
  %5386 = vmatpush.bf16.msra.mxu0 %v5276
  %5387 = vmatpush.bf16.msra.mxu0 %v5273
  %5388 = vmatpush.bf16.msra.mxu0 %v5270
  %5389 = vmatpush.bf16.msra.mxu0 %v5267
  %5390 = vmatmul.bf16.gmra.mxu0 %v5084
  %v5391 = vpop.f32.mrf.mxu0
  %v5392 = vadd.f32 %v5141, %v5391
  %v5393 = vpop.f32.mrf.mxu0
  %v5394 = vadd.f32 %v5141, %v5393
  %5395 = vmatmul.bf16.gmra.mxu0 %v5086
  %v5396 = vpop.f32.mrf.mxu0
  %v5397 = vadd.f32 %v5141, %v5396
  %v5398 = vpop.f32.mrf.mxu0
  %v5399 = vadd.f32 %v5141, %v5398
  %5400 = vdwg.mxu0
  %5401 = vmatpush.bf16.msra.mxu0 0
  %5402 = vmatpush.bf16.msra.mxu0 0
  %5403 = vmatpush.bf16.msra.mxu0 0
  %5404 = vmatpush.bf16.msra.mxu0 0
  %5405 = vmatpush.bf16.msra.mxu0 %v5300
  %5406 = vmatpush.bf16.msra.mxu0 %v5297
  %5407 = vmatpush.bf16.msra.mxu0 %v5294
  %5408 = vmatpush.bf16.msra.mxu0 %v5291
  %5409 = vmatmul.bf16.gmra.mxu0 %v5339
  %v5410 = vpop.f32.mrf.mxu0
  %v5411 = vadd.f32 %v5392, %v5410
  %v5412 = vpop.f32.mrf.mxu0
  %v5413 = vadd.f32 %v5394, %v5412
  %5414 = vmatmul.bf16.gmra.mxu0 %v5342
  %v5415 = vpop.f32.mrf.mxu0
  %v5416 = vadd.f32 %v5397, %v5415
  %v5417 = vpop.f32.mrf.mxu0
  %v5418 = vadd.f32 %v5399, %v5417
  %5419 = vdwg.mxu0
  %5420 = vmatpush.bf16.msra.mxu0 %v5289
  %5421 = vmatpush.bf16.msra.mxu0 %v5286
  %5422 = vmatpush.bf16.msra.mxu0 %v5283
  %5423 = vmatpush.bf16.msra.mxu0 %v5280
  %5424 = vmatpush.bf16.msra.mxu0 %v5277
  %5425 = vmatpush.bf16.msra.mxu0 %v5274
  %5426 = vmatpush.bf16.msra.mxu0 %v5271
  %5427 = vmatpush.bf16.msra.mxu0 %v5268
  %5428 = vmatmul.bf16.gmra.mxu0 %v5084
  %v5429 = vpop.f32.mrf.mxu0
  %v5430 = vadd.f32 %v5142, %v5429
  %v5431 = vpop.f32.mrf.mxu0
  %v5432 = vadd.f32 %v5142, %v5431
  %5433 = vmatmul.bf16.gmra.mxu0 %v5086
  %v5434 = vpop.f32.mrf.mxu0
  %v5435 = vadd.f32 %v5142, %v5434
  %v5436 = vpop.f32.mrf.mxu0
  %v5437 = vadd.f32 %v5142, %v5436
  %5438 = vdwg.mxu0
  %5439 = vmatpush.bf16.msra.mxu0 0
  %5440 = vmatpush.bf16.msra.mxu0 0
  %5441 = vmatpush.bf16.msra.mxu0 0
  %5442 = vmatpush.bf16.msra.mxu0 0
  %5443 = vmatpush.bf16.msra.mxu0 %v5301
  %5444 = vmatpush.bf16.msra.mxu0 %v5298
  %5445 = vmatpush.bf16.msra.mxu0 %v5295
  %5446 = vmatpush.bf16.msra.mxu0 %v5292
  %5447 = vmatmul.bf16.gmra.mxu0 %v5339
  %v5448 = vpop.f32.mrf.mxu0
  %v5449 = vadd.f32 %v5430, %v5448
  %v5450 = vpop.f32.mrf.mxu0
  %v5451 = vadd.f32 %v5432, %v5450
  %5452 = vmatmul.bf16.gmra.mxu0 %v5342
  %v5453 = vpop.f32.mrf.mxu0
  %v5454 = vadd.f32 %v5435, %v5453
  %v5455 = vpop.f32.mrf.mxu0
  %v5456 = vadd.f32 %v5437, %v5455
  %5457 = vdwg.mxu0
  %v5458 = vmul.f32 %v5373, 0.3
  %v5459 = vmul.f32 %v5411, 0.3
  %v5460 = vmul.f32 %v5449, 0.3
  %v5461 = vmul.f32 %v5375, 0.3
  %v5462 = vmul.f32 %v5413, 0.3
  %v5463 = vmul.f32 %v5451, 0.3
  %v5464 = vmul.f32 %v5378, 0.3
  %v5465 = vmul.f32 %v5416, 0.3
  %v5466 = vmul.f32 %v5454, 0.3
  %v5467 = vmul.f32 %v5380, 0.3
  %v5468 = vmul.f32 %v5418, 0.3
  %v5469 = vmul.f32 %v5456, 0.3
  %v5470 = vmax.f32 %v5373, %v5458
  %v5471 = vmax.f32 %v5411, %v5459
  %v5472 = vmax.f32 %v5449, %v5460
  %v5473 = vmax.f32 %v5375, %v5461
  %v5474 = vmax.f32 %v5413, %v5462
  %v5475 = vmax.f32 %v5451, %v5463
  %v5476 = vmax.f32 %v5378, %v5464
  %v5477 = vmax.f32 %v5416, %v5465
  %v5478 = vmax.f32 %v5454, %v5466
  %v5479 = vmax.f32 %v5380, %v5467
  %v5480 = vmax.f32 %v5418, %v5468
  %v5481 = vmax.f32 %v5456, %v5469
  %v5482 = vpack.c.bf16 %v5473, %v5470
  %v5483 = vpack.c.bf16 %v5474, %v5471
  %v5484 = vpack.c.bf16 %v5475, %v5472
  %v5485 = vpack.c.bf16 %v5479, %v5476
  %v5486 = vpack.c.bf16 %v5480, %v5477
  %v5487 = vpack.c.bf16 %v5481, %v5478
  %5488 = vmatpush.bf16.msra.mxu0 %v4726
  %5489 = vmatpush.bf16.msra.mxu0 %v4724
  %5490 = vmatpush.bf16.msra.mxu0 %v4722
  %5491 = vmatpush.bf16.msra.mxu0 %v4720
  %5492 = vmatpush.bf16.msra.mxu0 %v4718
  %5493 = vmatpush.bf16.msra.mxu0 %v4716
  %5494 = vmatpush.bf16.msra.mxu0 %v4714
  %5495 = vmatpush.bf16.msra.mxu0 %v4712
  %5496 = vmatmul.bf16.gmra.mxu0 %v5482
  %v5497 = vpop.f32.mrf.mxu0
  %v5498 = vadd.f32 %v4564, %v5497
  %v5499 = vpop.f32.mrf.mxu0
  %v5500 = vadd.f32 %v4564, %v5499
  %5501 = vmatmul.bf16.gmra.mxu0 %v5485
  %v5502 = vpop.f32.mrf.mxu0
  %v5503 = vadd.f32 %v4564, %v5502
  %v5504 = vpop.f32.mrf.mxu0
  %v5505 = vadd.f32 %v4564, %v5504
  %5506 = vdwg.mxu0
  %5507 = vmatpush.bf16.msra.mxu0 %v4742
  %5508 = vmatpush.bf16.msra.mxu0 %v4740
  %5509 = vmatpush.bf16.msra.mxu0 %v4738
  %5510 = vmatpush.bf16.msra.mxu0 %v4736
  %5511 = vmatpush.bf16.msra.mxu0 %v4734
  %5512 = vmatpush.bf16.msra.mxu0 %v4732
  %5513 = vmatpush.bf16.msra.mxu0 %v4730
  %5514 = vmatpush.bf16.msra.mxu0 %v4728
  %5515 = vmatmul.bf16.gmra.mxu0 %v5483
  %v5516 = vpop.f32.mrf.mxu0
  %v5517 = vadd.f32 %v5498, %v5516
  %v5518 = vpop.f32.mrf.mxu0
  %v5519 = vadd.f32 %v5500, %v5518
  %5520 = vmatmul.bf16.gmra.mxu0 %v5486
  %v5521 = vpop.f32.mrf.mxu0
  %v5522 = vadd.f32 %v5503, %v5521
  %v5523 = vpop.f32.mrf.mxu0
  %v5524 = vadd.f32 %v5505, %v5523
  %5525 = vdwg.mxu0
  %5526 = vmatpush.bf16.msra.mxu0 %v4758
  %5527 = vmatpush.bf16.msra.mxu0 %v4756
  %5528 = vmatpush.bf16.msra.mxu0 %v4754
  %5529 = vmatpush.bf16.msra.mxu0 %v4752
  %5530 = vmatpush.bf16.msra.mxu0 %v4750
  %5531 = vmatpush.bf16.msra.mxu0 %v4748
  %5532 = vmatpush.bf16.msra.mxu0 %v4746
  %5533 = vmatpush.bf16.msra.mxu0 %v4744
  %5534 = vmatmul.bf16.gmra.mxu0 %v5484
  %v5535 = vpop.f32.mrf.mxu0
  %v5536 = vadd.f32 %v5517, %v5535
  %v5537 = vpop.f32.mrf.mxu0
  %v5538 = vadd.f32 %v5519, %v5537
  %5539 = vmatmul.bf16.gmra.mxu0 %v5487
  %v5540 = vpop.f32.mrf.mxu0
  %v5541 = vadd.f32 %v5522, %v5540
  %v5542 = vpop.f32.mrf.mxu0
  %v5543 = vadd.f32 %v5524, %v5542
  %5544 = vdwg.mxu0
  %5545 = vmatpush.bf16.msra.mxu0 %v4727
  %5546 = vmatpush.bf16.msra.mxu0 %v4725
  %5547 = vmatpush.bf16.msra.mxu0 %v4723
  %5548 = vmatpush.bf16.msra.mxu0 %v4721
  %5549 = vmatpush.bf16.msra.mxu0 %v4719
  %5550 = vmatpush.bf16.msra.mxu0 %v4717
  %5551 = vmatpush.bf16.msra.mxu0 %v4715
  %5552 = vmatpush.bf16.msra.mxu0 %v4713
  %5553 = vmatmul.bf16.gmra.mxu0 %v5482
  %v5554 = vpop.f32.mrf.mxu0
  %v5555 = vadd.f32 %v4565, %v5554
  %v5556 = vpop.f32.mrf.mxu0
  %v5557 = vadd.f32 %v4565, %v5556
  %5558 = vmatmul.bf16.gmra.mxu0 %v5485
  %v5559 = vpop.f32.mrf.mxu0
  %v5560 = vadd.f32 %v4565, %v5559
  %v5561 = vpop.f32.mrf.mxu0
  %v5562 = vadd.f32 %v4565, %v5561
  %5563 = vdwg.mxu0
  %5564 = vmatpush.bf16.msra.mxu0 %v4743
  %5565 = vmatpush.bf16.msra.mxu0 %v4741
  %5566 = vmatpush.bf16.msra.mxu0 %v4739
  %5567 = vmatpush.bf16.msra.mxu0 %v4737
  %5568 = vmatpush.bf16.msra.mxu0 %v4735
  %5569 = vmatpush.bf16.msra.mxu0 %v4733
  %5570 = vmatpush.bf16.msra.mxu0 %v4731
  %5571 = vmatpush.bf16.msra.mxu0 %v4729
  %5572 = vmatmul.bf16.gmra.mxu0 %v5483
  %v5573 = vpop.f32.mrf.mxu0
  %v5574 = vadd.f32 %v5555, %v5573
  %v5575 = vpop.f32.mrf.mxu0
  %v5576 = vadd.f32 %v5557, %v5575
  %5577 = vmatmul.bf16.gmra.mxu0 %v5486
  %v5578 = vpop.f32.mrf.mxu0
  %v5579 = vadd.f32 %v5560, %v5578
  %v5580 = vpop.f32.mrf.mxu0
  %v5581 = vadd.f32 %v5562, %v5580
  %5582 = vdwg.mxu0
  %5583 = vmatpush.bf16.msra.mxu0 %v4759
  %5584 = vmatpush.bf16.msra.mxu0 %v4757
  %5585 = vmatpush.bf16.msra.mxu0 %v4755
  %5586 = vmatpush.bf16.msra.mxu0 %v4753
  %5587 = vmatpush.bf16.msra.mxu0 %v4751
  %5588 = vmatpush.bf16.msra.mxu0 %v4749
  %5589 = vmatpush.bf16.msra.mxu0 %v4747
  %5590 = vmatpush.bf16.msra.mxu0 %v4745
  %5591 = vmatmul.bf16.gmra.mxu0 %v5484
  %v5592 = vpop.f32.mrf.mxu0
  %v5593 = vadd.f32 %v5574, %v5592
  %v5594 = vpop.f32.mrf.mxu0
  %v5595 = vadd.f32 %v5576, %v5594
  %5596 = vmatmul.bf16.gmra.mxu0 %v5487
  %v5597 = vpop.f32.mrf.mxu0
  %v5598 = vadd.f32 %v5579, %v5597
  %v5599 = vpop.f32.mrf.mxu0
  %v5600 = vadd.f32 %v5581, %v5599
  %5601 = vdwg.mxu0
  %v5602 = vmul.f32 %v5536, 0.3
  %v5603 = vmul.f32 %v5593, 0.3
  %v5604 = vmul.f32 %v5538, 0.3
  %v5605 = vmul.f32 %v5595, 0.3
  %v5606 = vmul.f32 %v5541, 0.3
  %v5607 = vmul.f32 %v5598, 0.3
  %v5608 = vmul.f32 %v5543, 0.3
  %v5609 = vmul.f32 %v5600, 0.3
  %v5610 = vmax.f32 %v5536, %v5602
  %v5611 = vmax.f32 %v5593, %v5603
  %v5612 = vmax.f32 %v5538, %v5604
  %v5613 = vmax.f32 %v5595, %v5605
  %v5614 = vmax.f32 %v5541, %v5606
  %v5615 = vmax.f32 %v5598, %v5607
  %v5616 = vmax.f32 %v5543, %v5608
  %v5617 = vmax.f32 %v5600, %v5609
  %v5618 = vadd.f32 %v4938, %v5610
  %v5619 = vadd.f32 %v4939, %v5611
  %v5620 = vadd.f32 %v4940, %v5612
  %v5621 = vadd.f32 %v4941, %v5613
  %v5622 = vadd.f32 %v4942, %v5614
  %v5623 = vadd.f32 %v4943, %v5615
  %v5624 = vadd.f32 %v4944, %v5616
  %v5625 = vadd.f32 %v4945, %v5617
  %5626 = vmatpush.msra.mxu0 0.0
  %5627 = vmatpush.msra.mxu0 0.0
  %5628 = vmatpush.msra.mxu0 0.0
  %5629 = vmatpush.msra.mxu0 0.0
  %5630 = vmatpush.msra.mxu0 0.0
  %5631 = vmatpush.msra.mxu0 0.0
  %5632 = vmatpush.msra.mxu0 0.0
  %5633 = vmatpush.msra.mxu0 0.0
  %5634 = vmatpush.msra.mxu0 0.0
  %5635 = vmatpush.msra.mxu0 0.0
  %5636 = vmatpush.msra.mxu0 0.0
  %5637 = vmatpush.msra.mxu0 0.0
  %5638 = vmatpush.msra.mxu0 %v5624
  %5639 = vmatpush.msra.mxu0 %v5622
  %5640 = vmatpush.msra.mxu0 %v5620
  %5641 = vmatpush.msra.mxu0 %v5618
  %5642 = vmatmul.f32.gmra.mxu0 %v660
  %v5643 = vpop.f32.mrf.mxu0
  %v5644 = vadd.f32 0.0, %v5643
  %5645 = vdwg.mxu0
  %5646 = vmatpush.msra.mxu0 0.0
  %5647 = vmatpush.msra.mxu0 0.0
  %5648 = vmatpush.msra.mxu0 0.0
  %5649 = vmatpush.msra.mxu0 0.0
  %5650 = vmatpush.msra.mxu0 0.0
  %5651 = vmatpush.msra.mxu0 0.0
  %5652 = vmatpush.msra.mxu0 0.0
  %5653 = vmatpush.msra.mxu0 0.0
  %5654 = vmatpush.msra.mxu0 0.0
  %5655 = vmatpush.msra.mxu0 0.0
  %5656 = vmatpush.msra.mxu0 0.0
  %5657 = vmatpush.msra.mxu0 0.0
  %5658 = vmatpush.msra.mxu0 %v5625
  %5659 = vmatpush.msra.mxu0 %v5623
  %5660 = vmatpush.msra.mxu0 %v5621
  %5661 = vmatpush.msra.mxu0 %v5619
  %5662 = vmatmul.f32.gmra.mxu0 %v660
  %v5663 = vpop.f32.mrf.mxu0
  %v5664 = vadd.f32 0.0, %v5663
  %5665 = vdwg.mxu0
  %v5666 = vmul.f32 %v5618, %v5618
  %v5667 = vmul.f32 %v5619, %v5619
  %v5668 = vmul.f32 %v5620, %v5620
  %v5669 = vmul.f32 %v5621, %v5621
  %v5670 = vmul.f32 %v5622, %v5622
  %v5671 = vmul.f32 %v5623, %v5623
  %v5672 = vmul.f32 %v5624, %v5624
  %v5673 = vmul.f32 %v5625, %v5625
  %5674 = vmatpush.msra.mxu0 0.0
  %5675 = vmatpush.msra.mxu0 0.0
  %5676 = vmatpush.msra.mxu0 0.0
  %5677 = vmatpush.msra.mxu0 0.0
  %5678 = vmatpush.msra.mxu0 0.0
  %5679 = vmatpush.msra.mxu0 0.0
  %5680 = vmatpush.msra.mxu0 0.0
  %5681 = vmatpush.msra.mxu0 0.0
  %5682 = vmatpush.msra.mxu0 0.0
  %5683 = vmatpush.msra.mxu0 0.0
  %5684 = vmatpush.msra.mxu0 0.0
  %5685 = vmatpush.msra.mxu0 0.0
  %5686 = vmatpush.msra.mxu0 %v5672
  %5687 = vmatpush.msra.mxu0 %v5670
  %5688 = vmatpush.msra.mxu0 %v5668
  %5689 = vmatpush.msra.mxu0 %v5666
  %5690 = vmatmul.f32.gmra.mxu0 %v660
  %v5691 = vpop.f32.mrf.mxu0
  %v5692 = vadd.f32 0.0, %v5691
  %5693 = vdwg.mxu0
  %5694 = vmatpush.msra.mxu0 0.0
  %5695 = vmatpush.msra.mxu0 0.0
  %5696 = vmatpush.msra.mxu0 0.0
  %5697 = vmatpush.msra.mxu0 0.0
  %5698 = vmatpush.msra.mxu0 0.0
  %5699 = vmatpush.msra.mxu0 0.0
  %5700 = vmatpush.msra.mxu0 0.0
  %5701 = vmatpush.msra.mxu0 0.0
  %5702 = vmatpush.msra.mxu0 0.0
  %5703 = vmatpush.msra.mxu0 0.0
  %5704 = vmatpush.msra.mxu0 0.0
  %5705 = vmatpush.msra.mxu0 0.0
  %5706 = vmatpush.msra.mxu0 %v5673
  %5707 = vmatpush.msra.mxu0 %v5671
  %5708 = vmatpush.msra.mxu0 %v5669
  %5709 = vmatpush.msra.mxu0 %v5667
  %5710 = vmatmul.f32.gmra.mxu0 %v660
  %v5711 = vpop.f32.mrf.mxu0
  %v5712 = vadd.f32 0.0, %v5711
  %5713 = vdwg.mxu0
  %v5714 = vmul.f32 %v5644, 0.03125
  %v5715 = vmul.f32 %v5664, 0.03125
  %v5716 = vmul.f32 %v5692, 0.03125
  %v5717 = vmul.f32 %v5712, 0.03125
  %v5718 = vmul.f32 %v5714, %v5714
  %v5719 = vmul.f32 %v5715, %v5715
  %v5720 = vsub.f32 %v5716, %v5718
  %v5721 = vsub.f32 %v5717, %v5719
  %v5722 = vperm.slane %v5714, 0
  %v5723 = vperm.slane %v5715, 0
  %v5724 = vsub.f32 %v5618, %v5722
  %v5725 = vsub.f32 %v5619, %v5723
  %v5726 = vsub.f32 %v5620, %v5722
  %v5727 = vsub.f32 %v5621, %v5723
  %v5728 = vsub.f32 %v5622, %v5722
  %v5729 = vsub.f32 %v5623, %v5723
  %v5730 = vsub.f32 %v5624, %v5722
  %v5731 = vsub.f32 %v5625, %v5723
  %v5732 = vadd.f32 %v5720, 1e-05
  %v5733 = vadd.f32 %v5721, 1e-05
  %v5734 = vrsqrt.pop %v5732
  %v5735 = vmul.f32 %v5734, %v5732
  %v5736 = vmul.f32 %v5735, %v5734
  %v5737 = vmul.f32 0.5, %v5736
  %v5738 = vsub.f32 1.5, %v5737
  %v5739 = vmul.f32 %v5734, %v5738
  %vm5740 = vweird.f32 %v5732
  %vm5741 = vweird.f32 %v5734
  %vm5742 = vmor %vm5740, %vm5741
  %v5743 = vsel %vm5742, %v5734, %v5739
  %v5744 = vrsqrt.pop %v5733
  %v5745 = vmul.f32 %v5744, %v5733
  %v5746 = vmul.f32 %v5745, %v5744
  %v5747 = vmul.f32 0.5, %v5746
  %v5748 = vsub.f32 1.5, %v5747
  %v5749 = vmul.f32 %v5744, %v5748
  %vm5750 = vweird.f32 %v5733
  %vm5751 = vweird.f32 %v5744
  %vm5752 = vmor %vm5750, %vm5751
  %v5753 = vsel %vm5752, %v5744, %v5749
  %v5754 = vperm.slane %v5743, 0
  %v5755 = vperm.slane %v5753, 0
  %v5756 = vmul.f32 %v5724, %v5754
  %v5757 = vmul.f32 %v5725, %v5755
  %v5758 = vmul.f32 %v5726, %v5754
  %v5759 = vmul.f32 %v5727, %v5755
  %v5760 = vmul.f32 %v5728, %v5754
  %v5761 = vmul.f32 %v5729, %v5755
  %v5762 = vmul.f32 %v5730, %v5754
  %v5763 = vmul.f32 %v5731, %v5755
  %v5764 = vpack.c.bf16 %v5758, %v5756
  %v5765 = vpack.c.bf16 %v5759, %v5757
  %v5766 = vpack.c.bf16 %v5762, %v5760
  %v5767 = vpack.c.bf16 %v5763, %v5761
  %s5768 = scalar_lea.vmem %s4, 1728
  %v5769 = vld [vmem:[%s5768] sm:$0xff]
  %v5770 = vld [vmem:[%s5768 + $0x8] sm:$0xf]
  %v5771 = vld [vmem:[%s5768 + $0xc] sm:$0xff]
  %v5772 = vld [vmem:[%s5768 + $0x14] sm:$0xf]
  %v5773 = vld [vmem:[%s5768 + $0x18] sm:$0xff]
  %v5774 = vld [vmem:[%s5768 + $0x20] sm:$0xf]
  %v5775 = vld [vmem:[%s5768 + $0x24] sm:$0xff]
  %v5776 = vld [vmem:[%s5768 + $0x2c] sm:$0xf]
  %v5777 = vld [vmem:[%s5768 + $0x30] sm:$0xff]
  %v5778 = vld [vmem:[%s5768 + $0x38] sm:$0xf]
  %v5779 = vld [vmem:[%s5768 + $0x3c] sm:$0xff]
  %v5780 = vld [vmem:[%s5768 + $0x44] sm:$0xf]
  %v5781 = vld [vmem:[%s5768 + $0x48] sm:$0xff]
  %v5782 = vld [vmem:[%s5768 + $0x50] sm:$0xf]
  %v5783 = vld [vmem:[%s5768 + $0x54] sm:$0xff]
  %v5784 = vld [vmem:[%s5768 + $0x5c] sm:$0xf]
  %v5785 = vld [vmem:[%s5768 + $0x60] sm:$0xff]
  %v5786 = vld [vmem:[%s5768 + $0x68] sm:$0xf]
  %v5787 = vld [vmem:[%s5768 + $0x6c] sm:$0xff]
  %v5788 = vld [vmem:[%s5768 + $0x74] sm:$0xf]
  %v5789 = vld [vmem:[%s5768 + $0x78] sm:$0xff]
  %v5790 = vld [vmem:[%s5768 + $0x80] sm:$0xf]
  %v5791 = vld [vmem:[%s5768 + $0x84] sm:$0xff]
  %v5792 = vld [vmem:[%s5768 + $0x8c] sm:$0xf]
  %v5793 = vld [vmem:[%s5768 + $0x90] sm:$0xff]
  %v5794 = vld [vmem:[%s5768 + $0x98] sm:$0xf]
  %v5795 = vld [vmem:[%s5768 + $0x9c] sm:$0xff]
  %v5796 = vld [vmem:[%s5768 + $0xa4] sm:$0xf]
  %v5797 = vld [vmem:[%s5768 + $0xa8] sm:$0xff]
  %v5798 = vld [vmem:[%s5768 + $0xb0] sm:$0xf]
  %v5799 = vld [vmem:[%s5768 + $0xb4] sm:$0xff]
  %v5800 = vld [vmem:[%s5768 + $0xbc] sm:$0xf]
  %v5801 = vld [vmem:[%s5768 + $0xc0] sm:$0xff]
  %v5802 = vld [vmem:[%s5768 + $0xc8] sm:$0xf]
  %v5803 = vld [vmem:[%s5768 + $0xcc] sm:$0xff]
  %v5804 = vld [vmem:[%s5768 + $0xd4] sm:$0xf]
  %v5805 = vld [vmem:[%s5768 + $0xd8] sm:$0xff]
  %v5806 = vld [vmem:[%s5768 + $0xe0] sm:$0xf]
  %v5807 = vld [vmem:[%s5768 + $0xe4] sm:$0xff]
  %v5808 = vld [vmem:[%s5768 + $0xec] sm:$0xf]
  %v5809 = vld [vmem:[%s5768 + $0xf0] sm:$0xff]
  %v5810 = vld [vmem:[%s5768 + $0xf8] sm:$0xf]
  %v5811 = vld [vmem:[%s5768 + $0xfc] sm:$0xff]
  %v5812 = vld [vmem:[%s5768 + $0x104] sm:$0xf]
  %v5813 = vld [vmem:[%s5768 + $0x108] sm:$0xff]
  %v5814 = vld [vmem:[%s5768 + $0x110] sm:$0xf]
  %v5815 = vld [vmem:[%s5768 + $0x114] sm:$0xff]
  %v5816 = vld [vmem:[%s5768 + $0x11c] sm:$0xf]
  %s5817 = scalar_lea.vmem %s5, 6
  %v5818 = vld [vmem:[%s5817] ss:$8 sm:$0x7]
  %v5820 = vperm.slane %v5818, 0
  %v5821 = vperm.slane %v5818, 1
  %v5822 = vperm.slane %v5818, 2
  %v5874 = vunpack.c.l.b16 %v5769
  %v5875 = vunpack.c.h.b16 %v5769
  %v5876 = vunpack.c.l.b16 %v5770
  %v5877 = vunpack.c.l.b16 %v5771
  %v5878 = vunpack.c.h.b16 %v5771
  %v5879 = vunpack.c.l.b16 %v5772
  %v5880 = vunpack.c.l.b16 %v5773
  %v5881 = vunpack.c.h.b16 %v5773
  %v5882 = vunpack.c.l.b16 %v5774
  %v5883 = vunpack.c.l.b16 %v5775
  %v5884 = vunpack.c.h.b16 %v5775
  %v5885 = vunpack.c.l.b16 %v5776
  %v5886 = vunpack.c.l.b16 %v5777
  %v5887 = vunpack.c.h.b16 %v5777
  %v5888 = vunpack.c.l.b16 %v5778
  %v5889 = vunpack.c.l.b16 %v5779
  %v5890 = vunpack.c.h.b16 %v5779
  %v5891 = vunpack.c.l.b16 %v5780
  %v5892 = vunpack.c.l.b16 %v5781
  %v5893 = vunpack.c.h.b16 %v5781
  %v5894 = vunpack.c.l.b16 %v5782
  %v5895 = vunpack.c.l.b16 %v5783
  %v5896 = vunpack.c.h.b16 %v5783
  %v5897 = vunpack.c.l.b16 %v5784
  %v5898 = vunpack.c.l.b16 %v5785
  %v5899 = vunpack.c.h.b16 %v5785
  %v5900 = vunpack.c.l.b16 %v5786
  %v5901 = vunpack.c.l.b16 %v5787
  %v5902 = vunpack.c.h.b16 %v5787
  %v5903 = vunpack.c.l.b16 %v5788
  %v5904 = vunpack.c.l.b16 %v5789
  %v5905 = vunpack.c.h.b16 %v5789
  %v5906 = vunpack.c.l.b16 %v5790
  %v5907 = vunpack.c.l.b16 %v5791
  %v5908 = vunpack.c.h.b16 %v5791
  %v5909 = vunpack.c.l.b16 %v5792
  %v5910 = vunpack.c.l.b16 %v5793
  %v5911 = vunpack.c.h.b16 %v5793
  %v5912 = vunpack.c.l.b16 %v5794
  %v5913 = vunpack.c.l.b16 %v5795
  %v5914 = vunpack.c.h.b16 %v5795
  %v5915 = vunpack.c.l.b16 %v5796
  %v5916 = vunpack.c.l.b16 %v5797
  %v5917 = vunpack.c.h.b16 %v5797
  %v5918 = vunpack.c.l.b16 %v5798
  %v5919 = vunpack.c.l.b16 %v5799
  %v5920 = vunpack.c.h.b16 %v5799
  %v5921 = vunpack.c.l.b16 %v5800
  %v5922 = vunpack.c.l.b16 %v5801
  %v5923 = vunpack.c.h.b16 %v5801
  %v5924 = vunpack.c.l.b16 %v5802
  %v5925 = vunpack.c.l.b16 %v5803
  %v5926 = vunpack.c.h.b16 %v5803
  %v5927 = vunpack.c.l.b16 %v5804
  %v5928 = vunpack.c.l.b16 %v5805
  %v5929 = vunpack.c.h.b16 %v5805
  %v5930 = vunpack.c.l.b16 %v5806
  %v5931 = vunpack.c.l.b16 %v5807
  %v5932 = vunpack.c.h.b16 %v5807
  %v5933 = vunpack.c.l.b16 %v5808
  %v5934 = vunpack.c.l.b16 %v5809
  %v5935 = vunpack.c.h.b16 %v5809
  %v5936 = vunpack.c.l.b16 %v5810
  %v5937 = vunpack.c.l.b16 %v5811
  %v5938 = vunpack.c.h.b16 %v5811
  %v5939 = vunpack.c.l.b16 %v5812
  %v5940 = vunpack.c.l.b16 %v5813
  %v5941 = vunpack.c.h.b16 %v5813
  %v5942 = vunpack.c.l.b16 %v5814
  %v5943 = vunpack.c.l.b16 %v5815
  %v5944 = vunpack.c.h.b16 %v5815
  %v5945 = vunpack.c.l.b16 %v5816
  %v5946 = vpack.c.b16 %v5877, %v5874
  %v5947 = vpack.c.b16 %v5878, %v5875
  %v5948 = vpack.c.b16 %v5879, %v5876
  %v5949 = vpack.c.b16 %v5883, %v5880
  %v5950 = vpack.c.b16 %v5884, %v5881
  %v5951 = vpack.c.b16 %v5885, %v5882
  %v5952 = vpack.c.b16 %v5889, %v5886
  %v5953 = vpack.c.b16 %v5890, %v5887
  %v5954 = vpack.c.b16 %v5891, %v5888
  %v5955 = vpack.c.b16 %v5895, %v5892
  %v5956 = vpack.c.b16 %v5896, %v5893
  %v5957 = vpack.c.b16 %v5897, %v5894
  %v5958 = vpack.c.b16 %v5901, %v5898
  %v5959 = vpack.c.b16 %v5902, %v5899
  %v5960 = vpack.c.b16 %v5903, %v5900
  %v5961 = vpack.c.b16 %v5907, %v5904
  %v5962 = vpack.c.b16 %v5908, %v5905
  %v5963 = vpack.c.b16 %v5909, %v5906
  %v5964 = vpack.c.b16 %v5913, %v5910
  %v5965 = vpack.c.b16 %v5914, %v5911
  %v5966 = vpack.c.b16 %v5915, %v5912
  %v5967 = vpack.c.b16 %v5919, %v5916
  %v5968 = vpack.c.b16 %v5920, %v5917
  %v5969 = vpack.c.b16 %v5921, %v5918
  %v5970 = vpack.c.b16 %v5925, %v5922
  %v5971 = vpack.c.b16 %v5926, %v5923
  %v5972 = vpack.c.b16 %v5927, %v5924
  %v5973 = vpack.c.b16 %v5931, %v5928
  %v5974 = vpack.c.b16 %v5932, %v5929
  %v5975 = vpack.c.b16 %v5933, %v5930
  %v5976 = vpack.c.b16 %v5937, %v5934
  %v5977 = vpack.c.b16 %v5938, %v5935
  %v5978 = vpack.c.b16 %v5939, %v5936
  %v5979 = vpack.c.b16 %v5943, %v5940
  %v5980 = vpack.c.b16 %v5944, %v5941
  %v5981 = vpack.c.b16 %v5945, %v5942
  %v6019 = vsel %vm43, %v5765, 0
  %v6022 = vsel %vm43, %v5767, 0
  %6024 = vmatpush.bf16.msra.mxu0 %v5967
  %6025 = vmatpush.bf16.msra.mxu0 %v5964
  %6026 = vmatpush.bf16.msra.mxu0 %v5961
  %6027 = vmatpush.bf16.msra.mxu0 %v5958
  %6028 = vmatpush.bf16.msra.mxu0 %v5955
  %6029 = vmatpush.bf16.msra.mxu0 %v5952
  %6030 = vmatpush.bf16.msra.mxu0 %v5949
  %6031 = vmatpush.bf16.msra.mxu0 %v5946
  %6032 = vmatmul.bf16.gmra.mxu0 %v5764
  %v6033 = vpop.f32.mrf.mxu0
  %v6034 = vadd.f32 %v5820, %v6033
  %v6035 = vpop.f32.mrf.mxu0
  %v6036 = vadd.f32 %v5820, %v6035
  %6037 = vmatmul.bf16.gmra.mxu0 %v5766
  %v6038 = vpop.f32.mrf.mxu0
  %v6039 = vadd.f32 %v5820, %v6038
  %v6040 = vpop.f32.mrf.mxu0
  %v6041 = vadd.f32 %v5820, %v6040
  %6042 = vdwg.mxu0
  %6043 = vmatpush.bf16.msra.mxu0 0
  %6044 = vmatpush.bf16.msra.mxu0 0
  %6045 = vmatpush.bf16.msra.mxu0 0
  %6046 = vmatpush.bf16.msra.mxu0 0
  %6047 = vmatpush.bf16.msra.mxu0 %v5979
  %6048 = vmatpush.bf16.msra.mxu0 %v5976
  %6049 = vmatpush.bf16.msra.mxu0 %v5973
  %6050 = vmatpush.bf16.msra.mxu0 %v5970
  %6051 = vmatmul.bf16.gmra.mxu0 %v6019
  %v6052 = vpop.f32.mrf.mxu0
  %v6053 = vadd.f32 %v6034, %v6052
  %v6054 = vpop.f32.mrf.mxu0
  %v6055 = vadd.f32 %v6036, %v6054
  %6056 = vmatmul.bf16.gmra.mxu0 %v6022
  %v6057 = vpop.f32.mrf.mxu0
  %v6058 = vadd.f32 %v6039, %v6057
  %v6059 = vpop.f32.mrf.mxu0
  %v6060 = vadd.f32 %v6041, %v6059
  %6061 = vdwg.mxu0
  %6062 = vmatpush.bf16.msra.mxu0 %v5968
  %6063 = vmatpush.bf16.msra.mxu0 %v5965
  %6064 = vmatpush.bf16.msra.mxu0 %v5962
  %6065 = vmatpush.bf16.msra.mxu0 %v5959
  %6066 = vmatpush.bf16.msra.mxu0 %v5956
  %6067 = vmatpush.bf16.msra.mxu0 %v5953
  %6068 = vmatpush.bf16.msra.mxu0 %v5950
  %6069 = vmatpush.bf16.msra.mxu0 %v5947
  %6070 = vmatmul.bf16.gmra.mxu0 %v5764
  %v6071 = vpop.f32.mrf.mxu0
  %v6072 = vadd.f32 %v5821, %v6071
  %v6073 = vpop.f32.mrf.mxu0
  %v6074 = vadd.f32 %v5821, %v6073
  %6075 = vmatmul.bf16.gmra.mxu0 %v5766
  %v6076 = vpop.f32.mrf.mxu0
  %v6077 = vadd.f32 %v5821, %v6076
  %v6078 = vpop.f32.mrf.mxu0
  %v6079 = vadd.f32 %v5821, %v6078
  %6080 = vdwg.mxu0
  %6081 = vmatpush.bf16.msra.mxu0 0
  %6082 = vmatpush.bf16.msra.mxu0 0
  %6083 = vmatpush.bf16.msra.mxu0 0
  %6084 = vmatpush.bf16.msra.mxu0 0
  %6085 = vmatpush.bf16.msra.mxu0 %v5980
  %6086 = vmatpush.bf16.msra.mxu0 %v5977
  %6087 = vmatpush.bf16.msra.mxu0 %v5974
  %6088 = vmatpush.bf16.msra.mxu0 %v5971
  %6089 = vmatmul.bf16.gmra.mxu0 %v6019
  %v6090 = vpop.f32.mrf.mxu0
  %v6091 = vadd.f32 %v6072, %v6090
  %v6092 = vpop.f32.mrf.mxu0
  %v6093 = vadd.f32 %v6074, %v6092
  %6094 = vmatmul.bf16.gmra.mxu0 %v6022
  %v6095 = vpop.f32.mrf.mxu0
  %v6096 = vadd.f32 %v6077, %v6095
  %v6097 = vpop.f32.mrf.mxu0
  %v6098 = vadd.f32 %v6079, %v6097
  %6099 = vdwg.mxu0
  %6100 = vmatpush.bf16.msra.mxu0 %v5969
  %6101 = vmatpush.bf16.msra.mxu0 %v5966
  %6102 = vmatpush.bf16.msra.mxu0 %v5963
  %6103 = vmatpush.bf16.msra.mxu0 %v5960
  %6104 = vmatpush.bf16.msra.mxu0 %v5957
  %6105 = vmatpush.bf16.msra.mxu0 %v5954
  %6106 = vmatpush.bf16.msra.mxu0 %v5951
  %6107 = vmatpush.bf16.msra.mxu0 %v5948
  %6108 = vmatmul.bf16.gmra.mxu0 %v5764
  %v6109 = vpop.f32.mrf.mxu0
  %v6110 = vadd.f32 %v5822, %v6109
  %v6111 = vpop.f32.mrf.mxu0
  %v6112 = vadd.f32 %v5822, %v6111
  %6113 = vmatmul.bf16.gmra.mxu0 %v5766
  %v6114 = vpop.f32.mrf.mxu0
  %v6115 = vadd.f32 %v5822, %v6114
  %v6116 = vpop.f32.mrf.mxu0
  %v6117 = vadd.f32 %v5822, %v6116
  %6118 = vdwg.mxu0
  %6119 = vmatpush.bf16.msra.mxu0 0
  %6120 = vmatpush.bf16.msra.mxu0 0
  %6121 = vmatpush.bf16.msra.mxu0 0
  %6122 = vmatpush.bf16.msra.mxu0 0
  %6123 = vmatpush.bf16.msra.mxu0 %v5981
  %6124 = vmatpush.bf16.msra.mxu0 %v5978
  %6125 = vmatpush.bf16.msra.mxu0 %v5975
  %6126 = vmatpush.bf16.msra.mxu0 %v5972
  %6127 = vmatmul.bf16.gmra.mxu0 %v6019
  %v6128 = vpop.f32.mrf.mxu0
  %v6129 = vadd.f32 %v6110, %v6128
  %v6130 = vpop.f32.mrf.mxu0
  %v6131 = vadd.f32 %v6112, %v6130
  %6132 = vmatmul.bf16.gmra.mxu0 %v6022
  %v6133 = vpop.f32.mrf.mxu0
  %v6134 = vadd.f32 %v6115, %v6133
  %v6135 = vpop.f32.mrf.mxu0
  %v6136 = vadd.f32 %v6117, %v6135
  %6137 = vdwg.mxu0
  %v6138 = vmul.f32 %v6053, 0.3
  %v6139 = vmul.f32 %v6091, 0.3
  %v6140 = vmul.f32 %v6129, 0.3
  %v6141 = vmul.f32 %v6055, 0.3
  %v6142 = vmul.f32 %v6093, 0.3
  %v6143 = vmul.f32 %v6131, 0.3
  %v6144 = vmul.f32 %v6058, 0.3
  %v6145 = vmul.f32 %v6096, 0.3
  %v6146 = vmul.f32 %v6134, 0.3
  %v6147 = vmul.f32 %v6060, 0.3
  %v6148 = vmul.f32 %v6098, 0.3
  %v6149 = vmul.f32 %v6136, 0.3
  %v6150 = vmax.f32 %v6053, %v6138
  %v6151 = vmax.f32 %v6091, %v6139
  %v6152 = vmax.f32 %v6129, %v6140
  %v6153 = vmax.f32 %v6055, %v6141
  %v6154 = vmax.f32 %v6093, %v6142
  %v6155 = vmax.f32 %v6131, %v6143
  %v6156 = vmax.f32 %v6058, %v6144
  %v6157 = vmax.f32 %v6096, %v6145
  %v6158 = vmax.f32 %v6134, %v6146
  %v6159 = vmax.f32 %v6060, %v6147
  %v6160 = vmax.f32 %v6098, %v6148
  %v6161 = vmax.f32 %v6136, %v6149
  %v6162 = vpack.c.bf16 %v6153, %v6150
  %v6163 = vpack.c.bf16 %v6154, %v6151
  %v6164 = vpack.c.bf16 %v6155, %v6152
  %v6165 = vpack.c.bf16 %v6159, %v6156
  %v6166 = vpack.c.bf16 %v6160, %v6157
  %v6167 = vpack.c.bf16 %v6161, %v6158
  %s6168 = scalar_lea.vmem %s6, 1152
  %v6169 = vld [vmem:[%s6168] sm:$0xff]
  %v6170 = vld [vmem:[%s6168 + $0x8] sm:$0xff]
  %v6171 = vld [vmem:[%s6168 + $0x10] sm:$0xff]
  %v6172 = vld [vmem:[%s6168 + $0x18] sm:$0xff]
  %v6173 = vld [vmem:[%s6168 + $0x20] sm:$0xff]
  %v6174 = vld [vmem:[%s6168 + $0x28] sm:$0xff]
  %v6175 = vld [vmem:[%s6168 + $0x30] sm:$0xff]
  %v6176 = vld [vmem:[%s6168 + $0x38] sm:$0xff]
  %v6177 = vld [vmem:[%s6168 + $0x40] sm:$0xff]
  %v6178 = vld [vmem:[%s6168 + $0x48] sm:$0xff]
  %v6179 = vld [vmem:[%s6168 + $0x50] sm:$0xff]
  %v6180 = vld [vmem:[%s6168 + $0x58] sm:$0xff]
  %v6181 = vld [vmem:[%s6168 + $0x60] sm:$0xff]
  %v6182 = vld [vmem:[%s6168 + $0x68] sm:$0xff]
  %v6183 = vld [vmem:[%s6168 + $0x70] sm:$0xff]
  %v6184 = vld [vmem:[%s6168 + $0x78] sm:$0xff]
  %v6185 = vld [vmem:[%s6168 + $0x80] sm:$0xff]
  %v6186 = vld [vmem:[%s6168 + $0x88] sm:$0xff]
  %v6187 = vld [vmem:[%s6168 + $0x90] sm:$0xff]
  %v6188 = vld [vmem:[%s6168 + $0x98] sm:$0xff]
  %v6189 = vld [vmem:[%s6168 + $0xa0] sm:$0xff]
  %v6190 = vld [vmem:[%s6168 + $0xa8] sm:$0xff]
  %v6191 = vld [vmem:[%s6168 + $0xb0] sm:$0xff]
  %v6192 = vld [vmem:[%s6168 + $0xb8] sm:$0xff]
  %v6193 = vld [vmem:[%s6168 + $0xc0] sm:$0xff]
  %v6194 = vld [vmem:[%s6168 + $0xc8] sm:$0xff]
  %v6195 = vld [vmem:[%s6168 + $0xd0] sm:$0xff]
  %v6196 = vld [vmem:[%s6168 + $0xd8] sm:$0xff]
  %v6197 = vld [vmem:[%s6168 + $0xe0] sm:$0xff]
  %v6198 = vld [vmem:[%s6168 + $0xe8] sm:$0xff]
  %v6199 = vld [vmem:[%s6168 + $0xf0] sm:$0xff]
  %v6200 = vld [vmem:[%s6168 + $0xf8] sm:$0xff]
  %v6201 = vld [vmem:[%s6168 + $0x100] sm:$0xff]
  %v6202 = vld [vmem:[%s6168 + $0x108] sm:$0xff]
  %v6203 = vld [vmem:[%s6168 + $0x110] sm:$0xff]
  %v6204 = vld [vmem:[%s6168 + $0x118] sm:$0xff]
  %v6205 = vld [vmem:[%s6168 + $0x120] sm:$0xff]
  %v6206 = vld [vmem:[%s6168 + $0x128] sm:$0xff]
  %v6207 = vld [vmem:[%s6168 + $0x130] sm:$0xff]
  %v6208 = vld [vmem:[%s6168 + $0x138] sm:$0xff]
  %v6209 = vld [vmem:[%s6168 + $0x140] sm:$0xff]
  %v6210 = vld [vmem:[%s6168 + $0x148] sm:$0xff]
  %v6211 = vld [vmem:[%s6168 + $0x150] sm:$0xff]
  %v6212 = vld [vmem:[%s6168 + $0x158] sm:$0xff]
  %v6213 = vld [vmem:[%s6168 + $0x160] sm:$0xff]
  %v6214 = vld [vmem:[%s6168 + $0x168] sm:$0xff]
  %v6215 = vld [vmem:[%s6168 + $0x170] sm:$0xff]
  %v6216 = vld [vmem:[%s6168 + $0x178] sm:$0xff]
  %s6217 = scalar_lea.vmem %s7, 3
  %v6218 = vld [vmem:[%s6217] ss:$4 sm:$0x3]
  %v6220 = vperm.slane %v6218, 0
  %v6221 = vperm.slane %v6218, 1
  %v6272 = vunpack.c.l.b16 %v6169
  %v6273 = vunpack.c.h.b16 %v6169
  %v6274 = vunpack.c.l.b16 %v6170
  %v6275 = vunpack.c.h.b16 %v6170
  %v6276 = vunpack.c.l.b16 %v6171
  %v6277 = vunpack.c.h.b16 %v6171
  %v6278 = vunpack.c.l.b16 %v6172
  %v6279 = vunpack.c.h.b16 %v6172
  %v6280 = vunpack.c.l.b16 %v6173
  %v6281 = vunpack.c.h.b16 %v6173
  %v6282 = vunpack.c.l.b16 %v6174
  %v6283 = vunpack.c.h.b16 %v6174
  %v6284 = vunpack.c.l.b16 %v6175
  %v6285 = vunpack.c.h.b16 %v6175
  %v6286 = vunpack.c.l.b16 %v6176
  %v6287 = vunpack.c.h.b16 %v6176
  %v6288 = vunpack.c.l.b16 %v6177
  %v6289 = vunpack.c.h.b16 %v6177
  %v6290 = vunpack.c.l.b16 %v6178
  %v6291 = vunpack.c.h.b16 %v6178
  %v6292 = vunpack.c.l.b16 %v6179
  %v6293 = vunpack.c.h.b16 %v6179
  %v6294 = vunpack.c.l.b16 %v6180
  %v6295 = vunpack.c.h.b16 %v6180
  %v6296 = vunpack.c.l.b16 %v6181
  %v6297 = vunpack.c.h.b16 %v6181
  %v6298 = vunpack.c.l.b16 %v6182
  %v6299 = vunpack.c.h.b16 %v6182
  %v6300 = vunpack.c.l.b16 %v6183
  %v6301 = vunpack.c.h.b16 %v6183
  %v6302 = vunpack.c.l.b16 %v6184
  %v6303 = vunpack.c.h.b16 %v6184
  %v6304 = vunpack.c.l.b16 %v6185
  %v6305 = vunpack.c.h.b16 %v6185
  %v6306 = vunpack.c.l.b16 %v6186
  %v6307 = vunpack.c.h.b16 %v6186
  %v6308 = vunpack.c.l.b16 %v6187
  %v6309 = vunpack.c.h.b16 %v6187
  %v6310 = vunpack.c.l.b16 %v6188
  %v6311 = vunpack.c.h.b16 %v6188
  %v6312 = vunpack.c.l.b16 %v6189
  %v6313 = vunpack.c.h.b16 %v6189
  %v6314 = vunpack.c.l.b16 %v6190
  %v6315 = vunpack.c.h.b16 %v6190
  %v6316 = vunpack.c.l.b16 %v6191
  %v6317 = vunpack.c.h.b16 %v6191
  %v6318 = vunpack.c.l.b16 %v6192
  %v6319 = vunpack.c.h.b16 %v6192
  %v6320 = vunpack.c.l.b16 %v6193
  %v6321 = vunpack.c.h.b16 %v6193
  %v6322 = vunpack.c.l.b16 %v6194
  %v6323 = vunpack.c.h.b16 %v6194
  %v6324 = vunpack.c.l.b16 %v6195
  %v6325 = vunpack.c.h.b16 %v6195
  %v6326 = vunpack.c.l.b16 %v6196
  %v6327 = vunpack.c.h.b16 %v6196
  %v6328 = vunpack.c.l.b16 %v6197
  %v6329 = vunpack.c.h.b16 %v6197
  %v6330 = vunpack.c.l.b16 %v6198
  %v6331 = vunpack.c.h.b16 %v6198
  %v6332 = vunpack.c.l.b16 %v6199
  %v6333 = vunpack.c.h.b16 %v6199
  %v6334 = vunpack.c.l.b16 %v6200
  %v6335 = vunpack.c.h.b16 %v6200
  %v6336 = vunpack.c.l.b16 %v6201
  %v6337 = vunpack.c.h.b16 %v6201
  %v6338 = vunpack.c.l.b16 %v6202
  %v6339 = vunpack.c.h.b16 %v6202
  %v6340 = vunpack.c.l.b16 %v6203
  %v6341 = vunpack.c.h.b16 %v6203
  %v6342 = vunpack.c.l.b16 %v6204
  %v6343 = vunpack.c.h.b16 %v6204
  %v6344 = vunpack.c.l.b16 %v6205
  %v6345 = vunpack.c.h.b16 %v6205
  %v6346 = vunpack.c.l.b16 %v6206
  %v6347 = vunpack.c.h.b16 %v6206
  %v6348 = vunpack.c.l.b16 %v6207
  %v6349 = vunpack.c.h.b16 %v6207
  %v6350 = vunpack.c.l.b16 %v6208
  %v6351 = vunpack.c.h.b16 %v6208
  %v6352 = vunpack.c.l.b16 %v6209
  %v6353 = vunpack.c.h.b16 %v6209
  %v6354 = vunpack.c.l.b16 %v6210
  %v6355 = vunpack.c.h.b16 %v6210
  %v6356 = vunpack.c.l.b16 %v6211
  %v6357 = vunpack.c.h.b16 %v6211
  %v6358 = vunpack.c.l.b16 %v6212
  %v6359 = vunpack.c.h.b16 %v6212
  %v6360 = vunpack.c.l.b16 %v6213
  %v6361 = vunpack.c.h.b16 %v6213
  %v6362 = vunpack.c.l.b16 %v6214
  %v6363 = vunpack.c.h.b16 %v6214
  %v6364 = vunpack.c.l.b16 %v6215
  %v6365 = vunpack.c.h.b16 %v6215
  %v6366 = vunpack.c.l.b16 %v6216
  %v6367 = vunpack.c.h.b16 %v6216
  %v6368 = vpack.c.b16 %v6274, %v6272
  %v6369 = vpack.c.b16 %v6275, %v6273
  %v6370 = vpack.c.b16 %v6278, %v6276
  %v6371 = vpack.c.b16 %v6279, %v6277
  %v6372 = vpack.c.b16 %v6282, %v6280
  %v6373 = vpack.c.b16 %v6283, %v6281
  %v6374 = vpack.c.b16 %v6286, %v6284
  %v6375 = vpack.c.b16 %v6287, %v6285
  %v6376 = vpack.c.b16 %v6290, %v6288
  %v6377 = vpack.c.b16 %v6291, %v6289
  %v6378 = vpack.c.b16 %v6294, %v6292
  %v6379 = vpack.c.b16 %v6295, %v6293
  %v6380 = vpack.c.b16 %v6298, %v6296
  %v6381 = vpack.c.b16 %v6299, %v6297
  %v6382 = vpack.c.b16 %v6302, %v6300
  %v6383 = vpack.c.b16 %v6303, %v6301
  %v6384 = vpack.c.b16 %v6306, %v6304
  %v6385 = vpack.c.b16 %v6307, %v6305
  %v6386 = vpack.c.b16 %v6310, %v6308
  %v6387 = vpack.c.b16 %v6311, %v6309
  %v6388 = vpack.c.b16 %v6314, %v6312
  %v6389 = vpack.c.b16 %v6315, %v6313
  %v6390 = vpack.c.b16 %v6318, %v6316
  %v6391 = vpack.c.b16 %v6319, %v6317
  %v6392 = vpack.c.b16 %v6322, %v6320
  %v6393 = vpack.c.b16 %v6323, %v6321
  %v6394 = vpack.c.b16 %v6326, %v6324
  %v6395 = vpack.c.b16 %v6327, %v6325
  %v6396 = vpack.c.b16 %v6330, %v6328
  %v6397 = vpack.c.b16 %v6331, %v6329
  %v6398 = vpack.c.b16 %v6334, %v6332
  %v6399 = vpack.c.b16 %v6335, %v6333
  %v6400 = vpack.c.b16 %v6338, %v6336
  %v6401 = vpack.c.b16 %v6339, %v6337
  %v6402 = vpack.c.b16 %v6342, %v6340
  %v6403 = vpack.c.b16 %v6343, %v6341
  %v6404 = vpack.c.b16 %v6346, %v6344
  %v6405 = vpack.c.b16 %v6347, %v6345
  %v6406 = vpack.c.b16 %v6350, %v6348
  %v6407 = vpack.c.b16 %v6351, %v6349
  %v6408 = vpack.c.b16 %v6354, %v6352
  %v6409 = vpack.c.b16 %v6355, %v6353
  %v6410 = vpack.c.b16 %v6358, %v6356
  %v6411 = vpack.c.b16 %v6359, %v6357
  %v6412 = vpack.c.b16 %v6362, %v6360
  %v6413 = vpack.c.b16 %v6363, %v6361
  %v6414 = vpack.c.b16 %v6366, %v6364
  %v6415 = vpack.c.b16 %v6367, %v6365
  %6464 = vmatpush.bf16.msra.mxu0 %v6382
  %6465 = vmatpush.bf16.msra.mxu0 %v6380
  %6466 = vmatpush.bf16.msra.mxu0 %v6378
  %6467 = vmatpush.bf16.msra.mxu0 %v6376
  %6468 = vmatpush.bf16.msra.mxu0 %v6374
  %6469 = vmatpush.bf16.msra.mxu0 %v6372
  %6470 = vmatpush.bf16.msra.mxu0 %v6370
  %6471 = vmatpush.bf16.msra.mxu0 %v6368
  %6472 = vmatmul.bf16.gmra.mxu0 %v6162
  %v6473 = vpop.f32.mrf.mxu0
  %v6474 = vadd.f32 %v6220, %v6473
  %v6475 = vpop.f32.mrf.mxu0
  %v6476 = vadd.f32 %v6220, %v6475
  %6477 = vmatmul.bf16.gmra.mxu0 %v6165
  %v6478 = vpop.f32.mrf.mxu0
  %v6479 = vadd.f32 %v6220, %v6478
  %v6480 = vpop.f32.mrf.mxu0
  %v6481 = vadd.f32 %v6220, %v6480
  %6482 = vdwg.mxu0
  %6483 = vmatpush.bf16.msra.mxu0 %v6398
  %6484 = vmatpush.bf16.msra.mxu0 %v6396
  %6485 = vmatpush.bf16.msra.mxu0 %v6394
  %6486 = vmatpush.bf16.msra.mxu0 %v6392
  %6487 = vmatpush.bf16.msra.mxu0 %v6390
  %6488 = vmatpush.bf16.msra.mxu0 %v6388
  %6489 = vmatpush.bf16.msra.mxu0 %v6386
  %6490 = vmatpush.bf16.msra.mxu0 %v6384
  %6491 = vmatmul.bf16.gmra.mxu0 %v6163
  %v6492 = vpop.f32.mrf.mxu0
  %v6493 = vadd.f32 %v6474, %v6492
  %v6494 = vpop.f32.mrf.mxu0
  %v6495 = vadd.f32 %v6476, %v6494
  %6496 = vmatmul.bf16.gmra.mxu0 %v6166
  %v6497 = vpop.f32.mrf.mxu0
  %v6498 = vadd.f32 %v6479, %v6497
  %v6499 = vpop.f32.mrf.mxu0
  %v6500 = vadd.f32 %v6481, %v6499
  %6501 = vdwg.mxu0
  %6502 = vmatpush.bf16.msra.mxu0 %v6414
  %6503 = vmatpush.bf16.msra.mxu0 %v6412
  %6504 = vmatpush.bf16.msra.mxu0 %v6410
  %6505 = vmatpush.bf16.msra.mxu0 %v6408
  %6506 = vmatpush.bf16.msra.mxu0 %v6406
  %6507 = vmatpush.bf16.msra.mxu0 %v6404
  %6508 = vmatpush.bf16.msra.mxu0 %v6402
  %6509 = vmatpush.bf16.msra.mxu0 %v6400
  %6510 = vmatmul.bf16.gmra.mxu0 %v6164
  %v6511 = vpop.f32.mrf.mxu0
  %v6512 = vadd.f32 %v6493, %v6511
  %v6513 = vpop.f32.mrf.mxu0
  %v6514 = vadd.f32 %v6495, %v6513
  %6515 = vmatmul.bf16.gmra.mxu0 %v6167
  %v6516 = vpop.f32.mrf.mxu0
  %v6517 = vadd.f32 %v6498, %v6516
  %v6518 = vpop.f32.mrf.mxu0
  %v6519 = vadd.f32 %v6500, %v6518
  %6520 = vdwg.mxu0
  %6521 = vmatpush.bf16.msra.mxu0 %v6383
  %6522 = vmatpush.bf16.msra.mxu0 %v6381
  %6523 = vmatpush.bf16.msra.mxu0 %v6379
  %6524 = vmatpush.bf16.msra.mxu0 %v6377
  %6525 = vmatpush.bf16.msra.mxu0 %v6375
  %6526 = vmatpush.bf16.msra.mxu0 %v6373
  %6527 = vmatpush.bf16.msra.mxu0 %v6371
  %6528 = vmatpush.bf16.msra.mxu0 %v6369
  %6529 = vmatmul.bf16.gmra.mxu0 %v6162
  %v6530 = vpop.f32.mrf.mxu0
  %v6531 = vadd.f32 %v6221, %v6530
  %v6532 = vpop.f32.mrf.mxu0
  %v6533 = vadd.f32 %v6221, %v6532
  %6534 = vmatmul.bf16.gmra.mxu0 %v6165
  %v6535 = vpop.f32.mrf.mxu0
  %v6536 = vadd.f32 %v6221, %v6535
  %v6537 = vpop.f32.mrf.mxu0
  %v6538 = vadd.f32 %v6221, %v6537
  %6539 = vdwg.mxu0
  %6540 = vmatpush.bf16.msra.mxu0 %v6399
  %6541 = vmatpush.bf16.msra.mxu0 %v6397
  %6542 = vmatpush.bf16.msra.mxu0 %v6395
  %6543 = vmatpush.bf16.msra.mxu0 %v6393
  %6544 = vmatpush.bf16.msra.mxu0 %v6391
  %6545 = vmatpush.bf16.msra.mxu0 %v6389
  %6546 = vmatpush.bf16.msra.mxu0 %v6387
  %6547 = vmatpush.bf16.msra.mxu0 %v6385
  %6548 = vmatmul.bf16.gmra.mxu0 %v6163
  %v6549 = vpop.f32.mrf.mxu0
  %v6550 = vadd.f32 %v6531, %v6549
  %v6551 = vpop.f32.mrf.mxu0
  %v6552 = vadd.f32 %v6533, %v6551
  %6553 = vmatmul.bf16.gmra.mxu0 %v6166
  %v6554 = vpop.f32.mrf.mxu0
  %v6555 = vadd.f32 %v6536, %v6554
  %v6556 = vpop.f32.mrf.mxu0
  %v6557 = vadd.f32 %v6538, %v6556
  %6558 = vdwg.mxu0
  %6559 = vmatpush.bf16.msra.mxu0 %v6415
  %6560 = vmatpush.bf16.msra.mxu0 %v6413
  %6561 = vmatpush.bf16.msra.mxu0 %v6411
  %6562 = vmatpush.bf16.msra.mxu0 %v6409
  %6563 = vmatpush.bf16.msra.mxu0 %v6407
  %6564 = vmatpush.bf16.msra.mxu0 %v6405
  %6565 = vmatpush.bf16.msra.mxu0 %v6403
  %6566 = vmatpush.bf16.msra.mxu0 %v6401
  %6567 = vmatmul.bf16.gmra.mxu0 %v6164
  %v6568 = vpop.f32.mrf.mxu0
  %v6569 = vadd.f32 %v6550, %v6568
  %v6570 = vpop.f32.mrf.mxu0
  %v6571 = vadd.f32 %v6552, %v6570
  %6572 = vmatmul.bf16.gmra.mxu0 %v6167
  %v6573 = vpop.f32.mrf.mxu0
  %v6574 = vadd.f32 %v6555, %v6573
  %v6575 = vpop.f32.mrf.mxu0
  %v6576 = vadd.f32 %v6557, %v6575
  %6577 = vdwg.mxu0
  %v6578 = vmul.f32 %v6512, 0.3
  %v6579 = vmul.f32 %v6569, 0.3
  %v6580 = vmul.f32 %v6514, 0.3
  %v6581 = vmul.f32 %v6571, 0.3
  %v6582 = vmul.f32 %v6517, 0.3
  %v6583 = vmul.f32 %v6574, 0.3
  %v6584 = vmul.f32 %v6519, 0.3
  %v6585 = vmul.f32 %v6576, 0.3
  %v6586 = vmax.f32 %v6512, %v6578
  %v6587 = vmax.f32 %v6569, %v6579
  %v6588 = vmax.f32 %v6514, %v6580
  %v6589 = vmax.f32 %v6571, %v6581
  %v6590 = vmax.f32 %v6517, %v6582
  %v6591 = vmax.f32 %v6574, %v6583
  %v6592 = vmax.f32 %v6519, %v6584
  %v6593 = vmax.f32 %v6576, %v6585
  %v6594 = vadd.f32 %v5618, %v6586
  %v6595 = vadd.f32 %v5619, %v6587
  %v6596 = vadd.f32 %v5620, %v6588
  %v6597 = vadd.f32 %v5621, %v6589
  %v6598 = vadd.f32 %v5622, %v6590
  %v6599 = vadd.f32 %v5623, %v6591
  %v6600 = vadd.f32 %v5624, %v6592
  %v6601 = vadd.f32 %v5625, %v6593
  %6602 = vmatpush.msra.mxu0 0.0
  %6603 = vmatpush.msra.mxu0 0.0
  %6604 = vmatpush.msra.mxu0 0.0
  %6605 = vmatpush.msra.mxu0 0.0
  %6606 = vmatpush.msra.mxu0 0.0
  %6607 = vmatpush.msra.mxu0 0.0
  %6608 = vmatpush.msra.mxu0 0.0
  %6609 = vmatpush.msra.mxu0 0.0
  %6610 = vmatpush.msra.mxu0 0.0
  %6611 = vmatpush.msra.mxu0 0.0
  %6612 = vmatpush.msra.mxu0 0.0
  %6613 = vmatpush.msra.mxu0 0.0
  %6614 = vmatpush.msra.mxu0 %v6600
  %6615 = vmatpush.msra.mxu0 %v6598
  %6616 = vmatpush.msra.mxu0 %v6596
  %6617 = vmatpush.msra.mxu0 %v6594
  %6618 = vmatmul.f32.gmra.mxu0 %v660
  %v6619 = vpop.f32.mrf.mxu0
  %v6620 = vadd.f32 0.0, %v6619
  %6621 = vdwg.mxu0
  %6622 = vmatpush.msra.mxu0 0.0
  %6623 = vmatpush.msra.mxu0 0.0
  %6624 = vmatpush.msra.mxu0 0.0
  %6625 = vmatpush.msra.mxu0 0.0
  %6626 = vmatpush.msra.mxu0 0.0
  %6627 = vmatpush.msra.mxu0 0.0
  %6628 = vmatpush.msra.mxu0 0.0
  %6629 = vmatpush.msra.mxu0 0.0
  %6630 = vmatpush.msra.mxu0 0.0
  %6631 = vmatpush.msra.mxu0 0.0
  %6632 = vmatpush.msra.mxu0 0.0
  %6633 = vmatpush.msra.mxu0 0.0
  %6634 = vmatpush.msra.mxu0 %v6601
  %6635 = vmatpush.msra.mxu0 %v6599
  %6636 = vmatpush.msra.mxu0 %v6597
  %6637 = vmatpush.msra.mxu0 %v6595
  %6638 = vmatmul.f32.gmra.mxu0 %v660
  %v6639 = vpop.f32.mrf.mxu0
  %v6640 = vadd.f32 0.0, %v6639
  %6641 = vdwg.mxu0
  %v6642 = vmul.f32 %v6594, %v6594
  %v6643 = vmul.f32 %v6595, %v6595
  %v6644 = vmul.f32 %v6596, %v6596
  %v6645 = vmul.f32 %v6597, %v6597
  %v6646 = vmul.f32 %v6598, %v6598
  %v6647 = vmul.f32 %v6599, %v6599
  %v6648 = vmul.f32 %v6600, %v6600
  %v6649 = vmul.f32 %v6601, %v6601
  %6650 = vmatpush.msra.mxu0 0.0
  %6651 = vmatpush.msra.mxu0 0.0
  %6652 = vmatpush.msra.mxu0 0.0
  %6653 = vmatpush.msra.mxu0 0.0
  %6654 = vmatpush.msra.mxu0 0.0
  %6655 = vmatpush.msra.mxu0 0.0
  %6656 = vmatpush.msra.mxu0 0.0
  %6657 = vmatpush.msra.mxu0 0.0
  %6658 = vmatpush.msra.mxu0 0.0
  %6659 = vmatpush.msra.mxu0 0.0
  %6660 = vmatpush.msra.mxu0 0.0
  %6661 = vmatpush.msra.mxu0 0.0
  %6662 = vmatpush.msra.mxu0 %v6648
  %6663 = vmatpush.msra.mxu0 %v6646
  %6664 = vmatpush.msra.mxu0 %v6644
  %6665 = vmatpush.msra.mxu0 %v6642
  %6666 = vmatmul.f32.gmra.mxu0 %v660
  %v6667 = vpop.f32.mrf.mxu0
  %v6668 = vadd.f32 0.0, %v6667
  %6669 = vdwg.mxu0
  %6670 = vmatpush.msra.mxu0 0.0
  %6671 = vmatpush.msra.mxu0 0.0
  %6672 = vmatpush.msra.mxu0 0.0
  %6673 = vmatpush.msra.mxu0 0.0
  %6674 = vmatpush.msra.mxu0 0.0
  %6675 = vmatpush.msra.mxu0 0.0
  %6676 = vmatpush.msra.mxu0 0.0
  %6677 = vmatpush.msra.mxu0 0.0
  %6678 = vmatpush.msra.mxu0 0.0
  %6679 = vmatpush.msra.mxu0 0.0
  %6680 = vmatpush.msra.mxu0 0.0
  %6681 = vmatpush.msra.mxu0 0.0
  %6682 = vmatpush.msra.mxu0 %v6649
  %6683 = vmatpush.msra.mxu0 %v6647
  %6684 = vmatpush.msra.mxu0 %v6645
  %6685 = vmatpush.msra.mxu0 %v6643
  %6686 = vmatmul.f32.gmra.mxu0 %v660
  %v6687 = vpop.f32.mrf.mxu0
  %v6688 = vadd.f32 0.0, %v6687
  %6689 = vdwg.mxu0
  %v6690 = vmul.f32 %v6620, 0.03125
  %v6691 = vmul.f32 %v6640, 0.03125
  %v6692 = vmul.f32 %v6668, 0.03125
  %v6693 = vmul.f32 %v6688, 0.03125
  %v6694 = vmul.f32 %v6690, %v6690
  %v6695 = vmul.f32 %v6691, %v6691
  %v6696 = vsub.f32 %v6692, %v6694
  %v6697 = vsub.f32 %v6693, %v6695
  %v6698 = vperm.slane %v6690, 0
  %v6699 = vperm.slane %v6691, 0
  %v6700 = vsub.f32 %v6594, %v6698
  %v6701 = vsub.f32 %v6595, %v6699
  %v6702 = vsub.f32 %v6596, %v6698
  %v6703 = vsub.f32 %v6597, %v6699
  %v6704 = vsub.f32 %v6598, %v6698
  %v6705 = vsub.f32 %v6599, %v6699
  %v6706 = vsub.f32 %v6600, %v6698
  %v6707 = vsub.f32 %v6601, %v6699
  %v6708 = vadd.f32 %v6696, 1e-05
  %v6709 = vadd.f32 %v6697, 1e-05
  %v6710 = vrsqrt.pop %v6708
  %v6711 = vmul.f32 %v6710, %v6708
  %v6712 = vmul.f32 %v6711, %v6710
  %v6713 = vmul.f32 0.5, %v6712
  %v6714 = vsub.f32 1.5, %v6713
  %v6715 = vmul.f32 %v6710, %v6714
  %vm6716 = vweird.f32 %v6708
  %vm6717 = vweird.f32 %v6710
  %vm6718 = vmor %vm6716, %vm6717
  %v6719 = vsel %vm6718, %v6710, %v6715
  %v6720 = vrsqrt.pop %v6709
  %v6721 = vmul.f32 %v6720, %v6709
  %v6722 = vmul.f32 %v6721, %v6720
  %v6723 = vmul.f32 0.5, %v6722
  %v6724 = vsub.f32 1.5, %v6723
  %v6725 = vmul.f32 %v6720, %v6724
  %vm6726 = vweird.f32 %v6709
  %vm6727 = vweird.f32 %v6720
  %vm6728 = vmor %vm6726, %vm6727
  %v6729 = vsel %vm6728, %v6720, %v6725
  %v6730 = vperm.slane %v6719, 0
  %v6731 = vperm.slane %v6729, 0
  %v6732 = vmul.f32 %v6700, %v6730
  %v6733 = vmul.f32 %v6701, %v6731
  %v6734 = vmul.f32 %v6702, %v6730
  %v6735 = vmul.f32 %v6703, %v6731
  %v6736 = vmul.f32 %v6704, %v6730
  %v6737 = vmul.f32 %v6705, %v6731
  %v6738 = vmul.f32 %v6706, %v6730
  %v6739 = vmul.f32 %v6707, %v6731
  %v6740 = vpack.c.bf16 %v6734, %v6732
  %v6741 = vpack.c.bf16 %v6735, %v6733
  %v6742 = vpack.c.bf16 %v6738, %v6736
  %v6743 = vpack.c.bf16 %v6739, %v6737
  %s6744 = scalar_lea.vmem %s4, 2016
  %v6745 = vld [vmem:[%s6744] sm:$0xff]
  %v6746 = vld [vmem:[%s6744 + $0x8] sm:$0xf]
  %v6747 = vld [vmem:[%s6744 + $0xc] sm:$0xff]
  %v6748 = vld [vmem:[%s6744 + $0x14] sm:$0xf]
  %v6749 = vld [vmem:[%s6744 + $0x18] sm:$0xff]
  %v6750 = vld [vmem:[%s6744 + $0x20] sm:$0xf]
  %v6751 = vld [vmem:[%s6744 + $0x24] sm:$0xff]
  %v6752 = vld [vmem:[%s6744 + $0x2c] sm:$0xf]
  %v6753 = vld [vmem:[%s6744 + $0x30] sm:$0xff]
  %v6754 = vld [vmem:[%s6744 + $0x38] sm:$0xf]
  %v6755 = vld [vmem:[%s6744 + $0x3c] sm:$0xff]
  %v6756 = vld [vmem:[%s6744 + $0x44] sm:$0xf]
  %v6757 = vld [vmem:[%s6744 + $0x48] sm:$0xff]
  %v6758 = vld [vmem:[%s6744 + $0x50] sm:$0xf]
  %v6759 = vld [vmem:[%s6744 + $0x54] sm:$0xff]
  %v6760 = vld [vmem:[%s6744 + $0x5c] sm:$0xf]
  %v6761 = vld [vmem:[%s6744 + $0x60] sm:$0xff]
  %v6762 = vld [vmem:[%s6744 + $0x68] sm:$0xf]
  %v6763 = vld [vmem:[%s6744 + $0x6c] sm:$0xff]
  %v6764 = vld [vmem:[%s6744 + $0x74] sm:$0xf]
  %v6765 = vld [vmem:[%s6744 + $0x78] sm:$0xff]
  %v6766 = vld [vmem:[%s6744 + $0x80] sm:$0xf]
  %v6767 = vld [vmem:[%s6744 + $0x84] sm:$0xff]
  %v6768 = vld [vmem:[%s6744 + $0x8c] sm:$0xf]
  %v6769 = vld [vmem:[%s6744 + $0x90] sm:$0xff]
  %v6770 = vld [vmem:[%s6744 + $0x98] sm:$0xf]
  %v6771 = vld [vmem:[%s6744 + $0x9c] sm:$0xff]
  %v6772 = vld [vmem:[%s6744 + $0xa4] sm:$0xf]
  %v6773 = vld [vmem:[%s6744 + $0xa8] sm:$0xff]
  %v6774 = vld [vmem:[%s6744 + $0xb0] sm:$0xf]
  %v6775 = vld [vmem:[%s6744 + $0xb4] sm:$0xff]
  %v6776 = vld [vmem:[%s6744 + $0xbc] sm:$0xf]
  %v6777 = vld [vmem:[%s6744 + $0xc0] sm:$0xff]
  %v6778 = vld [vmem:[%s6744 + $0xc8] sm:$0xf]
  %v6779 = vld [vmem:[%s6744 + $0xcc] sm:$0xff]
  %v6780 = vld [vmem:[%s6744 + $0xd4] sm:$0xf]
  %v6781 = vld [vmem:[%s6744 + $0xd8] sm:$0xff]
  %v6782 = vld [vmem:[%s6744 + $0xe0] sm:$0xf]
  %v6783 = vld [vmem:[%s6744 + $0xe4] sm:$0xff]
  %v6784 = vld [vmem:[%s6744 + $0xec] sm:$0xf]
  %v6785 = vld [vmem:[%s6744 + $0xf0] sm:$0xff]
  %v6786 = vld [vmem:[%s6744 + $0xf8] sm:$0xf]
  %v6787 = vld [vmem:[%s6744 + $0xfc] sm:$0xff]
  %v6788 = vld [vmem:[%s6744 + $0x104] sm:$0xf]
  %v6789 = vld [vmem:[%s6744 + $0x108] sm:$0xff]
  %v6790 = vld [vmem:[%s6744 + $0x110] sm:$0xf]
  %v6791 = vld [vmem:[%s6744 + $0x114] sm:$0xff]
  %v6792 = vld [vmem:[%s6744 + $0x11c] sm:$0xf]
  %s6793 = scalar_lea.vmem %s5, 7
  %v6794 = vld [vmem:[%s6793] ss:$8 sm:$0x7]
  %v6796 = vperm.slane %v6794, 0
  %v6797 = vperm.slane %v6794, 1
  %v6798 = vperm.slane %v6794, 2
  %v6850 = vunpack.c.l.b16 %v6745
  %v6851 = vunpack.c.h.b16 %v6745
  %v6852 = vunpack.c.l.b16 %v6746
  %v6853 = vunpack.c.l.b16 %v6747
  %v6854 = vunpack.c.h.b16 %v6747
  %v6855 = vunpack.c.l.b16 %v6748
  %v6856 = vunpack.c.l.b16 %v6749
  %v6857 = vunpack.c.h.b16 %v6749
  %v6858 = vunpack.c.l.b16 %v6750
  %v6859 = vunpack.c.l.b16 %v6751
  %v6860 = vunpack.c.h.b16 %v6751
  %v6861 = vunpack.c.l.b16 %v6752
  %v6862 = vunpack.c.l.b16 %v6753
  %v6863 = vunpack.c.h.b16 %v6753
  %v6864 = vunpack.c.l.b16 %v6754
  %v6865 = vunpack.c.l.b16 %v6755
  %v6866 = vunpack.c.h.b16 %v6755
  %v6867 = vunpack.c.l.b16 %v6756
  %v6868 = vunpack.c.l.b16 %v6757
  %v6869 = vunpack.c.h.b16 %v6757
  %v6870 = vunpack.c.l.b16 %v6758
  %v6871 = vunpack.c.l.b16 %v6759
  %v6872 = vunpack.c.h.b16 %v6759
  %v6873 = vunpack.c.l.b16 %v6760
  %v6874 = vunpack.c.l.b16 %v6761
  %v6875 = vunpack.c.h.b16 %v6761
  %v6876 = vunpack.c.l.b16 %v6762
  %v6877 = vunpack.c.l.b16 %v6763
  %v6878 = vunpack.c.h.b16 %v6763
  %v6879 = vunpack.c.l.b16 %v6764
  %v6880 = vunpack.c.l.b16 %v6765
  %v6881 = vunpack.c.h.b16 %v6765
  %v6882 = vunpack.c.l.b16 %v6766
  %v6883 = vunpack.c.l.b16 %v6767
  %v6884 = vunpack.c.h.b16 %v6767
  %v6885 = vunpack.c.l.b16 %v6768
  %v6886 = vunpack.c.l.b16 %v6769
  %v6887 = vunpack.c.h.b16 %v6769
  %v6888 = vunpack.c.l.b16 %v6770
  %v6889 = vunpack.c.l.b16 %v6771
  %v6890 = vunpack.c.h.b16 %v6771
  %v6891 = vunpack.c.l.b16 %v6772
  %v6892 = vunpack.c.l.b16 %v6773
  %v6893 = vunpack.c.h.b16 %v6773
  %v6894 = vunpack.c.l.b16 %v6774
  %v6895 = vunpack.c.l.b16 %v6775
  %v6896 = vunpack.c.h.b16 %v6775
  %v6897 = vunpack.c.l.b16 %v6776
  %v6898 = vunpack.c.l.b16 %v6777
  %v6899 = vunpack.c.h.b16 %v6777
  %v6900 = vunpack.c.l.b16 %v6778
  %v6901 = vunpack.c.l.b16 %v6779
  %v6902 = vunpack.c.h.b16 %v6779
  %v6903 = vunpack.c.l.b16 %v6780
  %v6904 = vunpack.c.l.b16 %v6781
  %v6905 = vunpack.c.h.b16 %v6781
  %v6906 = vunpack.c.l.b16 %v6782
  %v6907 = vunpack.c.l.b16 %v6783
  %v6908 = vunpack.c.h.b16 %v6783
  %v6909 = vunpack.c.l.b16 %v6784
  %v6910 = vunpack.c.l.b16 %v6785
  %v6911 = vunpack.c.h.b16 %v6785
  %v6912 = vunpack.c.l.b16 %v6786
  %v6913 = vunpack.c.l.b16 %v6787
  %v6914 = vunpack.c.h.b16 %v6787
  %v6915 = vunpack.c.l.b16 %v6788
  %v6916 = vunpack.c.l.b16 %v6789
  %v6917 = vunpack.c.h.b16 %v6789
  %v6918 = vunpack.c.l.b16 %v6790
  %v6919 = vunpack.c.l.b16 %v6791
  %v6920 = vunpack.c.h.b16 %v6791
  %v6921 = vunpack.c.l.b16 %v6792
  %v6922 = vpack.c.b16 %v6853, %v6850
  %v6923 = vpack.c.b16 %v6854, %v6851
  %v6924 = vpack.c.b16 %v6855, %v6852
  %v6925 = vpack.c.b16 %v6859, %v6856
  %v6926 = vpack.c.b16 %v6860, %v6857
  %v6927 = vpack.c.b16 %v6861, %v6858
  %v6928 = vpack.c.b16 %v6865, %v6862
  %v6929 = vpack.c.b16 %v6866, %v6863
  %v6930 = vpack.c.b16 %v6867, %v6864
  %v6931 = vpack.c.b16 %v6871, %v6868
  %v6932 = vpack.c.b16 %v6872, %v6869
  %v6933 = vpack.c.b16 %v6873, %v6870
  %v6934 = vpack.c.b16 %v6877, %v6874
  %v6935 = vpack.c.b16 %v6878, %v6875
  %v6936 = vpack.c.b16 %v6879, %v6876
  %v6937 = vpack.c.b16 %v6883, %v6880
  %v6938 = vpack.c.b16 %v6884, %v6881
  %v6939 = vpack.c.b16 %v6885, %v6882
  %v6940 = vpack.c.b16 %v6889, %v6886
  %v6941 = vpack.c.b16 %v6890, %v6887
  %v6942 = vpack.c.b16 %v6891, %v6888
  %v6943 = vpack.c.b16 %v6895, %v6892
  %v6944 = vpack.c.b16 %v6896, %v6893
  %v6945 = vpack.c.b16 %v6897, %v6894
  %v6946 = vpack.c.b16 %v6901, %v6898
  %v6947 = vpack.c.b16 %v6902, %v6899
  %v6948 = vpack.c.b16 %v6903, %v6900
  %v6949 = vpack.c.b16 %v6907, %v6904
  %v6950 = vpack.c.b16 %v6908, %v6905
  %v6951 = vpack.c.b16 %v6909, %v6906
  %v6952 = vpack.c.b16 %v6913, %v6910
  %v6953 = vpack.c.b16 %v6914, %v6911
  %v6954 = vpack.c.b16 %v6915, %v6912
  %v6955 = vpack.c.b16 %v6919, %v6916
  %v6956 = vpack.c.b16 %v6920, %v6917
  %v6957 = vpack.c.b16 %v6921, %v6918
  %v6995 = vsel %vm43, %v6741, 0
  %v6998 = vsel %vm43, %v6743, 0
  %7000 = vmatpush.bf16.msra.mxu0 %v6943
  %7001 = vmatpush.bf16.msra.mxu0 %v6940
  %7002 = vmatpush.bf16.msra.mxu0 %v6937
  %7003 = vmatpush.bf16.msra.mxu0 %v6934
  %7004 = vmatpush.bf16.msra.mxu0 %v6931
  %7005 = vmatpush.bf16.msra.mxu0 %v6928
  %7006 = vmatpush.bf16.msra.mxu0 %v6925
  %7007 = vmatpush.bf16.msra.mxu0 %v6922
  %7008 = vmatmul.bf16.gmra.mxu0 %v6740
  %v7009 = vpop.f32.mrf.mxu0
  %v7010 = vadd.f32 %v6796, %v7009
  %v7011 = vpop.f32.mrf.mxu0
  %v7012 = vadd.f32 %v6796, %v7011
  %7013 = vmatmul.bf16.gmra.mxu0 %v6742
  %v7014 = vpop.f32.mrf.mxu0
  %v7015 = vadd.f32 %v6796, %v7014
  %v7016 = vpop.f32.mrf.mxu0
  %v7017 = vadd.f32 %v6796, %v7016
  %7018 = vdwg.mxu0
  %7019 = vmatpush.bf16.msra.mxu0 0
  %7020 = vmatpush.bf16.msra.mxu0 0
  %7021 = vmatpush.bf16.msra.mxu0 0
  %7022 = vmatpush.bf16.msra.mxu0 0
  %7023 = vmatpush.bf16.msra.mxu0 %v6955
  %7024 = vmatpush.bf16.msra.mxu0 %v6952
  %7025 = vmatpush.bf16.msra.mxu0 %v6949
  %7026 = vmatpush.bf16.msra.mxu0 %v6946
  %7027 = vmatmul.bf16.gmra.mxu0 %v6995
  %v7028 = vpop.f32.mrf.mxu0
  %v7029 = vadd.f32 %v7010, %v7028
  %v7030 = vpop.f32.mrf.mxu0
  %v7031 = vadd.f32 %v7012, %v7030
  %7032 = vmatmul.bf16.gmra.mxu0 %v6998
  %v7033 = vpop.f32.mrf.mxu0
  %v7034 = vadd.f32 %v7015, %v7033
  %v7035 = vpop.f32.mrf.mxu0
  %v7036 = vadd.f32 %v7017, %v7035
  %7037 = vdwg.mxu0
  %7038 = vmatpush.bf16.msra.mxu0 %v6944
  %7039 = vmatpush.bf16.msra.mxu0 %v6941
  %7040 = vmatpush.bf16.msra.mxu0 %v6938
  %7041 = vmatpush.bf16.msra.mxu0 %v6935
  %7042 = vmatpush.bf16.msra.mxu0 %v6932
  %7043 = vmatpush.bf16.msra.mxu0 %v6929
  %7044 = vmatpush.bf16.msra.mxu0 %v6926
  %7045 = vmatpush.bf16.msra.mxu0 %v6923
  %7046 = vmatmul.bf16.gmra.mxu0 %v6740
  %v7047 = vpop.f32.mrf.mxu0
  %v7048 = vadd.f32 %v6797, %v7047
  %v7049 = vpop.f32.mrf.mxu0
  %v7050 = vadd.f32 %v6797, %v7049
  %7051 = vmatmul.bf16.gmra.mxu0 %v6742
  %v7052 = vpop.f32.mrf.mxu0
  %v7053 = vadd.f32 %v6797, %v7052
  %v7054 = vpop.f32.mrf.mxu0
  %v7055 = vadd.f32 %v6797, %v7054
  %7056 = vdwg.mxu0
  %7057 = vmatpush.bf16.msra.mxu0 0
  %7058 = vmatpush.bf16.msra.mxu0 0
  %7059 = vmatpush.bf16.msra.mxu0 0
  %7060 = vmatpush.bf16.msra.mxu0 0
  %7061 = vmatpush.bf16.msra.mxu0 %v6956
  %7062 = vmatpush.bf16.msra.mxu0 %v6953
  %7063 = vmatpush.bf16.msra.mxu0 %v6950
  %7064 = vmatpush.bf16.msra.mxu0 %v6947
  %7065 = vmatmul.bf16.gmra.mxu0 %v6995
  %v7066 = vpop.f32.mrf.mxu0
  %v7067 = vadd.f32 %v7048, %v7066
  %v7068 = vpop.f32.mrf.mxu0
  %v7069 = vadd.f32 %v7050, %v7068
  %7070 = vmatmul.bf16.gmra.mxu0 %v6998
  %v7071 = vpop.f32.mrf.mxu0
  %v7072 = vadd.f32 %v7053, %v7071
  %v7073 = vpop.f32.mrf.mxu0
  %v7074 = vadd.f32 %v7055, %v7073
  %7075 = vdwg.mxu0
  %7076 = vmatpush.bf16.msra.mxu0 %v6945
  %7077 = vmatpush.bf16.msra.mxu0 %v6942
  %7078 = vmatpush.bf16.msra.mxu0 %v6939
  %7079 = vmatpush.bf16.msra.mxu0 %v6936
  %7080 = vmatpush.bf16.msra.mxu0 %v6933
  %7081 = vmatpush.bf16.msra.mxu0 %v6930
  %7082 = vmatpush.bf16.msra.mxu0 %v6927
  %7083 = vmatpush.bf16.msra.mxu0 %v6924
  %7084 = vmatmul.bf16.gmra.mxu0 %v6740
  %v7085 = vpop.f32.mrf.mxu0
  %v7086 = vadd.f32 %v6798, %v7085
  %v7087 = vpop.f32.mrf.mxu0
  %v7088 = vadd.f32 %v6798, %v7087
  %7089 = vmatmul.bf16.gmra.mxu0 %v6742
  %v7090 = vpop.f32.mrf.mxu0
  %v7091 = vadd.f32 %v6798, %v7090
  %v7092 = vpop.f32.mrf.mxu0
  %v7093 = vadd.f32 %v6798, %v7092
  %7094 = vdwg.mxu0
  %7095 = vmatpush.bf16.msra.mxu0 0
  %7096 = vmatpush.bf16.msra.mxu0 0
  %7097 = vmatpush.bf16.msra.mxu0 0
  %7098 = vmatpush.bf16.msra.mxu0 0
  %7099 = vmatpush.bf16.msra.mxu0 %v6957
  %7100 = vmatpush.bf16.msra.mxu0 %v6954
  %7101 = vmatpush.bf16.msra.mxu0 %v6951
  %7102 = vmatpush.bf16.msra.mxu0 %v6948
  %7103 = vmatmul.bf16.gmra.mxu0 %v6995
  %v7104 = vpop.f32.mrf.mxu0
  %v7105 = vadd.f32 %v7086, %v7104
  %v7106 = vpop.f32.mrf.mxu0
  %v7107 = vadd.f32 %v7088, %v7106
  %7108 = vmatmul.bf16.gmra.mxu0 %v6998
  %v7109 = vpop.f32.mrf.mxu0
  %v7110 = vadd.f32 %v7091, %v7109
  %v7111 = vpop.f32.mrf.mxu0
  %v7112 = vadd.f32 %v7093, %v7111
  %7113 = vdwg.mxu0
  %v7114 = vmul.f32 %v7029, 0.3
  %v7115 = vmul.f32 %v7067, 0.3
  %v7116 = vmul.f32 %v7105, 0.3
  %v7117 = vmul.f32 %v7031, 0.3
  %v7118 = vmul.f32 %v7069, 0.3
  %v7119 = vmul.f32 %v7107, 0.3
  %v7120 = vmul.f32 %v7034, 0.3
  %v7121 = vmul.f32 %v7072, 0.3
  %v7122 = vmul.f32 %v7110, 0.3
  %v7123 = vmul.f32 %v7036, 0.3
  %v7124 = vmul.f32 %v7074, 0.3
  %v7125 = vmul.f32 %v7112, 0.3
  %v7126 = vmax.f32 %v7029, %v7114
  %v7127 = vmax.f32 %v7067, %v7115
  %v7128 = vmax.f32 %v7105, %v7116
  %v7129 = vmax.f32 %v7031, %v7117
  %v7130 = vmax.f32 %v7069, %v7118
  %v7131 = vmax.f32 %v7107, %v7119
  %v7132 = vmax.f32 %v7034, %v7120
  %v7133 = vmax.f32 %v7072, %v7121
  %v7134 = vmax.f32 %v7110, %v7122
  %v7135 = vmax.f32 %v7036, %v7123
  %v7136 = vmax.f32 %v7074, %v7124
  %v7137 = vmax.f32 %v7112, %v7125
  %v7138 = vpack.c.bf16 %v7129, %v7126
  %v7139 = vpack.c.bf16 %v7130, %v7127
  %v7140 = vpack.c.bf16 %v7131, %v7128
  %v7141 = vpack.c.bf16 %v7135, %v7132
  %v7142 = vpack.c.bf16 %v7136, %v7133
  %v7143 = vpack.c.bf16 %v7137, %v7134
  %7144 = vmatpush.bf16.msra.mxu0 %v6382
  %7145 = vmatpush.bf16.msra.mxu0 %v6380
  %7146 = vmatpush.bf16.msra.mxu0 %v6378
  %7147 = vmatpush.bf16.msra.mxu0 %v6376
  %7148 = vmatpush.bf16.msra.mxu0 %v6374
  %7149 = vmatpush.bf16.msra.mxu0 %v6372
  %7150 = vmatpush.bf16.msra.mxu0 %v6370
  %7151 = vmatpush.bf16.msra.mxu0 %v6368
  %7152 = vmatmul.bf16.gmra.mxu0 %v7138
  %v7153 = vpop.f32.mrf.mxu0
  %v7154 = vadd.f32 %v6220, %v7153
  %v7155 = vpop.f32.mrf.mxu0
  %v7156 = vadd.f32 %v6220, %v7155
  %7157 = vmatmul.bf16.gmra.mxu0 %v7141
  %v7158 = vpop.f32.mrf.mxu0
  %v7159 = vadd.f32 %v6220, %v7158
  %v7160 = vpop.f32.mrf.mxu0
  %v7161 = vadd.f32 %v6220, %v7160
  %7162 = vdwg.mxu0
  %7163 = vmatpush.bf16.msra.mxu0 %v6398
  %7164 = vmatpush.bf16.msra.mxu0 %v6396
  %7165 = vmatpush.bf16.msra.mxu0 %v6394
  %7166 = vmatpush.bf16.msra.mxu0 %v6392
  %7167 = vmatpush.bf16.msra.mxu0 %v6390
  %7168 = vmatpush.bf16.msra.mxu0 %v6388
  %7169 = vmatpush.bf16.msra.mxu0 %v6386
  %7170 = vmatpush.bf16.msra.mxu0 %v6384
  %7171 = vmatmul.bf16.gmra.mxu0 %v7139
  %v7172 = vpop.f32.mrf.mxu0
  %v7173 = vadd.f32 %v7154, %v7172
  %v7174 = vpop.f32.mrf.mxu0
  %v7175 = vadd.f32 %v7156, %v7174
  %7176 = vmatmul.bf16.gmra.mxu0 %v7142
  %v7177 = vpop.f32.mrf.mxu0
  %v7178 = vadd.f32 %v7159, %v7177
  %v7179 = vpop.f32.mrf.mxu0
  %v7180 = vadd.f32 %v7161, %v7179
  %7181 = vdwg.mxu0
  %7182 = vmatpush.bf16.msra.mxu0 %v6414
  %7183 = vmatpush.bf16.msra.mxu0 %v6412
  %7184 = vmatpush.bf16.msra.mxu0 %v6410
  %7185 = vmatpush.bf16.msra.mxu0 %v6408
  %7186 = vmatpush.bf16.msra.mxu0 %v6406
  %7187 = vmatpush.bf16.msra.mxu0 %v6404
  %7188 = vmatpush.bf16.msra.mxu0 %v6402
  %7189 = vmatpush.bf16.msra.mxu0 %v6400
  %7190 = vmatmul.bf16.gmra.mxu0 %v7140
  %v7191 = vpop.f32.mrf.mxu0
  %v7192 = vadd.f32 %v7173, %v7191
  %v7193 = vpop.f32.mrf.mxu0
  %v7194 = vadd.f32 %v7175, %v7193
  %7195 = vmatmul.bf16.gmra.mxu0 %v7143
  %v7196 = vpop.f32.mrf.mxu0
  %v7197 = vadd.f32 %v7178, %v7196
  %v7198 = vpop.f32.mrf.mxu0
  %v7199 = vadd.f32 %v7180, %v7198
  %7200 = vdwg.mxu0
  %7201 = vmatpush.bf16.msra.mxu0 %v6383
  %7202 = vmatpush.bf16.msra.mxu0 %v6381
  %7203 = vmatpush.bf16.msra.mxu0 %v6379
  %7204 = vmatpush.bf16.msra.mxu0 %v6377
  %7205 = vmatpush.bf16.msra.mxu0 %v6375
  %7206 = vmatpush.bf16.msra.mxu0 %v6373
  %7207 = vmatpush.bf16.msra.mxu0 %v6371
  %7208 = vmatpush.bf16.msra.mxu0 %v6369
  %7209 = vmatmul.bf16.gmra.mxu0 %v7138
  %v7210 = vpop.f32.mrf.mxu0
  %v7211 = vadd.f32 %v6221, %v7210
  %v7212 = vpop.f32.mrf.mxu0
  %v7213 = vadd.f32 %v6221, %v7212
  %7214 = vmatmul.bf16.gmra.mxu0 %v7141
  %v7215 = vpop.f32.mrf.mxu0
  %v7216 = vadd.f32 %v6221, %v7215
  %v7217 = vpop.f32.mrf.mxu0
  %v7218 = vadd.f32 %v6221, %v7217
  %7219 = vdwg.mxu0
  %7220 = vmatpush.bf16.msra.mxu0 %v6399
  %7221 = vmatpush.bf16.msra.mxu0 %v6397
  %7222 = vmatpush.bf16.msra.mxu0 %v6395
  %7223 = vmatpush.bf16.msra.mxu0 %v6393
  %7224 = vmatpush.bf16.msra.mxu0 %v6391
  %7225 = vmatpush.bf16.msra.mxu0 %v6389
  %7226 = vmatpush.bf16.msra.mxu0 %v6387
  %7227 = vmatpush.bf16.msra.mxu0 %v6385
  %7228 = vmatmul.bf16.gmra.mxu0 %v7139
  %v7229 = vpop.f32.mrf.mxu0
  %v7230 = vadd.f32 %v7211, %v7229
  %v7231 = vpop.f32.mrf.mxu0
  %v7232 = vadd.f32 %v7213, %v7231
  %7233 = vmatmul.bf16.gmra.mxu0 %v7142
  %v7234 = vpop.f32.mrf.mxu0
  %v7235 = vadd.f32 %v7216, %v7234
  %v7236 = vpop.f32.mrf.mxu0
  %v7237 = vadd.f32 %v7218, %v7236
  %7238 = vdwg.mxu0
  %7239 = vmatpush.bf16.msra.mxu0 %v6415
  %7240 = vmatpush.bf16.msra.mxu0 %v6413
  %7241 = vmatpush.bf16.msra.mxu0 %v6411
  %7242 = vmatpush.bf16.msra.mxu0 %v6409
  %7243 = vmatpush.bf16.msra.mxu0 %v6407
  %7244 = vmatpush.bf16.msra.mxu0 %v6405
  %7245 = vmatpush.bf16.msra.mxu0 %v6403
  %7246 = vmatpush.bf16.msra.mxu0 %v6401
  %7247 = vmatmul.bf16.gmra.mxu0 %v7140
  %v7248 = vpop.f32.mrf.mxu0
  %v7249 = vadd.f32 %v7230, %v7248
  %v7250 = vpop.f32.mrf.mxu0
  %v7251 = vadd.f32 %v7232, %v7250
  %7252 = vmatmul.bf16.gmra.mxu0 %v7143
  %v7253 = vpop.f32.mrf.mxu0
  %v7254 = vadd.f32 %v7235, %v7253
  %v7255 = vpop.f32.mrf.mxu0
  %v7256 = vadd.f32 %v7237, %v7255
  %7257 = vdwg.mxu0
  %v7258 = vmul.f32 %v7192, 0.3
  %v7259 = vmul.f32 %v7249, 0.3
  %v7260 = vmul.f32 %v7194, 0.3
  %v7261 = vmul.f32 %v7251, 0.3
  %v7262 = vmul.f32 %v7197, 0.3
  %v7263 = vmul.f32 %v7254, 0.3
  %v7264 = vmul.f32 %v7199, 0.3
  %v7265 = vmul.f32 %v7256, 0.3
  %v7266 = vmax.f32 %v7192, %v7258
  %v7267 = vmax.f32 %v7249, %v7259
  %v7268 = vmax.f32 %v7194, %v7260
  %v7269 = vmax.f32 %v7251, %v7261
  %v7270 = vmax.f32 %v7197, %v7262
  %v7271 = vmax.f32 %v7254, %v7263
  %v7272 = vmax.f32 %v7199, %v7264
  %v7273 = vmax.f32 %v7256, %v7265
  %v7274 = vadd.f32 %v6594, %v7266
  %v7275 = vadd.f32 %v6595, %v7267
  %v7276 = vadd.f32 %v6596, %v7268
  %v7277 = vadd.f32 %v6597, %v7269
  %v7278 = vadd.f32 %v6598, %v7270
  %v7279 = vadd.f32 %v6599, %v7271
  %v7280 = vadd.f32 %v6600, %v7272
  %v7281 = vadd.f32 %v6601, %v7273
  %v7282 = vld [vmem:[%s1 + $0x80] sm:$0xff]
  %v7283 = vld [vmem:[%s1 + $0x88] sm:$0xff]
  %v7284 = vld [vmem:[%s1 + $0x90] sm:$0xff]
  %v7285 = vld [vmem:[%s1 + $0x98] sm:$0xff]
  %v7286 = vld [vmem:[%s1 + $0xa0] sm:$0xff]
  %v7287 = vld [vmem:[%s1 + $0xa8] sm:$0xff]
  %v7288 = vld [vmem:[%s1 + $0xb0] sm:$0xff]
  %v7289 = vld [vmem:[%s1 + $0xb8] sm:$0xff]
  %v7290 = vmul.f32 %v7274, %v619
  %v7291 = vmul.f32 %v7275, %v648
  %v7292 = vmul.f32 %v7276, %v622
  %v7293 = vmul.f32 %v7277, %v651
  %v7294 = vmul.f32 %v7278, %v625
  %v7295 = vmul.f32 %v7279, %v654
  %v7296 = vmul.f32 %v7280, %v628
  %v7297 = vmul.f32 %v7281, %v657
  %v7298 = vld [vmem:[%s1 + $0x180] sm:$0xff]
  %v7299 = vld [vmem:[%s1 + $0x188] sm:$0xff]
  %v7300 = vld [vmem:[%s1 + $0x190] sm:$0xff]
  %v7301 = vld [vmem:[%s1 + $0x198] sm:$0xff]
  %v7302 = vld [vmem:[%s1 + $0x1a0] sm:$0xff]
  %v7303 = vld [vmem:[%s1 + $0x1a8] sm:$0xff]
  %v7304 = vld [vmem:[%s1 + $0x1b0] sm:$0xff]
  %v7305 = vld [vmem:[%s1 + $0x1b8] sm:$0xff]
  %v7306 = vld [vmem:[%s1 + $0x1c0] sm:$0xff]
  %v7307 = vld [vmem:[%s1 + $0x1c8] sm:$0xff]
  %v7308 = vld [vmem:[%s1 + $0x1d0] sm:$0xff]
  %v7309 = vld [vmem:[%s1 + $0x1d8] sm:$0xff]
  %v7310 = vld [vmem:[%s1 + $0x1e0] sm:$0xff]
  %v7311 = vld [vmem:[%s1 + $0x1e8] sm:$0xff]
  %v7312 = vld [vmem:[%s1 + $0x1f0] sm:$0xff]
  %v7313 = vld [vmem:[%s1 + $0x1f8] sm:$0xff]
  %v7314 = vld [vmem:[%s1 + $0x200] sm:$0xff]
  %v7315 = vld [vmem:[%s1 + $0x208] sm:$0xff]
  %v7316 = vld [vmem:[%s1 + $0x210] sm:$0xff]
  %v7317 = vld [vmem:[%s1 + $0x218] sm:$0xff]
  %v7318 = vld [vmem:[%s1 + $0x220] sm:$0xff]
  %v7319 = vld [vmem:[%s1 + $0x228] sm:$0xff]
  %v7320 = vld [vmem:[%s1 + $0x230] sm:$0xff]
  %v7321 = vld [vmem:[%s1 + $0x238] sm:$0xff]
  %v7323 = vsel %vm43, %v7291, 0
  %v7326 = vsel %vm43, %v7293, 0
  %v7329 = vsel %vm43, %v7295, 0
  %v7332 = vsel %vm43, %v7297, 0
  %7334 = vmatpush.msra.mxu0 %v7313
  %7335 = vmatpush.msra.mxu0 %v7312
  %7336 = vmatpush.msra.mxu0 %v7311
  %7337 = vmatpush.msra.mxu0 %v7310
  %7338 = vmatpush.msra.mxu0 %v7309
  %7339 = vmatpush.msra.mxu0 %v7308
  %7340 = vmatpush.msra.mxu0 %v7307
  %7341 = vmatpush.msra.mxu0 %v7306
  %7342 = vmatpush.msra.mxu0 %v7305
  %7343 = vmatpush.msra.mxu0 %v7304
  %7344 = vmatpush.msra.mxu0 %v7303
  %7345 = vmatpush.msra.mxu0 %v7302
  %7346 = vmatpush.msra.mxu0 %v7301
  %7347 = vmatpush.msra.mxu0 %v7300
  %7348 = vmatpush.msra.mxu0 %v7299
  %7349 = vmatpush.msra.mxu0 %v7298
  %7350 = vmatmul.f32.gmra.mxu0 %v7290
  %v7351 = vpop.f32.mrf.mxu0
  %v7352 = vadd.f32 0.0, %v7351
  %7353 = vmatmul.f32.gmra.mxu0 %v7292
  %v7354 = vpop.f32.mrf.mxu0
  %v7355 = vadd.f32 0.0, %v7354
  %7356 = vmatmul.f32.gmra.mxu0 %v7294
  %v7357 = vpop.f32.mrf.mxu0
  %v7358 = vadd.f32 0.0, %v7357
  %7359 = vmatmul.f32.gmra.mxu0 %v7296
  %v7360 = vpop.f32.mrf.mxu0
  %v7361 = vadd.f32 0.0, %v7360
  %7362 = vdwg.mxu0
  %7363 = vmatpush.msra.mxu0 0.0
  %7364 = vmatpush.msra.mxu0 0.0
  %7365 = vmatpush.msra.mxu0 0.0
  %7366 = vmatpush.msra.mxu0 0.0
  %7367 = vmatpush.msra.mxu0 0.0
  %7368 = vmatpush.msra.mxu0 0.0
  %7369 = vmatpush.msra.mxu0 0.0
  %7370 = vmatpush.msra.mxu0 0.0
  %7371 = vmatpush.msra.mxu0 %v7321
  %7372 = vmatpush.msra.mxu0 %v7320
  %7373 = vmatpush.msra.mxu0 %v7319
  %7374 = vmatpush.msra.mxu0 %v7318
  %7375 = vmatpush.msra.mxu0 %v7317
  %7376 = vmatpush.msra.mxu0 %v7316
  %7377 = vmatpush.msra.mxu0 %v7315
  %7378 = vmatpush.msra.mxu0 %v7314
  %7379 = vmatmul.f32.gmra.mxu0 %v7323
  %v7380 = vpop.f32.mrf.mxu0
  %v7381 = vadd.f32 %v7352, %v7380
  %7382 = vmatmul.f32.gmra.mxu0 %v7326
  %v7383 = vpop.f32.mrf.mxu0
  %v7384 = vadd.f32 %v7355, %v7383
  %7385 = vmatmul.f32.gmra.mxu0 %v7329
  %v7386 = vpop.f32.mrf.mxu0
  %v7387 = vadd.f32 %v7358, %v7386
  %7388 = vmatmul.f32.gmra.mxu0 %v7332
  %v7389 = vpop.f32.mrf.mxu0
  %v7390 = vadd.f32 %v7361, %v7389
  %7391 = vdwg.mxu0
  %7392 = vmatpush.msra.mxu0 0.0
  %7393 = vmatpush.msra.mxu0 0.0
  %7394 = vmatpush.msra.mxu0 0.0
  %7395 = vmatpush.msra.mxu0 0.0
  %7396 = vmatpush.msra.mxu0 0.0
  %7397 = vmatpush.msra.mxu0 0.0
  %7398 = vmatpush.msra.mxu0 0.0
  %7399 = vmatpush.msra.mxu0 0.0
  %7400 = vmatpush.msra.mxu0 %v7289
  %7401 = vmatpush.msra.mxu0 %v7288
  %7402 = vmatpush.msra.mxu0 %v7287
  %7403 = vmatpush.msra.mxu0 %v7286
  %7404 = vmatpush.msra.mxu0 %v7285
  %7405 = vmatpush.msra.mxu0 %v7284
  %7406 = vmatpush.msra.mxu0 %v7283
  %7407 = vmatpush.msra.mxu0 %v7282
  %7408 = vmatmul.f32.gmra.mxu0 %v192
  %v7409 = vpop.f32.mrf.mxu0
  %v7410 = vadd.f32 %v7381, %v7409
  %7411 = vmatmul.f32.gmra.mxu0 %v195
  %v7412 = vpop.f32.mrf.mxu0
  %v7413 = vadd.f32 %v7384, %v7412
  %7414 = vmatmul.f32.gmra.mxu0 %v198
  %v7415 = vpop.f32.mrf.mxu0
  %v7416 = vadd.f32 %v7387, %v7415
  %7417 = vmatmul.f32.gmra.mxu0 %v201
  %v7418 = vpop.f32.mrf.mxu0
  %v7419 = vadd.f32 %v7390, %v7418
  %7420 = vdwg.mxu0
  %v7421 = vld [vmem:[%s3 + $0x2] ss:$0 sm:$0xff]
  %v7422 = vadd.f32 %v7410, %v7421
  %v7423 = vadd.f32 %v7413, %v7421
  %v7424 = vadd.f32 %v7416, %v7421
  %v7425 = vadd.f32 %v7419, %v7421
  %7426 = vst.msk [vmem:[%s8] sm:$0xff] %vm43, %v7422
  %7427 = vst.msk [vmem:[%s8 + $0x8] sm:$0xff] %vm43, %v7423
  %7428 = vst.msk [vmem:[%s8 + $0x10] sm:$0xff] %vm43, %v7424
  %7429 = vst.msk [vmem:[%s8 + $0x18] sm:$0xff] %vm43, %v7425
  // Predicated region
  $region34: #{model_forward.1} parent=0 // pred_check
    _
  $region35: #{model_forward.1} parent=0 // pred_check_branch
    %7431 = sbr.rel (0) target = $region37
  $region36: #{model_forward.1} parent=0 // pred_region
    _
  $region37: #{model_forward.1} parent=0 // pred_fallthru
    _
  // Predicated region
  $region38: #{model_forward.1} parent=0 // pred_check
    _
  $region39: #{model_forward.1} parent=0 // pred_check_branch
    %7433 = sbr.rel (0) target = $region41
  $region40: #{model_forward.1} parent=0 // pred_region
    _
  $region41: #{model_forward.1} parent=0 // pred_fallthru
    _

</llo_original>
